<compile_context>
chip_gen: v6e
topology: v6e:2x2x1
jax: 0.10.0
libtpu: 0.0.40
codegen_flags: <defaults>
</compile_context>

<pallas_src>
import jax
import jax.numpy as jnp
from jax import lax
from jax.experimental import pallas as pl
from jax.experimental.pallas import tpu as pltpu


# ----------------------------------------------------------------------------
# Pallas kernels
# ----------------------------------------------------------------------------
def _bidir_lstm_layer_kernel(x_ref, wih_ref, whh_ref, b_ref, out_ref, gx_ref):
    """One direction of a bidirectional LSTM layer; grid axis 0 = direction.

    x_ref:   (T, B, D_in)   time-major input, shared by both directions
    wih_ref: (D_in, 4H)     this direction's input weights   (direction dim squeezed)
    whh_ref: (H, 4H)        this direction's recurrent weights
    b_ref:   (1, 4H)        b_ih + b_hh
    out_ref: (T, B, H)      per-timestep hidden states, at ORIGINAL time positions
    gx_ref:  (T, B, 4H)     VMEM scratch: hoisted input projection.

    Gate order matches PyTorch: i, f, g, o.  Initial h/c are zero.
    """
    direction = pl.program_id(0)                      # 0 = forward, 1 = reverse
    T, B, D = x_ref.shape
    H = whh_ref.shape[0]

    # ---- Hoisted input projection: one big MXU matmul + one bias broadcast ----
    gx = jnp.dot(x_ref[...].reshape(T * B, D), wih_ref[...],
                 preferred_element_type=jnp.float32) + b_ref[...]
    gx_ref[...] = gx.reshape(T, B, 4 * H)

    # ---- Recurrence: h/c carried in registers, only h @ W_hh per step ----
    def step(s, carry):
        h, c = carry
        # forward walks t = s; reverse walks t = T-1-s and writes to slot t.
        t = jnp.where(direction == 0, s, T - 1 - s)
        gates = gx_ref[t] + jnp.dot(h, whh_ref[...],
                                    preferred_element_type=jnp.float32)  # (B, 4H)
        i = jax.nn.sigmoid(gates[:, 0 * H:1 * H])
        f = jax.nn.sigmoid(gates[:, 1 * H:2 * H])
        g = jnp.tanh(gates[:, 2 * H:3 * H])
        o = jax.nn.sigmoid(gates[:, 3 * H:4 * H])
        c = f * c + i * g
        h = o * jnp.tanh(c)
        out_ref[t] = h
        return (h, c)

    h0 = jnp.zeros((B, H), jnp.float32)
    c0 = jnp.zeros((B, H), jnp.float32)
    lax.fori_loop(0, T, step, (h0, c0), unroll=True)


def _fc_kernel(x_ref, w_ref, b_ref, o_ref):
    o_ref[...] = (jnp.dot(x_ref[...], w_ref[...],
                          preferred_element_type=jnp.float32) + b_ref[...])


# ----------------------------------------------------------------------------
# Wrappers
# ----------------------------------------------------------------------------
def bidir_lstm_layer(x_tm, w_ih, w_hh, b):
    """x_tm: (T, B, D_in); stacked per-direction weights:
         w_ih (2, D_in, 4H), w_hh (2, H, 4H), b (2, 1, 4H).
    Returns (T, B, 2H) with [fwd | rev] concatenated on the feature dim."""
    T, B, D = x_tm.shape
    H = w_hh.shape[1]
    out = pl.pallas_call(
        _bidir_lstm_layer_kernel,
        out_shape=jax.ShapeDtypeStruct((2, T, B, H), jnp.float32),
        grid_spec=pltpu.PrefetchScalarGridSpec(
            num_scalar_prefetch=0,
            grid=(2,),                                           # direction axis
            in_specs=[
                # x: same block for both directions -> fetched into VMEM once.
                pl.BlockSpec((T, B, D), lambda d: (0, 0, 0)),
                pl.BlockSpec((None, D, 4 * H), lambda d: (d, 0, 0)),
                pl.BlockSpec((None, H, 4 * H), lambda d: (d, 0, 0)),
                pl.BlockSpec((None, 1, 4 * H), lambda d: (d, 0, 0)),
            ],
            out_specs=pl.BlockSpec((None, T, B, H), lambda d: (d, 0, 0, 0)),
            scratch_shapes=[pltpu.VMEM((T, B, 4 * H), jnp.float32)],  # gates_x
        ),
        compiler_params=pltpu.CompilerParams(
            # Directions are independent: on v7x the two grid steps can be
            # split across the two TensorCores.
            dimension_semantics=("parallel",),
        ),
    )(x_tm, w_ih, w_hh, b)
    # (2, T, B, H) -> (T, B, 2H), PyTorch ordering [forward | reverse] per step.
    return jnp.concatenate([out[0], out[1]], axis=-1)


def fc_layer(x, w, b):
    B = x.shape[0]
    N = w.shape[1]
    return pl.pallas_call(
        _fc_kernel,
        out_shape=jax.ShapeDtypeStruct((B, N), jnp.float32),
        in_specs=[pl.BlockSpec(memory_space=pltpu.MemorySpace.VMEM)] * 3,
        out_specs=pl.BlockSpec(memory_space=pltpu.MemorySpace.VMEM),
    )(x, w, b)


def init_params(key, in_size, h_size, num_layers, num_classes):
    """Deterministic synthetic parameters (PyTorch-style uniform(-1/sqrt(H), 1/sqrt(H))),
    stacked per direction so each layer is a single pallas_call."""
    params = {"layers": []}
    k = 1.0 / jnp.sqrt(jnp.float32(h_size))
    for layer in range(num_layers):
        d_in = in_size if layer == 0 else 2 * h_size
        w_ih_d, w_hh_d, b_d = [], [], []
        for _direction in range(2):          # 0 = forward, 1 = reverse
            key, k1, k2, k3, k4 = jax.random.split(key, 5)
            w_ih_d.append(jax.random.uniform(k1, (d_in, 4 * h_size), jnp.float32, -k, k))
            w_hh_d.append(jax.random.uniform(k2, (h_size, 4 * h_size), jnp.float32, -k, k))
            b_ih = jax.random.uniform(k3, (4 * h_size,), jnp.float32, -k, k)
            b_hh = jax.random.uniform(k4, (4 * h_size,), jnp.float32, -k, k)
            b_d.append((b_ih + b_hh).reshape(1, 4 * h_size))
        params["layers"].append({
            "w_ih": jnp.stack(w_ih_d),        # (2, D_in, 4H)
            "w_hh": jnp.stack(w_hh_d),        # (2, H,   4H)
            "b":    jnp.stack(b_d),           # (2, 1,   4H)
        })
    key, kf1, kf2 = jax.random.split(key, 3)
    kf = 1.0 / jnp.sqrt(jnp.float32(2 * h_size))
    params["fc_w"] = jax.random.uniform(kf1, (2 * h_size, num_classes), jnp.float32, -kf, kf)
    params["fc_b"] = jax.random.uniform(kf2, (1, num_classes), jnp.float32, -kf, kf)
    return params


def blstm_forward(params, x):
    """x: (B, T, in_size) -> (B, num_classes).  Matches BLSTM.forward with zero h_0/c_0."""
    x_tm = jnp.transpose(x, (1, 0, 2)).astype(jnp.float32)        # (T, B, D)
    for layer in params["layers"]:
        x_tm = bidir_lstm_layer(x_tm, layer["w_ih"], layer["w_hh"], layer["b"])
    last = x_tm[-1]                                               # == PyTorch x[:, -1, :]
    return fc_layer(last, params["fc_w"], params["fc_b"])


# ----------------------------------------------------------------------------
# Pure-JAX reference (for correctness check)
# ----------------------------------------------------------------------------
def _lstm_dir_ref(x_tm, w_ih, w_hh, b, reverse):
    T, B, _ = x_tm.shape
    H = w_hh.shape[0]
    h = jnp.zeros((B, H), jnp.float32)
    c = jnp.zeros((B, H), jnp.float32)
    outs = [None] * T
    time_order = range(T - 1, -1, -1) if reverse else range(T)
    for t in time_order:
        gates = x_tm[t] @ w_ih + h @ w_hh + b
        i = jax.nn.sigmoid(gates[:, :H])
        f = jax.nn.sigmoid(gates[:, H:2 * H])
        g = jnp.tanh(gates[:, 2 * H:3 * H])
        o = jax.nn.sigmoid(gates[:, 3 * H:])
        c = f * c + i * g
        h = o * jnp.tanh(c)
        outs[t] = h
    return jnp.stack(outs)


def blstm_ref(params, x):
    x_tm = jnp.transpose(x, (1, 0, 2)).astype(jnp.float32)
    for layer in params["layers"]:
        h_fwd = _lstm_dir_ref(x_tm, layer["w_ih"][0], layer["w_hh"][0], layer["b"][0], False)
        h_rev = _lstm_dir_ref(x_tm, layer["w_ih"][1], layer["w_hh"][1], layer["b"][1], True)
        x_tm = jnp.concatenate([h_fwd, h_rev], axis=-1)
    return x_tm[-1] @ params["fc_w"] + params["fc_b"]


# ----------------------------------------------------------------------------
if __name__ == "__main__":
    # Small shapes consistent with the module, chosen lane/sublane aligned:
    # B multiple of 8 (sublanes), H multiple of 128 (lanes); in_size = 28 as in the spec.
    B, T, IN_SIZE, H_SIZE, NUM_LAYERS, NUM_CLASSES = 8, 8, 28, 128, 2, 10

    key = jax.random.PRNGKey(0)
    kp, kx = jax.random.split(key)
    params = init_params(kp, IN_SIZE, H_SIZE, NUM_LAYERS, NUM_CLASSES)
    x = jax.random.normal(kx, (B, T, IN_SIZE), jnp.float32)

    out = jax.jit(blstm_forward)(params, x)
    out = jax.block_until_ready(out)

    ref = blstm_ref(params, x)
    assert out.shape == (B, NUM_CLASSES)
    assert jnp.allclose(out, ref, atol=2e-3, rtol=2e-3), "Pallas output mismatch vs reference"

    print("KERNEL_OK")
</pallas_src>

<mosaic_0001>
module attributes {stable_mosaic.version = 11 : i64} {
  func.func @_bidir_lstm_layer_kernel(%arg0: i32, %arg1: memref<8x8x28xf32, #tpu.memory_space<vmem>>, %arg2: memref<1x28x512xf32, #tpu.memory_space<vmem>>, %arg3: memref<1x128x512xf32, #tpu.memory_space<vmem>>, %arg4: memref<1x1x512xf32, #tpu.memory_space<vmem>>, %arg5: memref<1x8x8x128xf32, #tpu.memory_space<vmem>>, %arg6: memref<8x8x512xf32, #tpu.memory_space<vmem>>) attributes {dimension_semantics = [#tpu.dimension_semantics<parallel>], iteration_bounds = array<i64: 2>, scalar_prefetch = 0 : i64, scratch_operands = 1 : i64, tpu.core_type = #tpu.core_type<tc>, window_params = [{pipeline_mode = #tpu.pipeline_mode<synchronous>, transform_indices = @transform_0, window_bounds = array<i64: 8, 8, 28>}, {transform_indices = @transform_1, window_bounds = array<i64: 1, 28, 512>}, {transform_indices = @transform_2, window_bounds = array<i64: 1, 128, 512>}, {transform_indices = @transform_3, window_bounds = array<i64: 1, 1, 512>}, {transform_indices = @transform_4, window_bounds = array<i64: 1, 8, 8, 128>}]} {
    %c0 = arith.constant 0 : index
    %c0_0 = arith.constant 0 : index
    %c0_1 = arith.constant 0 : index
    %0 = vector.load %arg1[%c0, %c0_0, %c0_1] : memref<8x8x28xf32, #tpu.memory_space<vmem>>, vector<8x8x28xf32>
    %1 = vector.shape_cast %0 : vector<8x8x28xf32> to vector<64x28xf32>
    %c0_2 = arith.constant 0 : index
    %c0_3 = arith.constant 0 : index
    %c0_4 = arith.constant 0 : index
    %2 = vector.load %arg2[%c0_2, %c0_3, %c0_4] : memref<1x28x512xf32, #tpu.memory_space<vmem>>, vector<1x28x512xf32>
    %3 = vector.shape_cast %2 : vector<1x28x512xf32> to vector<28x512xf32>
    %cst = arith.constant dense<0.000000e+00> : vector<64x512xf32>
    %4 = tpu.matmul %1, %3, %cst {dimension_numbers = #tpu.dot_dimension_numbers<[1], [0], [0], [1], [0, 0, 1, 1], [], []>} : vector<64x28xf32>, vector<28x512xf32>, vector<64x512xf32> -> vector<64x512xf32>
    %c0_5 = arith.constant 0 : index
    %c0_6 = arith.constant 0 : index
    %c0_7 = arith.constant 0 : index
    %5 = vector.load %arg4[%c0_5, %c0_6, %c0_7] : memref<1x1x512xf32, #tpu.memory_space<vmem>>, vector<1x1x512xf32>
    %6 = vector.shape_cast %5 : vector<1x1x512xf32> to vector<1x512xf32>
    %7 = vector.broadcast %6 : vector<1x512xf32> to vector<64x512xf32>
    %8 = arith.addf %4, %7 : vector<64x512xf32>
    %9 = vector.shape_cast %8 : vector<64x512xf32> to vector<8x8x512xf32>
    %c0_8 = arith.constant 0 : index
    %c0_9 = arith.constant 0 : index
    %c0_10 = arith.constant 0 : index
    %10 = vector.load %arg6[%c0_8, %c0_9, %c0_10] : memref<8x8x512xf32, #tpu.memory_space<vmem>>, vector<8x8x512xf32>
    tpu.vector_store %arg6[%c0_8, %c0_9, %c0_10], %9 {strides = array<i32>} : memref<8x8x512xf32, #tpu.memory_space<vmem>>, vector<8x8x512xf32>,
    %cst_11 = arith.constant 0.000000e+00 : f32
    %11 = vector.broadcast %cst_11 : f32 to vector<8x128xf32>
    %cst_12 = arith.constant 0.000000e+00 : f32
    %12 = vector.broadcast %cst_12 : f32 to vector<8x128xf32>
    %c0_i32 = arith.constant 0 : i32
    %c0_i32_13 = arith.constant 0 : i32
    %13 = arith.cmpi eq, %arg0, %c0_i32_13 : i32
    %c7_i32 = arith.constant 7 : i32
    %14 = arith.subi %c7_i32, %c0_i32 : i32
    %15 = arith.select %13, %c0_i32, %14 : i32
    %16 = arith.index_cast %15 : i32 to index
    %c0_14 = arith.constant 0 : index
    %c0_15 = arith.constant 0 : index
    %17 = vector.load %arg6[%16, %c0_14, %c0_15] : memref<8x8x512xf32, #tpu.memory_space<vmem>>, vector<1x8x512xf32>
    %18 = vector.shape_cast %17 : vector<1x8x512xf32> to vector<8x512xf32>
    %c0_16 = arith.constant 0 : index
    %c0_17 = arith.constant 0 : index
    %c0_18 = arith.constant 0 : index
    %19 = vector.load %arg3[%c0_16, %c0_17, %c0_18] : memref<1x128x512xf32, #tpu.memory_space<vmem>>, vector<1x128x512xf32>
    %20 = vector.shape_cast %19 : vector<1x128x512xf32> to vector<128x512xf32>
    %cst_19 = arith.constant dense<0.000000e+00> : vector<8x512xf32>
    %21 = tpu.matmul %11, %20, %cst_19 {dimension_numbers = #tpu.dot_dimension_numbers<[1], [0], [0], [1], [0, 0, 1, 1], [], []>} : vector<8x128xf32>, vector<128x512xf32>, vector<8x512xf32> -> vector<8x512xf32>
    %22 = arith.addf %18, %21 : vector<8x512xf32>
    %23 = vector.extract_strided_slice %22 {offsets = [0, 0], sizes = [8, 128], strides = [1, 1]} : vector<8x512xf32> to vector<8x128xf32>
    %24 = arith.negf %23 : vector<8x128xf32>
    %25 = math.exp %24 : vector<8x128xf32>
    %cst_20 = arith.constant 1.000000e+00 : f32
    %26 = vector.broadcast %cst_20 : f32 to vector<8x128xf32>
    %27 = arith.addf %26, %25 : vector<8x128xf32>
    %28 = arith.divf %26, %27 : vector<8x128xf32>
    %29 = vector.extract_strided_slice %22 {offsets = [0, 128], sizes = [8, 128], strides = [1, 1]} : vector<8x512xf32> to vector<8x128xf32>
    %30 = arith.negf %29 : vector<8x128xf32>
    %31 = math.exp %30 : vector<8x128xf32>
    %cst_21 = arith.constant 1.000000e+00 : f32
    %32 = vector.broadcast %cst_21 : f32 to vector<8x128xf32>
    %33 = arith.addf %32, %31 : vector<8x128xf32>
    %34 = arith.divf %32, %33 : vector<8x128xf32>
    %35 = vector.extract_strided_slice %22 {offsets = [0, 256], sizes = [8, 128], strides = [1, 1]} : vector<8x512xf32> to vector<8x128xf32>
    %36 = math.tanh %35 : vector<8x128xf32>
    %37 = vector.extract_strided_slice %22 {offsets = [0, 384], sizes = [8, 128], strides = [1, 1]} : vector<8x512xf32> to vector<8x128xf32>
    %38 = arith.negf %37 : vector<8x128xf32>
    %39 = math.exp %38 : vector<8x128xf32>
    %cst_22 = arith.constant 1.000000e+00 : f32
    %40 = vector.broadcast %cst_22 : f32 to vector<8x128xf32>
    %41 = arith.addf %40, %39 : vector<8x128xf32>
    %42 = arith.divf %40, %41 : vector<8x128xf32>
    %43 = arith.mulf %34, %12 : vector<8x128xf32>
    %44 = arith.mulf %28, %36 : vector<8x128xf32>
    %45 = arith.addf %43, %44 : vector<8x128xf32>
    %46 = math.tanh %45 : vector<8x128xf32>
    %47 = arith.mulf %42, %46 : vector<8x128xf32>
    %c0_23 = arith.constant 0 : index
    %48 = arith.index_cast %15 : i32 to index
    %c0_24 = arith.constant 0 : index
    %c0_25 = arith.constant 0 : index
    %49 = vector.load %arg5[%c0_23, %48, %c0_24, %c0_25] : memref<1x8x8x128xf32, #tpu.memory_space<vmem>>, vector<1x1x8x128xf32>
    %50 = vector.shape_cast %49 : vector<1x1x8x128xf32> to vector<8x128xf32>
    %51 = vector.shape_cast %47 : vector<8x128xf32> to vector<1x1x8x128xf32>
    tpu.vector_store %arg5[%c0_23, %48, %c0_24, %c0_25], %51 {strides = array<i32>} : memref<1x8x8x128xf32, #tpu.memory_space<vmem>>, vector<1x1x8x128xf32>,
    %c1_i32 = arith.constant 1 : i32
    %c0_i32_26 = arith.constant 0 : i32
    %52 = arith.cmpi eq, %arg0, %c0_i32_26 : i32
    %c7_i32_27 = arith.constant 7 : i32
    %53 = arith.subi %c7_i32_27, %c1_i32 : i32
    %54 = arith.select %52, %c1_i32, %53 : i32
    %55 = arith.index_cast %54 : i32 to index
    %c0_28 = arith.constant 0 : index
    %c0_29 = arith.constant 0 : index
    %56 = vector.load %arg6[%55, %c0_28, %c0_29] : memref<8x8x512xf32, #tpu.memory_space<vmem>>, vector<1x8x512xf32>
    %57 = vector.shape_cast %56 : vector<1x8x512xf32> to vector<8x512xf32>
    %c0_30 = arith.constant 0 : index
    %c0_31 = arith.constant 0 : index
    %c0_32 = arith.constant 0 : index
    %58 = vector.load %arg3[%c0_30, %c0_31, %c0_32] : memref<1x128x512xf32, #tpu.memory_space<vmem>>, vector<1x128x512xf32>
    %59 = vector.shape_cast %58 : vector<1x128x512xf32> to vector<128x512xf32>
    %cst_33 = arith.constant dense<0.000000e+00> : vector<8x512xf32>
    %60 = tpu.matmul %47, %59, %cst_33 {dimension_numbers = #tpu.dot_dimension_numbers<[1], [0], [0], [1], [0, 0, 1, 1], [], []>} : vector<8x128xf32>, vector<128x512xf32>, vector<8x512xf32> -> vector<8x512xf32>
    %61 = arith.addf %57, %60 : vector<8x512xf32>
    %62 = vector.extract_strided_slice %61 {offsets = [0, 0], sizes = [8, 128], strides = [1, 1]} : vector<8x512xf32> to vector<8x128xf32>
    %63 = arith.negf %62 : vector<8x128xf32>
    %64 = math.exp %63 : vector<8x128xf32>
    %cst_34 = arith.constant 1.000000e+00 : f32
    %65 = vector.broadcast %cst_34 : f32 to vector<8x128xf32>
    %66 = arith.addf %65, %64 : vector<8x128xf32>
    %67 = arith.divf %65, %66 : vector<8x128xf32>
    %68 = vector.extract_strided_slice %61 {offsets = [0, 128], sizes = [8, 128], strides = [1, 1]} : vector<8x512xf32> to vector<8x128xf32>
    %69 = arith.negf %68 : vector<8x128xf32>
    %70 = math.exp %69 : vector<8x128xf32>
    %cst_35 = arith.constant 1.000000e+00 : f32
    %71 = vector.broadcast %cst_35 : f32 to vector<8x128xf32>
    %72 = arith.addf %71, %70 : vector<8x128xf32>
    %73 = arith.divf %71, %72 : vector<8x128xf32>
    %74 = vector.extract_strided_slice %61 {offsets = [0, 256], sizes = [8, 128], strides = [1, 1]} : vector<8x512xf32> to vector<8x128xf32>
    %75 = math.tanh %74 : vector<8x128xf32>
    %76 = vector.extract_strided_slice %61 {offsets = [0, 384], sizes = [8, 128], strides = [1, 1]} : vector<8x512xf32> to vector<8x128xf32>
    %77 = arith.negf %76 : vector<8x128xf32>
    %78 = math.exp %77 : vector<8x128xf32>
    %cst_36 = arith.constant 1.000000e+00 : f32
    %79 = vector.broadcast %cst_36 : f32 to vector<8x128xf32>
    %80 = arith.addf %79, %78 : vector<8x128xf32>
    %81 = arith.divf %79, %80 : vector<8x128xf32>
    %82 = arith.mulf %73, %45 : vector<8x128xf32>
    %83 = arith.mulf %67, %75 : vector<8x128xf32>
    %84 = arith.addf %82, %83 : vector<8x128xf32>
    %85 = math.tanh %84 : vector<8x128xf32>
    %86 = arith.mulf %81, %85 : vector<8x128xf32>
    %c0_37 = arith.constant 0 : index
    %87 = arith.index_cast %54 : i32 to index
    %c0_38 = arith.constant 0 : index
    %c0_39 = arith.constant 0 : index
    %88 = vector.load %arg5[%c0_37, %87, %c0_38, %c0_39] : memref<1x8x8x128xf32, #tpu.memory_space<vmem>>, vector<1x1x8x128xf32>
    %89 = vector.shape_cast %88 : vector<1x1x8x128xf32> to vector<8x128xf32>
    %90 = vector.shape_cast %86 : vector<8x128xf32> to vector<1x1x8x128xf32>
    tpu.vector_store %arg5[%c0_37, %87, %c0_38, %c0_39], %90 {strides = array<i32>} : memref<1x8x8x128xf32, #tpu.memory_space<vmem>>, vector<1x1x8x128xf32>,
    %c2_i32 = arith.constant 2 : i32
    %c0_i32_40 = arith.constant 0 : i32
    %91 = arith.cmpi eq, %arg0, %c0_i32_40 : i32
    %c7_i32_41 = arith.constant 7 : i32
    %92 = arith.subi %c7_i32_41, %c2_i32 : i32
    %93 = arith.select %91, %c2_i32, %92 : i32
    %94 = arith.index_cast %93 : i32 to index
    %c0_42 = arith.constant 0 : index
    %c0_43 = arith.constant 0 : index
    %95 = vector.load %arg6[%94, %c0_42, %c0_43] : memref<8x8x512xf32, #tpu.memory_space<vmem>>, vector<1x8x512xf32>
    %96 = vector.shape_cast %95 : vector<1x8x512xf32> to vector<8x512xf32>
    %c0_44 = arith.constant 0 : index
    %c0_45 = arith.constant 0 : index
    %c0_46 = arith.constant 0 : index
    %97 = vector.load %arg3[%c0_44, %c0_45, %c0_46] : memref<1x128x512xf32, #tpu.memory_space<vmem>>, vector<1x128x512xf32>
    %98 = vector.shape_cast %97 : vector<1x128x512xf32> to vector<128x512xf32>
    %cst_47 = arith.constant dense<0.000000e+00> : vector<8x512xf32>
    %99 = tpu.matmul %86, %98, %cst_47 {dimension_numbers = #tpu.dot_dimension_numbers<[1], [0], [0], [1], [0, 0, 1, 1], [], []>} : vector<8x128xf32>, vector<128x512xf32>, vector<8x512xf32> -> vector<8x512xf32>
    %100 = arith.addf %96, %99 : vector<8x512xf32>
    %101 = vector.extract_strided_slice %100 {offsets = [0, 0], sizes = [8, 128], strides = [1, 1]} : vector<8x512xf32> to vector<8x128xf32>
    %102 = arith.negf %101 : vector<8x128xf32>
    %103 = math.exp %102 : vector<8x128xf32>
    %cst_48 = arith.constant 1.000000e+00 : f32
    %104 = vector.broadcast %cst_48 : f32 to vector<8x128xf32>
    %105 = arith.addf %104, %103 : vector<8x128xf32>
    %106 = arith.divf %104, %105 : vector<8x128xf32>
    %107 = vector.extract_strided_slice %100 {offsets = [0, 128], sizes = [8, 128], strides = [1, 1]} : vector<8x512xf32> to vector<8x128xf32>
    %108 = arith.negf %107 : vector<8x128xf32>
    %109 = math.exp %108 : vector<8x128xf32>
    %cst_49 = arith.constant 1.000000e+00 : f32
    %110 = vector.broadcast %cst_49 : f32 to vector<8x128xf32>
    %111 = arith.addf %110, %109 : vector<8x128xf32>
    %112 = arith.divf %110, %111 : vector<8x128xf32>
    %113 = vector.extract_strided_slice %100 {offsets = [0, 256], sizes = [8, 128], strides = [1, 1]} : vector<8x512xf32> to vector<8x128xf32>
    %114 = math.tanh %113 : vector<8x128xf32>
    %115 = vector.extract_strided_slice %100 {offsets = [0, 384], sizes = [8, 128], strides = [1, 1]} : vector<8x512xf32> to vector<8x128xf32>
    %116 = arith.negf %115 : vector<8x128xf32>
    %117 = math.exp %116 : vector<8x128xf32>
    %cst_50 = arith.constant 1.000000e+00 : f32
    %118 = vector.broadcast %cst_50 : f32 to vector<8x128xf32>
    %119 = arith.addf %118, %117 : vector<8x128xf32>
    %120 = arith.divf %118, %119 : vector<8x128xf32>
    %121 = arith.mulf %112, %84 : vector<8x128xf32>
    %122 = arith.mulf %106, %114 : vector<8x128xf32>
    %123 = arith.addf %121, %122 : vector<8x128xf32>
    %124 = math.tanh %123 : vector<8x128xf32>
    %125 = arith.mulf %120, %124 : vector<8x128xf32>
    %c0_51 = arith.constant 0 : index
    %126 = arith.index_cast %93 : i32 to index
    %c0_52 = arith.constant 0 : index
    %c0_53 = arith.constant 0 : index
    %127 = vector.load %arg5[%c0_51, %126, %c0_52, %c0_53] : memref<1x8x8x128xf32, #tpu.memory_space<vmem>>, vector<1x1x8x128xf32>
    %128 = vector.shape_cast %127 : vector<1x1x8x128xf32> to vector<8x128xf32>
    %129 = vector.shape_cast %125 : vector<8x128xf32> to vector<1x1x8x128xf32>
    tpu.vector_store %arg5[%c0_51, %126, %c0_52, %c0_53], %129 {strides = array<i32>} : memref<1x8x8x128xf32, #tpu.memory_space<vmem>>, vector<1x1x8x128xf32>,
    %c3_i32 = arith.constant 3 : i32
    %c0_i32_54 = arith.constant 0 : i32
    %130 = arith.cmpi eq, %arg0, %c0_i32_54 : i32
    %c7_i32_55 = arith.constant 7 : i32
    %131 = arith.subi %c7_i32_55, %c3_i32 : i32
    %132 = arith.select %130, %c3_i32, %131 : i32
    %133 = arith.index_cast %132 : i32 to index
    %c0_56 = arith.constant 0 : index
    %c0_57 = arith.constant 0 : index
    %134 = vector.load %arg6[%133, %c0_56, %c0_57] : memref<8x8x512xf32, #tpu.memory_space<vmem>>, vector<1x8x512xf32>
    %135 = vector.shape_cast %134 : vector<1x8x512xf32> to vector<8x512xf32>
    %c0_58 = arith.constant 0 : index
    %c0_59 = arith.constant 0 : index
    %c0_60 = arith.constant 0 : index
    %136 = vector.load %arg3[%c0_58, %c0_59, %c0_60] : memref<1x128x512xf32, #tpu.memory_space<vmem>>, vector<1x128x512xf32>
    %137 = vector.shape_cast %136 : vector<1x128x512xf32> to vector<128x512xf32>
    %cst_61 = arith.constant dense<0.000000e+00> : vector<8x512xf32>
    %138 = tpu.matmul %125, %137, %cst_61 {dimension_numbers = #tpu.dot_dimension_numbers<[1], [0], [0], [1], [0, 0, 1, 1], [], []>} : vector<8x128xf32>, vector<128x512xf32>, vector<8x512xf32> -> vector<8x512xf32>
    %139 = arith.addf %135, %138 : vector<8x512xf32>
    %140 = vector.extract_strided_slice %139 {offsets = [0, 0], sizes = [8, 128], strides = [1, 1]} : vector<8x512xf32> to vector<8x128xf32>
    %141 = arith.negf %140 : vector<8x128xf32>
    %142 = math.exp %141 : vector<8x128xf32>
    %cst_62 = arith.constant 1.000000e+00 : f32
    %143 = vector.broadcast %cst_62 : f32 to vector<8x128xf32>
    %144 = arith.addf %143, %142 : vector<8x128xf32>
    %145 = arith.divf %143, %144 : vector<8x128xf32>
    %146 = vector.extract_strided_slice %139 {offsets = [0, 128], sizes = [8, 128], strides = [1, 1]} : vector<8x512xf32> to vector<8x128xf32>
    %147 = arith.negf %146 : vector<8x128xf32>
    %148 = math.exp %147 : vector<8x128xf32>
    %cst_63 = arith.constant 1.000000e+00 : f32
    %149 = vector.broadcast %cst_63 : f32 to vector<8x128xf32>
    %150 = arith.addf %149, %148 : vector<8x128xf32>
    %151 = arith.divf %149, %150 : vector<8x128xf32>
    %152 = vector.extract_strided_slice %139 {offsets = [0, 256], sizes = [8, 128], strides = [1, 1]} : vector<8x512xf32> to vector<8x128xf32>
    %153 = math.tanh %152 : vector<8x128xf32>
    %154 = vector.extract_strided_slice %139 {offsets = [0, 384], sizes = [8, 128], strides = [1, 1]} : vector<8x512xf32> to vector<8x128xf32>
    %155 = arith.negf %154 : vector<8x128xf32>
    %156 = math.exp %155 : vector<8x128xf32>
    %cst_64 = arith.constant 1.000000e+00 : f32
    %157 = vector.broadcast %cst_64 : f32 to vector<8x128xf32>
    %158 = arith.addf %157, %156 : vector<8x128xf32>
    %159 = arith.divf %157, %158 : vector<8x128xf32>
    %160 = arith.mulf %151, %123 : vector<8x128xf32>
    %161 = arith.mulf %145, %153 : vector<8x128xf32>
    %162 = arith.addf %160, %161 : vector<8x128xf32>
    %163 = math.tanh %162 : vector<8x128xf32>
    %164 = arith.mulf %159, %163 : vector<8x128xf32>
    %c0_65 = arith.constant 0 : index
    %165 = arith.index_cast %132 : i32 to index
    %c0_66 = arith.constant 0 : index
    %c0_67 = arith.constant 0 : index
    %166 = vector.load %arg5[%c0_65, %165, %c0_66, %c0_67] : memref<1x8x8x128xf32, #tpu.memory_space<vmem>>, vector<1x1x8x128xf32>
    %167 = vector.shape_cast %166 : vector<1x1x8x128xf32> to vector<8x128xf32>
    %168 = vector.shape_cast %164 : vector<8x128xf32> to vector<1x1x8x128xf32>
    tpu.vector_store %arg5[%c0_65, %165, %c0_66, %c0_67], %168 {strides = array<i32>} : memref<1x8x8x128xf32, #tpu.memory_space<vmem>>, vector<1x1x8x128xf32>,
    %c4_i32 = arith.constant 4 : i32
    %c0_i32_68 = arith.constant 0 : i32
    %169 = arith.cmpi eq, %arg0, %c0_i32_68 : i32
    %c7_i32_69 = arith.constant 7 : i32
    %170 = arith.subi %c7_i32_69, %c4_i32 : i32
    %171 = arith.select %169, %c4_i32, %170 : i32
    %172 = arith.index_cast %171 : i32 to index
    %c0_70 = arith.constant 0 : index
    %c0_71 = arith.constant 0 : index
    %173 = vector.load %arg6[%172, %c0_70, %c0_71] : memref<8x8x512xf32, #tpu.memory_space<vmem>>, vector<1x8x512xf32>
    %174 = vector.shape_cast %173 : vector<1x8x512xf32> to vector<8x512xf32>
    %c0_72 = arith.constant 0 : index
    %c0_73 = arith.constant 0 : index
    %c0_74 = arith.constant 0 : index
    %175 = vector.load %arg3[%c0_72, %c0_73, %c0_74] : memref<1x128x512xf32, #tpu.memory_space<vmem>>, vector<1x128x512xf32>
    %176 = vector.shape_cast %175 : vector<1x128x512xf32> to vector<128x512xf32>
    %cst_75 = arith.constant dense<0.000000e+00> : vector<8x512xf32>
    %177 = tpu.matmul %164, %176, %cst_75 {dimension_numbers = #tpu.dot_dimension_numbers<[1], [0], [0], [1], [0, 0, 1, 1], [], []>} : vector<8x128xf32>, vector<128x512xf32>, vector<8x512xf32> -> vector<8x512xf32>
    %178 = arith.addf %174, %177 : vector<8x512xf32>
    %179 = vector.extract_strided_slice %178 {offsets = [0, 0], sizes = [8, 128], strides = [1, 1]} : vector<8x512xf32> to vector<8x128xf32>
    %180 = arith.negf %179 : vector<8x128xf32>
    %181 = math.exp %180 : vector<8x128xf32>
    %cst_76 = arith.constant 1.000000e+00 : f32
    %182 = vector.broadcast %cst_76 : f32 to vector<8x128xf32>
    %183 = arith.addf %182, %181 : vector<8x128xf32>
    %184 = arith.divf %182, %183 : vector<8x128xf32>
    %185 = vector.extract_strided_slice %178 {offsets = [0, 128], sizes = [8, 128], strides = [1, 1]} : vector<8x512xf32> to vector<8x128xf32>
    %186 = arith.negf %185 : vector<8x128xf32>
    %187 = math.exp %186 : vector<8x128xf32>
    %cst_77 = arith.constant 1.000000e+00 : f32
    %188 = vector.broadcast %cst_77 : f32 to vector<8x128xf32>
    %189 = arith.addf %188, %187 : vector<8x128xf32>
    %190 = arith.divf %188, %189 : vector<8x128xf32>
    %191 = vector.extract_strided_slice %178 {offsets = [0, 256], sizes = [8, 128], strides = [1, 1]} : vector<8x512xf32> to vector<8x128xf32>
    %192 = math.tanh %191 : vector<8x128xf32>
    %193 = vector.extract_strided_slice %178 {offsets = [0, 384], sizes = [8, 128], strides = [1, 1]} : vector<8x512xf32> to vector<8x128xf32>
    %194 = arith.negf %193 : vector<8x128xf32>
    %195 = math.exp %194 : vector<8x128xf32>
    %cst_78 = arith.constant 1.000000e+00 : f32
    %196 = vector.broadcast %cst_78 : f32 to vector<8x128xf32>
    %197 = arith.addf %196, %195 : vector<8x128xf32>
    %198 = arith.divf %196, %197 : vector<8x128xf32>
    %199 = arith.mulf %190, %162 : vector<8x128xf32>
    %200 = arith.mulf %184, %192 : vector<8x128xf32>
    %201 = arith.addf %199, %200 : vector<8x128xf32>
    %202 = math.tanh %201 : vector<8x128xf32>
    %203 = arith.mulf %198, %202 : vector<8x128xf32>
    %c0_79 = arith.constant 0 : index
    %204 = arith.index_cast %171 : i32 to index
    %c0_80 = arith.constant 0 : index
    %c0_81 = arith.constant 0 : index
    %205 = vector.load %arg5[%c0_79, %204, %c0_80, %c0_81] : memref<1x8x8x128xf32, #tpu.memory_space<vmem>>, vector<1x1x8x128xf32>
    %206 = vector.shape_cast %205 : vector<1x1x8x128xf32> to vector<8x128xf32>
    %207 = vector.shape_cast %203 : vector<8x128xf32> to vector<1x1x8x128xf32>
    tpu.vector_store %arg5[%c0_79, %204, %c0_80, %c0_81], %207 {strides = array<i32>} : memref<1x8x8x128xf32, #tpu.memory_space<vmem>>, vector<1x1x8x128xf32>,
    %c5_i32 = arith.constant 5 : i32
    %c0_i32_82 = arith.constant 0 : i32
    %208 = arith.cmpi eq, %arg0, %c0_i32_82 : i32
    %c7_i32_83 = arith.constant 7 : i32
    %209 = arith.subi %c7_i32_83, %c5_i32 : i32
    %210 = arith.select %208, %c5_i32, %209 : i32
    %211 = arith.index_cast %210 : i32 to index
    %c0_84 = arith.constant 0 : index
    %c0_85 = arith.constant 0 : index
    %212 = vector.load %arg6[%211, %c0_84, %c0_85] : memref<8x8x512xf32, #tpu.memory_space<vmem>>, vector<1x8x512xf32>
    %213 = vector.shape_cast %212 : vector<1x8x512xf32> to vector<8x512xf32>
    %c0_86 = arith.constant 0 : index
    %c0_87 = arith.constant 0 : index
    %c0_88 = arith.constant 0 : index
    %214 = vector.load %arg3[%c0_86, %c0_87, %c0_88] : memref<1x128x512xf32, #tpu.memory_space<vmem>>, vector<1x128x512xf32>
    %215 = vector.shape_cast %214 : vector<1x128x512xf32> to vector<128x512xf32>
    %cst_89 = arith.constant dense<0.000000e+00> : vector<8x512xf32>
    %216 = tpu.matmul %203, %215, %cst_89 {dimension_numbers = #tpu.dot_dimension_numbers<[1], [0], [0], [1], [0, 0, 1, 1], [], []>} : vector<8x128xf32>, vector<128x512xf32>, vector<8x512xf32> -> vector<8x512xf32>
    %217 = arith.addf %213, %216 : vector<8x512xf32>
    %218 = vector.extract_strided_slice %217 {offsets = [0, 0], sizes = [8, 128], strides = [1, 1]} : vector<8x512xf32> to vector<8x128xf32>
    %219 = arith.negf %218 : vector<8x128xf32>
    %220 = math.exp %219 : vector<8x128xf32>
    %cst_90 = arith.constant 1.000000e+00 : f32
    %221 = vector.broadcast %cst_90 : f32 to vector<8x128xf32>
    %222 = arith.addf %221, %220 : vector<8x128xf32>
    %223 = arith.divf %221, %222 : vector<8x128xf32>
    %224 = vector.extract_strided_slice %217 {offsets = [0, 128], sizes = [8, 128], strides = [1, 1]} : vector<8x512xf32> to vector<8x128xf32>
    %225 = arith.negf %224 : vector<8x128xf32>
    %226 = math.exp %225 : vector<8x128xf32>
    %cst_91 = arith.constant 1.000000e+00 : f32
    %227 = vector.broadcast %cst_91 : f32 to vector<8x128xf32>
    %228 = arith.addf %227, %226 : vector<8x128xf32>
    %229 = arith.divf %227, %228 : vector<8x128xf32>
    %230 = vector.extract_strided_slice %217 {offsets = [0, 256], sizes = [8, 128], strides = [1, 1]} : vector<8x512xf32> to vector<8x128xf32>
    %231 = math.tanh %230 : vector<8x128xf32>
    %232 = vector.extract_strided_slice %217 {offsets = [0, 384], sizes = [8, 128], strides = [1, 1]} : vector<8x512xf32> to vector<8x128xf32>
    %233 = arith.negf %232 : vector<8x128xf32>
    %234 = math.exp %233 : vector<8x128xf32>
    %cst_92 = arith.constant 1.000000e+00 : f32
    %235 = vector.broadcast %cst_92 : f32 to vector<8x128xf32>
    %236 = arith.addf %235, %234 : vector<8x128xf32>
    %237 = arith.divf %235, %236 : vector<8x128xf32>
    %238 = arith.mulf %229, %201 : vector<8x128xf32>
    %239 = arith.mulf %223, %231 : vector<8x128xf32>
    %240 = arith.addf %238, %239 : vector<8x128xf32>
    %241 = math.tanh %240 : vector<8x128xf32>
    %242 = arith.mulf %237, %241 : vector<8x128xf32>
    %c0_93 = arith.constant 0 : index
    %243 = arith.index_cast %210 : i32 to index
    %c0_94 = arith.constant 0 : index
    %c0_95 = arith.constant 0 : index
    %244 = vector.load %arg5[%c0_93, %243, %c0_94, %c0_95] : memref<1x8x8x128xf32, #tpu.memory_space<vmem>>, vector<1x1x8x128xf32>
    %245 = vector.shape_cast %244 : vector<1x1x8x128xf32> to vector<8x128xf32>
    %246 = vector.shape_cast %242 : vector<8x128xf32> to vector<1x1x8x128xf32>
    tpu.vector_store %arg5[%c0_93, %243, %c0_94, %c0_95], %246 {strides = array<i32>} : memref<1x8x8x128xf32, #tpu.memory_space<vmem>>, vector<1x1x8x128xf32>,
    %c6_i32 = arith.constant 6 : i32
    %c0_i32_96 = arith.constant 0 : i32
    %247 = arith.cmpi eq, %arg0, %c0_i32_96 : i32
    %c7_i32_97 = arith.constant 7 : i32
    %248 = arith.subi %c7_i32_97, %c6_i32 : i32
    %249 = arith.select %247, %c6_i32, %248 : i32
    %250 = arith.index_cast %249 : i32 to index
    %c0_98 = arith.constant 0 : index
    %c0_99 = arith.constant 0 : index
    %251 = vector.load %arg6[%250, %c0_98, %c0_99] : memref<8x8x512xf32, #tpu.memory_space<vmem>>, vector<1x8x512xf32>
    %252 = vector.shape_cast %251 : vector<1x8x512xf32> to vector<8x512xf32>
    %c0_100 = arith.constant 0 : index
    %c0_101 = arith.constant 0 : index
    %c0_102 = arith.constant 0 : index
    %253 = vector.load %arg3[%c0_100, %c0_101, %c0_102] : memref<1x128x512xf32, #tpu.memory_space<vmem>>, vector<1x128x512xf32>
    %254 = vector.shape_cast %253 : vector<1x128x512xf32> to vector<128x512xf32>
    %cst_103 = arith.constant dense<0.000000e+00> : vector<8x512xf32>
    %255 = tpu.matmul %242, %254, %cst_103 {dimension_numbers = #tpu.dot_dimension_numbers<[1], [0], [0], [1], [0, 0, 1, 1], [], []>} : vector<8x128xf32>, vector<128x512xf32>, vector<8x512xf32> -> vector<8x512xf32>
    %256 = arith.addf %252, %255 : vector<8x512xf32>
    %257 = vector.extract_strided_slice %256 {offsets = [0, 0], sizes = [8, 128], strides = [1, 1]} : vector<8x512xf32> to vector<8x128xf32>
    %258 = arith.negf %257 : vector<8x128xf32>
    %259 = math.exp %258 : vector<8x128xf32>
    %cst_104 = arith.constant 1.000000e+00 : f32
    %260 = vector.broadcast %cst_104 : f32 to vector<8x128xf32>
    %261 = arith.addf %260, %259 : vector<8x128xf32>
    %262 = arith.divf %260, %261 : vector<8x128xf32>
    %263 = vector.extract_strided_slice %256 {offsets = [0, 128], sizes = [8, 128], strides = [1, 1]} : vector<8x512xf32> to vector<8x128xf32>
    %264 = arith.negf %263 : vector<8x128xf32>
    %265 = math.exp %264 : vector<8x128xf32>
    %cst_105 = arith.constant 1.000000e+00 : f32
    %266 = vector.broadcast %cst_105 : f32 to vector<8x128xf32>
    %267 = arith.addf %266, %265 : vector<8x128xf32>
    %268 = arith.divf %266, %267 : vector<8x128xf32>
    %269 = vector.extract_strided_slice %256 {offsets = [0, 256], sizes = [8, 128], strides = [1, 1]} : vector<8x512xf32> to vector<8x128xf32>
    %270 = math.tanh %269 : vector<8x128xf32>
    %271 = vector.extract_strided_slice %256 {offsets = [0, 384], sizes = [8, 128], strides = [1, 1]} : vector<8x512xf32> to vector<8x128xf32>
    %272 = arith.negf %271 : vector<8x128xf32>
    %273 = math.exp %272 : vector<8x128xf32>
    %cst_106 = arith.constant 1.000000e+00 : f32
    %274 = vector.broadcast %cst_106 : f32 to vector<8x128xf32>
    %275 = arith.addf %274, %273 : vector<8x128xf32>
    %276 = arith.divf %274, %275 : vector<8x128xf32>
    %277 = arith.mulf %268, %240 : vector<8x128xf32>
    %278 = arith.mulf %262, %270 : vector<8x128xf32>
    %279 = arith.addf %277, %278 : vector<8x128xf32>
    %280 = math.tanh %279 : vector<8x128xf32>
    %281 = arith.mulf %276, %280 : vector<8x128xf32>
    %c0_107 = arith.constant 0 : index
    %282 = arith.index_cast %249 : i32 to index
    %c0_108 = arith.constant 0 : index
    %c0_109 = arith.constant 0 : index
    %283 = vector.load %arg5[%c0_107, %282, %c0_108, %c0_109] : memref<1x8x8x128xf32, #tpu.memory_space<vmem>>, vector<1x1x8x128xf32>
    %284 = vector.shape_cast %283 : vector<1x1x8x128xf32> to vector<8x128xf32>
    %285 = vector.shape_cast %281 : vector<8x128xf32> to vector<1x1x8x128xf32>
    tpu.vector_store %arg5[%c0_107, %282, %c0_108, %c0_109], %285 {strides = array<i32>} : memref<1x8x8x128xf32, #tpu.memory_space<vmem>>, vector<1x1x8x128xf32>,
    %c7_i32_110 = arith.constant 7 : i32
    %c0_i32_111 = arith.constant 0 : i32
    %286 = arith.cmpi eq, %arg0, %c0_i32_111 : i32
    %c7_i32_112 = arith.constant 7 : i32
    %287 = arith.subi %c7_i32_112, %c7_i32_110 : i32
    %288 = arith.select %286, %c7_i32_110, %287 : i32
    %289 = arith.index_cast %288 : i32 to index
    %c0_113 = arith.constant 0 : index
    %c0_114 = arith.constant 0 : index
    %290 = vector.load %arg6[%289, %c0_113, %c0_114] : memref<8x8x512xf32, #tpu.memory_space<vmem>>, vector<1x8x512xf32>
    %291 = vector.shape_cast %290 : vector<1x8x512xf32> to vector<8x512xf32>
    %c0_115 = arith.constant 0 : index
    %c0_116 = arith.constant 0 : index
    %c0_117 = arith.constant 0 : index
    %292 = vector.load %arg3[%c0_115, %c0_116, %c0_117] : memref<1x128x512xf32, #tpu.memory_space<vmem>>, vector<1x128x512xf32>
    %293 = vector.shape_cast %292 : vector<1x128x512xf32> to vector<128x512xf32>
    %cst_118 = arith.constant dense<0.000000e+00> : vector<8x512xf32>
    %294 = tpu.matmul %281, %293, %cst_118 {dimension_numbers = #tpu.dot_dimension_numbers<[1], [0], [0], [1], [0, 0, 1, 1], [], []>} : vector<8x128xf32>, vector<128x512xf32>, vector<8x512xf32> -> vector<8x512xf32>
    %295 = arith.addf %291, %294 : vector<8x512xf32>
    %296 = vector.extract_strided_slice %295 {offsets = [0, 0], sizes = [8, 128], strides = [1, 1]} : vector<8x512xf32> to vector<8x128xf32>
    %297 = arith.negf %296 : vector<8x128xf32>
    %298 = math.exp %297 : vector<8x128xf32>
    %cst_119 = arith.constant 1.000000e+00 : f32
    %299 = vector.broadcast %cst_119 : f32 to vector<8x128xf32>
    %300 = arith.addf %299, %298 : vector<8x128xf32>
    %301 = arith.divf %299, %300 : vector<8x128xf32>
    %302 = vector.extract_strided_slice %295 {offsets = [0, 128], sizes = [8, 128], strides = [1, 1]} : vector<8x512xf32> to vector<8x128xf32>
    %303 = arith.negf %302 : vector<8x128xf32>
    %304 = math.exp %303 : vector<8x128xf32>
    %cst_120 = arith.constant 1.000000e+00 : f32
    %305 = vector.broadcast %cst_120 : f32 to vector<8x128xf32>
    %306 = arith.addf %305, %304 : vector<8x128xf32>
    %307 = arith.divf %305, %306 : vector<8x128xf32>
    %308 = vector.extract_strided_slice %295 {offsets = [0, 256], sizes = [8, 128], strides = [1, 1]} : vector<8x512xf32> to vector<8x128xf32>
    %309 = math.tanh %308 : vector<8x128xf32>
    %310 = vector.extract_strided_slice %295 {offsets = [0, 384], sizes = [8, 128], strides = [1, 1]} : vector<8x512xf32> to vector<8x128xf32>
    %311 = arith.negf %310 : vector<8x128xf32>
    %312 = math.exp %311 : vector<8x128xf32>
    %cst_121 = arith.constant 1.000000e+00 : f32
    %313 = vector.broadcast %cst_121 : f32 to vector<8x128xf32>
    %314 = arith.addf %313, %312 : vector<8x128xf32>
    %315 = arith.divf %313, %314 : vector<8x128xf32>
    %316 = arith.mulf %307, %279 : vector<8x128xf32>
    %317 = arith.mulf %301, %309 : vector<8x128xf32>
    %318 = arith.addf %316, %317 : vector<8x128xf32>
    %319 = math.tanh %318 : vector<8x128xf32>
    %320 = arith.mulf %315, %319 : vector<8x128xf32>
    %c0_122 = arith.constant 0 : index
    %321 = arith.index_cast %288 : i32 to index
    %c0_123 = arith.constant 0 : index
    %c0_124 = arith.constant 0 : index
    %322 = vector.load %arg5[%c0_122, %321, %c0_123, %c0_124] : memref<1x8x8x128xf32, #tpu.memory_space<vmem>>, vector<1x1x8x128xf32>
    %323 = vector.shape_cast %322 : vector<1x1x8x128xf32> to vector<8x128xf32>
    %324 = vector.shape_cast %320 : vector<8x128xf32> to vector<1x1x8x128xf32>
    tpu.vector_store %arg5[%c0_122, %321, %c0_123, %c0_124], %324 {strides = array<i32>} : memref<1x8x8x128xf32, #tpu.memory_space<vmem>>, vector<1x1x8x128xf32>,
    %c8_i32 = arith.constant 8 : i32
    return
  }
  func.func @transform_0(%arg0: i32) -> (i32, i32, i32) {
    %c0_i32 = arith.constant 0 : i32
    %c0_i32_0 = arith.constant 0 : i32
    %c0_i32_1 = arith.constant 0 : i32
    %c0_i32_2 = arith.constant 0 : i32
    return %c0_i32, %c0_i32_0, %c0_i32_1 : i32, i32, i32
  }
  func.func @transform_1(%arg0: i32) -> (i32, i32, i32) {
    %c0_i32 = arith.constant 0 : i32
    %c0_i32_0 = arith.constant 0 : i32
    %c0_i32_1 = arith.constant 0 : i32
    return %arg0, %c0_i32, %c0_i32_0 : i32, i32, i32
  }
  func.func @transform_2(%arg0: i32) -> (i32, i32, i32) {
    %c0_i32 = arith.constant 0 : i32
    %c0_i32_0 = arith.constant 0 : i32
    %c0_i32_1 = arith.constant 0 : i32
    return %arg0, %c0_i32, %c0_i32_0 : i32, i32, i32
  }
  func.func @transform_3(%arg0: i32) -> (i32, i32, i32) {
    %c0_i32 = arith.constant 0 : i32
    %c0_i32_0 = arith.constant 0 : i32
    %c0_i32_1 = arith.constant 0 : i32
    return %arg0, %c0_i32, %c0_i32_0 : i32, i32, i32
  }
  func.func @transform_4(%arg0: i32) -> (i32, i32, i32, i32) {
    %c0_i32 = arith.constant 0 : i32
    %c0_i32_0 = arith.constant 0 : i32
    %c0_i32_1 = arith.constant 0 : i32
    %c0_i32_2 = arith.constant 0 : i32
    return %arg0, %c0_i32, %c0_i32_0, %c0_i32_1 : i32, i32, i32, i32
  }
}

module attributes {stable_mosaic.version = 11 : i64} {
  func.func @_bidir_lstm_layer_kernel(%arg0: i32, %arg1: memref<8x8x256xf32, #tpu.memory_space<vmem>>, %arg2: memref<1x256x512xf32, #tpu.memory_space<vmem>>, %arg3: memref<1x128x512xf32, #tpu.memory_space<vmem>>, %arg4: memref<1x1x512xf32, #tpu.memory_space<vmem>>, %arg5: memref<1x8x8x128xf32, #tpu.memory_space<vmem>>, %arg6: memref<8x8x512xf32, #tpu.memory_space<vmem>>) attributes {dimension_semantics = [#tpu.dimension_semantics<parallel>], iteration_bounds = array<i64: 2>, scalar_prefetch = 0 : i64, scratch_operands = 1 : i64, tpu.core_type = #tpu.core_type<tc>, window_params = [{pipeline_mode = #tpu.pipeline_mode<synchronous>, transform_indices = @transform_0, window_bounds = array<i64: 8, 8, 256>}, {transform_indices = @transform_1, window_bounds = array<i64: 1, 256, 512>}, {transform_indices = @transform_2, window_bounds = array<i64: 1, 128, 512>}, {transform_indices = @transform_3, window_bounds = array<i64: 1, 1, 512>}, {transform_indices = @transform_4, window_bounds = array<i64: 1, 8, 8, 128>}]} {
    %c0 = arith.constant 0 : index
    %c0_0 = arith.constant 0 : index
    %c0_1 = arith.constant 0 : index
    %0 = vector.load %arg1[%c0, %c0_0, %c0_1] : memref<8x8x256xf32, #tpu.memory_space<vmem>>, vector<8x8x256xf32>
    %1 = vector.shape_cast %0 : vector<8x8x256xf32> to vector<64x256xf32>
    %c0_2 = arith.constant 0 : index
    %c0_3 = arith.constant 0 : index
    %c0_4 = arith.constant 0 : index
    %2 = vector.load %arg2[%c0_2, %c0_3, %c0_4] : memref<1x256x512xf32, #tpu.memory_space<vmem>>, vector<1x256x512xf32>
    %3 = vector.shape_cast %2 : vector<1x256x512xf32> to vector<256x512xf32>
    %cst = arith.constant dense<0.000000e+00> : vector<64x512xf32>
    %4 = tpu.matmul %1, %3, %cst {dimension_numbers = #tpu.dot_dimension_numbers<[1], [0], [0], [1], [0, 0, 1, 1], [], []>} : vector<64x256xf32>, vector<256x512xf32>, vector<64x512xf32> -> vector<64x512xf32>
    %c0_5 = arith.constant 0 : index
    %c0_6 = arith.constant 0 : index
    %c0_7 = arith.constant 0 : index
    %5 = vector.load %arg4[%c0_5, %c0_6, %c0_7] : memref<1x1x512xf32, #tpu.memory_space<vmem>>, vector<1x1x512xf32>
    %6 = vector.shape_cast %5 : vector<1x1x512xf32> to vector<1x512xf32>
    %7 = vector.broadcast %6 : vector<1x512xf32> to vector<64x512xf32>
    %8 = arith.addf %4, %7 : vector<64x512xf32>
    %9 = vector.shape_cast %8 : vector<64x512xf32> to vector<8x8x512xf32>
    %c0_8 = arith.constant 0 : index
    %c0_9 = arith.constant 0 : index
    %c0_10 = arith.constant 0 : index
    %10 = vector.load %arg6[%c0_8, %c0_9, %c0_10] : memref<8x8x512xf32, #tpu.memory_space<vmem>>, vector<8x8x512xf32>
    tpu.vector_store %arg6[%c0_8, %c0_9, %c0_10], %9 {strides = array<i32>} : memref<8x8x512xf32, #tpu.memory_space<vmem>>, vector<8x8x512xf32>,
    %cst_11 = arith.constant 0.000000e+00 : f32
    %11 = vector.broadcast %cst_11 : f32 to vector<8x128xf32>
    %cst_12 = arith.constant 0.000000e+00 : f32
    %12 = vector.broadcast %cst_12 : f32 to vector<8x128xf32>
    %c0_i32 = arith.constant 0 : i32
    %c0_i32_13 = arith.constant 0 : i32
    %13 = arith.cmpi eq, %arg0, %c0_i32_13 : i32
    %c7_i32 = arith.constant 7 : i32
    %14 = arith.subi %c7_i32, %c0_i32 : i32
    %15 = arith.select %13, %c0_i32, %14 : i32
    %16 = arith.index_cast %15 : i32 to index
    %c0_14 = arith.constant 0 : index
    %c0_15 = arith.constant 0 : index
    %17 = vector.load %arg6[%16, %c0_14, %c0_15] : memref<8x8x512xf32, #tpu.memory_space<vmem>>, vector<1x8x512xf32>
    %18 = vector.shape_cast %17 : vector<1x8x512xf32> to vector<8x512xf32>
    %c0_16 = arith.constant 0 : index
    %c0_17 = arith.constant 0 : index
    %c0_18 = arith.constant 0 : index
    %19 = vector.load %arg3[%c0_16, %c0_17, %c0_18] : memref<1x128x512xf32, #tpu.memory_space<vmem>>, vector<1x128x512xf32>
    %20 = vector.shape_cast %19 : vector<1x128x512xf32> to vector<128x512xf32>
    %cst_19 = arith.constant dense<0.000000e+00> : vector<8x512xf32>
    %21 = tpu.matmul %11, %20, %cst_19 {dimension_numbers = #tpu.dot_dimension_numbers<[1], [0], [0], [1], [0, 0, 1, 1], [], []>} : vector<8x128xf32>, vector<128x512xf32>, vector<8x512xf32> -> vector<8x512xf32>
    %22 = arith.addf %18, %21 : vector<8x512xf32>
    %23 = vector.extract_strided_slice %22 {offsets = [0, 0], sizes = [8, 128], strides = [1, 1]} : vector<8x512xf32> to vector<8x128xf32>
    %24 = arith.negf %23 : vector<8x128xf32>
    %25 = math.exp %24 : vector<8x128xf32>
    %cst_20 = arith.constant 1.000000e+00 : f32
    %26 = vector.broadcast %cst_20 : f32 to vector<8x128xf32>
    %27 = arith.addf %26, %25 : vector<8x128xf32>
    %28 = arith.divf %26, %27 : vector<8x128xf32>
    %29 = vector.extract_strided_slice %22 {offsets = [0, 128], sizes = [8, 128], strides = [1, 1]} : vector<8x512xf32> to vector<8x128xf32>
    %30 = arith.negf %29 : vector<8x128xf32>
    %31 = math.exp %30 : vector<8x128xf32>
    %cst_21 = arith.constant 1.000000e+00 : f32
    %32 = vector.broadcast %cst_21 : f32 to vector<8x128xf32>
    %33 = arith.addf %32, %31 : vector<8x128xf32>
    %34 = arith.divf %32, %33 : vector<8x128xf32>
    %35 = vector.extract_strided_slice %22 {offsets = [0, 256], sizes = [8, 128], strides = [1, 1]} : vector<8x512xf32> to vector<8x128xf32>
    %36 = math.tanh %35 : vector<8x128xf32>
    %37 = vector.extract_strided_slice %22 {offsets = [0, 384], sizes = [8, 128], strides = [1, 1]} : vector<8x512xf32> to vector<8x128xf32>
    %38 = arith.negf %37 : vector<8x128xf32>
    %39 = math.exp %38 : vector<8x128xf32>
    %cst_22 = arith.constant 1.000000e+00 : f32
    %40 = vector.broadcast %cst_22 : f32 to vector<8x128xf32>
    %41 = arith.addf %40, %39 : vector<8x128xf32>
    %42 = arith.divf %40, %41 : vector<8x128xf32>
    %43 = arith.mulf %34, %12 : vector<8x128xf32>
    %44 = arith.mulf %28, %36 : vector<8x128xf32>
    %45 = arith.addf %43, %44 : vector<8x128xf32>
    %46 = math.tanh %45 : vector<8x128xf32>
    %47 = arith.mulf %42, %46 : vector<8x128xf32>
    %c0_23 = arith.constant 0 : index
    %48 = arith.index_cast %15 : i32 to index
    %c0_24 = arith.constant 0 : index
    %c0_25 = arith.constant 0 : index
    %49 = vector.load %arg5[%c0_23, %48, %c0_24, %c0_25] : memref<1x8x8x128xf32, #tpu.memory_space<vmem>>, vector<1x1x8x128xf32>
    %50 = vector.shape_cast %49 : vector<1x1x8x128xf32> to vector<8x128xf32>
    %51 = vector.shape_cast %47 : vector<8x128xf32> to vector<1x1x8x128xf32>
    tpu.vector_store %arg5[%c0_23, %48, %c0_24, %c0_25], %51 {strides = array<i32>} : memref<1x8x8x128xf32, #tpu.memory_space<vmem>>, vector<1x1x8x128xf32>,
    %c1_i32 = arith.constant 1 : i32
    %c0_i32_26 = arith.constant 0 : i32
    %52 = arith.cmpi eq, %arg0, %c0_i32_26 : i32
    %c7_i32_27 = arith.constant 7 : i32
    %53 = arith.subi %c7_i32_27, %c1_i32 : i32
    %54 = arith.select %52, %c1_i32, %53 : i32
    %55 = arith.index_cast %54 : i32 to index
    %c0_28 = arith.constant 0 : index
    %c0_29 = arith.constant 0 : index
    %56 = vector.load %arg6[%55, %c0_28, %c0_29] : memref<8x8x512xf32, #tpu.memory_space<vmem>>, vector<1x8x512xf32>
    %57 = vector.shape_cast %56 : vector<1x8x512xf32> to vector<8x512xf32>
    %c0_30 = arith.constant 0 : index
    %c0_31 = arith.constant 0 : index
    %c0_32 = arith.constant 0 : index
    %58 = vector.load %arg3[%c0_30, %c0_31, %c0_32] : memref<1x128x512xf32, #tpu.memory_space<vmem>>, vector<1x128x512xf32>
    %59 = vector.shape_cast %58 : vector<1x128x512xf32> to vector<128x512xf32>
    %cst_33 = arith.constant dense<0.000000e+00> : vector<8x512xf32>
    %60 = tpu.matmul %47, %59, %cst_33 {dimension_numbers = #tpu.dot_dimension_numbers<[1], [0], [0], [1], [0, 0, 1, 1], [], []>} : vector<8x128xf32>, vector<128x512xf32>, vector<8x512xf32> -> vector<8x512xf32>
    %61 = arith.addf %57, %60 : vector<8x512xf32>
    %62 = vector.extract_strided_slice %61 {offsets = [0, 0], sizes = [8, 128], strides = [1, 1]} : vector<8x512xf32> to vector<8x128xf32>
    %63 = arith.negf %62 : vector<8x128xf32>
    %64 = math.exp %63 : vector<8x128xf32>
    %cst_34 = arith.constant 1.000000e+00 : f32
    %65 = vector.broadcast %cst_34 : f32 to vector<8x128xf32>
    %66 = arith.addf %65, %64 : vector<8x128xf32>
    %67 = arith.divf %65, %66 : vector<8x128xf32>
    %68 = vector.extract_strided_slice %61 {offsets = [0, 128], sizes = [8, 128], strides = [1, 1]} : vector<8x512xf32> to vector<8x128xf32>
    %69 = arith.negf %68 : vector<8x128xf32>
    %70 = math.exp %69 : vector<8x128xf32>
    %cst_35 = arith.constant 1.000000e+00 : f32
    %71 = vector.broadcast %cst_35 : f32 to vector<8x128xf32>
    %72 = arith.addf %71, %70 : vector<8x128xf32>
    %73 = arith.divf %71, %72 : vector<8x128xf32>
    %74 = vector.extract_strided_slice %61 {offsets = [0, 256], sizes = [8, 128], strides = [1, 1]} : vector<8x512xf32> to vector<8x128xf32>
    %75 = math.tanh %74 : vector<8x128xf32>
    %76 = vector.extract_strided_slice %61 {offsets = [0, 384], sizes = [8, 128], strides = [1, 1]} : vector<8x512xf32> to vector<8x128xf32>
    %77 = arith.negf %76 : vector<8x128xf32>
    %78 = math.exp %77 : vector<8x128xf32>
    %cst_36 = arith.constant 1.000000e+00 : f32
    %79 = vector.broadcast %cst_36 : f32 to vector<8x128xf32>
    %80 = arith.addf %79, %78 : vector<8x128xf32>
    %81 = arith.divf %79, %80 : vector<8x128xf32>
    %82 = arith.mulf %73, %45 : vector<8x128xf32>
    %83 = arith.mulf %67, %75 : vector<8x128xf32>
    %84 = arith.addf %82, %83 : vector<8x128xf32>
    %85 = math.tanh %84 : vector<8x128xf32>
    %86 = arith.mulf %81, %85 : vector<8x128xf32>
    %c0_37 = arith.constant 0 : index
    %87 = arith.index_cast %54 : i32 to index
    %c0_38 = arith.constant 0 : index
    %c0_39 = arith.constant 0 : index
    %88 = vector.load %arg5[%c0_37, %87, %c0_38, %c0_39] : memref<1x8x8x128xf32, #tpu.memory_space<vmem>>, vector<1x1x8x128xf32>
    %89 = vector.shape_cast %88 : vector<1x1x8x128xf32> to vector<8x128xf32>
    %90 = vector.shape_cast %86 : vector<8x128xf32> to vector<1x1x8x128xf32>
    tpu.vector_store %arg5[%c0_37, %87, %c0_38, %c0_39], %90 {strides = array<i32>} : memref<1x8x8x128xf32, #tpu.memory_space<vmem>>, vector<1x1x8x128xf32>,
    %c2_i32 = arith.constant 2 : i32
    %c0_i32_40 = arith.constant 0 : i32
    %91 = arith.cmpi eq, %arg0, %c0_i32_40 : i32
    %c7_i32_41 = arith.constant 7 : i32
    %92 = arith.subi %c7_i32_41, %c2_i32 : i32
    %93 = arith.select %91, %c2_i32, %92 : i32
    %94 = arith.index_cast %93 : i32 to index
    %c0_42 = arith.constant 0 : index
    %c0_43 = arith.constant 0 : index
    %95 = vector.load %arg6[%94, %c0_42, %c0_43] : memref<8x8x512xf32, #tpu.memory_space<vmem>>, vector<1x8x512xf32>
    %96 = vector.shape_cast %95 : vector<1x8x512xf32> to vector<8x512xf32>
    %c0_44 = arith.constant 0 : index
    %c0_45 = arith.constant 0 : index
    %c0_46 = arith.constant 0 : index
    %97 = vector.load %arg3[%c0_44, %c0_45, %c0_46] : memref<1x128x512xf32, #tpu.memory_space<vmem>>, vector<1x128x512xf32>
    %98 = vector.shape_cast %97 : vector<1x128x512xf32> to vector<128x512xf32>
    %cst_47 = arith.constant dense<0.000000e+00> : vector<8x512xf32>
    %99 = tpu.matmul %86, %98, %cst_47 {dimension_numbers = #tpu.dot_dimension_numbers<[1], [0], [0], [1], [0, 0, 1, 1], [], []>} : vector<8x128xf32>, vector<128x512xf32>, vector<8x512xf32> -> vector<8x512xf32>
    %100 = arith.addf %96, %99 : vector<8x512xf32>
    %101 = vector.extract_strided_slice %100 {offsets = [0, 0], sizes = [8, 128], strides = [1, 1]} : vector<8x512xf32> to vector<8x128xf32>
    %102 = arith.negf %101 : vector<8x128xf32>
    %103 = math.exp %102 : vector<8x128xf32>
    %cst_48 = arith.constant 1.000000e+00 : f32
    %104 = vector.broadcast %cst_48 : f32 to vector<8x128xf32>
    %105 = arith.addf %104, %103 : vector<8x128xf32>
    %106 = arith.divf %104, %105 : vector<8x128xf32>
    %107 = vector.extract_strided_slice %100 {offsets = [0, 128], sizes = [8, 128], strides = [1, 1]} : vector<8x512xf32> to vector<8x128xf32>
    %108 = arith.negf %107 : vector<8x128xf32>
    %109 = math.exp %108 : vector<8x128xf32>
    %cst_49 = arith.constant 1.000000e+00 : f32
    %110 = vector.broadcast %cst_49 : f32 to vector<8x128xf32>
    %111 = arith.addf %110, %109 : vector<8x128xf32>
    %112 = arith.divf %110, %111 : vector<8x128xf32>
    %113 = vector.extract_strided_slice %100 {offsets = [0, 256], sizes = [8, 128], strides = [1, 1]} : vector<8x512xf32> to vector<8x128xf32>
    %114 = math.tanh %113 : vector<8x128xf32>
    %115 = vector.extract_strided_slice %100 {offsets = [0, 384], sizes = [8, 128], strides = [1, 1]} : vector<8x512xf32> to vector<8x128xf32>
    %116 = arith.negf %115 : vector<8x128xf32>
    %117 = math.exp %116 : vector<8x128xf32>
    %cst_50 = arith.constant 1.000000e+00 : f32
    %118 = vector.broadcast %cst_50 : f32 to vector<8x128xf32>
    %119 = arith.addf %118, %117 : vector<8x128xf32>
    %120 = arith.divf %118, %119 : vector<8x128xf32>
    %121 = arith.mulf %112, %84 : vector<8x128xf32>
    %122 = arith.mulf %106, %114 : vector<8x128xf32>
    %123 = arith.addf %121, %122 : vector<8x128xf32>
    %124 = math.tanh %123 : vector<8x128xf32>
    %125 = arith.mulf %120, %124 : vector<8x128xf32>
    %c0_51 = arith.constant 0 : index
    %126 = arith.index_cast %93 : i32 to index
    %c0_52 = arith.constant 0 : index
    %c0_53 = arith.constant 0 : index
    %127 = vector.load %arg5[%c0_51, %126, %c0_52, %c0_53] : memref<1x8x8x128xf32, #tpu.memory_space<vmem>>, vector<1x1x8x128xf32>
    %128 = vector.shape_cast %127 : vector<1x1x8x128xf32> to vector<8x128xf32>
    %129 = vector.shape_cast %125 : vector<8x128xf32> to vector<1x1x8x128xf32>
    tpu.vector_store %arg5[%c0_51, %126, %c0_52, %c0_53], %129 {strides = array<i32>} : memref<1x8x8x128xf32, #tpu.memory_space<vmem>>, vector<1x1x8x128xf32>,
    %c3_i32 = arith.constant 3 : i32
    %c0_i32_54 = arith.constant 0 : i32
    %130 = arith.cmpi eq, %arg0, %c0_i32_54 : i32
    %c7_i32_55 = arith.constant 7 : i32
    %131 = arith.subi %c7_i32_55, %c3_i32 : i32
    %132 = arith.select %130, %c3_i32, %131 : i32
    %133 = arith.index_cast %132 : i32 to index
    %c0_56 = arith.constant 0 : index
    %c0_57 = arith.constant 0 : index
    %134 = vector.load %arg6[%133, %c0_56, %c0_57] : memref<8x8x512xf32, #tpu.memory_space<vmem>>, vector<1x8x512xf32>
    %135 = vector.shape_cast %134 : vector<1x8x512xf32> to vector<8x512xf32>
    %c0_58 = arith.constant 0 : index
    %c0_59 = arith.constant 0 : index
    %c0_60 = arith.constant 0 : index
    %136 = vector.load %arg3[%c0_58, %c0_59, %c0_60] : memref<1x128x512xf32, #tpu.memory_space<vmem>>, vector<1x128x512xf32>
    %137 = vector.shape_cast %136 : vector<1x128x512xf32> to vector<128x512xf32>
    %cst_61 = arith.constant dense<0.000000e+00> : vector<8x512xf32>
    %138 = tpu.matmul %125, %137, %cst_61 {dimension_numbers = #tpu.dot_dimension_numbers<[1], [0], [0], [1], [0, 0, 1, 1], [], []>} : vector<8x128xf32>, vector<128x512xf32>, vector<8x512xf32> -> vector<8x512xf32>
    %139 = arith.addf %135, %138 : vector<8x512xf32>
    %140 = vector.extract_strided_slice %139 {offsets = [0, 0], sizes = [8, 128], strides = [1, 1]} : vector<8x512xf32> to vector<8x128xf32>
    %141 = arith.negf %140 : vector<8x128xf32>
    %142 = math.exp %141 : vector<8x128xf32>
    %cst_62 = arith.constant 1.000000e+00 : f32
    %143 = vector.broadcast %cst_62 : f32 to vector<8x128xf32>
    %144 = arith.addf %143, %142 : vector<8x128xf32>
    %145 = arith.divf %143, %144 : vector<8x128xf32>
    %146 = vector.extract_strided_slice %139 {offsets = [0, 128], sizes = [8, 128], strides = [1, 1]} : vector<8x512xf32> to vector<8x128xf32>
    %147 = arith.negf %146 : vector<8x128xf32>
    %148 = math.exp %147 : vector<8x128xf32>
    %cst_63 = arith.constant 1.000000e+00 : f32
    %149 = vector.broadcast %cst_63 : f32 to vector<8x128xf32>
    %150 = arith.addf %149, %148 : vector<8x128xf32>
    %151 = arith.divf %149, %150 : vector<8x128xf32>
    %152 = vector.extract_strided_slice %139 {offsets = [0, 256], sizes = [8, 128], strides = [1, 1]} : vector<8x512xf32> to vector<8x128xf32>
    %153 = math.tanh %152 : vector<8x128xf32>
    %154 = vector.extract_strided_slice %139 {offsets = [0, 384], sizes = [8, 128], strides = [1, 1]} : vector<8x512xf32> to vector<8x128xf32>
    %155 = arith.negf %154 : vector<8x128xf32>
    %156 = math.exp %155 : vector<8x128xf32>
    %cst_64 = arith.constant 1.000000e+00 : f32
    %157 = vector.broadcast %cst_64 : f32 to vector<8x128xf32>
    %158 = arith.addf %157, %156 : vector<8x128xf32>
    %159 = arith.divf %157, %158 : vector<8x128xf32>
    %160 = arith.mulf %151, %123 : vector<8x128xf32>
    %161 = arith.mulf %145, %153 : vector<8x128xf32>
    %162 = arith.addf %160, %161 : vector<8x128xf32>
    %163 = math.tanh %162 : vector<8x128xf32>
    %164 = arith.mulf %159, %163 : vector<8x128xf32>
    %c0_65 = arith.constant 0 : index
    %165 = arith.index_cast %132 : i32 to index
    %c0_66 = arith.constant 0 : index
    %c0_67 = arith.constant 0 : index
    %166 = vector.load %arg5[%c0_65, %165, %c0_66, %c0_67] : memref<1x8x8x128xf32, #tpu.memory_space<vmem>>, vector<1x1x8x128xf32>
    %167 = vector.shape_cast %166 : vector<1x1x8x128xf32> to vector<8x128xf32>
    %168 = vector.shape_cast %164 : vector<8x128xf32> to vector<1x1x8x128xf32>
    tpu.vector_store %arg5[%c0_65, %165, %c0_66, %c0_67], %168 {strides = array<i32>} : memref<1x8x8x128xf32, #tpu.memory_space<vmem>>, vector<1x1x8x128xf32>,
    %c4_i32 = arith.constant 4 : i32
    %c0_i32_68 = arith.constant 0 : i32
    %169 = arith.cmpi eq, %arg0, %c0_i32_68 : i32
    %c7_i32_69 = arith.constant 7 : i32
    %170 = arith.subi %c7_i32_69, %c4_i32 : i32
    %171 = arith.select %169, %c4_i32, %170 : i32
    %172 = arith.index_cast %171 : i32 to index
    %c0_70 = arith.constant 0 : index
    %c0_71 = arith.constant 0 : index
    %173 = vector.load %arg6[%172, %c0_70, %c0_71] : memref<8x8x512xf32, #tpu.memory_space<vmem>>, vector<1x8x512xf32>
    %174 = vector.shape_cast %173 : vector<1x8x512xf32> to vector<8x512xf32>
    %c0_72 = arith.constant 0 : index
    %c0_73 = arith.constant 0 : index
    %c0_74 = arith.constant 0 : index
    %175 = vector.load %arg3[%c0_72, %c0_73, %c0_74] : memref<1x128x512xf32, #tpu.memory_space<vmem>>, vector<1x128x512xf32>
    %176 = vector.shape_cast %175 : vector<1x128x512xf32> to vector<128x512xf32>
    %cst_75 = arith.constant dense<0.000000e+00> : vector<8x512xf32>
    %177 = tpu.matmul %164, %176, %cst_75 {dimension_numbers = #tpu.dot_dimension_numbers<[1], [0], [0], [1], [0, 0, 1, 1], [], []>} : vector<8x128xf32>, vector<128x512xf32>, vector<8x512xf32> -> vector<8x512xf32>
    %178 = arith.addf %174, %177 : vector<8x512xf32>
    %179 = vector.extract_strided_slice %178 {offsets = [0, 0], sizes = [8, 128], strides = [1, 1]} : vector<8x512xf32> to vector<8x128xf32>
    %180 = arith.negf %179 : vector<8x128xf32>
    %181 = math.exp %180 : vector<8x128xf32>
    %cst_76 = arith.constant 1.000000e+00 : f32
    %182 = vector.broadcast %cst_76 : f32 to vector<8x128xf32>
    %183 = arith.addf %182, %181 : vector<8x128xf32>
    %184 = arith.divf %182, %183 : vector<8x128xf32>
    %185 = vector.extract_strided_slice %178 {offsets = [0, 128], sizes = [8, 128], strides = [1, 1]} : vector<8x512xf32> to vector<8x128xf32>
    %186 = arith.negf %185 : vector<8x128xf32>
    %187 = math.exp %186 : vector<8x128xf32>
    %cst_77 = arith.constant 1.000000e+00 : f32
    %188 = vector.broadcast %cst_77 : f32 to vector<8x128xf32>
    %189 = arith.addf %188, %187 : vector<8x128xf32>
    %190 = arith.divf %188, %189 : vector<8x128xf32>
    %191 = vector.extract_strided_slice %178 {offsets = [0, 256], sizes = [8, 128], strides = [1, 1]} : vector<8x512xf32> to vector<8x128xf32>
    %192 = math.tanh %191 : vector<8x128xf32>
    %193 = vector.extract_strided_slice %178 {offsets = [0, 384], sizes = [8, 128], strides = [1, 1]} : vector<8x512xf32> to vector<8x128xf32>
    %194 = arith.negf %193 : vector<8x128xf32>
    %195 = math.exp %194 : vector<8x128xf32>
    %cst_78 = arith.constant 1.000000e+00 : f32
    %196 = vector.broadcast %cst_78 : f32 to vector<8x128xf32>
    %197 = arith.addf %196, %195 : vector<8x128xf32>
    %198 = arith.divf %196, %197 : vector<8x128xf32>
    %199 = arith.mulf %190, %162 : vector<8x128xf32>
    %200 = arith.mulf %184, %192 : vector<8x128xf32>
    %201 = arith.addf %199, %200 : vector<8x128xf32>
    %202 = math.tanh %201 : vector<8x128xf32>
    %203 = arith.mulf %198, %202 : vector<8x128xf32>
    %c0_79 = arith.constant 0 : index
    %204 = arith.index_cast %171 : i32 to index
    %c0_80 = arith.constant 0 : index
    %c0_81 = arith.constant 0 : index
    %205 = vector.load %arg5[%c0_79, %204, %c0_80, %c0_81] : memref<1x8x8x128xf32, #tpu.memory_space<vmem>>, vector<1x1x8x128xf32>
    %206 = vector.shape_cast %205 : vector<1x1x8x128xf32> to vector<8x128xf32>
    %207 = vector.shape_cast %203 : vector<8x128xf32> to vector<1x1x8x128xf32>
    tpu.vector_store %arg5[%c0_79, %204, %c0_80, %c0_81], %207 {strides = array<i32>} : memref<1x8x8x128xf32, #tpu.memory_space<vmem>>, vector<1x1x8x128xf32>,
    %c5_i32 = arith.constant 5 : i32
    %c0_i32_82 = arith.constant 0 : i32
    %208 = arith.cmpi eq, %arg0, %c0_i32_82 : i32
    %c7_i32_83 = arith.constant 7 : i32
    %209 = arith.subi %c7_i32_83, %c5_i32 : i32
    %210 = arith.select %208, %c5_i32, %209 : i32
    %211 = arith.index_cast %210 : i32 to index
    %c0_84 = arith.constant 0 : index
    %c0_85 = arith.constant 0 : index
    %212 = vector.load %arg6[%211, %c0_84, %c0_85] : memref<8x8x512xf32, #tpu.memory_space<vmem>>, vector<1x8x512xf32>
    %213 = vector.shape_cast %212 : vector<1x8x512xf32> to vector<8x512xf32>
    %c0_86 = arith.constant 0 : index
    %c0_87 = arith.constant 0 : index
    %c0_88 = arith.constant 0 : index
    %214 = vector.load %arg3[%c0_86, %c0_87, %c0_88] : memref<1x128x512xf32, #tpu.memory_space<vmem>>, vector<1x128x512xf32>
    %215 = vector.shape_cast %214 : vector<1x128x512xf32> to vector<128x512xf32>
    %cst_89 = arith.constant dense<0.000000e+00> : vector<8x512xf32>
    %216 = tpu.matmul %203, %215, %cst_89 {dimension_numbers = #tpu.dot_dimension_numbers<[1], [0], [0], [1], [0, 0, 1, 1], [], []>} : vector<8x128xf32>, vector<128x512xf32>, vector<8x512xf32> -> vector<8x512xf32>
    %217 = arith.addf %213, %216 : vector<8x512xf32>
    %218 = vector.extract_strided_slice %217 {offsets = [0, 0], sizes = [8, 128], strides = [1, 1]} : vector<8x512xf32> to vector<8x128xf32>
    %219 = arith.negf %218 : vector<8x128xf32>
    %220 = math.exp %219 : vector<8x128xf32>
    %cst_90 = arith.constant 1.000000e+00 : f32
    %221 = vector.broadcast %cst_90 : f32 to vector<8x128xf32>
    %222 = arith.addf %221, %220 : vector<8x128xf32>
    %223 = arith.divf %221, %222 : vector<8x128xf32>
    %224 = vector.extract_strided_slice %217 {offsets = [0, 128], sizes = [8, 128], strides = [1, 1]} : vector<8x512xf32> to vector<8x128xf32>
    %225 = arith.negf %224 : vector<8x128xf32>
    %226 = math.exp %225 : vector<8x128xf32>
    %cst_91 = arith.constant 1.000000e+00 : f32
    %227 = vector.broadcast %cst_91 : f32 to vector<8x128xf32>
    %228 = arith.addf %227, %226 : vector<8x128xf32>
    %229 = arith.divf %227, %228 : vector<8x128xf32>
    %230 = vector.extract_strided_slice %217 {offsets = [0, 256], sizes = [8, 128], strides = [1, 1]} : vector<8x512xf32> to vector<8x128xf32>
    %231 = math.tanh %230 : vector<8x128xf32>
    %232 = vector.extract_strided_slice %217 {offsets = [0, 384], sizes = [8, 128], strides = [1, 1]} : vector<8x512xf32> to vector<8x128xf32>
    %233 = arith.negf %232 : vector<8x128xf32>
    %234 = math.exp %233 : vector<8x128xf32>
    %cst_92 = arith.constant 1.000000e+00 : f32
    %235 = vector.broadcast %cst_92 : f32 to vector<8x128xf32>
    %236 = arith.addf %235, %234 : vector<8x128xf32>
    %237 = arith.divf %235, %236 : vector<8x128xf32>
    %238 = arith.mulf %229, %201 : vector<8x128xf32>
    %239 = arith.mulf %223, %231 : vector<8x128xf32>
    %240 = arith.addf %238, %239 : vector<8x128xf32>
    %241 = math.tanh %240 : vector<8x128xf32>
    %242 = arith.mulf %237, %241 : vector<8x128xf32>
    %c0_93 = arith.constant 0 : index
    %243 = arith.index_cast %210 : i32 to index
    %c0_94 = arith.constant 0 : index
    %c0_95 = arith.constant 0 : index
    %244 = vector.load %arg5[%c0_93, %243, %c0_94, %c0_95] : memref<1x8x8x128xf32, #tpu.memory_space<vmem>>, vector<1x1x8x128xf32>
    %245 = vector.shape_cast %244 : vector<1x1x8x128xf32> to vector<8x128xf32>
    %246 = vector.shape_cast %242 : vector<8x128xf32> to vector<1x1x8x128xf32>
    tpu.vector_store %arg5[%c0_93, %243, %c0_94, %c0_95], %246 {strides = array<i32>} : memref<1x8x8x128xf32, #tpu.memory_space<vmem>>, vector<1x1x8x128xf32>,
    %c6_i32 = arith.constant 6 : i32
    %c0_i32_96 = arith.constant 0 : i32
    %247 = arith.cmpi eq, %arg0, %c0_i32_96 : i32
    %c7_i32_97 = arith.constant 7 : i32
    %248 = arith.subi %c7_i32_97, %c6_i32 : i32
    %249 = arith.select %247, %c6_i32, %248 : i32
    %250 = arith.index_cast %249 : i32 to index
    %c0_98 = arith.constant 0 : index
    %c0_99 = arith.constant 0 : index
    %251 = vector.load %arg6[%250, %c0_98, %c0_99] : memref<8x8x512xf32, #tpu.memory_space<vmem>>, vector<1x8x512xf32>
    %252 = vector.shape_cast %251 : vector<1x8x512xf32> to vector<8x512xf32>
    %c0_100 = arith.constant 0 : index
    %c0_101 = arith.constant 0 : index
    %c0_102 = arith.constant 0 : index
    %253 = vector.load %arg3[%c0_100, %c0_101, %c0_102] : memref<1x128x512xf32, #tpu.memory_space<vmem>>, vector<1x128x512xf32>
    %254 = vector.shape_cast %253 : vector<1x128x512xf32> to vector<128x512xf32>
    %cst_103 = arith.constant dense<0.000000e+00> : vector<8x512xf32>
    %255 = tpu.matmul %242, %254, %cst_103 {dimension_numbers = #tpu.dot_dimension_numbers<[1], [0], [0], [1], [0, 0, 1, 1], [], []>} : vector<8x128xf32>, vector<128x512xf32>, vector<8x512xf32> -> vector<8x512xf32>
    %256 = arith.addf %252, %255 : vector<8x512xf32>
    %257 = vector.extract_strided_slice %256 {offsets = [0, 0], sizes = [8, 128], strides = [1, 1]} : vector<8x512xf32> to vector<8x128xf32>
    %258 = arith.negf %257 : vector<8x128xf32>
    %259 = math.exp %258 : vector<8x128xf32>
    %cst_104 = arith.constant 1.000000e+00 : f32
    %260 = vector.broadcast %cst_104 : f32 to vector<8x128xf32>
    %261 = arith.addf %260, %259 : vector<8x128xf32>
    %262 = arith.divf %260, %261 : vector<8x128xf32>
    %263 = vector.extract_strided_slice %256 {offsets = [0, 128], sizes = [8, 128], strides = [1, 1]} : vector<8x512xf32> to vector<8x128xf32>
    %264 = arith.negf %263 : vector<8x128xf32>
    %265 = math.exp %264 : vector<8x128xf32>
    %cst_105 = arith.constant 1.000000e+00 : f32
    %266 = vector.broadcast %cst_105 : f32 to vector<8x128xf32>
    %267 = arith.addf %266, %265 : vector<8x128xf32>
    %268 = arith.divf %266, %267 : vector<8x128xf32>
    %269 = vector.extract_strided_slice %256 {offsets = [0, 256], sizes = [8, 128], strides = [1, 1]} : vector<8x512xf32> to vector<8x128xf32>
    %270 = math.tanh %269 : vector<8x128xf32>
    %271 = vector.extract_strided_slice %256 {offsets = [0, 384], sizes = [8, 128], strides = [1, 1]} : vector<8x512xf32> to vector<8x128xf32>
    %272 = arith.negf %271 : vector<8x128xf32>
    %273 = math.exp %272 : vector<8x128xf32>
    %cst_106 = arith.constant 1.000000e+00 : f32
    %274 = vector.broadcast %cst_106 : f32 to vector<8x128xf32>
    %275 = arith.addf %274, %273 : vector<8x128xf32>
    %276 = arith.divf %274, %275 : vector<8x128xf32>
    %277 = arith.mulf %268, %240 : vector<8x128xf32>
    %278 = arith.mulf %262, %270 : vector<8x128xf32>
    %279 = arith.addf %277, %278 : vector<8x128xf32>
    %280 = math.tanh %279 : vector<8x128xf32>
    %281 = arith.mulf %276, %280 : vector<8x128xf32>
    %c0_107 = arith.constant 0 : index
    %282 = arith.index_cast %249 : i32 to index
    %c0_108 = arith.constant 0 : index
    %c0_109 = arith.constant 0 : index
    %283 = vector.load %arg5[%c0_107, %282, %c0_108, %c0_109] : memref<1x8x8x128xf32, #tpu.memory_space<vmem>>, vector<1x1x8x128xf32>
    %284 = vector.shape_cast %283 : vector<1x1x8x128xf32> to vector<8x128xf32>
    %285 = vector.shape_cast %281 : vector<8x128xf32> to vector<1x1x8x128xf32>
    tpu.vector_store %arg5[%c0_107, %282, %c0_108, %c0_109], %285 {strides = array<i32>} : memref<1x8x8x128xf32, #tpu.memory_space<vmem>>, vector<1x1x8x128xf32>,
    %c7_i32_110 = arith.constant 7 : i32
    %c0_i32_111 = arith.constant 0 : i32
    %286 = arith.cmpi eq, %arg0, %c0_i32_111 : i32
    %c7_i32_112 = arith.constant 7 : i32
    %287 = arith.subi %c7_i32_112, %c7_i32_110 : i32
    %288 = arith.select %286, %c7_i32_110, %287 : i32
    %289 = arith.index_cast %288 : i32 to index
    %c0_113 = arith.constant 0 : index
    %c0_114 = arith.constant 0 : index
    %290 = vector.load %arg6[%289, %c0_113, %c0_114] : memref<8x8x512xf32, #tpu.memory_space<vmem>>, vector<1x8x512xf32>
    %291 = vector.shape_cast %290 : vector<1x8x512xf32> to vector<8x512xf32>
    %c0_115 = arith.constant 0 : index
    %c0_116 = arith.constant 0 : index
    %c0_117 = arith.constant 0 : index
    %292 = vector.load %arg3[%c0_115, %c0_116, %c0_117] : memref<1x128x512xf32, #tpu.memory_space<vmem>>, vector<1x128x512xf32>
    %293 = vector.shape_cast %292 : vector<1x128x512xf32> to vector<128x512xf32>
    %cst_118 = arith.constant dense<0.000000e+00> : vector<8x512xf32>
    %294 = tpu.matmul %281, %293, %cst_118 {dimension_numbers = #tpu.dot_dimension_numbers<[1], [0], [0], [1], [0, 0, 1, 1], [], []>} : vector<8x128xf32>, vector<128x512xf32>, vector<8x512xf32> -> vector<8x512xf32>
    %295 = arith.addf %291, %294 : vector<8x512xf32>
    %296 = vector.extract_strided_slice %295 {offsets = [0, 0], sizes = [8, 128], strides = [1, 1]} : vector<8x512xf32> to vector<8x128xf32>
    %297 = arith.negf %296 : vector<8x128xf32>
    %298 = math.exp %297 : vector<8x128xf32>
    %cst_119 = arith.constant 1.000000e+00 : f32
    %299 = vector.broadcast %cst_119 : f32 to vector<8x128xf32>
    %300 = arith.addf %299, %298 : vector<8x128xf32>
    %301 = arith.divf %299, %300 : vector<8x128xf32>
    %302 = vector.extract_strided_slice %295 {offsets = [0, 128], sizes = [8, 128], strides = [1, 1]} : vector<8x512xf32> to vector<8x128xf32>
    %303 = arith.negf %302 : vector<8x128xf32>
    %304 = math.exp %303 : vector<8x128xf32>
    %cst_120 = arith.constant 1.000000e+00 : f32
    %305 = vector.broadcast %cst_120 : f32 to vector<8x128xf32>
    %306 = arith.addf %305, %304 : vector<8x128xf32>
    %307 = arith.divf %305, %306 : vector<8x128xf32>
    %308 = vector.extract_strided_slice %295 {offsets = [0, 256], sizes = [8, 128], strides = [1, 1]} : vector<8x512xf32> to vector<8x128xf32>
    %309 = math.tanh %308 : vector<8x128xf32>
    %310 = vector.extract_strided_slice %295 {offsets = [0, 384], sizes = [8, 128], strides = [1, 1]} : vector<8x512xf32> to vector<8x128xf32>
    %311 = arith.negf %310 : vector<8x128xf32>
    %312 = math.exp %311 : vector<8x128xf32>
    %cst_121 = arith.constant 1.000000e+00 : f32
    %313 = vector.broadcast %cst_121 : f32 to vector<8x128xf32>
    %314 = arith.addf %313, %312 : vector<8x128xf32>
    %315 = arith.divf %313, %314 : vector<8x128xf32>
    %316 = arith.mulf %307, %279 : vector<8x128xf32>
    %317 = arith.mulf %301, %309 : vector<8x128xf32>
    %318 = arith.addf %316, %317 : vector<8x128xf32>
    %319 = math.tanh %318 : vector<8x128xf32>
    %320 = arith.mulf %315, %319 : vector<8x128xf32>
    %c0_122 = arith.constant 0 : index
    %321 = arith.index_cast %288 : i32 to index
    %c0_123 = arith.constant 0 : index
    %c0_124 = arith.constant 0 : index
    %322 = vector.load %arg5[%c0_122, %321, %c0_123, %c0_124] : memref<1x8x8x128xf32, #tpu.memory_space<vmem>>, vector<1x1x8x128xf32>
    %323 = vector.shape_cast %322 : vector<1x1x8x128xf32> to vector<8x128xf32>
    %324 = vector.shape_cast %320 : vector<8x128xf32> to vector<1x1x8x128xf32>
    tpu.vector_store %arg5[%c0_122, %321, %c0_123, %c0_124], %324 {strides = array<i32>} : memref<1x8x8x128xf32, #tpu.memory_space<vmem>>, vector<1x1x8x128xf32>,
    %c8_i32 = arith.constant 8 : i32
    return
  }
  func.func @transform_0(%arg0: i32) -> (i32, i32, i32) {
    %c0_i32 = arith.constant 0 : i32
    %c0_i32_0 = arith.constant 0 : i32
    %c0_i32_1 = arith.constant 0 : i32
    %c0_i32_2 = arith.constant 0 : i32
    return %c0_i32, %c0_i32_0, %c0_i32_1 : i32, i32, i32
  }
  func.func @transform_1(%arg0: i32) -> (i32, i32, i32) {
    %c0_i32 = arith.constant 0 : i32
    %c0_i32_0 = arith.constant 0 : i32
    %c0_i32_1 = arith.constant 0 : i32
    return %arg0, %c0_i32, %c0_i32_0 : i32, i32, i32
  }
  func.func @transform_2(%arg0: i32) -> (i32, i32, i32) {
    %c0_i32 = arith.constant 0 : i32
    %c0_i32_0 = arith.constant 0 : i32
    %c0_i32_1 = arith.constant 0 : i32
    return %arg0, %c0_i32, %c0_i32_0 : i32, i32, i32
  }
  func.func @transform_3(%arg0: i32) -> (i32, i32, i32) {
    %c0_i32 = arith.constant 0 : i32
    %c0_i32_0 = arith.constant 0 : i32
    %c0_i32_1 = arith.constant 0 : i32
    return %arg0, %c0_i32, %c0_i32_0 : i32, i32, i32
  }
  func.func @transform_4(%arg0: i32) -> (i32, i32, i32, i32) {
    %c0_i32 = arith.constant 0 : i32
    %c0_i32_0 = arith.constant 0 : i32
    %c0_i32_1 = arith.constant 0 : i32
    %c0_i32_2 = arith.constant 0 : i32
    return %arg0, %c0_i32, %c0_i32_0, %c0_i32_1 : i32, i32, i32, i32
  }
}

module attributes {stable_mosaic.version = 11 : i64} {
  func.func @_fc_kernel(%arg0: memref<8x256xf32, #tpu.memory_space<vmem>>, %arg1: memref<256x10xf32, #tpu.memory_space<vmem>>, %arg2: memref<1x10xf32, #tpu.memory_space<vmem>>, %arg3: memref<8x10xf32, #tpu.memory_space<vmem>>) attributes {dimension_semantics = [], scalar_prefetch = 0 : i64, scratch_operands = 0 : i64, tpu.core_type = #tpu.core_type<tc>} {
    %c0 = arith.constant 0 : index
    %c0_0 = arith.constant 0 : index
    %0 = vector.load %arg0[%c0, %c0_0] : memref<8x256xf32, #tpu.memory_space<vmem>>, vector<8x256xf32>
    %c0_1 = arith.constant 0 : index
    %c0_2 = arith.constant 0 : index
    %1 = vector.load %arg1[%c0_1, %c0_2] : memref<256x10xf32, #tpu.memory_space<vmem>>, vector<256x10xf32>
    %cst = arith.constant dense<0.000000e+00> : vector<8x10xf32>
    %2 = tpu.matmul %0, %1, %cst {dimension_numbers = #tpu.dot_dimension_numbers<[1], [0], [0], [1], [0, 0, 1, 1], [], []>} : vector<8x256xf32>, vector<256x10xf32>, vector<8x10xf32> -> vector<8x10xf32>
    %c0_3 = arith.constant 0 : index
    %c0_4 = arith.constant 0 : index
    %3 = vector.load %arg2[%c0_3, %c0_4] : memref<1x10xf32, #tpu.memory_space<vmem>>, vector<1x10xf32>
    %4 = vector.broadcast %3 : vector<1x10xf32> to vector<8x10xf32>
    %5 = arith.addf %2, %4 : vector<8x10xf32>
    %c0_5 = arith.constant 0 : index
    %c0_6 = arith.constant 0 : index
    %6 = vector.load %arg3[%c0_5, %c0_6] : memref<8x10xf32, #tpu.memory_space<vmem>>, vector<8x10xf32>
    tpu.vector_store %arg3[%c0_5, %c0_6], %5 {strides = array<i32>} : memref<8x10xf32, #tpu.memory_space<vmem>>, vector<8x10xf32>,
    return
  }
}

</mosaic_0001>

<llo_original>
// kernel: blstm_forward.5
$region0: #{blstm_forward.5}
  #allocation0 [shape = 'u32[]', space=smem, size = 0x4, offset = 0x4, fixed_abs, tag = 'smem constant byte address 0x4 - core index']
  #allocation1 [shape = 'u32[144,128]{1,0:T(1,128)}', space=vmem, size = 0x12000, scoped, tag = 'internal scratch']
  %s0 = inlined_call_operand.vmem [shape: f32[8,256], index: 0, kind: input, shape index: {}]
  %s1 = inlined_call_operand.vmem [shape: f32[256,10], index: 1, kind: input, shape index: {}]
  %s2 = inlined_call_operand.vmem [shape: f32[1,10], index: 2, kind: input, shape index: {}]
  %s3 = inlined_call_operand.hbm [shape: f32[8,10], index: 3, kind: output, shape index: {}]
  %s4 = sld [smem:[#allocation0]]
  $region22: #{blstm_forward.5} parent=0
    _
  %s6 = ssub.s32 1, %s4
  %s7 = scalar_select 0, %s6, %s4
  $region1: #{blstm_forward.5} parent=0
    #allocation2 [shape = 'u8[4096]{0}', space=vmem, size = 0x1000, scoped, tag = 'output window, operand 0, single buffered']
    #allocation3 [shape = 's32[1]{0}', space=sflag, size = 0x4, scoped, tag = 'scoped memory for blstm_forward.5']
    %8 = vsyncpa [#allocation3], 0
    // Predicated region
    $region2: #{blstm_forward.5} parent=1 // pred_check
      _
    $region3: #{blstm_forward.5} parent=1 // pred_check_branch
      %10 = sbr.rel (0) target = $region5
    $region4: #{blstm_forward.5} parent=1 // pred_region
      _
    $region5: #{blstm_forward.5} parent=1 // pred_fallthru
      _
    // Predicated region
    $region6: #{blstm_forward.5} parent=1 // pred_check
      _
    $region7: #{blstm_forward.5} parent=1 // pred_check_branch
      %12 = sbr.rel (0) target = $region9
    $region8: #{blstm_forward.5} parent=1 // pred_region
      _
    $region9: #{blstm_forward.5} parent=1 // pred_fallthru
      _
    // Predicated region
    $region10: #{blstm_forward.5} parent=1 // pred_check
      _
    $region11: #{blstm_forward.5} parent=1 // pred_check_branch
      %14 = sbr.rel (0) target = $region13
    $region12: #{blstm_forward.5} parent=1 // pred_region
      _
    $region13: #{blstm_forward.5} parent=1 // pred_fallthru
      _
    %v15 = vld [vmem:[%s0] sm:$0xff]
    %v16 = vld [vmem:[%s0 + $0x8] sm:$0xff]
    %v17 = vld [vmem:[%s1] sm:$0xff]
    %v18 = vld [vmem:[%s1 + $0x8] sm:$0xff]
    %v19 = vld [vmem:[%s1 + $0x10] sm:$0xff]
    %v20 = vld [vmem:[%s1 + $0x18] sm:$0xff]
    %v21 = vld [vmem:[%s1 + $0x20] sm:$0xff]
    %v22 = vld [vmem:[%s1 + $0x28] sm:$0xff]
    %v23 = vld [vmem:[%s1 + $0x30] sm:$0xff]
    %v24 = vld [vmem:[%s1 + $0x38] sm:$0xff]
    %v25 = vld [vmem:[%s1 + $0x40] sm:$0xff]
    %v26 = vld [vmem:[%s1 + $0x48] sm:$0xff]
    %v27 = vld [vmem:[%s1 + $0x50] sm:$0xff]
    %v28 = vld [vmem:[%s1 + $0x58] sm:$0xff]
    %v29 = vld [vmem:[%s1 + $0x60] sm:$0xff]
    %v30 = vld [vmem:[%s1 + $0x68] sm:$0xff]
    %v31 = vld [vmem:[%s1 + $0x70] sm:$0xff]
    %v32 = vld [vmem:[%s1 + $0x78] sm:$0xff]
    %v33 = vld [vmem:[%s1 + $0x80] sm:$0xff]
    %v34 = vld [vmem:[%s1 + $0x88] sm:$0xff]
    %v35 = vld [vmem:[%s1 + $0x90] sm:$0xff]
    %v36 = vld [vmem:[%s1 + $0x98] sm:$0xff]
    %v37 = vld [vmem:[%s1 + $0xa0] sm:$0xff]
    %v38 = vld [vmem:[%s1 + $0xa8] sm:$0xff]
    %v39 = vld [vmem:[%s1 + $0xb0] sm:$0xff]
    %v40 = vld [vmem:[%s1 + $0xb8] sm:$0xff]
    %v41 = vld [vmem:[%s1 + $0xc0] sm:$0xff]
    %v42 = vld [vmem:[%s1 + $0xc8] sm:$0xff]
    %v43 = vld [vmem:[%s1 + $0xd0] sm:$0xff]
    %v44 = vld [vmem:[%s1 + $0xd8] sm:$0xff]
    %v45 = vld [vmem:[%s1 + $0xe0] sm:$0xff]
    %v46 = vld [vmem:[%s1 + $0xe8] sm:$0xff]
    %v47 = vld [vmem:[%s1 + $0xf0] sm:$0xff]
    %v48 = vld [vmem:[%s1 + $0xf8] sm:$0xff]
    %v49 = vld [vmem:[%s2] sm:$0x1]
    %v51 = vlaneseq
    %v52 = vshrl.u32 %v51, 7
    %v53 = vsub.s32 0, %v52
    %v54 = vrot.slane %v49, %v53
    %56 = vmatprep.subr.mxu0 0.0
    %57 = vmatpush1.msra.mxu0 %v32
    %58 = vmatprep.subr.mxu0 0.0
    %59 = vmatpush1.msra.mxu0 %v31
    %60 = vmatprep.subr.mxu0 0.0
    %61 = vmatpush1.msra.mxu0 %v30
    %62 = vmatprep.subr.mxu0 0.0
    %63 = vmatpush1.msra.mxu0 %v29
    %64 = vmatprep.subr.mxu0 0.0
    %65 = vmatpush1.msra.mxu0 %v28
    %66 = vmatprep.subr.mxu0 0.0
    %67 = vmatpush1.msra.mxu0 %v27
    %68 = vmatprep.subr.mxu0 0.0
    %69 = vmatpush1.msra.mxu0 %v26
    %70 = vmatprep.subr.mxu0 0.0
    %71 = vmatpush1.msra.mxu0 %v25
    %72 = vmatprep.subr.mxu0 0.0
    %73 = vmatpush1.msra.mxu0 %v24
    %74 = vmatprep.subr.mxu0 0.0
    %75 = vmatpush1.msra.mxu0 %v23
    %76 = vmatprep.subr.mxu0 0.0
    %77 = vmatpush1.msra.mxu0 %v22
    %78 = vmatprep.subr.mxu0 0.0
    %79 = vmatpush1.msra.mxu0 %v21
    %80 = vmatprep.subr.mxu0 0.0
    %81 = vmatpush1.msra.mxu0 %v20
    %82 = vmatprep.subr.mxu0 0.0
    %83 = vmatpush1.msra.mxu0 %v19
    %84 = vmatprep.subr.mxu0 0.0
    %85 = vmatpush1.msra.mxu0 %v18
    %86 = vmatprep.subr.mxu0 0.0
    %87 = vmatpush1.msra.mxu0 %v17
    %88 = vmatprep.subr.mxu0 0.0
    %89 = vmatpush2.msra.mxu0 %v48
    %90 = vmatprep.subr.mxu0 0.0
    %91 = vmatpush2.msra.mxu0 %v47
    %92 = vmatprep.subr.mxu0 0.0
    %93 = vmatpush2.msra.mxu0 %v46
    %94 = vmatprep.subr.mxu0 0.0
    %95 = vmatpush2.msra.mxu0 %v45
    %96 = vmatprep.subr.mxu0 0.0
    %97 = vmatpush2.msra.mxu0 %v44
    %98 = vmatprep.subr.mxu0 0.0
    %99 = vmatpush2.msra.mxu0 %v43
    %100 = vmatprep.subr.mxu0 0.0
    %101 = vmatpush2.msra.mxu0 %v42
    %102 = vmatprep.subr.mxu0 0.0
    %103 = vmatpush2.msra.mxu0 %v41
    %104 = vmatprep.subr.mxu0 0.0
    %105 = vmatpush2.msra.mxu0 %v40
    %106 = vmatprep.subr.mxu0 0.0
    %107 = vmatpush2.msra.mxu0 %v39
    %108 = vmatprep.subr.mxu0 0.0
    %109 = vmatpush2.msra.mxu0 %v38
    %110 = vmatprep.subr.mxu0 0.0
    %111 = vmatpush2.msra.mxu0 %v37
    %112 = vmatprep.subr.mxu0 0.0
    %113 = vmatpush2.msra.mxu0 %v36
    %114 = vmatprep.subr.mxu0 0.0
    %115 = vmatpush2.msra.mxu0 %v35
    %116 = vmatprep.subr.mxu0 0.0
    %117 = vmatpush2.msra.mxu0 %v34
    %118 = vmatprep.subr.mxu0 0.0
    %119 = vmatpush2.msra.mxu0 %v33
    %120 = vmatprep.mubr.f32.mxu0 %v16
    %121 = vmatmul.mubr.f32.gmra.mxu0 %v15
    %v122 = vpop.f32.mrf.mxu0
    %v123 = vadd.f32 %v54, %v122
    %v124 = vpop.f32.mrf.mxu0
    %125 = vdwg.mxu0
    %vm126 = vcmask 80896
    %127 = vst.msk [vmem:[#allocation2] sm:$0xff] %vm126, %v123
    // Predicated region
    $region14: #{blstm_forward.5} parent=1 // pred_check
      _
    $region15: #{blstm_forward.5} parent=1 // pred_check_branch
      %129 = sbr.rel (0) target = $region17
    $region16: #{blstm_forward.5} parent=1 // pred_region
      %s131 = ssub.s32 128, 128
      %132 = vsyncadd [#allocation3], %s131
      %s134 = sshll.u32 [#allocation2], 4
      %s135 = int_to_ptr.vmem [resolvable:$true] %s134
      %137 = dma.vmem_to_hbm [thread:$0]  %s135, 128, %s3, [#allocation3]
    $region17: #{blstm_forward.5} parent=1 // pred_fallthru
      _
    // Predicated region
    $region18: #{blstm_forward.5} parent=1 // pred_check
      _
    $region19: #{blstm_forward.5} parent=1 // pred_check_branch
      %139 = sbr.rel (0) target = $region21
    $region20: #{blstm_forward.5} parent=1 // pred_region
      %140 = dma.done [#allocation3], 128
    $region21: #{blstm_forward.5} parent=1 // pred_fallthru
      _
    %141 = vsyncpa [#allocation3], 1

// kernel: blstm_forward.3
$region0: #{blstm_forward.3}
  #allocation0 [shape = 'u32[]', space=smem, size = 0x4, offset = 0x4, fixed_abs, tag = 'smem constant byte address 0x4 - core index']
  #allocation1 [shape = 'u32[144,128]{1,0:T(1,128)}', space=vmem, size = 0x12000, scoped, tag = 'internal scratch']
  #allocation2 [shape = 'f32[8,8,512]{2,1,0:T(8,128)}', space=vmem, size = 0x20000, scoped, tag = 'scratch operand']
  %s0 = inlined_call_operand.vmem [shape: f32[8,8,28], index: 0, kind: input, shape index: {}]
  %s1 = inlined_call_operand.vmem [shape: f32[2,28,512], index: 1, kind: input, shape index: {}]
  %s2 = inlined_call_operand.hbm [shape: f32[2,128,512], index: 2, kind: input, shape index: {}]
  %s3 = inlined_call_operand.vmem [shape: f32[2,1,512], index: 3, kind: input, shape index: {}]
  %s4 = inlined_call_operand.vmem [shape: f32[2,8,8,128], index: 4, kind: output, shape index: {}]
  %s5 = sld [smem:[#allocation0]]
  $region53: #{blstm_forward.3} parent=0
    _
  %s7 = ssub.s32 1, %s5
  %s8 = scalar_select 0, %s7, %s5
  $region1: #{blstm_forward.3} parent=0
    #allocation3 [shape = 'u8[524288]{0}', space=vmem, size = 0x80000, scoped, tag = 'input window, operand 2']
    #allocation4 [shape = 's32[2]{0}', space=sflag, size = 0x8, scoped, tag = 'scoped memory for blstm_forward.3']
    %9 = vsyncpa [#allocation4], 0
    %s10 = scalar_lea.sflag [#allocation4], 1
    %11 = vsyncpa %s10, 0
    loop: start=0, step=1, limit=4
    $region2: #{blstm_forward.3} parent=1 // loop_pre_header
      _
    $region3: #{blstm_forward.3} parent=1 // loop_header
      %s13 = sphi 0, %s17
      %p14 = scmp.ge.s32.totalorder %s13, 4
      %s21 = sphi 0, %s21
      %s23 = sphi 0, %s21
      %s24 = sphi 0, %s23
      %s38 = sphi 0, %s24
      %s44 = sphi 0, %s46
      %s47 = sphi 0, %s44
      %s48 = sphi 0, %s47
      %s64 = sphi 0, %s48
      %s70 = sphi 0, %s72
      %s73 = sphi 0, %s70
      %s74 = sphi 0, %s73
      %s90 = sphi 0, %s74
      %s96 = sphi 0, %s98
      %s99 = sphi 0, %s96
      %s100 = sphi 0, %s99
      %s116 = sphi 0, %s100
      %s122 = sphi 0, %s124
      %s125 = sphi 0, %s122
      %s126 = sphi 0, %s125
      %s142 = sphi 0, %s126
    $region4: #{blstm_forward.3} parent=1 // loop_header_branch
      %16 = sbr.rel (%p14) target = $region8
    $region5: #{blstm_forward.3} parent=1 // loop_body
      %s18 = ssub.s32 %s13, 1
      %s19 = ssub.s32 %s13, 2
      %s20 = sadd.s32 %s13, 1
      %s22 = sadd.s32 %s21, 1
      %p25 = scmp.eq.s32.totalorder %s13, 1
      %p26 = scmp.ne.s32.totalorder %s21, %s23
      %p27 = scmp.eq.s32.totalorder %s13, 0
      %p28 = por %p26, %p27
      %p29 = scmp.ne.s32.totalorder %s21, %s23
      %p30 = scmp.eq.s32.totalorder %s18, 1
      %p31 = por %p29, %p30
      %p32 = scmp.ne.s32.totalorder %s23, %s24
      %p33 = scmp.eq.s32.totalorder %s18, 0
      %p34 = por %p32, %p33
      %p35 = scmp.ne.s32.totalorder %s23, %s24
      %p36 = scmp.eq.s32.totalorder %s19, 1
      %p37 = por %p35, %p36
      %p39 = scmp.ne.s32.totalorder %s24, %s38
      %p40 = scmp.eq.s32.totalorder %s19, 0
      %p41 = por %p39, %p40
      %s42 = ssub.s32 %s13, %s20
      %p43 = scmp.eq.s32.totalorder %s42, 0
      %s45 = sadd.s32 %s44, 1
      %s46 = scalar_select %p43, %s44, %s45
      %p49 = pneg %p43
      %p50 = scmp.eq.s32.totalorder %s13, 1
      %p51 = por %p49, %p50
      %p52 = scmp.ne.s32.totalorder %s44, %s47
      %p53 = scmp.eq.s32.totalorder %s13, 0
      %p54 = por %p52, %p53
      %p55 = scmp.ne.s32.totalorder %s44, %s47
      %p56 = scmp.eq.s32.totalorder %s18, 1
      %p57 = por %p55, %p56
      %p58 = scmp.ne.s32.totalorder %s47, %s48
      %p59 = scmp.eq.s32.totalorder %s18, 0
      %p60 = por %p58, %p59
      %p61 = scmp.ne.s32.totalorder %s47, %s48
      %p62 = scmp.eq.s32.totalorder %s19, 1
      %p63 = por %p61, %p62
      %p65 = scmp.ne.s32.totalorder %s48, %s64
      %p66 = scmp.eq.s32.totalorder %s19, 0
      %p67 = por %p65, %p66
      %s68 = ssub.s32 %s13, %s20
      %p69 = scmp.eq.s32.totalorder %s68, 0
      %s71 = sadd.s32 %s70, 1
      %s72 = scalar_select %p69, %s70, %s71
      %p75 = pneg %p69
      %p76 = scmp.eq.s32.totalorder %s13, 1
      %p77 = por %p75, %p76
      %p78 = scmp.ne.s32.totalorder %s70, %s73
      %p79 = scmp.eq.s32.totalorder %s13, 0
      %p80 = por %p78, %p79
      %p81 = scmp.ne.s32.totalorder %s70, %s73
      %p82 = scmp.eq.s32.totalorder %s18, 1
      %p83 = por %p81, %p82
      %p84 = scmp.ne.s32.totalorder %s73, %s74
      %p85 = scmp.eq.s32.totalorder %s18, 0
      %p86 = por %p84, %p85
      %p87 = scmp.ne.s32.totalorder %s73, %s74
      %p88 = scmp.eq.s32.totalorder %s19, 1
      %p89 = por %p87, %p88
      %p91 = scmp.ne.s32.totalorder %s74, %s90
      %p92 = scmp.eq.s32.totalorder %s19, 0
      %p93 = por %p91, %p92
      %s94 = ssub.s32 %s13, %s20
      %p95 = scmp.eq.s32.totalorder %s94, 0
      %s97 = sadd.s32 %s96, 1
      %s98 = scalar_select %p95, %s96, %s97
      %p101 = pneg %p95
      %p102 = scmp.eq.s32.totalorder %s13, 1
      %p103 = por %p101, %p102
      %p104 = scmp.ne.s32.totalorder %s96, %s99
      %p105 = scmp.eq.s32.totalorder %s13, 0
      %p106 = por %p104, %p105
      %p107 = scmp.ne.s32.totalorder %s96, %s99
      %p108 = scmp.eq.s32.totalorder %s18, 1
      %p109 = por %p107, %p108
      %p110 = scmp.ne.s32.totalorder %s99, %s100
      %p111 = scmp.eq.s32.totalorder %s18, 0
      %p112 = por %p110, %p111
      %p113 = scmp.ne.s32.totalorder %s99, %s100
      %p114 = scmp.eq.s32.totalorder %s19, 1
      %p115 = por %p113, %p114
      %p117 = scmp.ne.s32.totalorder %s100, %s116
      %p118 = scmp.eq.s32.totalorder %s19, 0
      %p119 = por %p117, %p118
      %s120 = ssub.s32 %s13, %s20
      %p121 = scmp.eq.s32.totalorder %s120, 0
      %s123 = sadd.s32 %s122, 1
      %s124 = scalar_select %p121, %s122, %s123
      %p127 = pneg %p121
      %p128 = scmp.eq.s32.totalorder %s13, 1
      %p129 = por %p127, %p128
      %p130 = scmp.ne.s32.totalorder %s122, %s125
      %p131 = scmp.eq.s32.totalorder %s13, 0
      %p132 = por %p130, %p131
      %p133 = scmp.ne.s32.totalorder %s122, %s125
      %p134 = scmp.eq.s32.totalorder %s18, 1
      %p135 = por %p133, %p134
      %p136 = scmp.ne.s32.totalorder %s125, %s126
      %p137 = scmp.eq.s32.totalorder %s18, 0
      %p138 = por %p136, %p137
      %p139 = scmp.ne.s32.totalorder %s125, %s126
      %p140 = scmp.eq.s32.totalorder %s19, 1
      %p141 = por %p139, %p140
      %p143 = scmp.ne.s32.totalorder %s126, %s142
      %p144 = scmp.eq.s32.totalorder %s19, 0
      %p145 = por %p143, %p144
      %p146 = scmp.le.s32.totalorder 1, %s13
      %p147 = scmp.lt.s32.totalorder %s13, 3
      %p148 = pnand %p146, %p147
      %p149 = pneg %p148
      // Predicated region
      $region9: #{blstm_forward.3} parent=5 // pred_check
        _
      $region10: #{blstm_forward.3} parent=5 // pred_check_branch
        %151 = sbr.rel (%p148) target = $region12
      $region11: #{blstm_forward.3} parent=5 // pred_region
        %s152 = ssub.s32 %s13, 1
        // Predicated region
        $region13: #{blstm_forward.3} parent=11 // pred_check
          %p153 = pneg %p34
        $region14: #{blstm_forward.3} parent=11 // pred_check_branch
          %155 = sbr.rel (%p153) target = $region16
        $region15: #{blstm_forward.3} parent=11 // pred_region
          _
        $region16: #{blstm_forward.3} parent=11 // pred_fallthru
          _
      $region12: #{blstm_forward.3} parent=5 // pred_fallthru
        _
      %p156 = scmp.lt.s32.totalorder %s13, 2
      // Predicated region
      $region17: #{blstm_forward.3} parent=5 // pred_check
        %p157 = pneg %p156
      $region18: #{blstm_forward.3} parent=5 // pred_check_branch
        %159 = sbr.rel (%p157) target = $region20
      $region19: #{blstm_forward.3} parent=5 // pred_region
        // Predicated region
        $region21: #{blstm_forward.3} parent=19 // pred_check
          %p160 = pneg %p54
        $region22: #{blstm_forward.3} parent=19 // pred_check_branch
          %162 = sbr.rel (%p160) target = $region24
        $region23: #{blstm_forward.3} parent=19 // pred_region
          %p163 = scmp.lt.s32.totalorder %s13, 1
          %s164 = scalar_select %p163, %s13, 1
          %s165 = smul.addr %s164, 16
          %s166 = smul.addr %s165, 8
          %s167 = scalar_lea.vmem %s1, %s166
        $region24: #{blstm_forward.3} parent=19 // pred_fallthru
          _
        // Predicated region
        $region25: #{blstm_forward.3} parent=19 // pred_check
          %p168 = pneg %p80
        $region26: #{blstm_forward.3} parent=19 // pred_check_branch
          %170 = sbr.rel (%p168) target = $region28
        $region27: #{blstm_forward.3} parent=19 // pred_region
          %s171 = sand.u32 %s70, 1
          %s172 = scalar_lea.sflag [#allocation4], %s171
          %s173 = sand.u32 %s70, 1
          %s174 = smul.addr %s173, 512
          %s175 = scalar_lea.vmem [#allocation3], %s174
          %s177 = ssub.s32 8192, 8192
          %178 = vsyncadd %s172, %s177
          %s179 = smul.addr %s13, 64
          %s180 = smul.addr %s179, 128
          %s181 = scalar_lea.hbm %s2, %s180
          %s182 = sshll.u32 %s175, 4
          %s183 = int_to_ptr.vmem [resolvable:$true] %s182
          %188 = dma.hbm_to_vmem [thread:$0]  %s181, 8192, %s183, %s172, 512, 512, 32
        $region28: #{blstm_forward.3} parent=19 // pred_fallthru
          _
        // Predicated region
        $region29: #{blstm_forward.3} parent=19 // pred_check
          %p189 = pneg %p106
        $region30: #{blstm_forward.3} parent=19 // pred_check_branch
          %191 = sbr.rel (%p189) target = $region32
        $region31: #{blstm_forward.3} parent=19 // pred_region
          %p192 = scmp.lt.s32.totalorder %s13, 1
          %s193 = scalar_select %p192, %s13, 1
          %s194 = smul.addr %s193, 4
          %s195 = scalar_lea.vmem %s3, %s194
        $region32: #{blstm_forward.3} parent=19 // pred_fallthru
          _
      $region20: #{blstm_forward.3} parent=5 // pred_fallthru
        _
      %p196 = scmp.le.s32.totalorder 1, %s13
      %p197 = scmp.lt.s32.totalorder %s13, 3
      %p198 = pnand %p196, %p197
      %p199 = pneg %p198
      // Predicated region
      $region33: #{blstm_forward.3} parent=5 // pred_check
        _
      $region34: #{blstm_forward.3} parent=5 // pred_check_branch
        %201 = sbr.rel (%p198) target = $region36
      $region35: #{blstm_forward.3} parent=5 // pred_region
        %s202 = ssub.s32 %s13, 1
        %s203 = sand.u32 %s73, 1
        %s204 = scalar_lea.sflag [#allocation4], %s203
        %s205 = sand.u32 %s73, 1
        %s206 = smul.addr %s205, 512
        %s207 = scalar_lea.vmem [#allocation3], %s206
        // Predicated region
        $region37: #{blstm_forward.3} parent=35 // pred_check
          %p208 = pneg %p86
        $region38: #{blstm_forward.3} parent=35 // pred_check_branch
          %210 = sbr.rel (%p208) target = $region40
        $region39: #{blstm_forward.3} parent=35 // pred_region
          %211 = dma.done %s204, 8192
        $region40: #{blstm_forward.3} parent=35 // pred_fallthru
          _
        %p212 = pneg %p34
        %p213 = pneg %p31
        %p214 = scmp.lt.s32.totalorder %s18, 1
        %s215 = scalar_select %p214, %s18, 1
        %s216 = smul.addr %s215, 16
        %s217 = smul.addr %s216, 8
        %s218 = scalar_lea.vmem %s1, %s217
        %p219 = pneg %p60
        %p220 = pneg %p57
        %s221 = sand.u32 %s73, 1
        %s222 = scalar_lea.sflag [#allocation4], %s221
        %s223 = sand.u32 %s73, 1
        %s224 = smul.addr %s223, 512
        %s225 = scalar_lea.vmem [#allocation3], %s224
        %p226 = pneg %p86
        %p227 = pneg %p83
        %p228 = scmp.lt.s32.totalorder %s18, 1
        %s229 = scalar_select %p228, %s18, 1
        %s230 = smul.addr %s229, 4
        %s231 = scalar_lea.vmem %s3, %s230
        %p232 = pneg %p112
        %p233 = pneg %p109
        %p234 = pneg %p138
        %p235 = pneg %p135
        %p236 = scmp.lt.s32.totalorder %s18, 1
        %s237 = scalar_select %p236, %s18, 1
        %s238 = smul.addr %s237, 8
        %s239 = smul.addr %s238, 8
        %s240 = scalar_lea.vmem %s4, %s239
        %p241 = scmp.lt.s32.totalorder %s18, 1
        %s242 = scalar_select %p241, %s18, 1
        %s243 = smul.addr %s242, 16
        %s244 = smul.addr %s243, 8
        %s245 = scalar_lea.vmem %s1, %s244
        %p246 = scmp.lt.s32.totalorder %s18, 1
        %s247 = scalar_select %p246, %s18, 1
        %s248 = smul.addr %s247, 4
        %s249 = scalar_lea.vmem %s3, %s248
        %p250 = scmp.lt.s32.totalorder %s18, 1
        %s251 = scalar_select %p250, %s18, 1
        %s252 = smul.addr %s251, 8
        %s253 = smul.addr %s252, 8
        %s254 = scalar_lea.vmem %s4, %s253
        %v255 = vld [vmem:[%s0] sm:$0xff]
        %v256 = vld [vmem:[%s0 + $0x8] sm:$0xff]
        %v257 = vld [vmem:[%s0 + $0x10] sm:$0xff]
        %v258 = vld [vmem:[%s0 + $0x18] sm:$0xff]
        %v259 = vld [vmem:[%s0 + $0x20] sm:$0xff]
        %v260 = vld [vmem:[%s0 + $0x28] sm:$0xff]
        %v261 = vld [vmem:[%s0 + $0x30] sm:$0xff]
        %v262 = vld [vmem:[%s0 + $0x38] sm:$0xff]
        %v263 = vld [vmem:[%s245] sm:$0xff]
        %v264 = vld [vmem:[%s245 + $0x8] sm:$0xff]
        %v265 = vld [vmem:[%s245 + $0x10] sm:$0xff]
        %v266 = vld [vmem:[%s245 + $0x18] sm:$0xff]
        %v267 = vld [vmem:[%s245 + $0x20] sm:$0xff]
        %v268 = vld [vmem:[%s245 + $0x28] sm:$0xff]
        %v269 = vld [vmem:[%s245 + $0x30] sm:$0xff]
        %v270 = vld [vmem:[%s245 + $0x38] sm:$0xff]
        %v271 = vld [vmem:[%s245 + $0x40] sm:$0xff]
        %v272 = vld [vmem:[%s245 + $0x48] sm:$0xff]
        %v273 = vld [vmem:[%s245 + $0x50] sm:$0xff]
        %v274 = vld [vmem:[%s245 + $0x58] sm:$0xff]
        %v275 = vld [vmem:[%s245 + $0x60] sm:$0xf]
        %v276 = vld [vmem:[%s245 + $0x68] sm:$0xf]
        %v277 = vld [vmem:[%s245 + $0x70] sm:$0xf]
        %v278 = vld [vmem:[%s245 + $0x78] sm:$0xf]
        %v279 = vld [vmem:[%s249] sm:$0xf]
        %v281 = vlaneseq
        %v282 = vshrl.u32 %v281, 7
        %v283 = vsub.s32 0, %v282
        %v284 = vrot.slane %v279, %v283
        %v285 = vlaneseq
        %v286 = vshrl.u32 %v285, 7
        %v287 = vsub.s32 1, %v286
        %v288 = vrot.slane %v279, %v287
        %v289 = vlaneseq
        %v290 = vshrl.u32 %v289, 7
        %v291 = vsub.s32 2, %v290
        %v292 = vrot.slane %v279, %v291
        %v293 = vlaneseq
        %v294 = vshrl.u32 %v293, 7
        %v295 = vsub.s32 3, %v294
        %v296 = vrot.slane %v279, %v295
        %vm301 = vcmask 228352
        %v303 = vsel %vm301, %v255, 0
        %v306 = vsel %vm301, %v256, 0
        %v309 = vsel %vm301, %v257, 0
        %v312 = vsel %vm301, %v258, 0
        %v315 = vsel %vm301, %v259, 0
        %v318 = vsel %vm301, %v260, 0
        %v321 = vsel %vm301, %v261, 0
        %v324 = vsel %vm301, %v262, 0
        %vm326 = vcmask 1043456
        %v328 = vsel %vm326, %v275, 0
        %v331 = vsel %vm326, %v276, 0
        %v334 = vsel %vm326, %v277, 0
        %v337 = vsel %vm326, %v278, 0
        %339 = vmatprep.subr.mxu0 0.0
        %340 = vmatpush1.msra.mxu0 0.0
        %341 = vmatprep.subr.mxu0 0.0
        %342 = vmatpush1.msra.mxu0 0.0
        %343 = vmatprep.subr.mxu0 0.0
        %344 = vmatpush1.msra.mxu0 0.0
        %345 = vmatprep.subr.mxu0 0.0
        %346 = vmatpush1.msra.mxu0 0.0
        %347 = vmatprep.subr.mxu0 0.0
        %348 = vmatpush1.msra.mxu0 0.0
        %349 = vmatprep.subr.mxu0 0.0
        %350 = vmatpush1.msra.mxu0 0.0
        %351 = vmatprep.subr.mxu0 0.0
        %352 = vmatpush1.msra.mxu0 0.0
        %353 = vmatprep.subr.mxu0 0.0
        %354 = vmatpush1.msra.mxu0 0.0
        %355 = vmatprep.subr.mxu0 0.0
        %356 = vmatpush1.msra.mxu0 0.0
        %357 = vmatprep.subr.mxu0 0.0
        %358 = vmatpush1.msra.mxu0 0.0
        %359 = vmatprep.subr.mxu0 0.0
        %360 = vmatpush1.msra.mxu0 0.0
        %361 = vmatprep.subr.mxu0 0.0
        %362 = vmatpush1.msra.mxu0 0.0
        %363 = vmatprep.subr.mxu0 %v331
        %364 = vmatpush1.msra.mxu0 %v328
        %365 = vmatprep.subr.mxu0 %v272
        %366 = vmatpush1.msra.mxu0 %v271
        %367 = vmatprep.subr.mxu0 %v268
        %368 = vmatpush1.msra.mxu0 %v267
        %369 = vmatprep.subr.mxu0 %v264
        %370 = vmatpush1.msra.mxu0 %v263
        %371 = vmatprep.subr.mxu0 0.0
        %372 = vmatpush2.msra.mxu0 0.0
        %373 = vmatprep.subr.mxu0 0.0
        %374 = vmatpush2.msra.mxu0 0.0
        %375 = vmatprep.subr.mxu0 0.0
        %376 = vmatpush2.msra.mxu0 0.0
        %377 = vmatprep.subr.mxu0 0.0
        %378 = vmatpush2.msra.mxu0 0.0
        %379 = vmatprep.subr.mxu0 0.0
        %380 = vmatpush2.msra.mxu0 0.0
        %381 = vmatprep.subr.mxu0 0.0
        %382 = vmatpush2.msra.mxu0 0.0
        %383 = vmatprep.subr.mxu0 0.0
        %384 = vmatpush2.msra.mxu0 0.0
        %385 = vmatprep.subr.mxu0 0.0
        %386 = vmatpush2.msra.mxu0 0.0
        %387 = vmatprep.subr.mxu0 0.0
        %388 = vmatpush2.msra.mxu0 0.0
        %389 = vmatprep.subr.mxu0 0.0
        %390 = vmatpush2.msra.mxu0 0.0
        %391 = vmatprep.subr.mxu0 0.0
        %392 = vmatpush2.msra.mxu0 0.0
        %393 = vmatprep.subr.mxu0 0.0
        %394 = vmatpush2.msra.mxu0 0.0
        %395 = vmatprep.subr.mxu0 0.0
        %396 = vmatpush2.msra.mxu0 0.0
        %397 = vmatprep.subr.mxu0 0.0
        %398 = vmatpush2.msra.mxu0 0.0
        %399 = vmatprep.subr.mxu0 0.0
        %400 = vmatpush2.msra.mxu0 0.0
        %401 = vmatprep.subr.mxu0 0.0
        %402 = vmatpush2.msra.mxu0 0.0
        %403 = vmatprep.mubr.f32.mxu0 0.0
        %404 = vmatmul.mubr.f32.gmra.mxu0 %v303
        %v405 = vpop.f32.mrf.mxu0
        %v406 = vadd.f32 %v284, %v405
        %v407 = vpop.f32.mrf.mxu0
        %v408 = vadd.f32 %v288, %v407
        %409 = vmatprep.mubr.f32.mxu0 0.0
        %410 = vmatmul.mubr.f32.gmra.mxu0 %v306
        %v411 = vpop.f32.mrf.mxu0
        %v412 = vadd.f32 %v284, %v411
        %v413 = vpop.f32.mrf.mxu0
        %v414 = vadd.f32 %v288, %v413
        %415 = vmatprep.mubr.f32.mxu0 0.0
        %416 = vmatmul.mubr.f32.gmra.mxu0 %v309
        %v417 = vpop.f32.mrf.mxu0
        %v418 = vadd.f32 %v284, %v417
        %v419 = vpop.f32.mrf.mxu0
        %v420 = vadd.f32 %v288, %v419
        %421 = vmatprep.mubr.f32.mxu0 0.0
        %422 = vmatmul.mubr.f32.gmra.mxu0 %v312
        %v423 = vpop.f32.mrf.mxu0
        %v424 = vadd.f32 %v284, %v423
        %v425 = vpop.f32.mrf.mxu0
        %v426 = vadd.f32 %v288, %v425
        %427 = vmatprep.mubr.f32.mxu0 0.0
        %428 = vmatmul.mubr.f32.gmra.mxu0 %v315
        %v429 = vpop.f32.mrf.mxu0
        %v430 = vadd.f32 %v284, %v429
        %v431 = vpop.f32.mrf.mxu0
        %v432 = vadd.f32 %v288, %v431
        %433 = vmatprep.mubr.f32.mxu0 0.0
        %434 = vmatmul.mubr.f32.gmra.mxu0 %v318
        %v435 = vpop.f32.mrf.mxu0
        %v436 = vadd.f32 %v284, %v435
        %v437 = vpop.f32.mrf.mxu0
        %v438 = vadd.f32 %v288, %v437
        %439 = vmatprep.mubr.f32.mxu0 0.0
        %440 = vmatmul.mubr.f32.gmra.mxu0 %v321
        %v441 = vpop.f32.mrf.mxu0
        %v442 = vadd.f32 %v284, %v441
        %v443 = vpop.f32.mrf.mxu0
        %v444 = vadd.f32 %v288, %v443
        %445 = vmatprep.mubr.f32.mxu0 0.0
        %446 = vmatmul.mubr.f32.gmra.mxu0 %v324
        %v447 = vpop.f32.mrf.mxu0
        %v448 = vadd.f32 %v284, %v447
        %v449 = vpop.f32.mrf.mxu0
        %v450 = vadd.f32 %v288, %v449
        %451 = vdwg.mxu0
        %452 = vmatprep.subr.mxu0 0.0
        %453 = vmatpush1.msra.mxu0 0.0
        %454 = vmatprep.subr.mxu0 0.0
        %455 = vmatpush1.msra.mxu0 0.0
        %456 = vmatprep.subr.mxu0 0.0
        %457 = vmatpush1.msra.mxu0 0.0
        %458 = vmatprep.subr.mxu0 0.0
        %459 = vmatpush1.msra.mxu0 0.0
        %460 = vmatprep.subr.mxu0 0.0
        %461 = vmatpush1.msra.mxu0 0.0
        %462 = vmatprep.subr.mxu0 0.0
        %463 = vmatpush1.msra.mxu0 0.0
        %464 = vmatprep.subr.mxu0 0.0
        %465 = vmatpush1.msra.mxu0 0.0
        %466 = vmatprep.subr.mxu0 0.0
        %467 = vmatpush1.msra.mxu0 0.0
        %468 = vmatprep.subr.mxu0 0.0
        %469 = vmatpush1.msra.mxu0 0.0
        %470 = vmatprep.subr.mxu0 0.0
        %471 = vmatpush1.msra.mxu0 0.0
        %472 = vmatprep.subr.mxu0 0.0
        %473 = vmatpush1.msra.mxu0 0.0
        %474 = vmatprep.subr.mxu0 0.0
        %475 = vmatpush1.msra.mxu0 0.0
        %476 = vmatprep.subr.mxu0 %v337
        %477 = vmatpush1.msra.mxu0 %v334
        %478 = vmatprep.subr.mxu0 %v274
        %479 = vmatpush1.msra.mxu0 %v273
        %480 = vmatprep.subr.mxu0 %v270
        %481 = vmatpush1.msra.mxu0 %v269
        %482 = vmatprep.subr.mxu0 %v266
        %483 = vmatpush1.msra.mxu0 %v265
        %484 = vmatprep.subr.mxu0 0.0
        %485 = vmatpush2.msra.mxu0 0.0
        %486 = vmatprep.subr.mxu0 0.0
        %487 = vmatpush2.msra.mxu0 0.0
        %488 = vmatprep.subr.mxu0 0.0
        %489 = vmatpush2.msra.mxu0 0.0
        %490 = vmatprep.subr.mxu0 0.0
        %491 = vmatpush2.msra.mxu0 0.0
        %492 = vmatprep.subr.mxu0 0.0
        %493 = vmatpush2.msra.mxu0 0.0
        %494 = vmatprep.subr.mxu0 0.0
        %495 = vmatpush2.msra.mxu0 0.0
        %496 = vmatprep.subr.mxu0 0.0
        %497 = vmatpush2.msra.mxu0 0.0
        %498 = vmatprep.subr.mxu0 0.0
        %499 = vmatpush2.msra.mxu0 0.0
        %500 = vmatprep.subr.mxu0 0.0
        %501 = vmatpush2.msra.mxu0 0.0
        %502 = vmatprep.subr.mxu0 0.0
        %503 = vmatpush2.msra.mxu0 0.0
        %504 = vmatprep.subr.mxu0 0.0
        %505 = vmatpush2.msra.mxu0 0.0
        %506 = vmatprep.subr.mxu0 0.0
        %507 = vmatpush2.msra.mxu0 0.0
        %508 = vmatprep.subr.mxu0 0.0
        %509 = vmatpush2.msra.mxu0 0.0
        %510 = vmatprep.subr.mxu0 0.0
        %511 = vmatpush2.msra.mxu0 0.0
        %512 = vmatprep.subr.mxu0 0.0
        %513 = vmatpush2.msra.mxu0 0.0
        %514 = vmatprep.subr.mxu0 0.0
        %515 = vmatpush2.msra.mxu0 0.0
        %516 = vmatprep.mubr.f32.mxu0 0.0
        %517 = vmatmul.mubr.f32.gmra.mxu0 %v303
        %v518 = vpop.f32.mrf.mxu0
        %v519 = vadd.f32 %v292, %v518
        %v520 = vpop.f32.mrf.mxu0
        %v521 = vadd.f32 %v296, %v520
        %522 = vmatprep.mubr.f32.mxu0 0.0
        %523 = vmatmul.mubr.f32.gmra.mxu0 %v306
        %v524 = vpop.f32.mrf.mxu0
        %v525 = vadd.f32 %v292, %v524
        %v526 = vpop.f32.mrf.mxu0
        %v527 = vadd.f32 %v296, %v526
        %528 = vmatprep.mubr.f32.mxu0 0.0
        %529 = vmatmul.mubr.f32.gmra.mxu0 %v309
        %v530 = vpop.f32.mrf.mxu0
        %v531 = vadd.f32 %v292, %v530
        %v532 = vpop.f32.mrf.mxu0
        %v533 = vadd.f32 %v296, %v532
        %534 = vmatprep.mubr.f32.mxu0 0.0
        %535 = vmatmul.mubr.f32.gmra.mxu0 %v312
        %v536 = vpop.f32.mrf.mxu0
        %v537 = vadd.f32 %v292, %v536
        %v538 = vpop.f32.mrf.mxu0
        %v539 = vadd.f32 %v296, %v538
        %540 = vmatprep.mubr.f32.mxu0 0.0
        %541 = vmatmul.mubr.f32.gmra.mxu0 %v315
        %v542 = vpop.f32.mrf.mxu0
        %v543 = vadd.f32 %v292, %v542
        %v544 = vpop.f32.mrf.mxu0
        %v545 = vadd.f32 %v296, %v544
        %546 = vmatprep.mubr.f32.mxu0 0.0
        %547 = vmatmul.mubr.f32.gmra.mxu0 %v318
        %v548 = vpop.f32.mrf.mxu0
        %v549 = vadd.f32 %v292, %v548
        %v550 = vpop.f32.mrf.mxu0
        %v551 = vadd.f32 %v296, %v550
        %552 = vmatprep.mubr.f32.mxu0 0.0
        %553 = vmatmul.mubr.f32.gmra.mxu0 %v321
        %v554 = vpop.f32.mrf.mxu0
        %v555 = vadd.f32 %v292, %v554
        %v556 = vpop.f32.mrf.mxu0
        %v557 = vadd.f32 %v296, %v556
        %558 = vmatprep.mubr.f32.mxu0 0.0
        %559 = vmatmul.mubr.f32.gmra.mxu0 %v324
        %v560 = vpop.f32.mrf.mxu0
        %v561 = vadd.f32 %v292, %v560
        %v562 = vpop.f32.mrf.mxu0
        %v563 = vadd.f32 %v296, %v562
        %564 = vdwg.mxu0
        %565 = vst [vmem:[#allocation2] sm:$0xff] %v406
        %566 = vst [vmem:[#allocation2 + $0x8] sm:$0xff] %v408
        %567 = vst [vmem:[#allocation2 + $0x10] sm:$0xff] %v519
        %568 = vst [vmem:[#allocation2 + $0x18] sm:$0xff] %v521
        %569 = vst [vmem:[#allocation2 + $0x20] sm:$0xff] %v412
        %570 = vst [vmem:[#allocation2 + $0x28] sm:$0xff] %v414
        %571 = vst [vmem:[#allocation2 + $0x30] sm:$0xff] %v525
        %572 = vst [vmem:[#allocation2 + $0x38] sm:$0xff] %v527
        %573 = vst [vmem:[#allocation2 + $0x40] sm:$0xff] %v418
        %574 = vst [vmem:[#allocation2 + $0x48] sm:$0xff] %v420
        %575 = vst [vmem:[#allocation2 + $0x50] sm:$0xff] %v531
        %576 = vst [vmem:[#allocation2 + $0x58] sm:$0xff] %v533
        %577 = vst [vmem:[#allocation2 + $0x60] sm:$0xff] %v424
        %578 = vst [vmem:[#allocation2 + $0x68] sm:$0xff] %v426
        %579 = vst [vmem:[#allocation2 + $0x70] sm:$0xff] %v537
        %580 = vst [vmem:[#allocation2 + $0x78] sm:$0xff] %v539
        %581 = vst [vmem:[#allocation2 + $0x80] sm:$0xff] %v430
        %582 = vst [vmem:[#allocation2 + $0x88] sm:$0xff] %v432
        %583 = vst [vmem:[#allocation2 + $0x90] sm:$0xff] %v543
        %584 = vst [vmem:[#allocation2 + $0x98] sm:$0xff] %v545
        %585 = vst [vmem:[#allocation2 + $0xa0] sm:$0xff] %v436
        %586 = vst [vmem:[#allocation2 + $0xa8] sm:$0xff] %v438
        %587 = vst [vmem:[#allocation2 + $0xb0] sm:$0xff] %v549
        %588 = vst [vmem:[#allocation2 + $0xb8] sm:$0xff] %v551
        %589 = vst [vmem:[#allocation2 + $0xc0] sm:$0xff] %v442
        %590 = vst [vmem:[#allocation2 + $0xc8] sm:$0xff] %v444
        %591 = vst [vmem:[#allocation2 + $0xd0] sm:$0xff] %v555
        %592 = vst [vmem:[#allocation2 + $0xd8] sm:$0xff] %v557
        %593 = vst [vmem:[#allocation2 + $0xe0] sm:$0xff] %v448
        %594 = vst [vmem:[#allocation2 + $0xe8] sm:$0xff] %v450
        %595 = vst [vmem:[#allocation2 + $0xf0] sm:$0xff] %v561
        %596 = vst [vmem:[#allocation2 + $0xf8] sm:$0xff] %v563
        %p597 = scmp.eq.s32.totalorder %s18, 0
        %s598 = scalar_select %p597, 0, 7
        %s599 = smul.u32 %s598, 4
        %s600 = smul.addr %s599, 8
        %s601 = scalar_lea.vmem [#allocation2], %s600
        %v602 = vld [vmem:[%s601] sm:$0xff]
        %v603 = vld [vmem:[%s601 + $0x8] sm:$0xff]
        %v604 = vld [vmem:[%s601 + $0x10] sm:$0xff]
        %v605 = vld [vmem:[%s601 + $0x18] sm:$0xff]
        %v606 = vld [vmem:[%s207] sm:$0xff]
        %v607 = vld [vmem:[%s207 + $0x8] sm:$0xff]
        %v608 = vld [vmem:[%s207 + $0x10] sm:$0xff]
        %v609 = vld [vmem:[%s207 + $0x18] sm:$0xff]
        %v610 = vld [vmem:[%s207 + $0x20] sm:$0xff]
        %v611 = vld [vmem:[%s207 + $0x28] sm:$0xff]
        %v612 = vld [vmem:[%s207 + $0x30] sm:$0xff]
        %v613 = vld [vmem:[%s207 + $0x38] sm:$0xff]
        %v614 = vld [vmem:[%s207 + $0x40] sm:$0xff]
        %v615 = vld [vmem:[%s207 + $0x48] sm:$0xff]
        %v616 = vld [vmem:[%s207 + $0x50] sm:$0xff]
        %v617 = vld [vmem:[%s207 + $0x58] sm:$0xff]
        %v618 = vld [vmem:[%s207 + $0x60] sm:$0xff]
        %v619 = vld [vmem:[%s207 + $0x68] sm:$0xff]
        %v620 = vld [vmem:[%s207 + $0x70] sm:$0xff]
        %v621 = vld [vmem:[%s207 + $0x78] sm:$0xff]
        %v622 = vld [vmem:[%s207 + $0x80] sm:$0xff]
        %v623 = vld [vmem:[%s207 + $0x88] sm:$0xff]
        %v624 = vld [vmem:[%s207 + $0x90] sm:$0xff]
        %v625 = vld [vmem:[%s207 + $0x98] sm:$0xff]
        %v626 = vld [vmem:[%s207 + $0xa0] sm:$0xff]
        %v627 = vld [vmem:[%s207 + $0xa8] sm:$0xff]
        %v628 = vld [vmem:[%s207 + $0xb0] sm:$0xff]
        %v629 = vld [vmem:[%s207 + $0xb8] sm:$0xff]
        %v630 = vld [vmem:[%s207 + $0xc0] sm:$0xff]
        %v631 = vld [vmem:[%s207 + $0xc8] sm:$0xff]
        %v632 = vld [vmem:[%s207 + $0xd0] sm:$0xff]
        %v633 = vld [vmem:[%s207 + $0xd8] sm:$0xff]
        %v634 = vld [vmem:[%s207 + $0xe0] sm:$0xff]
        %v635 = vld [vmem:[%s207 + $0xe8] sm:$0xff]
        %v636 = vld [vmem:[%s207 + $0xf0] sm:$0xff]
        %v637 = vld [vmem:[%s207 + $0xf8] sm:$0xff]
        %v638 = vld [vmem:[%s207 + $0x100] sm:$0xff]
        %v639 = vld [vmem:[%s207 + $0x108] sm:$0xff]
        %v640 = vld [vmem:[%s207 + $0x110] sm:$0xff]
        %v641 = vld [vmem:[%s207 + $0x118] sm:$0xff]
        %v642 = vld [vmem:[%s207 + $0x120] sm:$0xff]
        %v643 = vld [vmem:[%s207 + $0x128] sm:$0xff]
        %v644 = vld [vmem:[%s207 + $0x130] sm:$0xff]
        %v645 = vld [vmem:[%s207 + $0x138] sm:$0xff]
        %v646 = vld [vmem:[%s207 + $0x140] sm:$0xff]
        %v647 = vld [vmem:[%s207 + $0x148] sm:$0xff]
        %v648 = vld [vmem:[%s207 + $0x150] sm:$0xff]
        %v649 = vld [vmem:[%s207 + $0x158] sm:$0xff]
        %v650 = vld [vmem:[%s207 + $0x160] sm:$0xff]
        %v651 = vld [vmem:[%s207 + $0x168] sm:$0xff]
        %v652 = vld [vmem:[%s207 + $0x170] sm:$0xff]
        %v653 = vld [vmem:[%s207 + $0x178] sm:$0xff]
        %v654 = vld [vmem:[%s207 + $0x180] sm:$0xff]
        %v655 = vld [vmem:[%s207 + $0x188] sm:$0xff]
        %v656 = vld [vmem:[%s207 + $0x190] sm:$0xff]
        %v657 = vld [vmem:[%s207 + $0x198] sm:$0xff]
        %v658 = vld [vmem:[%s207 + $0x1a0] sm:$0xff]
        %v659 = vld [vmem:[%s207 + $0x1a8] sm:$0xff]
        %v660 = vld [vmem:[%s207 + $0x1b0] sm:$0xff]
        %v661 = vld [vmem:[%s207 + $0x1b8] sm:$0xff]
        %v662 = vld [vmem:[%s207 + $0x1c0] sm:$0xff]
        %v663 = vld [vmem:[%s207 + $0x1c8] sm:$0xff]
        %v664 = vld [vmem:[%s207 + $0x1d0] sm:$0xff]
        %v665 = vld [vmem:[%s207 + $0x1d8] sm:$0xff]
        %v666 = vld [vmem:[%s207 + $0x1e0] sm:$0xff]
        %v667 = vld [vmem:[%s207 + $0x1e8] sm:$0xff]
        %v668 = vld [vmem:[%s207 + $0x1f0] sm:$0xff]
        %v669 = vld [vmem:[%s207 + $0x1f8] sm:$0xff]
        %670 = vmatprep.subr.mxu0 %v667
        %671 = vmatpush1.msra.mxu0 %v666
        %672 = vmatprep.subr.mxu0 %v663
        %673 = vmatpush1.msra.mxu0 %v662
        %674 = vmatprep.subr.mxu0 %v659
        %675 = vmatpush1.msra.mxu0 %v658
        %676 = vmatprep.subr.mxu0 %v655
        %677 = vmatpush1.msra.mxu0 %v654
        %678 = vmatprep.subr.mxu0 %v651
        %679 = vmatpush1.msra.mxu0 %v650
        %680 = vmatprep.subr.mxu0 %v647
        %681 = vmatpush1.msra.mxu0 %v646
        %682 = vmatprep.subr.mxu0 %v643
        %683 = vmatpush1.msra.mxu0 %v642
        %684 = vmatprep.subr.mxu0 %v639
        %685 = vmatpush1.msra.mxu0 %v638
        %686 = vmatprep.subr.mxu0 %v635
        %687 = vmatpush1.msra.mxu0 %v634
        %688 = vmatprep.subr.mxu0 %v631
        %689 = vmatpush1.msra.mxu0 %v630
        %690 = vmatprep.subr.mxu0 %v627
        %691 = vmatpush1.msra.mxu0 %v626
        %692 = vmatprep.subr.mxu0 %v623
        %693 = vmatpush1.msra.mxu0 %v622
        %694 = vmatprep.subr.mxu0 %v619
        %695 = vmatpush1.msra.mxu0 %v618
        %696 = vmatprep.subr.mxu0 %v615
        %697 = vmatpush1.msra.mxu0 %v614
        %698 = vmatprep.subr.mxu0 %v611
        %699 = vmatpush1.msra.mxu0 %v610
        %700 = vmatprep.subr.mxu0 %v607
        %701 = vmatpush1.msra.mxu0 %v606
        %702 = vmatprep.subr.mxu0 0.0
        %703 = vmatpush2.msra.mxu0 0.0
        %704 = vmatprep.subr.mxu0 0.0
        %705 = vmatpush2.msra.mxu0 0.0
        %706 = vmatprep.subr.mxu0 0.0
        %707 = vmatpush2.msra.mxu0 0.0
        %708 = vmatprep.subr.mxu0 0.0
        %709 = vmatpush2.msra.mxu0 0.0
        %710 = vmatprep.subr.mxu0 0.0
        %711 = vmatpush2.msra.mxu0 0.0
        %712 = vmatprep.subr.mxu0 0.0
        %713 = vmatpush2.msra.mxu0 0.0
        %714 = vmatprep.subr.mxu0 0.0
        %715 = vmatpush2.msra.mxu0 0.0
        %716 = vmatprep.subr.mxu0 0.0
        %717 = vmatpush2.msra.mxu0 0.0
        %718 = vmatprep.subr.mxu0 0.0
        %719 = vmatpush2.msra.mxu0 0.0
        %720 = vmatprep.subr.mxu0 0.0
        %721 = vmatpush2.msra.mxu0 0.0
        %722 = vmatprep.subr.mxu0 0.0
        %723 = vmatpush2.msra.mxu0 0.0
        %724 = vmatprep.subr.mxu0 0.0
        %725 = vmatpush2.msra.mxu0 0.0
        %726 = vmatprep.subr.mxu0 0.0
        %727 = vmatpush2.msra.mxu0 0.0
        %728 = vmatprep.subr.mxu0 0.0
        %729 = vmatpush2.msra.mxu0 0.0
        %730 = vmatprep.subr.mxu0 0.0
        %731 = vmatpush2.msra.mxu0 0.0
        %732 = vmatprep.subr.mxu0 0.0
        %733 = vmatpush2.msra.mxu0 0.0
        %734 = vmatprep.mubr.f32.mxu0 0.0
        %735 = vmatmul.mubr.f32.gmra.mxu0 0.0
        %v736 = vpop.f32.mrf.mxu0
        %v737 = vadd.f32 0.0, %v736
        %v738 = vpop.f32.mrf.mxu0
        %v739 = vadd.f32 0.0, %v738
        %740 = vdwg.mxu0
        %741 = vmatprep.subr.mxu0 %v669
        %742 = vmatpush1.msra.mxu0 %v668
        %743 = vmatprep.subr.mxu0 %v665
        %744 = vmatpush1.msra.mxu0 %v664
        %745 = vmatprep.subr.mxu0 %v661
        %746 = vmatpush1.msra.mxu0 %v660
        %747 = vmatprep.subr.mxu0 %v657
        %748 = vmatpush1.msra.mxu0 %v656
        %749 = vmatprep.subr.mxu0 %v653
        %750 = vmatpush1.msra.mxu0 %v652
        %751 = vmatprep.subr.mxu0 %v649
        %752 = vmatpush1.msra.mxu0 %v648
        %753 = vmatprep.subr.mxu0 %v645
        %754 = vmatpush1.msra.mxu0 %v644
        %755 = vmatprep.subr.mxu0 %v641
        %756 = vmatpush1.msra.mxu0 %v640
        %757 = vmatprep.subr.mxu0 %v637
        %758 = vmatpush1.msra.mxu0 %v636
        %759 = vmatprep.subr.mxu0 %v633
        %760 = vmatpush1.msra.mxu0 %v632
        %761 = vmatprep.subr.mxu0 %v629
        %762 = vmatpush1.msra.mxu0 %v628
        %763 = vmatprep.subr.mxu0 %v625
        %764 = vmatpush1.msra.mxu0 %v624
        %765 = vmatprep.subr.mxu0 %v621
        %766 = vmatpush1.msra.mxu0 %v620
        %767 = vmatprep.subr.mxu0 %v617
        %768 = vmatpush1.msra.mxu0 %v616
        %769 = vmatprep.subr.mxu0 %v613
        %770 = vmatpush1.msra.mxu0 %v612
        %771 = vmatprep.subr.mxu0 %v609
        %772 = vmatpush1.msra.mxu0 %v608
        %773 = vmatprep.subr.mxu0 0.0
        %774 = vmatpush2.msra.mxu0 0.0
        %775 = vmatprep.subr.mxu0 0.0
        %776 = vmatpush2.msra.mxu0 0.0
        %777 = vmatprep.subr.mxu0 0.0
        %778 = vmatpush2.msra.mxu0 0.0
        %779 = vmatprep.subr.mxu0 0.0
        %780 = vmatpush2.msra.mxu0 0.0
        %781 = vmatprep.subr.mxu0 0.0
        %782 = vmatpush2.msra.mxu0 0.0
        %783 = vmatprep.subr.mxu0 0.0
        %784 = vmatpush2.msra.mxu0 0.0
        %785 = vmatprep.subr.mxu0 0.0
        %786 = vmatpush2.msra.mxu0 0.0
        %787 = vmatprep.subr.mxu0 0.0
        %788 = vmatpush2.msra.mxu0 0.0
        %789 = vmatprep.subr.mxu0 0.0
        %790 = vmatpush2.msra.mxu0 0.0
        %791 = vmatprep.subr.mxu0 0.0
        %792 = vmatpush2.msra.mxu0 0.0
        %793 = vmatprep.subr.mxu0 0.0
        %794 = vmatpush2.msra.mxu0 0.0
        %795 = vmatprep.subr.mxu0 0.0
        %796 = vmatpush2.msra.mxu0 0.0
        %797 = vmatprep.subr.mxu0 0.0
        %798 = vmatpush2.msra.mxu0 0.0
        %799 = vmatprep.subr.mxu0 0.0
        %800 = vmatpush2.msra.mxu0 0.0
        %801 = vmatprep.subr.mxu0 0.0
        %802 = vmatpush2.msra.mxu0 0.0
        %803 = vmatprep.subr.mxu0 0.0
        %804 = vmatpush2.msra.mxu0 0.0
        %805 = vmatprep.mubr.f32.mxu0 0.0
        %806 = vmatmul.mubr.f32.gmra.mxu0 0.0
        %v807 = vpop.f32.mrf.mxu0
        %v808 = vadd.f32 0.0, %v807
        %v809 = vpop.f32.mrf.mxu0
        %v810 = vadd.f32 0.0, %v809
        %811 = vdwg.mxu0
        %v812 = vadd.f32 %v602, %v737
        %v813 = vadd.f32 %v603, %v739
        %v814 = vadd.f32 %v604, %v808
        %v815 = vadd.f32 %v605, %v810
        %v816 = vxor.u32 %v812, 2147483648
        %v817 = vmul.f32 %v816, 1.442695
        %v818 = vpow.pop %v817
        %v819 = vadd.f32 %v818, 1.0
        %v820 = vrcp.pop %v819
        %v821 = vmul.f32 1.0, %v820
        %v822 = vxor.u32 %v813, 2147483648
        %v823 = vmul.f32 %v822, 1.442695
        %v824 = vpow.pop %v823
        %v825 = vadd.f32 %v824, 1.0
        %v826 = vrcp.pop %v825
        %v827 = vmul.f32 1.0, %v826
        %v828 = vtanh.pop %v814
        %v829 = vxor.u32 %v815, 2147483648
        %v830 = vmul.f32 %v829, 1.442695
        %v831 = vpow.pop %v830
        %v832 = vadd.f32 %v831, 1.0
        %v833 = vrcp.pop %v832
        %v834 = vmul.f32 1.0, %v833
        %v835 = vmul.f32 %v827, 0.0
        %v836 = vmul.f32 %v821, %v828
        %v837 = vadd.f32 %v835, %v836
        %v838 = vtanh.pop %v837
        %v839 = vmul.f32 %v834, %v838
        %s840 = smul.u32 %s598, 8
        %s841 = scalar_lea.vmem %s254, %s840
        %842 = vst [vmem:[%s841] sm:$0xff] %v839
        %s843 = scalar_select %p597, 1, 6
        %s844 = smul.u32 %s843, 4
        %s845 = smul.addr %s844, 8
        %s846 = scalar_lea.vmem [#allocation2], %s845
        %v847 = vld [vmem:[%s846] sm:$0xff]
        %v848 = vld [vmem:[%s846 + $0x8] sm:$0xff]
        %v849 = vld [vmem:[%s846 + $0x10] sm:$0xff]
        %v850 = vld [vmem:[%s846 + $0x18] sm:$0xff]
        %v851 = vld [vmem:[%s207] sm:$0xff]
        %v852 = vld [vmem:[%s207 + $0x8] sm:$0xff]
        %v853 = vld [vmem:[%s207 + $0x10] sm:$0xff]
        %v854 = vld [vmem:[%s207 + $0x18] sm:$0xff]
        %v855 = vld [vmem:[%s207 + $0x20] sm:$0xff]
        %v856 = vld [vmem:[%s207 + $0x28] sm:$0xff]
        %v857 = vld [vmem:[%s207 + $0x30] sm:$0xff]
        %v858 = vld [vmem:[%s207 + $0x38] sm:$0xff]
        %v859 = vld [vmem:[%s207 + $0x40] sm:$0xff]
        %v860 = vld [vmem:[%s207 + $0x48] sm:$0xff]
        %v861 = vld [vmem:[%s207 + $0x50] sm:$0xff]
        %v862 = vld [vmem:[%s207 + $0x58] sm:$0xff]
        %v863 = vld [vmem:[%s207 + $0x60] sm:$0xff]
        %v864 = vld [vmem:[%s207 + $0x68] sm:$0xff]
        %v865 = vld [vmem:[%s207 + $0x70] sm:$0xff]
        %v866 = vld [vmem:[%s207 + $0x78] sm:$0xff]
        %v867 = vld [vmem:[%s207 + $0x80] sm:$0xff]
        %v868 = vld [vmem:[%s207 + $0x88] sm:$0xff]
        %v869 = vld [vmem:[%s207 + $0x90] sm:$0xff]
        %v870 = vld [vmem:[%s207 + $0x98] sm:$0xff]
        %v871 = vld [vmem:[%s207 + $0xa0] sm:$0xff]
        %v872 = vld [vmem:[%s207 + $0xa8] sm:$0xff]
        %v873 = vld [vmem:[%s207 + $0xb0] sm:$0xff]
        %v874 = vld [vmem:[%s207 + $0xb8] sm:$0xff]
        %v875 = vld [vmem:[%s207 + $0xc0] sm:$0xff]
        %v876 = vld [vmem:[%s207 + $0xc8] sm:$0xff]
        %v877 = vld [vmem:[%s207 + $0xd0] sm:$0xff]
        %v878 = vld [vmem:[%s207 + $0xd8] sm:$0xff]
        %v879 = vld [vmem:[%s207 + $0xe0] sm:$0xff]
        %v880 = vld [vmem:[%s207 + $0xe8] sm:$0xff]
        %v881 = vld [vmem:[%s207 + $0xf0] sm:$0xff]
        %v882 = vld [vmem:[%s207 + $0xf8] sm:$0xff]
        %v883 = vld [vmem:[%s207 + $0x100] sm:$0xff]
        %v884 = vld [vmem:[%s207 + $0x108] sm:$0xff]
        %v885 = vld [vmem:[%s207 + $0x110] sm:$0xff]
        %v886 = vld [vmem:[%s207 + $0x118] sm:$0xff]
        %v887 = vld [vmem:[%s207 + $0x120] sm:$0xff]
        %v888 = vld [vmem:[%s207 + $0x128] sm:$0xff]
        %v889 = vld [vmem:[%s207 + $0x130] sm:$0xff]
        %v890 = vld [vmem:[%s207 + $0x138] sm:$0xff]
        %v891 = vld [vmem:[%s207 + $0x140] sm:$0xff]
        %v892 = vld [vmem:[%s207 + $0x148] sm:$0xff]
        %v893 = vld [vmem:[%s207 + $0x150] sm:$0xff]
        %v894 = vld [vmem:[%s207 + $0x158] sm:$0xff]
        %v895 = vld [vmem:[%s207 + $0x160] sm:$0xff]
        %v896 = vld [vmem:[%s207 + $0x168] sm:$0xff]
        %v897 = vld [vmem:[%s207 + $0x170] sm:$0xff]
        %v898 = vld [vmem:[%s207 + $0x178] sm:$0xff]
        %v899 = vld [vmem:[%s207 + $0x180] sm:$0xff]
        %v900 = vld [vmem:[%s207 + $0x188] sm:$0xff]
        %v901 = vld [vmem:[%s207 + $0x190] sm:$0xff]
        %v902 = vld [vmem:[%s207 + $0x198] sm:$0xff]
        %v903 = vld [vmem:[%s207 + $0x1a0] sm:$0xff]
        %v904 = vld [vmem:[%s207 + $0x1a8] sm:$0xff]
        %v905 = vld [vmem:[%s207 + $0x1b0] sm:$0xff]
        %v906 = vld [vmem:[%s207 + $0x1b8] sm:$0xff]
        %v907 = vld [vmem:[%s207 + $0x1c0] sm:$0xff]
        %v908 = vld [vmem:[%s207 + $0x1c8] sm:$0xff]
        %v909 = vld [vmem:[%s207 + $0x1d0] sm:$0xff]
        %v910 = vld [vmem:[%s207 + $0x1d8] sm:$0xff]
        %v911 = vld [vmem:[%s207 + $0x1e0] sm:$0xff]
        %v912 = vld [vmem:[%s207 + $0x1e8] sm:$0xff]
        %v913 = vld [vmem:[%s207 + $0x1f0] sm:$0xff]
        %v914 = vld [vmem:[%s207 + $0x1f8] sm:$0xff]
        %915 = vmatprep.subr.mxu0 %v912
        %916 = vmatpush1.msra.mxu0 %v911
        %917 = vmatprep.subr.mxu0 %v908
        %918 = vmatpush1.msra.mxu0 %v907
        %919 = vmatprep.subr.mxu0 %v904
        %920 = vmatpush1.msra.mxu0 %v903
        %921 = vmatprep.subr.mxu0 %v900
        %922 = vmatpush1.msra.mxu0 %v899
        %923 = vmatprep.subr.mxu0 %v896
        %924 = vmatpush1.msra.mxu0 %v895
        %925 = vmatprep.subr.mxu0 %v892
        %926 = vmatpush1.msra.mxu0 %v891
        %927 = vmatprep.subr.mxu0 %v888
        %928 = vmatpush1.msra.mxu0 %v887
        %929 = vmatprep.subr.mxu0 %v884
        %930 = vmatpush1.msra.mxu0 %v883
        %931 = vmatprep.subr.mxu0 %v880
        %932 = vmatpush1.msra.mxu0 %v879
        %933 = vmatprep.subr.mxu0 %v876
        %934 = vmatpush1.msra.mxu0 %v875
        %935 = vmatprep.subr.mxu0 %v872
        %936 = vmatpush1.msra.mxu0 %v871
        %937 = vmatprep.subr.mxu0 %v868
        %938 = vmatpush1.msra.mxu0 %v867
        %939 = vmatprep.subr.mxu0 %v864
        %940 = vmatpush1.msra.mxu0 %v863
        %941 = vmatprep.subr.mxu0 %v860
        %942 = vmatpush1.msra.mxu0 %v859
        %943 = vmatprep.subr.mxu0 %v856
        %944 = vmatpush1.msra.mxu0 %v855
        %945 = vmatprep.subr.mxu0 %v852
        %946 = vmatpush1.msra.mxu0 %v851
        %947 = vmatprep.subr.mxu0 0.0
        %948 = vmatpush2.msra.mxu0 0.0
        %949 = vmatprep.subr.mxu0 0.0
        %950 = vmatpush2.msra.mxu0 0.0
        %951 = vmatprep.subr.mxu0 0.0
        %952 = vmatpush2.msra.mxu0 0.0
        %953 = vmatprep.subr.mxu0 0.0
        %954 = vmatpush2.msra.mxu0 0.0
        %955 = vmatprep.subr.mxu0 0.0
        %956 = vmatpush2.msra.mxu0 0.0
        %957 = vmatprep.subr.mxu0 0.0
        %958 = vmatpush2.msra.mxu0 0.0
        %959 = vmatprep.subr.mxu0 0.0
        %960 = vmatpush2.msra.mxu0 0.0
        %961 = vmatprep.subr.mxu0 0.0
        %962 = vmatpush2.msra.mxu0 0.0
        %963 = vmatprep.subr.mxu0 0.0
        %964 = vmatpush2.msra.mxu0 0.0
        %965 = vmatprep.subr.mxu0 0.0
        %966 = vmatpush2.msra.mxu0 0.0
        %967 = vmatprep.subr.mxu0 0.0
        %968 = vmatpush2.msra.mxu0 0.0
        %969 = vmatprep.subr.mxu0 0.0
        %970 = vmatpush2.msra.mxu0 0.0
        %971 = vmatprep.subr.mxu0 0.0
        %972 = vmatpush2.msra.mxu0 0.0
        %973 = vmatprep.subr.mxu0 0.0
        %974 = vmatpush2.msra.mxu0 0.0
        %975 = vmatprep.subr.mxu0 0.0
        %976 = vmatpush2.msra.mxu0 0.0
        %977 = vmatprep.subr.mxu0 0.0
        %978 = vmatpush2.msra.mxu0 0.0
        %979 = vmatprep.mubr.f32.mxu0 0.0
        %980 = vmatmul.mubr.f32.gmra.mxu0 %v839
        %v981 = vpop.f32.mrf.mxu0
        %v982 = vadd.f32 0.0, %v981
        %v983 = vpop.f32.mrf.mxu0
        %v984 = vadd.f32 0.0, %v983
        %985 = vdwg.mxu0
        %986 = vmatprep.subr.mxu0 %v914
        %987 = vmatpush1.msra.mxu0 %v913
        %988 = vmatprep.subr.mxu0 %v910
        %989 = vmatpush1.msra.mxu0 %v909
        %990 = vmatprep.subr.mxu0 %v906
        %991 = vmatpush1.msra.mxu0 %v905
        %992 = vmatprep.subr.mxu0 %v902
        %993 = vmatpush1.msra.mxu0 %v901
        %994 = vmatprep.subr.mxu0 %v898
        %995 = vmatpush1.msra.mxu0 %v897
        %996 = vmatprep.subr.mxu0 %v894
        %997 = vmatpush1.msra.mxu0 %v893
        %998 = vmatprep.subr.mxu0 %v890
        %999 = vmatpush1.msra.mxu0 %v889
        %1000 = vmatprep.subr.mxu0 %v886
        %1001 = vmatpush1.msra.mxu0 %v885
        %1002 = vmatprep.subr.mxu0 %v882
        %1003 = vmatpush1.msra.mxu0 %v881
        %1004 = vmatprep.subr.mxu0 %v878
        %1005 = vmatpush1.msra.mxu0 %v877
        %1006 = vmatprep.subr.mxu0 %v874
        %1007 = vmatpush1.msra.mxu0 %v873
        %1008 = vmatprep.subr.mxu0 %v870
        %1009 = vmatpush1.msra.mxu0 %v869
        %1010 = vmatprep.subr.mxu0 %v866
        %1011 = vmatpush1.msra.mxu0 %v865
        %1012 = vmatprep.subr.mxu0 %v862
        %1013 = vmatpush1.msra.mxu0 %v861
        %1014 = vmatprep.subr.mxu0 %v858
        %1015 = vmatpush1.msra.mxu0 %v857
        %1016 = vmatprep.subr.mxu0 %v854
        %1017 = vmatpush1.msra.mxu0 %v853
        %1018 = vmatprep.subr.mxu0 0.0
        %1019 = vmatpush2.msra.mxu0 0.0
        %1020 = vmatprep.subr.mxu0 0.0
        %1021 = vmatpush2.msra.mxu0 0.0
        %1022 = vmatprep.subr.mxu0 0.0
        %1023 = vmatpush2.msra.mxu0 0.0
        %1024 = vmatprep.subr.mxu0 0.0
        %1025 = vmatpush2.msra.mxu0 0.0
        %1026 = vmatprep.subr.mxu0 0.0
        %1027 = vmatpush2.msra.mxu0 0.0
        %1028 = vmatprep.subr.mxu0 0.0
        %1029 = vmatpush2.msra.mxu0 0.0
        %1030 = vmatprep.subr.mxu0 0.0
        %1031 = vmatpush2.msra.mxu0 0.0
        %1032 = vmatprep.subr.mxu0 0.0
        %1033 = vmatpush2.msra.mxu0 0.0
        %1034 = vmatprep.subr.mxu0 0.0
        %1035 = vmatpush2.msra.mxu0 0.0
        %1036 = vmatprep.subr.mxu0 0.0
        %1037 = vmatpush2.msra.mxu0 0.0
        %1038 = vmatprep.subr.mxu0 0.0
        %1039 = vmatpush2.msra.mxu0 0.0
        %1040 = vmatprep.subr.mxu0 0.0
        %1041 = vmatpush2.msra.mxu0 0.0
        %1042 = vmatprep.subr.mxu0 0.0
        %1043 = vmatpush2.msra.mxu0 0.0
        %1044 = vmatprep.subr.mxu0 0.0
        %1045 = vmatpush2.msra.mxu0 0.0
        %1046 = vmatprep.subr.mxu0 0.0
        %1047 = vmatpush2.msra.mxu0 0.0
        %1048 = vmatprep.subr.mxu0 0.0
        %1049 = vmatpush2.msra.mxu0 0.0
        %1050 = vmatprep.mubr.f32.mxu0 0.0
        %1051 = vmatmul.mubr.f32.gmra.mxu0 %v839
        %v1052 = vpop.f32.mrf.mxu0
        %v1053 = vadd.f32 0.0, %v1052
        %v1054 = vpop.f32.mrf.mxu0
        %v1055 = vadd.f32 0.0, %v1054
        %1056 = vdwg.mxu0
        %v1057 = vadd.f32 %v847, %v982
        %v1058 = vadd.f32 %v848, %v984
        %v1059 = vadd.f32 %v849, %v1053
        %v1060 = vadd.f32 %v850, %v1055
        %v1061 = vxor.u32 %v1057, 2147483648
        %v1062 = vmul.f32 %v1061, 1.442695
        %v1063 = vpow.pop %v1062
        %v1064 = vadd.f32 %v1063, 1.0
        %v1065 = vrcp.pop %v1064
        %v1066 = vmul.f32 1.0, %v1065
        %v1067 = vxor.u32 %v1058, 2147483648
        %v1068 = vmul.f32 %v1067, 1.442695
        %v1069 = vpow.pop %v1068
        %v1070 = vadd.f32 %v1069, 1.0
        %v1071 = vrcp.pop %v1070
        %v1072 = vmul.f32 1.0, %v1071
        %v1073 = vtanh.pop %v1059
        %v1074 = vxor.u32 %v1060, 2147483648
        %v1075 = vmul.f32 %v1074, 1.442695
        %v1076 = vpow.pop %v1075
        %v1077 = vadd.f32 %v1076, 1.0
        %v1078 = vrcp.pop %v1077
        %v1079 = vmul.f32 1.0, %v1078
        %v1080 = vmul.f32 %v1072, %v837
        %v1081 = vmul.f32 %v1066, %v1073
        %v1082 = vadd.f32 %v1080, %v1081
        %v1083 = vtanh.pop %v1082
        %v1084 = vmul.f32 %v1079, %v1083
        %s1085 = smul.u32 %s843, 8
        %s1086 = scalar_lea.vmem %s254, %s1085
        %1087 = vst [vmem:[%s1086] sm:$0xff] %v1084
        %s1088 = scalar_select %p597, 2, 5
        %s1089 = smul.u32 %s1088, 4
        %s1090 = smul.addr %s1089, 8
        %s1091 = scalar_lea.vmem [#allocation2], %s1090
        %v1092 = vld [vmem:[%s1091] sm:$0xff]
        %v1093 = vld [vmem:[%s1091 + $0x8] sm:$0xff]
        %v1094 = vld [vmem:[%s1091 + $0x10] sm:$0xff]
        %v1095 = vld [vmem:[%s1091 + $0x18] sm:$0xff]
        %v1096 = vld [vmem:[%s207] sm:$0xff]
        %v1097 = vld [vmem:[%s207 + $0x8] sm:$0xff]
        %v1098 = vld [vmem:[%s207 + $0x10] sm:$0xff]
        %v1099 = vld [vmem:[%s207 + $0x18] sm:$0xff]
        %v1100 = vld [vmem:[%s207 + $0x20] sm:$0xff]
        %v1101 = vld [vmem:[%s207 + $0x28] sm:$0xff]
        %v1102 = vld [vmem:[%s207 + $0x30] sm:$0xff]
        %v1103 = vld [vmem:[%s207 + $0x38] sm:$0xff]
        %v1104 = vld [vmem:[%s207 + $0x40] sm:$0xff]
        %v1105 = vld [vmem:[%s207 + $0x48] sm:$0xff]
        %v1106 = vld [vmem:[%s207 + $0x50] sm:$0xff]
        %v1107 = vld [vmem:[%s207 + $0x58] sm:$0xff]
        %v1108 = vld [vmem:[%s207 + $0x60] sm:$0xff]
        %v1109 = vld [vmem:[%s207 + $0x68] sm:$0xff]
        %v1110 = vld [vmem:[%s207 + $0x70] sm:$0xff]
        %v1111 = vld [vmem:[%s207 + $0x78] sm:$0xff]
        %v1112 = vld [vmem:[%s207 + $0x80] sm:$0xff]
        %v1113 = vld [vmem:[%s207 + $0x88] sm:$0xff]
        %v1114 = vld [vmem:[%s207 + $0x90] sm:$0xff]
        %v1115 = vld [vmem:[%s207 + $0x98] sm:$0xff]
        %v1116 = vld [vmem:[%s207 + $0xa0] sm:$0xff]
        %v1117 = vld [vmem:[%s207 + $0xa8] sm:$0xff]
        %v1118 = vld [vmem:[%s207 + $0xb0] sm:$0xff]
        %v1119 = vld [vmem:[%s207 + $0xb8] sm:$0xff]
        %v1120 = vld [vmem:[%s207 + $0xc0] sm:$0xff]
        %v1121 = vld [vmem:[%s207 + $0xc8] sm:$0xff]
        %v1122 = vld [vmem:[%s207 + $0xd0] sm:$0xff]
        %v1123 = vld [vmem:[%s207 + $0xd8] sm:$0xff]
        %v1124 = vld [vmem:[%s207 + $0xe0] sm:$0xff]
        %v1125 = vld [vmem:[%s207 + $0xe8] sm:$0xff]
        %v1126 = vld [vmem:[%s207 + $0xf0] sm:$0xff]
        %v1127 = vld [vmem:[%s207 + $0xf8] sm:$0xff]
        %v1128 = vld [vmem:[%s207 + $0x100] sm:$0xff]
        %v1129 = vld [vmem:[%s207 + $0x108] sm:$0xff]
        %v1130 = vld [vmem:[%s207 + $0x110] sm:$0xff]
        %v1131 = vld [vmem:[%s207 + $0x118] sm:$0xff]
        %v1132 = vld [vmem:[%s207 + $0x120] sm:$0xff]
        %v1133 = vld [vmem:[%s207 + $0x128] sm:$0xff]
        %v1134 = vld [vmem:[%s207 + $0x130] sm:$0xff]
        %v1135 = vld [vmem:[%s207 + $0x138] sm:$0xff]
        %v1136 = vld [vmem:[%s207 + $0x140] sm:$0xff]
        %v1137 = vld [vmem:[%s207 + $0x148] sm:$0xff]
        %v1138 = vld [vmem:[%s207 + $0x150] sm:$0xff]
        %v1139 = vld [vmem:[%s207 + $0x158] sm:$0xff]
        %v1140 = vld [vmem:[%s207 + $0x160] sm:$0xff]
        %v1141 = vld [vmem:[%s207 + $0x168] sm:$0xff]
        %v1142 = vld [vmem:[%s207 + $0x170] sm:$0xff]
        %v1143 = vld [vmem:[%s207 + $0x178] sm:$0xff]
        %v1144 = vld [vmem:[%s207 + $0x180] sm:$0xff]
        %v1145 = vld [vmem:[%s207 + $0x188] sm:$0xff]
        %v1146 = vld [vmem:[%s207 + $0x190] sm:$0xff]
        %v1147 = vld [vmem:[%s207 + $0x198] sm:$0xff]
        %v1148 = vld [vmem:[%s207 + $0x1a0] sm:$0xff]
        %v1149 = vld [vmem:[%s207 + $0x1a8] sm:$0xff]
        %v1150 = vld [vmem:[%s207 + $0x1b0] sm:$0xff]
        %v1151 = vld [vmem:[%s207 + $0x1b8] sm:$0xff]
        %v1152 = vld [vmem:[%s207 + $0x1c0] sm:$0xff]
        %v1153 = vld [vmem:[%s207 + $0x1c8] sm:$0xff]
        %v1154 = vld [vmem:[%s207 + $0x1d0] sm:$0xff]
        %v1155 = vld [vmem:[%s207 + $0x1d8] sm:$0xff]
        %v1156 = vld [vmem:[%s207 + $0x1e0] sm:$0xff]
        %v1157 = vld [vmem:[%s207 + $0x1e8] sm:$0xff]
        %v1158 = vld [vmem:[%s207 + $0x1f0] sm:$0xff]
        %v1159 = vld [vmem:[%s207 + $0x1f8] sm:$0xff]
        %1160 = vmatprep.subr.mxu0 %v1157
        %1161 = vmatpush1.msra.mxu0 %v1156
        %1162 = vmatprep.subr.mxu0 %v1153
        %1163 = vmatpush1.msra.mxu0 %v1152
        %1164 = vmatprep.subr.mxu0 %v1149
        %1165 = vmatpush1.msra.mxu0 %v1148
        %1166 = vmatprep.subr.mxu0 %v1145
        %1167 = vmatpush1.msra.mxu0 %v1144
        %1168 = vmatprep.subr.mxu0 %v1141
        %1169 = vmatpush1.msra.mxu0 %v1140
        %1170 = vmatprep.subr.mxu0 %v1137
        %1171 = vmatpush1.msra.mxu0 %v1136
        %1172 = vmatprep.subr.mxu0 %v1133
        %1173 = vmatpush1.msra.mxu0 %v1132
        %1174 = vmatprep.subr.mxu0 %v1129
        %1175 = vmatpush1.msra.mxu0 %v1128
        %1176 = vmatprep.subr.mxu0 %v1125
        %1177 = vmatpush1.msra.mxu0 %v1124
        %1178 = vmatprep.subr.mxu0 %v1121
        %1179 = vmatpush1.msra.mxu0 %v1120
        %1180 = vmatprep.subr.mxu0 %v1117
        %1181 = vmatpush1.msra.mxu0 %v1116
        %1182 = vmatprep.subr.mxu0 %v1113
        %1183 = vmatpush1.msra.mxu0 %v1112
        %1184 = vmatprep.subr.mxu0 %v1109
        %1185 = vmatpush1.msra.mxu0 %v1108
        %1186 = vmatprep.subr.mxu0 %v1105
        %1187 = vmatpush1.msra.mxu0 %v1104
        %1188 = vmatprep.subr.mxu0 %v1101
        %1189 = vmatpush1.msra.mxu0 %v1100
        %1190 = vmatprep.subr.mxu0 %v1097
        %1191 = vmatpush1.msra.mxu0 %v1096
        %1192 = vmatprep.subr.mxu0 0.0
        %1193 = vmatpush2.msra.mxu0 0.0
        %1194 = vmatprep.subr.mxu0 0.0
        %1195 = vmatpush2.msra.mxu0 0.0
        %1196 = vmatprep.subr.mxu0 0.0
        %1197 = vmatpush2.msra.mxu0 0.0
        %1198 = vmatprep.subr.mxu0 0.0
        %1199 = vmatpush2.msra.mxu0 0.0
        %1200 = vmatprep.subr.mxu0 0.0
        %1201 = vmatpush2.msra.mxu0 0.0
        %1202 = vmatprep.subr.mxu0 0.0
        %1203 = vmatpush2.msra.mxu0 0.0
        %1204 = vmatprep.subr.mxu0 0.0
        %1205 = vmatpush2.msra.mxu0 0.0
        %1206 = vmatprep.subr.mxu0 0.0
        %1207 = vmatpush2.msra.mxu0 0.0
        %1208 = vmatprep.subr.mxu0 0.0
        %1209 = vmatpush2.msra.mxu0 0.0
        %1210 = vmatprep.subr.mxu0 0.0
        %1211 = vmatpush2.msra.mxu0 0.0
        %1212 = vmatprep.subr.mxu0 0.0
        %1213 = vmatpush2.msra.mxu0 0.0
        %1214 = vmatprep.subr.mxu0 0.0
        %1215 = vmatpush2.msra.mxu0 0.0
        %1216 = vmatprep.subr.mxu0 0.0
        %1217 = vmatpush2.msra.mxu0 0.0
        %1218 = vmatprep.subr.mxu0 0.0
        %1219 = vmatpush2.msra.mxu0 0.0
        %1220 = vmatprep.subr.mxu0 0.0
        %1221 = vmatpush2.msra.mxu0 0.0
        %1222 = vmatprep.subr.mxu0 0.0
        %1223 = vmatpush2.msra.mxu0 0.0
        %1224 = vmatprep.mubr.f32.mxu0 0.0
        %1225 = vmatmul.mubr.f32.gmra.mxu0 %v1084
        %v1226 = vpop.f32.mrf.mxu0
        %v1227 = vadd.f32 0.0, %v1226
        %v1228 = vpop.f32.mrf.mxu0
        %v1229 = vadd.f32 0.0, %v1228
        %1230 = vdwg.mxu0
        %1231 = vmatprep.subr.mxu0 %v1159
        %1232 = vmatpush1.msra.mxu0 %v1158
        %1233 = vmatprep.subr.mxu0 %v1155
        %1234 = vmatpush1.msra.mxu0 %v1154
        %1235 = vmatprep.subr.mxu0 %v1151
        %1236 = vmatpush1.msra.mxu0 %v1150
        %1237 = vmatprep.subr.mxu0 %v1147
        %1238 = vmatpush1.msra.mxu0 %v1146
        %1239 = vmatprep.subr.mxu0 %v1143
        %1240 = vmatpush1.msra.mxu0 %v1142
        %1241 = vmatprep.subr.mxu0 %v1139
        %1242 = vmatpush1.msra.mxu0 %v1138
        %1243 = vmatprep.subr.mxu0 %v1135
        %1244 = vmatpush1.msra.mxu0 %v1134
        %1245 = vmatprep.subr.mxu0 %v1131
        %1246 = vmatpush1.msra.mxu0 %v1130
        %1247 = vmatprep.subr.mxu0 %v1127
        %1248 = vmatpush1.msra.mxu0 %v1126
        %1249 = vmatprep.subr.mxu0 %v1123
        %1250 = vmatpush1.msra.mxu0 %v1122
        %1251 = vmatprep.subr.mxu0 %v1119
        %1252 = vmatpush1.msra.mxu0 %v1118
        %1253 = vmatprep.subr.mxu0 %v1115
        %1254 = vmatpush1.msra.mxu0 %v1114
        %1255 = vmatprep.subr.mxu0 %v1111
        %1256 = vmatpush1.msra.mxu0 %v1110
        %1257 = vmatprep.subr.mxu0 %v1107
        %1258 = vmatpush1.msra.mxu0 %v1106
        %1259 = vmatprep.subr.mxu0 %v1103
        %1260 = vmatpush1.msra.mxu0 %v1102
        %1261 = vmatprep.subr.mxu0 %v1099
        %1262 = vmatpush1.msra.mxu0 %v1098
        %1263 = vmatprep.subr.mxu0 0.0
        %1264 = vmatpush2.msra.mxu0 0.0
        %1265 = vmatprep.subr.mxu0 0.0
        %1266 = vmatpush2.msra.mxu0 0.0
        %1267 = vmatprep.subr.mxu0 0.0
        %1268 = vmatpush2.msra.mxu0 0.0
        %1269 = vmatprep.subr.mxu0 0.0
        %1270 = vmatpush2.msra.mxu0 0.0
        %1271 = vmatprep.subr.mxu0 0.0
        %1272 = vmatpush2.msra.mxu0 0.0
        %1273 = vmatprep.subr.mxu0 0.0
        %1274 = vmatpush2.msra.mxu0 0.0
        %1275 = vmatprep.subr.mxu0 0.0
        %1276 = vmatpush2.msra.mxu0 0.0
        %1277 = vmatprep.subr.mxu0 0.0
        %1278 = vmatpush2.msra.mxu0 0.0
        %1279 = vmatprep.subr.mxu0 0.0
        %1280 = vmatpush2.msra.mxu0 0.0
        %1281 = vmatprep.subr.mxu0 0.0
        %1282 = vmatpush2.msra.mxu0 0.0
        %1283 = vmatprep.subr.mxu0 0.0
        %1284 = vmatpush2.msra.mxu0 0.0
        %1285 = vmatprep.subr.mxu0 0.0
        %1286 = vmatpush2.msra.mxu0 0.0
        %1287 = vmatprep.subr.mxu0 0.0
        %1288 = vmatpush2.msra.mxu0 0.0
        %1289 = vmatprep.subr.mxu0 0.0
        %1290 = vmatpush2.msra.mxu0 0.0
        %1291 = vmatprep.subr.mxu0 0.0
        %1292 = vmatpush2.msra.mxu0 0.0
        %1293 = vmatprep.subr.mxu0 0.0
        %1294 = vmatpush2.msra.mxu0 0.0
        %1295 = vmatprep.mubr.f32.mxu0 0.0
        %1296 = vmatmul.mubr.f32.gmra.mxu0 %v1084
        %v1297 = vpop.f32.mrf.mxu0
        %v1298 = vadd.f32 0.0, %v1297
        %v1299 = vpop.f32.mrf.mxu0
        %v1300 = vadd.f32 0.0, %v1299
        %1301 = vdwg.mxu0
        %v1302 = vadd.f32 %v1092, %v1227
        %v1303 = vadd.f32 %v1093, %v1229
        %v1304 = vadd.f32 %v1094, %v1298
        %v1305 = vadd.f32 %v1095, %v1300
        %v1306 = vxor.u32 %v1302, 2147483648
        %v1307 = vmul.f32 %v1306, 1.442695
        %v1308 = vpow.pop %v1307
        %v1309 = vadd.f32 %v1308, 1.0
        %v1310 = vrcp.pop %v1309
        %v1311 = vmul.f32 1.0, %v1310
        %v1312 = vxor.u32 %v1303, 2147483648
        %v1313 = vmul.f32 %v1312, 1.442695
        %v1314 = vpow.pop %v1313
        %v1315 = vadd.f32 %v1314, 1.0
        %v1316 = vrcp.pop %v1315
        %v1317 = vmul.f32 1.0, %v1316
        %v1318 = vtanh.pop %v1304
        %v1319 = vxor.u32 %v1305, 2147483648
        %v1320 = vmul.f32 %v1319, 1.442695
        %v1321 = vpow.pop %v1320
        %v1322 = vadd.f32 %v1321, 1.0
        %v1323 = vrcp.pop %v1322
        %v1324 = vmul.f32 1.0, %v1323
        %v1325 = vmul.f32 %v1317, %v1082
        %v1326 = vmul.f32 %v1311, %v1318
        %v1327 = vadd.f32 %v1325, %v1326
        %v1328 = vtanh.pop %v1327
        %v1329 = vmul.f32 %v1324, %v1328
        %s1330 = smul.u32 %s1088, 8
        %s1331 = scalar_lea.vmem %s254, %s1330
        %1332 = vst [vmem:[%s1331] sm:$0xff] %v1329
        %s1333 = scalar_select %p597, 3, 4
        %s1334 = smul.u32 %s1333, 4
        %s1335 = smul.addr %s1334, 8
        %s1336 = scalar_lea.vmem [#allocation2], %s1335
        %v1337 = vld [vmem:[%s1336] sm:$0xff]
        %v1338 = vld [vmem:[%s1336 + $0x8] sm:$0xff]
        %v1339 = vld [vmem:[%s1336 + $0x10] sm:$0xff]
        %v1340 = vld [vmem:[%s1336 + $0x18] sm:$0xff]
        %v1341 = vld [vmem:[%s207] sm:$0xff]
        %v1342 = vld [vmem:[%s207 + $0x8] sm:$0xff]
        %v1343 = vld [vmem:[%s207 + $0x10] sm:$0xff]
        %v1344 = vld [vmem:[%s207 + $0x18] sm:$0xff]
        %v1345 = vld [vmem:[%s207 + $0x20] sm:$0xff]
        %v1346 = vld [vmem:[%s207 + $0x28] sm:$0xff]
        %v1347 = vld [vmem:[%s207 + $0x30] sm:$0xff]
        %v1348 = vld [vmem:[%s207 + $0x38] sm:$0xff]
        %v1349 = vld [vmem:[%s207 + $0x40] sm:$0xff]
        %v1350 = vld [vmem:[%s207 + $0x48] sm:$0xff]
        %v1351 = vld [vmem:[%s207 + $0x50] sm:$0xff]
        %v1352 = vld [vmem:[%s207 + $0x58] sm:$0xff]
        %v1353 = vld [vmem:[%s207 + $0x60] sm:$0xff]
        %v1354 = vld [vmem:[%s207 + $0x68] sm:$0xff]
        %v1355 = vld [vmem:[%s207 + $0x70] sm:$0xff]
        %v1356 = vld [vmem:[%s207 + $0x78] sm:$0xff]
        %v1357 = vld [vmem:[%s207 + $0x80] sm:$0xff]
        %v1358 = vld [vmem:[%s207 + $0x88] sm:$0xff]
        %v1359 = vld [vmem:[%s207 + $0x90] sm:$0xff]
        %v1360 = vld [vmem:[%s207 + $0x98] sm:$0xff]
        %v1361 = vld [vmem:[%s207 + $0xa0] sm:$0xff]
        %v1362 = vld [vmem:[%s207 + $0xa8] sm:$0xff]
        %v1363 = vld [vmem:[%s207 + $0xb0] sm:$0xff]
        %v1364 = vld [vmem:[%s207 + $0xb8] sm:$0xff]
        %v1365 = vld [vmem:[%s207 + $0xc0] sm:$0xff]
        %v1366 = vld [vmem:[%s207 + $0xc8] sm:$0xff]
        %v1367 = vld [vmem:[%s207 + $0xd0] sm:$0xff]
        %v1368 = vld [vmem:[%s207 + $0xd8] sm:$0xff]
        %v1369 = vld [vmem:[%s207 + $0xe0] sm:$0xff]
        %v1370 = vld [vmem:[%s207 + $0xe8] sm:$0xff]
        %v1371 = vld [vmem:[%s207 + $0xf0] sm:$0xff]
        %v1372 = vld [vmem:[%s207 + $0xf8] sm:$0xff]
        %v1373 = vld [vmem:[%s207 + $0x100] sm:$0xff]
        %v1374 = vld [vmem:[%s207 + $0x108] sm:$0xff]
        %v1375 = vld [vmem:[%s207 + $0x110] sm:$0xff]
        %v1376 = vld [vmem:[%s207 + $0x118] sm:$0xff]
        %v1377 = vld [vmem:[%s207 + $0x120] sm:$0xff]
        %v1378 = vld [vmem:[%s207 + $0x128] sm:$0xff]
        %v1379 = vld [vmem:[%s207 + $0x130] sm:$0xff]
        %v1380 = vld [vmem:[%s207 + $0x138] sm:$0xff]
        %v1381 = vld [vmem:[%s207 + $0x140] sm:$0xff]
        %v1382 = vld [vmem:[%s207 + $0x148] sm:$0xff]
        %v1383 = vld [vmem:[%s207 + $0x150] sm:$0xff]
        %v1384 = vld [vmem:[%s207 + $0x158] sm:$0xff]
        %v1385 = vld [vmem:[%s207 + $0x160] sm:$0xff]
        %v1386 = vld [vmem:[%s207 + $0x168] sm:$0xff]
        %v1387 = vld [vmem:[%s207 + $0x170] sm:$0xff]
        %v1388 = vld [vmem:[%s207 + $0x178] sm:$0xff]
        %v1389 = vld [vmem:[%s207 + $0x180] sm:$0xff]
        %v1390 = vld [vmem:[%s207 + $0x188] sm:$0xff]
        %v1391 = vld [vmem:[%s207 + $0x190] sm:$0xff]
        %v1392 = vld [vmem:[%s207 + $0x198] sm:$0xff]
        %v1393 = vld [vmem:[%s207 + $0x1a0] sm:$0xff]
        %v1394 = vld [vmem:[%s207 + $0x1a8] sm:$0xff]
        %v1395 = vld [vmem:[%s207 + $0x1b0] sm:$0xff]
        %v1396 = vld [vmem:[%s207 + $0x1b8] sm:$0xff]
        %v1397 = vld [vmem:[%s207 + $0x1c0] sm:$0xff]
        %v1398 = vld [vmem:[%s207 + $0x1c8] sm:$0xff]
        %v1399 = vld [vmem:[%s207 + $0x1d0] sm:$0xff]
        %v1400 = vld [vmem:[%s207 + $0x1d8] sm:$0xff]
        %v1401 = vld [vmem:[%s207 + $0x1e0] sm:$0xff]
        %v1402 = vld [vmem:[%s207 + $0x1e8] sm:$0xff]
        %v1403 = vld [vmem:[%s207 + $0x1f0] sm:$0xff]
        %v1404 = vld [vmem:[%s207 + $0x1f8] sm:$0xff]
        %1405 = vmatprep.subr.mxu0 %v1402
        %1406 = vmatpush1.msra.mxu0 %v1401
        %1407 = vmatprep.subr.mxu0 %v1398
        %1408 = vmatpush1.msra.mxu0 %v1397
        %1409 = vmatprep.subr.mxu0 %v1394
        %1410 = vmatpush1.msra.mxu0 %v1393
        %1411 = vmatprep.subr.mxu0 %v1390
        %1412 = vmatpush1.msra.mxu0 %v1389
        %1413 = vmatprep.subr.mxu0 %v1386
        %1414 = vmatpush1.msra.mxu0 %v1385
        %1415 = vmatprep.subr.mxu0 %v1382
        %1416 = vmatpush1.msra.mxu0 %v1381
        %1417 = vmatprep.subr.mxu0 %v1378
        %1418 = vmatpush1.msra.mxu0 %v1377
        %1419 = vmatprep.subr.mxu0 %v1374
        %1420 = vmatpush1.msra.mxu0 %v1373
        %1421 = vmatprep.subr.mxu0 %v1370
        %1422 = vmatpush1.msra.mxu0 %v1369
        %1423 = vmatprep.subr.mxu0 %v1366
        %1424 = vmatpush1.msra.mxu0 %v1365
        %1425 = vmatprep.subr.mxu0 %v1362
        %1426 = vmatpush1.msra.mxu0 %v1361
        %1427 = vmatprep.subr.mxu0 %v1358
        %1428 = vmatpush1.msra.mxu0 %v1357
        %1429 = vmatprep.subr.mxu0 %v1354
        %1430 = vmatpush1.msra.mxu0 %v1353
        %1431 = vmatprep.subr.mxu0 %v1350
        %1432 = vmatpush1.msra.mxu0 %v1349
        %1433 = vmatprep.subr.mxu0 %v1346
        %1434 = vmatpush1.msra.mxu0 %v1345
        %1435 = vmatprep.subr.mxu0 %v1342
        %1436 = vmatpush1.msra.mxu0 %v1341
        %1437 = vmatprep.subr.mxu0 0.0
        %1438 = vmatpush2.msra.mxu0 0.0
        %1439 = vmatprep.subr.mxu0 0.0
        %1440 = vmatpush2.msra.mxu0 0.0
        %1441 = vmatprep.subr.mxu0 0.0
        %1442 = vmatpush2.msra.mxu0 0.0
        %1443 = vmatprep.subr.mxu0 0.0
        %1444 = vmatpush2.msra.mxu0 0.0
        %1445 = vmatprep.subr.mxu0 0.0
        %1446 = vmatpush2.msra.mxu0 0.0
        %1447 = vmatprep.subr.mxu0 0.0
        %1448 = vmatpush2.msra.mxu0 0.0
        %1449 = vmatprep.subr.mxu0 0.0
        %1450 = vmatpush2.msra.mxu0 0.0
        %1451 = vmatprep.subr.mxu0 0.0
        %1452 = vmatpush2.msra.mxu0 0.0
        %1453 = vmatprep.subr.mxu0 0.0
        %1454 = vmatpush2.msra.mxu0 0.0
        %1455 = vmatprep.subr.mxu0 0.0
        %1456 = vmatpush2.msra.mxu0 0.0
        %1457 = vmatprep.subr.mxu0 0.0
        %1458 = vmatpush2.msra.mxu0 0.0
        %1459 = vmatprep.subr.mxu0 0.0
        %1460 = vmatpush2.msra.mxu0 0.0
        %1461 = vmatprep.subr.mxu0 0.0
        %1462 = vmatpush2.msra.mxu0 0.0
        %1463 = vmatprep.subr.mxu0 0.0
        %1464 = vmatpush2.msra.mxu0 0.0
        %1465 = vmatprep.subr.mxu0 0.0
        %1466 = vmatpush2.msra.mxu0 0.0
        %1467 = vmatprep.subr.mxu0 0.0
        %1468 = vmatpush2.msra.mxu0 0.0
        %1469 = vmatprep.mubr.f32.mxu0 0.0
        %1470 = vmatmul.mubr.f32.gmra.mxu0 %v1329
        %v1471 = vpop.f32.mrf.mxu0
        %v1472 = vadd.f32 0.0, %v1471
        %v1473 = vpop.f32.mrf.mxu0
        %v1474 = vadd.f32 0.0, %v1473
        %1475 = vdwg.mxu0
        %1476 = vmatprep.subr.mxu0 %v1404
        %1477 = vmatpush1.msra.mxu0 %v1403
        %1478 = vmatprep.subr.mxu0 %v1400
        %1479 = vmatpush1.msra.mxu0 %v1399
        %1480 = vmatprep.subr.mxu0 %v1396
        %1481 = vmatpush1.msra.mxu0 %v1395
        %1482 = vmatprep.subr.mxu0 %v1392
        %1483 = vmatpush1.msra.mxu0 %v1391
        %1484 = vmatprep.subr.mxu0 %v1388
        %1485 = vmatpush1.msra.mxu0 %v1387
        %1486 = vmatprep.subr.mxu0 %v1384
        %1487 = vmatpush1.msra.mxu0 %v1383
        %1488 = vmatprep.subr.mxu0 %v1380
        %1489 = vmatpush1.msra.mxu0 %v1379
        %1490 = vmatprep.subr.mxu0 %v1376
        %1491 = vmatpush1.msra.mxu0 %v1375
        %1492 = vmatprep.subr.mxu0 %v1372
        %1493 = vmatpush1.msra.mxu0 %v1371
        %1494 = vmatprep.subr.mxu0 %v1368
        %1495 = vmatpush1.msra.mxu0 %v1367
        %1496 = vmatprep.subr.mxu0 %v1364
        %1497 = vmatpush1.msra.mxu0 %v1363
        %1498 = vmatprep.subr.mxu0 %v1360
        %1499 = vmatpush1.msra.mxu0 %v1359
        %1500 = vmatprep.subr.mxu0 %v1356
        %1501 = vmatpush1.msra.mxu0 %v1355
        %1502 = vmatprep.subr.mxu0 %v1352
        %1503 = vmatpush1.msra.mxu0 %v1351
        %1504 = vmatprep.subr.mxu0 %v1348
        %1505 = vmatpush1.msra.mxu0 %v1347
        %1506 = vmatprep.subr.mxu0 %v1344
        %1507 = vmatpush1.msra.mxu0 %v1343
        %1508 = vmatprep.subr.mxu0 0.0
        %1509 = vmatpush2.msra.mxu0 0.0
        %1510 = vmatprep.subr.mxu0 0.0
        %1511 = vmatpush2.msra.mxu0 0.0
        %1512 = vmatprep.subr.mxu0 0.0
        %1513 = vmatpush2.msra.mxu0 0.0
        %1514 = vmatprep.subr.mxu0 0.0
        %1515 = vmatpush2.msra.mxu0 0.0
        %1516 = vmatprep.subr.mxu0 0.0
        %1517 = vmatpush2.msra.mxu0 0.0
        %1518 = vmatprep.subr.mxu0 0.0
        %1519 = vmatpush2.msra.mxu0 0.0
        %1520 = vmatprep.subr.mxu0 0.0
        %1521 = vmatpush2.msra.mxu0 0.0
        %1522 = vmatprep.subr.mxu0 0.0
        %1523 = vmatpush2.msra.mxu0 0.0
        %1524 = vmatprep.subr.mxu0 0.0
        %1525 = vmatpush2.msra.mxu0 0.0
        %1526 = vmatprep.subr.mxu0 0.0
        %1527 = vmatpush2.msra.mxu0 0.0
        %1528 = vmatprep.subr.mxu0 0.0
        %1529 = vmatpush2.msra.mxu0 0.0
        %1530 = vmatprep.subr.mxu0 0.0
        %1531 = vmatpush2.msra.mxu0 0.0
        %1532 = vmatprep.subr.mxu0 0.0
        %1533 = vmatpush2.msra.mxu0 0.0
        %1534 = vmatprep.subr.mxu0 0.0
        %1535 = vmatpush2.msra.mxu0 0.0
        %1536 = vmatprep.subr.mxu0 0.0
        %1537 = vmatpush2.msra.mxu0 0.0
        %1538 = vmatprep.subr.mxu0 0.0
        %1539 = vmatpush2.msra.mxu0 0.0
        %1540 = vmatprep.mubr.f32.mxu0 0.0
        %1541 = vmatmul.mubr.f32.gmra.mxu0 %v1329
        %v1542 = vpop.f32.mrf.mxu0
        %v1543 = vadd.f32 0.0, %v1542
        %v1544 = vpop.f32.mrf.mxu0
        %v1545 = vadd.f32 0.0, %v1544
        %1546 = vdwg.mxu0
        %v1547 = vadd.f32 %v1337, %v1472
        %v1548 = vadd.f32 %v1338, %v1474
        %v1549 = vadd.f32 %v1339, %v1543
        %v1550 = vadd.f32 %v1340, %v1545
        %v1551 = vxor.u32 %v1547, 2147483648
        %v1552 = vmul.f32 %v1551, 1.442695
        %v1553 = vpow.pop %v1552
        %v1554 = vadd.f32 %v1553, 1.0
        %v1555 = vrcp.pop %v1554
        %v1556 = vmul.f32 1.0, %v1555
        %v1557 = vxor.u32 %v1548, 2147483648
        %v1558 = vmul.f32 %v1557, 1.442695
        %v1559 = vpow.pop %v1558
        %v1560 = vadd.f32 %v1559, 1.0
        %v1561 = vrcp.pop %v1560
        %v1562 = vmul.f32 1.0, %v1561
        %v1563 = vtanh.pop %v1549
        %v1564 = vxor.u32 %v1550, 2147483648
        %v1565 = vmul.f32 %v1564, 1.442695
        %v1566 = vpow.pop %v1565
        %v1567 = vadd.f32 %v1566, 1.0
        %v1568 = vrcp.pop %v1567
        %v1569 = vmul.f32 1.0, %v1568
        %v1570 = vmul.f32 %v1562, %v1327
        %v1571 = vmul.f32 %v1556, %v1563
        %v1572 = vadd.f32 %v1570, %v1571
        %v1573 = vtanh.pop %v1572
        %v1574 = vmul.f32 %v1569, %v1573
        %s1575 = smul.u32 %s1333, 8
        %s1576 = scalar_lea.vmem %s254, %s1575
        %1577 = vst [vmem:[%s1576] sm:$0xff] %v1574
        %s1578 = scalar_select %p597, 4, 3
        %s1579 = smul.u32 %s1578, 4
        %s1580 = smul.addr %s1579, 8
        %s1581 = scalar_lea.vmem [#allocation2], %s1580
        %v1582 = vld [vmem:[%s1581] sm:$0xff]
        %v1583 = vld [vmem:[%s1581 + $0x8] sm:$0xff]
        %v1584 = vld [vmem:[%s1581 + $0x10] sm:$0xff]
        %v1585 = vld [vmem:[%s1581 + $0x18] sm:$0xff]
        %v1586 = vld [vmem:[%s207] sm:$0xff]
        %v1587 = vld [vmem:[%s207 + $0x8] sm:$0xff]
        %v1588 = vld [vmem:[%s207 + $0x10] sm:$0xff]
        %v1589 = vld [vmem:[%s207 + $0x18] sm:$0xff]
        %v1590 = vld [vmem:[%s207 + $0x20] sm:$0xff]
        %v1591 = vld [vmem:[%s207 + $0x28] sm:$0xff]
        %v1592 = vld [vmem:[%s207 + $0x30] sm:$0xff]
        %v1593 = vld [vmem:[%s207 + $0x38] sm:$0xff]
        %v1594 = vld [vmem:[%s207 + $0x40] sm:$0xff]
        %v1595 = vld [vmem:[%s207 + $0x48] sm:$0xff]
        %v1596 = vld [vmem:[%s207 + $0x50] sm:$0xff]
        %v1597 = vld [vmem:[%s207 + $0x58] sm:$0xff]
        %v1598 = vld [vmem:[%s207 + $0x60] sm:$0xff]
        %v1599 = vld [vmem:[%s207 + $0x68] sm:$0xff]
        %v1600 = vld [vmem:[%s207 + $0x70] sm:$0xff]
        %v1601 = vld [vmem:[%s207 + $0x78] sm:$0xff]
        %v1602 = vld [vmem:[%s207 + $0x80] sm:$0xff]
        %v1603 = vld [vmem:[%s207 + $0x88] sm:$0xff]
        %v1604 = vld [vmem:[%s207 + $0x90] sm:$0xff]
        %v1605 = vld [vmem:[%s207 + $0x98] sm:$0xff]
        %v1606 = vld [vmem:[%s207 + $0xa0] sm:$0xff]
        %v1607 = vld [vmem:[%s207 + $0xa8] sm:$0xff]
        %v1608 = vld [vmem:[%s207 + $0xb0] sm:$0xff]
        %v1609 = vld [vmem:[%s207 + $0xb8] sm:$0xff]
        %v1610 = vld [vmem:[%s207 + $0xc0] sm:$0xff]
        %v1611 = vld [vmem:[%s207 + $0xc8] sm:$0xff]
        %v1612 = vld [vmem:[%s207 + $0xd0] sm:$0xff]
        %v1613 = vld [vmem:[%s207 + $0xd8] sm:$0xff]
        %v1614 = vld [vmem:[%s207 + $0xe0] sm:$0xff]
        %v1615 = vld [vmem:[%s207 + $0xe8] sm:$0xff]
        %v1616 = vld [vmem:[%s207 + $0xf0] sm:$0xff]
        %v1617 = vld [vmem:[%s207 + $0xf8] sm:$0xff]
        %v1618 = vld [vmem:[%s207 + $0x100] sm:$0xff]
        %v1619 = vld [vmem:[%s207 + $0x108] sm:$0xff]
        %v1620 = vld [vmem:[%s207 + $0x110] sm:$0xff]
        %v1621 = vld [vmem:[%s207 + $0x118] sm:$0xff]
        %v1622 = vld [vmem:[%s207 + $0x120] sm:$0xff]
        %v1623 = vld [vmem:[%s207 + $0x128] sm:$0xff]
        %v1624 = vld [vmem:[%s207 + $0x130] sm:$0xff]
        %v1625 = vld [vmem:[%s207 + $0x138] sm:$0xff]
        %v1626 = vld [vmem:[%s207 + $0x140] sm:$0xff]
        %v1627 = vld [vmem:[%s207 + $0x148] sm:$0xff]
        %v1628 = vld [vmem:[%s207 + $0x150] sm:$0xff]
        %v1629 = vld [vmem:[%s207 + $0x158] sm:$0xff]
        %v1630 = vld [vmem:[%s207 + $0x160] sm:$0xff]
        %v1631 = vld [vmem:[%s207 + $0x168] sm:$0xff]
        %v1632 = vld [vmem:[%s207 + $0x170] sm:$0xff]
        %v1633 = vld [vmem:[%s207 + $0x178] sm:$0xff]
        %v1634 = vld [vmem:[%s207 + $0x180] sm:$0xff]
        %v1635 = vld [vmem:[%s207 + $0x188] sm:$0xff]
        %v1636 = vld [vmem:[%s207 + $0x190] sm:$0xff]
        %v1637 = vld [vmem:[%s207 + $0x198] sm:$0xff]
        %v1638 = vld [vmem:[%s207 + $0x1a0] sm:$0xff]
        %v1639 = vld [vmem:[%s207 + $0x1a8] sm:$0xff]
        %v1640 = vld [vmem:[%s207 + $0x1b0] sm:$0xff]
        %v1641 = vld [vmem:[%s207 + $0x1b8] sm:$0xff]
        %v1642 = vld [vmem:[%s207 + $0x1c0] sm:$0xff]
        %v1643 = vld [vmem:[%s207 + $0x1c8] sm:$0xff]
        %v1644 = vld [vmem:[%s207 + $0x1d0] sm:$0xff]
        %v1645 = vld [vmem:[%s207 + $0x1d8] sm:$0xff]
        %v1646 = vld [vmem:[%s207 + $0x1e0] sm:$0xff]
        %v1647 = vld [vmem:[%s207 + $0x1e8] sm:$0xff]
        %v1648 = vld [vmem:[%s207 + $0x1f0] sm:$0xff]
        %v1649 = vld [vmem:[%s207 + $0x1f8] sm:$0xff]
        %1650 = vmatprep.subr.mxu0 %v1647
        %1651 = vmatpush1.msra.mxu0 %v1646
        %1652 = vmatprep.subr.mxu0 %v1643
        %1653 = vmatpush1.msra.mxu0 %v1642
        %1654 = vmatprep.subr.mxu0 %v1639
        %1655 = vmatpush1.msra.mxu0 %v1638
        %1656 = vmatprep.subr.mxu0 %v1635
        %1657 = vmatpush1.msra.mxu0 %v1634
        %1658 = vmatprep.subr.mxu0 %v1631
        %1659 = vmatpush1.msra.mxu0 %v1630
        %1660 = vmatprep.subr.mxu0 %v1627
        %1661 = vmatpush1.msra.mxu0 %v1626
        %1662 = vmatprep.subr.mxu0 %v1623
        %1663 = vmatpush1.msra.mxu0 %v1622
        %1664 = vmatprep.subr.mxu0 %v1619
        %1665 = vmatpush1.msra.mxu0 %v1618
        %1666 = vmatprep.subr.mxu0 %v1615
        %1667 = vmatpush1.msra.mxu0 %v1614
        %1668 = vmatprep.subr.mxu0 %v1611
        %1669 = vmatpush1.msra.mxu0 %v1610
        %1670 = vmatprep.subr.mxu0 %v1607
        %1671 = vmatpush1.msra.mxu0 %v1606
        %1672 = vmatprep.subr.mxu0 %v1603
        %1673 = vmatpush1.msra.mxu0 %v1602
        %1674 = vmatprep.subr.mxu0 %v1599
        %1675 = vmatpush1.msra.mxu0 %v1598
        %1676 = vmatprep.subr.mxu0 %v1595
        %1677 = vmatpush1.msra.mxu0 %v1594
        %1678 = vmatprep.subr.mxu0 %v1591
        %1679 = vmatpush1.msra.mxu0 %v1590
        %1680 = vmatprep.subr.mxu0 %v1587
        %1681 = vmatpush1.msra.mxu0 %v1586
        %1682 = vmatprep.subr.mxu0 0.0
        %1683 = vmatpush2.msra.mxu0 0.0
        %1684 = vmatprep.subr.mxu0 0.0
        %1685 = vmatpush2.msra.mxu0 0.0
        %1686 = vmatprep.subr.mxu0 0.0
        %1687 = vmatpush2.msra.mxu0 0.0
        %1688 = vmatprep.subr.mxu0 0.0
        %1689 = vmatpush2.msra.mxu0 0.0
        %1690 = vmatprep.subr.mxu0 0.0
        %1691 = vmatpush2.msra.mxu0 0.0
        %1692 = vmatprep.subr.mxu0 0.0
        %1693 = vmatpush2.msra.mxu0 0.0
        %1694 = vmatprep.subr.mxu0 0.0
        %1695 = vmatpush2.msra.mxu0 0.0
        %1696 = vmatprep.subr.mxu0 0.0
        %1697 = vmatpush2.msra.mxu0 0.0
        %1698 = vmatprep.subr.mxu0 0.0
        %1699 = vmatpush2.msra.mxu0 0.0
        %1700 = vmatprep.subr.mxu0 0.0
        %1701 = vmatpush2.msra.mxu0 0.0
        %1702 = vmatprep.subr.mxu0 0.0
        %1703 = vmatpush2.msra.mxu0 0.0
        %1704 = vmatprep.subr.mxu0 0.0
        %1705 = vmatpush2.msra.mxu0 0.0
        %1706 = vmatprep.subr.mxu0 0.0
        %1707 = vmatpush2.msra.mxu0 0.0
        %1708 = vmatprep.subr.mxu0 0.0
        %1709 = vmatpush2.msra.mxu0 0.0
        %1710 = vmatprep.subr.mxu0 0.0
        %1711 = vmatpush2.msra.mxu0 0.0
        %1712 = vmatprep.subr.mxu0 0.0
        %1713 = vmatpush2.msra.mxu0 0.0
        %1714 = vmatprep.mubr.f32.mxu0 0.0
        %1715 = vmatmul.mubr.f32.gmra.mxu0 %v1574
        %v1716 = vpop.f32.mrf.mxu0
        %v1717 = vadd.f32 0.0, %v1716
        %v1718 = vpop.f32.mrf.mxu0
        %v1719 = vadd.f32 0.0, %v1718
        %1720 = vdwg.mxu0
        %1721 = vmatprep.subr.mxu0 %v1649
        %1722 = vmatpush1.msra.mxu0 %v1648
        %1723 = vmatprep.subr.mxu0 %v1645
        %1724 = vmatpush1.msra.mxu0 %v1644
        %1725 = vmatprep.subr.mxu0 %v1641
        %1726 = vmatpush1.msra.mxu0 %v1640
        %1727 = vmatprep.subr.mxu0 %v1637
        %1728 = vmatpush1.msra.mxu0 %v1636
        %1729 = vmatprep.subr.mxu0 %v1633
        %1730 = vmatpush1.msra.mxu0 %v1632
        %1731 = vmatprep.subr.mxu0 %v1629
        %1732 = vmatpush1.msra.mxu0 %v1628
        %1733 = vmatprep.subr.mxu0 %v1625
        %1734 = vmatpush1.msra.mxu0 %v1624
        %1735 = vmatprep.subr.mxu0 %v1621
        %1736 = vmatpush1.msra.mxu0 %v1620
        %1737 = vmatprep.subr.mxu0 %v1617
        %1738 = vmatpush1.msra.mxu0 %v1616
        %1739 = vmatprep.subr.mxu0 %v1613
        %1740 = vmatpush1.msra.mxu0 %v1612
        %1741 = vmatprep.subr.mxu0 %v1609
        %1742 = vmatpush1.msra.mxu0 %v1608
        %1743 = vmatprep.subr.mxu0 %v1605
        %1744 = vmatpush1.msra.mxu0 %v1604
        %1745 = vmatprep.subr.mxu0 %v1601
        %1746 = vmatpush1.msra.mxu0 %v1600
        %1747 = vmatprep.subr.mxu0 %v1597
        %1748 = vmatpush1.msra.mxu0 %v1596
        %1749 = vmatprep.subr.mxu0 %v1593
        %1750 = vmatpush1.msra.mxu0 %v1592
        %1751 = vmatprep.subr.mxu0 %v1589
        %1752 = vmatpush1.msra.mxu0 %v1588
        %1753 = vmatprep.subr.mxu0 0.0
        %1754 = vmatpush2.msra.mxu0 0.0
        %1755 = vmatprep.subr.mxu0 0.0
        %1756 = vmatpush2.msra.mxu0 0.0
        %1757 = vmatprep.subr.mxu0 0.0
        %1758 = vmatpush2.msra.mxu0 0.0
        %1759 = vmatprep.subr.mxu0 0.0
        %1760 = vmatpush2.msra.mxu0 0.0
        %1761 = vmatprep.subr.mxu0 0.0
        %1762 = vmatpush2.msra.mxu0 0.0
        %1763 = vmatprep.subr.mxu0 0.0
        %1764 = vmatpush2.msra.mxu0 0.0
        %1765 = vmatprep.subr.mxu0 0.0
        %1766 = vmatpush2.msra.mxu0 0.0
        %1767 = vmatprep.subr.mxu0 0.0
        %1768 = vmatpush2.msra.mxu0 0.0
        %1769 = vmatprep.subr.mxu0 0.0
        %1770 = vmatpush2.msra.mxu0 0.0
        %1771 = vmatprep.subr.mxu0 0.0
        %1772 = vmatpush2.msra.mxu0 0.0
        %1773 = vmatprep.subr.mxu0 0.0
        %1774 = vmatpush2.msra.mxu0 0.0
        %1775 = vmatprep.subr.mxu0 0.0
        %1776 = vmatpush2.msra.mxu0 0.0
        %1777 = vmatprep.subr.mxu0 0.0
        %1778 = vmatpush2.msra.mxu0 0.0
        %1779 = vmatprep.subr.mxu0 0.0
        %1780 = vmatpush2.msra.mxu0 0.0
        %1781 = vmatprep.subr.mxu0 0.0
        %1782 = vmatpush2.msra.mxu0 0.0
        %1783 = vmatprep.subr.mxu0 0.0
        %1784 = vmatpush2.msra.mxu0 0.0
        %1785 = vmatprep.mubr.f32.mxu0 0.0
        %1786 = vmatmul.mubr.f32.gmra.mxu0 %v1574
        %v1787 = vpop.f32.mrf.mxu0
        %v1788 = vadd.f32 0.0, %v1787
        %v1789 = vpop.f32.mrf.mxu0
        %v1790 = vadd.f32 0.0, %v1789
        %1791 = vdwg.mxu0
        %v1792 = vadd.f32 %v1582, %v1717
        %v1793 = vadd.f32 %v1583, %v1719
        %v1794 = vadd.f32 %v1584, %v1788
        %v1795 = vadd.f32 %v1585, %v1790
        %v1796 = vxor.u32 %v1792, 2147483648
        %v1797 = vmul.f32 %v1796, 1.442695
        %v1798 = vpow.pop %v1797
        %v1799 = vadd.f32 %v1798, 1.0
        %v1800 = vrcp.pop %v1799
        %v1801 = vmul.f32 1.0, %v1800
        %v1802 = vxor.u32 %v1793, 2147483648
        %v1803 = vmul.f32 %v1802, 1.442695
        %v1804 = vpow.pop %v1803
        %v1805 = vadd.f32 %v1804, 1.0
        %v1806 = vrcp.pop %v1805
        %v1807 = vmul.f32 1.0, %v1806
        %v1808 = vtanh.pop %v1794
        %v1809 = vxor.u32 %v1795, 2147483648
        %v1810 = vmul.f32 %v1809, 1.442695
        %v1811 = vpow.pop %v1810
        %v1812 = vadd.f32 %v1811, 1.0
        %v1813 = vrcp.pop %v1812
        %v1814 = vmul.f32 1.0, %v1813
        %v1815 = vmul.f32 %v1807, %v1572
        %v1816 = vmul.f32 %v1801, %v1808
        %v1817 = vadd.f32 %v1815, %v1816
        %v1818 = vtanh.pop %v1817
        %v1819 = vmul.f32 %v1814, %v1818
        %s1820 = smul.u32 %s1578, 8
        %s1821 = scalar_lea.vmem %s254, %s1820
        %1822 = vst [vmem:[%s1821] sm:$0xff] %v1819
        %s1823 = scalar_select %p597, 5, 2
        %s1824 = smul.u32 %s1823, 4
        %s1825 = smul.addr %s1824, 8
        %s1826 = scalar_lea.vmem [#allocation2], %s1825
        %v1827 = vld [vmem:[%s1826] sm:$0xff]
        %v1828 = vld [vmem:[%s1826 + $0x8] sm:$0xff]
        %v1829 = vld [vmem:[%s1826 + $0x10] sm:$0xff]
        %v1830 = vld [vmem:[%s1826 + $0x18] sm:$0xff]
        %v1831 = vld [vmem:[%s207] sm:$0xff]
        %v1832 = vld [vmem:[%s207 + $0x8] sm:$0xff]
        %v1833 = vld [vmem:[%s207 + $0x10] sm:$0xff]
        %v1834 = vld [vmem:[%s207 + $0x18] sm:$0xff]
        %v1835 = vld [vmem:[%s207 + $0x20] sm:$0xff]
        %v1836 = vld [vmem:[%s207 + $0x28] sm:$0xff]
        %v1837 = vld [vmem:[%s207 + $0x30] sm:$0xff]
        %v1838 = vld [vmem:[%s207 + $0x38] sm:$0xff]
        %v1839 = vld [vmem:[%s207 + $0x40] sm:$0xff]
        %v1840 = vld [vmem:[%s207 + $0x48] sm:$0xff]
        %v1841 = vld [vmem:[%s207 + $0x50] sm:$0xff]
        %v1842 = vld [vmem:[%s207 + $0x58] sm:$0xff]
        %v1843 = vld [vmem:[%s207 + $0x60] sm:$0xff]
        %v1844 = vld [vmem:[%s207 + $0x68] sm:$0xff]
        %v1845 = vld [vmem:[%s207 + $0x70] sm:$0xff]
        %v1846 = vld [vmem:[%s207 + $0x78] sm:$0xff]
        %v1847 = vld [vmem:[%s207 + $0x80] sm:$0xff]
        %v1848 = vld [vmem:[%s207 + $0x88] sm:$0xff]
        %v1849 = vld [vmem:[%s207 + $0x90] sm:$0xff]
        %v1850 = vld [vmem:[%s207 + $0x98] sm:$0xff]
        %v1851 = vld [vmem:[%s207 + $0xa0] sm:$0xff]
        %v1852 = vld [vmem:[%s207 + $0xa8] sm:$0xff]
        %v1853 = vld [vmem:[%s207 + $0xb0] sm:$0xff]
        %v1854 = vld [vmem:[%s207 + $0xb8] sm:$0xff]
        %v1855 = vld [vmem:[%s207 + $0xc0] sm:$0xff]
        %v1856 = vld [vmem:[%s207 + $0xc8] sm:$0xff]
        %v1857 = vld [vmem:[%s207 + $0xd0] sm:$0xff]
        %v1858 = vld [vmem:[%s207 + $0xd8] sm:$0xff]
        %v1859 = vld [vmem:[%s207 + $0xe0] sm:$0xff]
        %v1860 = vld [vmem:[%s207 + $0xe8] sm:$0xff]
        %v1861 = vld [vmem:[%s207 + $0xf0] sm:$0xff]
        %v1862 = vld [vmem:[%s207 + $0xf8] sm:$0xff]
        %v1863 = vld [vmem:[%s207 + $0x100] sm:$0xff]
        %v1864 = vld [vmem:[%s207 + $0x108] sm:$0xff]
        %v1865 = vld [vmem:[%s207 + $0x110] sm:$0xff]
        %v1866 = vld [vmem:[%s207 + $0x118] sm:$0xff]
        %v1867 = vld [vmem:[%s207 + $0x120] sm:$0xff]
        %v1868 = vld [vmem:[%s207 + $0x128] sm:$0xff]
        %v1869 = vld [vmem:[%s207 + $0x130] sm:$0xff]
        %v1870 = vld [vmem:[%s207 + $0x138] sm:$0xff]
        %v1871 = vld [vmem:[%s207 + $0x140] sm:$0xff]
        %v1872 = vld [vmem:[%s207 + $0x148] sm:$0xff]
        %v1873 = vld [vmem:[%s207 + $0x150] sm:$0xff]
        %v1874 = vld [vmem:[%s207 + $0x158] sm:$0xff]
        %v1875 = vld [vmem:[%s207 + $0x160] sm:$0xff]
        %v1876 = vld [vmem:[%s207 + $0x168] sm:$0xff]
        %v1877 = vld [vmem:[%s207 + $0x170] sm:$0xff]
        %v1878 = vld [vmem:[%s207 + $0x178] sm:$0xff]
        %v1879 = vld [vmem:[%s207 + $0x180] sm:$0xff]
        %v1880 = vld [vmem:[%s207 + $0x188] sm:$0xff]
        %v1881 = vld [vmem:[%s207 + $0x190] sm:$0xff]
        %v1882 = vld [vmem:[%s207 + $0x198] sm:$0xff]
        %v1883 = vld [vmem:[%s207 + $0x1a0] sm:$0xff]
        %v1884 = vld [vmem:[%s207 + $0x1a8] sm:$0xff]
        %v1885 = vld [vmem:[%s207 + $0x1b0] sm:$0xff]
        %v1886 = vld [vmem:[%s207 + $0x1b8] sm:$0xff]
        %v1887 = vld [vmem:[%s207 + $0x1c0] sm:$0xff]
        %v1888 = vld [vmem:[%s207 + $0x1c8] sm:$0xff]
        %v1889 = vld [vmem:[%s207 + $0x1d0] sm:$0xff]
        %v1890 = vld [vmem:[%s207 + $0x1d8] sm:$0xff]
        %v1891 = vld [vmem:[%s207 + $0x1e0] sm:$0xff]
        %v1892 = vld [vmem:[%s207 + $0x1e8] sm:$0xff]
        %v1893 = vld [vmem:[%s207 + $0x1f0] sm:$0xff]
        %v1894 = vld [vmem:[%s207 + $0x1f8] sm:$0xff]
        %1895 = vmatprep.subr.mxu0 %v1892
        %1896 = vmatpush1.msra.mxu0 %v1891
        %1897 = vmatprep.subr.mxu0 %v1888
        %1898 = vmatpush1.msra.mxu0 %v1887
        %1899 = vmatprep.subr.mxu0 %v1884
        %1900 = vmatpush1.msra.mxu0 %v1883
        %1901 = vmatprep.subr.mxu0 %v1880
        %1902 = vmatpush1.msra.mxu0 %v1879
        %1903 = vmatprep.subr.mxu0 %v1876
        %1904 = vmatpush1.msra.mxu0 %v1875
        %1905 = vmatprep.subr.mxu0 %v1872
        %1906 = vmatpush1.msra.mxu0 %v1871
        %1907 = vmatprep.subr.mxu0 %v1868
        %1908 = vmatpush1.msra.mxu0 %v1867
        %1909 = vmatprep.subr.mxu0 %v1864
        %1910 = vmatpush1.msra.mxu0 %v1863
        %1911 = vmatprep.subr.mxu0 %v1860
        %1912 = vmatpush1.msra.mxu0 %v1859
        %1913 = vmatprep.subr.mxu0 %v1856
        %1914 = vmatpush1.msra.mxu0 %v1855
        %1915 = vmatprep.subr.mxu0 %v1852
        %1916 = vmatpush1.msra.mxu0 %v1851
        %1917 = vmatprep.subr.mxu0 %v1848
        %1918 = vmatpush1.msra.mxu0 %v1847
        %1919 = vmatprep.subr.mxu0 %v1844
        %1920 = vmatpush1.msra.mxu0 %v1843
        %1921 = vmatprep.subr.mxu0 %v1840
        %1922 = vmatpush1.msra.mxu0 %v1839
        %1923 = vmatprep.subr.mxu0 %v1836
        %1924 = vmatpush1.msra.mxu0 %v1835
        %1925 = vmatprep.subr.mxu0 %v1832
        %1926 = vmatpush1.msra.mxu0 %v1831
        %1927 = vmatprep.subr.mxu0 0.0
        %1928 = vmatpush2.msra.mxu0 0.0
        %1929 = vmatprep.subr.mxu0 0.0
        %1930 = vmatpush2.msra.mxu0 0.0
        %1931 = vmatprep.subr.mxu0 0.0
        %1932 = vmatpush2.msra.mxu0 0.0
        %1933 = vmatprep.subr.mxu0 0.0
        %1934 = vmatpush2.msra.mxu0 0.0
        %1935 = vmatprep.subr.mxu0 0.0
        %1936 = vmatpush2.msra.mxu0 0.0
        %1937 = vmatprep.subr.mxu0 0.0
        %1938 = vmatpush2.msra.mxu0 0.0
        %1939 = vmatprep.subr.mxu0 0.0
        %1940 = vmatpush2.msra.mxu0 0.0
        %1941 = vmatprep.subr.mxu0 0.0
        %1942 = vmatpush2.msra.mxu0 0.0
        %1943 = vmatprep.subr.mxu0 0.0
        %1944 = vmatpush2.msra.mxu0 0.0
        %1945 = vmatprep.subr.mxu0 0.0
        %1946 = vmatpush2.msra.mxu0 0.0
        %1947 = vmatprep.subr.mxu0 0.0
        %1948 = vmatpush2.msra.mxu0 0.0
        %1949 = vmatprep.subr.mxu0 0.0
        %1950 = vmatpush2.msra.mxu0 0.0
        %1951 = vmatprep.subr.mxu0 0.0
        %1952 = vmatpush2.msra.mxu0 0.0
        %1953 = vmatprep.subr.mxu0 0.0
        %1954 = vmatpush2.msra.mxu0 0.0
        %1955 = vmatprep.subr.mxu0 0.0
        %1956 = vmatpush2.msra.mxu0 0.0
        %1957 = vmatprep.subr.mxu0 0.0
        %1958 = vmatpush2.msra.mxu0 0.0
        %1959 = vmatprep.mubr.f32.mxu0 0.0
        %1960 = vmatmul.mubr.f32.gmra.mxu0 %v1819
        %v1961 = vpop.f32.mrf.mxu0
        %v1962 = vadd.f32 0.0, %v1961
        %v1963 = vpop.f32.mrf.mxu0
        %v1964 = vadd.f32 0.0, %v1963
        %1965 = vdwg.mxu0
        %1966 = vmatprep.subr.mxu0 %v1894
        %1967 = vmatpush1.msra.mxu0 %v1893
        %1968 = vmatprep.subr.mxu0 %v1890
        %1969 = vmatpush1.msra.mxu0 %v1889
        %1970 = vmatprep.subr.mxu0 %v1886
        %1971 = vmatpush1.msra.mxu0 %v1885
        %1972 = vmatprep.subr.mxu0 %v1882
        %1973 = vmatpush1.msra.mxu0 %v1881
        %1974 = vmatprep.subr.mxu0 %v1878
        %1975 = vmatpush1.msra.mxu0 %v1877
        %1976 = vmatprep.subr.mxu0 %v1874
        %1977 = vmatpush1.msra.mxu0 %v1873
        %1978 = vmatprep.subr.mxu0 %v1870
        %1979 = vmatpush1.msra.mxu0 %v1869
        %1980 = vmatprep.subr.mxu0 %v1866
        %1981 = vmatpush1.msra.mxu0 %v1865
        %1982 = vmatprep.subr.mxu0 %v1862
        %1983 = vmatpush1.msra.mxu0 %v1861
        %1984 = vmatprep.subr.mxu0 %v1858
        %1985 = vmatpush1.msra.mxu0 %v1857
        %1986 = vmatprep.subr.mxu0 %v1854
        %1987 = vmatpush1.msra.mxu0 %v1853
        %1988 = vmatprep.subr.mxu0 %v1850
        %1989 = vmatpush1.msra.mxu0 %v1849
        %1990 = vmatprep.subr.mxu0 %v1846
        %1991 = vmatpush1.msra.mxu0 %v1845
        %1992 = vmatprep.subr.mxu0 %v1842
        %1993 = vmatpush1.msra.mxu0 %v1841
        %1994 = vmatprep.subr.mxu0 %v1838
        %1995 = vmatpush1.msra.mxu0 %v1837
        %1996 = vmatprep.subr.mxu0 %v1834
        %1997 = vmatpush1.msra.mxu0 %v1833
        %1998 = vmatprep.subr.mxu0 0.0
        %1999 = vmatpush2.msra.mxu0 0.0
        %2000 = vmatprep.subr.mxu0 0.0
        %2001 = vmatpush2.msra.mxu0 0.0
        %2002 = vmatprep.subr.mxu0 0.0
        %2003 = vmatpush2.msra.mxu0 0.0
        %2004 = vmatprep.subr.mxu0 0.0
        %2005 = vmatpush2.msra.mxu0 0.0
        %2006 = vmatprep.subr.mxu0 0.0
        %2007 = vmatpush2.msra.mxu0 0.0
        %2008 = vmatprep.subr.mxu0 0.0
        %2009 = vmatpush2.msra.mxu0 0.0
        %2010 = vmatprep.subr.mxu0 0.0
        %2011 = vmatpush2.msra.mxu0 0.0
        %2012 = vmatprep.subr.mxu0 0.0
        %2013 = vmatpush2.msra.mxu0 0.0
        %2014 = vmatprep.subr.mxu0 0.0
        %2015 = vmatpush2.msra.mxu0 0.0
        %2016 = vmatprep.subr.mxu0 0.0
        %2017 = vmatpush2.msra.mxu0 0.0
        %2018 = vmatprep.subr.mxu0 0.0
        %2019 = vmatpush2.msra.mxu0 0.0
        %2020 = vmatprep.subr.mxu0 0.0
        %2021 = vmatpush2.msra.mxu0 0.0
        %2022 = vmatprep.subr.mxu0 0.0
        %2023 = vmatpush2.msra.mxu0 0.0
        %2024 = vmatprep.subr.mxu0 0.0
        %2025 = vmatpush2.msra.mxu0 0.0
        %2026 = vmatprep.subr.mxu0 0.0
        %2027 = vmatpush2.msra.mxu0 0.0
        %2028 = vmatprep.subr.mxu0 0.0
        %2029 = vmatpush2.msra.mxu0 0.0
        %2030 = vmatprep.mubr.f32.mxu0 0.0
        %2031 = vmatmul.mubr.f32.gmra.mxu0 %v1819
        %v2032 = vpop.f32.mrf.mxu0
        %v2033 = vadd.f32 0.0, %v2032
        %v2034 = vpop.f32.mrf.mxu0
        %v2035 = vadd.f32 0.0, %v2034
        %2036 = vdwg.mxu0
        %v2037 = vadd.f32 %v1827, %v1962
        %v2038 = vadd.f32 %v1828, %v1964
        %v2039 = vadd.f32 %v1829, %v2033
        %v2040 = vadd.f32 %v1830, %v2035
        %v2041 = vxor.u32 %v2037, 2147483648
        %v2042 = vmul.f32 %v2041, 1.442695
        %v2043 = vpow.pop %v2042
        %v2044 = vadd.f32 %v2043, 1.0
        %v2045 = vrcp.pop %v2044
        %v2046 = vmul.f32 1.0, %v2045
        %v2047 = vxor.u32 %v2038, 2147483648
        %v2048 = vmul.f32 %v2047, 1.442695
        %v2049 = vpow.pop %v2048
        %v2050 = vadd.f32 %v2049, 1.0
        %v2051 = vrcp.pop %v2050
        %v2052 = vmul.f32 1.0, %v2051
        %v2053 = vtanh.pop %v2039
        %v2054 = vxor.u32 %v2040, 2147483648
        %v2055 = vmul.f32 %v2054, 1.442695
        %v2056 = vpow.pop %v2055
        %v2057 = vadd.f32 %v2056, 1.0
        %v2058 = vrcp.pop %v2057
        %v2059 = vmul.f32 1.0, %v2058
        %v2060 = vmul.f32 %v2052, %v1817
        %v2061 = vmul.f32 %v2046, %v2053
        %v2062 = vadd.f32 %v2060, %v2061
        %v2063 = vtanh.pop %v2062
        %v2064 = vmul.f32 %v2059, %v2063
        %s2065 = smul.u32 %s1823, 8
        %s2066 = scalar_lea.vmem %s254, %s2065
        %2067 = vst [vmem:[%s2066] sm:$0xff] %v2064
        %s2068 = scalar_select %p597, 6, 1
        %s2069 = smul.u32 %s2068, 4
        %s2070 = smul.addr %s2069, 8
        %s2071 = scalar_lea.vmem [#allocation2], %s2070
        %v2072 = vld [vmem:[%s2071] sm:$0xff]
        %v2073 = vld [vmem:[%s2071 + $0x8] sm:$0xff]
        %v2074 = vld [vmem:[%s2071 + $0x10] sm:$0xff]
        %v2075 = vld [vmem:[%s2071 + $0x18] sm:$0xff]
        %v2076 = vld [vmem:[%s207] sm:$0xff]
        %v2077 = vld [vmem:[%s207 + $0x8] sm:$0xff]
        %v2078 = vld [vmem:[%s207 + $0x10] sm:$0xff]
        %v2079 = vld [vmem:[%s207 + $0x18] sm:$0xff]
        %v2080 = vld [vmem:[%s207 + $0x20] sm:$0xff]
        %v2081 = vld [vmem:[%s207 + $0x28] sm:$0xff]
        %v2082 = vld [vmem:[%s207 + $0x30] sm:$0xff]
        %v2083 = vld [vmem:[%s207 + $0x38] sm:$0xff]
        %v2084 = vld [vmem:[%s207 + $0x40] sm:$0xff]
        %v2085 = vld [vmem:[%s207 + $0x48] sm:$0xff]
        %v2086 = vld [vmem:[%s207 + $0x50] sm:$0xff]
        %v2087 = vld [vmem:[%s207 + $0x58] sm:$0xff]
        %v2088 = vld [vmem:[%s207 + $0x60] sm:$0xff]
        %v2089 = vld [vmem:[%s207 + $0x68] sm:$0xff]
        %v2090 = vld [vmem:[%s207 + $0x70] sm:$0xff]
        %v2091 = vld [vmem:[%s207 + $0x78] sm:$0xff]
        %v2092 = vld [vmem:[%s207 + $0x80] sm:$0xff]
        %v2093 = vld [vmem:[%s207 + $0x88] sm:$0xff]
        %v2094 = vld [vmem:[%s207 + $0x90] sm:$0xff]
        %v2095 = vld [vmem:[%s207 + $0x98] sm:$0xff]
        %v2096 = vld [vmem:[%s207 + $0xa0] sm:$0xff]
        %v2097 = vld [vmem:[%s207 + $0xa8] sm:$0xff]
        %v2098 = vld [vmem:[%s207 + $0xb0] sm:$0xff]
        %v2099 = vld [vmem:[%s207 + $0xb8] sm:$0xff]
        %v2100 = vld [vmem:[%s207 + $0xc0] sm:$0xff]
        %v2101 = vld [vmem:[%s207 + $0xc8] sm:$0xff]
        %v2102 = vld [vmem:[%s207 + $0xd0] sm:$0xff]
        %v2103 = vld [vmem:[%s207 + $0xd8] sm:$0xff]
        %v2104 = vld [vmem:[%s207 + $0xe0] sm:$0xff]
        %v2105 = vld [vmem:[%s207 + $0xe8] sm:$0xff]
        %v2106 = vld [vmem:[%s207 + $0xf0] sm:$0xff]
        %v2107 = vld [vmem:[%s207 + $0xf8] sm:$0xff]
        %v2108 = vld [vmem:[%s207 + $0x100] sm:$0xff]
        %v2109 = vld [vmem:[%s207 + $0x108] sm:$0xff]
        %v2110 = vld [vmem:[%s207 + $0x110] sm:$0xff]
        %v2111 = vld [vmem:[%s207 + $0x118] sm:$0xff]
        %v2112 = vld [vmem:[%s207 + $0x120] sm:$0xff]
        %v2113 = vld [vmem:[%s207 + $0x128] sm:$0xff]
        %v2114 = vld [vmem:[%s207 + $0x130] sm:$0xff]
        %v2115 = vld [vmem:[%s207 + $0x138] sm:$0xff]
        %v2116 = vld [vmem:[%s207 + $0x140] sm:$0xff]
        %v2117 = vld [vmem:[%s207 + $0x148] sm:$0xff]
        %v2118 = vld [vmem:[%s207 + $0x150] sm:$0xff]
        %v2119 = vld [vmem:[%s207 + $0x158] sm:$0xff]
        %v2120 = vld [vmem:[%s207 + $0x160] sm:$0xff]
        %v2121 = vld [vmem:[%s207 + $0x168] sm:$0xff]
        %v2122 = vld [vmem:[%s207 + $0x170] sm:$0xff]
        %v2123 = vld [vmem:[%s207 + $0x178] sm:$0xff]
        %v2124 = vld [vmem:[%s207 + $0x180] sm:$0xff]
        %v2125 = vld [vmem:[%s207 + $0x188] sm:$0xff]
        %v2126 = vld [vmem:[%s207 + $0x190] sm:$0xff]
        %v2127 = vld [vmem:[%s207 + $0x198] sm:$0xff]
        %v2128 = vld [vmem:[%s207 + $0x1a0] sm:$0xff]
        %v2129 = vld [vmem:[%s207 + $0x1a8] sm:$0xff]
        %v2130 = vld [vmem:[%s207 + $0x1b0] sm:$0xff]
        %v2131 = vld [vmem:[%s207 + $0x1b8] sm:$0xff]
        %v2132 = vld [vmem:[%s207 + $0x1c0] sm:$0xff]
        %v2133 = vld [vmem:[%s207 + $0x1c8] sm:$0xff]
        %v2134 = vld [vmem:[%s207 + $0x1d0] sm:$0xff]
        %v2135 = vld [vmem:[%s207 + $0x1d8] sm:$0xff]
        %v2136 = vld [vmem:[%s207 + $0x1e0] sm:$0xff]
        %v2137 = vld [vmem:[%s207 + $0x1e8] sm:$0xff]
        %v2138 = vld [vmem:[%s207 + $0x1f0] sm:$0xff]
        %v2139 = vld [vmem:[%s207 + $0x1f8] sm:$0xff]
        %2140 = vmatprep.subr.mxu0 %v2137
        %2141 = vmatpush1.msra.mxu0 %v2136
        %2142 = vmatprep.subr.mxu0 %v2133
        %2143 = vmatpush1.msra.mxu0 %v2132
        %2144 = vmatprep.subr.mxu0 %v2129
        %2145 = vmatpush1.msra.mxu0 %v2128
        %2146 = vmatprep.subr.mxu0 %v2125
        %2147 = vmatpush1.msra.mxu0 %v2124
        %2148 = vmatprep.subr.mxu0 %v2121
        %2149 = vmatpush1.msra.mxu0 %v2120
        %2150 = vmatprep.subr.mxu0 %v2117
        %2151 = vmatpush1.msra.mxu0 %v2116
        %2152 = vmatprep.subr.mxu0 %v2113
        %2153 = vmatpush1.msra.mxu0 %v2112
        %2154 = vmatprep.subr.mxu0 %v2109
        %2155 = vmatpush1.msra.mxu0 %v2108
        %2156 = vmatprep.subr.mxu0 %v2105
        %2157 = vmatpush1.msra.mxu0 %v2104
        %2158 = vmatprep.subr.mxu0 %v2101
        %2159 = vmatpush1.msra.mxu0 %v2100
        %2160 = vmatprep.subr.mxu0 %v2097
        %2161 = vmatpush1.msra.mxu0 %v2096
        %2162 = vmatprep.subr.mxu0 %v2093
        %2163 = vmatpush1.msra.mxu0 %v2092
        %2164 = vmatprep.subr.mxu0 %v2089
        %2165 = vmatpush1.msra.mxu0 %v2088
        %2166 = vmatprep.subr.mxu0 %v2085
        %2167 = vmatpush1.msra.mxu0 %v2084
        %2168 = vmatprep.subr.mxu0 %v2081
        %2169 = vmatpush1.msra.mxu0 %v2080
        %2170 = vmatprep.subr.mxu0 %v2077
        %2171 = vmatpush1.msra.mxu0 %v2076
        %2172 = vmatprep.subr.mxu0 0.0
        %2173 = vmatpush2.msra.mxu0 0.0
        %2174 = vmatprep.subr.mxu0 0.0
        %2175 = vmatpush2.msra.mxu0 0.0
        %2176 = vmatprep.subr.mxu0 0.0
        %2177 = vmatpush2.msra.mxu0 0.0
        %2178 = vmatprep.subr.mxu0 0.0
        %2179 = vmatpush2.msra.mxu0 0.0
        %2180 = vmatprep.subr.mxu0 0.0
        %2181 = vmatpush2.msra.mxu0 0.0
        %2182 = vmatprep.subr.mxu0 0.0
        %2183 = vmatpush2.msra.mxu0 0.0
        %2184 = vmatprep.subr.mxu0 0.0
        %2185 = vmatpush2.msra.mxu0 0.0
        %2186 = vmatprep.subr.mxu0 0.0
        %2187 = vmatpush2.msra.mxu0 0.0
        %2188 = vmatprep.subr.mxu0 0.0
        %2189 = vmatpush2.msra.mxu0 0.0
        %2190 = vmatprep.subr.mxu0 0.0
        %2191 = vmatpush2.msra.mxu0 0.0
        %2192 = vmatprep.subr.mxu0 0.0
        %2193 = vmatpush2.msra.mxu0 0.0
        %2194 = vmatprep.subr.mxu0 0.0
        %2195 = vmatpush2.msra.mxu0 0.0
        %2196 = vmatprep.subr.mxu0 0.0
        %2197 = vmatpush2.msra.mxu0 0.0
        %2198 = vmatprep.subr.mxu0 0.0
        %2199 = vmatpush2.msra.mxu0 0.0
        %2200 = vmatprep.subr.mxu0 0.0
        %2201 = vmatpush2.msra.mxu0 0.0
        %2202 = vmatprep.subr.mxu0 0.0
        %2203 = vmatpush2.msra.mxu0 0.0
        %2204 = vmatprep.mubr.f32.mxu0 0.0
        %2205 = vmatmul.mubr.f32.gmra.mxu0 %v2064
        %v2206 = vpop.f32.mrf.mxu0
        %v2207 = vadd.f32 0.0, %v2206
        %v2208 = vpop.f32.mrf.mxu0
        %v2209 = vadd.f32 0.0, %v2208
        %2210 = vdwg.mxu0
        %2211 = vmatprep.subr.mxu0 %v2139
        %2212 = vmatpush1.msra.mxu0 %v2138
        %2213 = vmatprep.subr.mxu0 %v2135
        %2214 = vmatpush1.msra.mxu0 %v2134
        %2215 = vmatprep.subr.mxu0 %v2131
        %2216 = vmatpush1.msra.mxu0 %v2130
        %2217 = vmatprep.subr.mxu0 %v2127
        %2218 = vmatpush1.msra.mxu0 %v2126
        %2219 = vmatprep.subr.mxu0 %v2123
        %2220 = vmatpush1.msra.mxu0 %v2122
        %2221 = vmatprep.subr.mxu0 %v2119
        %2222 = vmatpush1.msra.mxu0 %v2118
        %2223 = vmatprep.subr.mxu0 %v2115
        %2224 = vmatpush1.msra.mxu0 %v2114
        %2225 = vmatprep.subr.mxu0 %v2111
        %2226 = vmatpush1.msra.mxu0 %v2110
        %2227 = vmatprep.subr.mxu0 %v2107
        %2228 = vmatpush1.msra.mxu0 %v2106
        %2229 = vmatprep.subr.mxu0 %v2103
        %2230 = vmatpush1.msra.mxu0 %v2102
        %2231 = vmatprep.subr.mxu0 %v2099
        %2232 = vmatpush1.msra.mxu0 %v2098
        %2233 = vmatprep.subr.mxu0 %v2095
        %2234 = vmatpush1.msra.mxu0 %v2094
        %2235 = vmatprep.subr.mxu0 %v2091
        %2236 = vmatpush1.msra.mxu0 %v2090
        %2237 = vmatprep.subr.mxu0 %v2087
        %2238 = vmatpush1.msra.mxu0 %v2086
        %2239 = vmatprep.subr.mxu0 %v2083
        %2240 = vmatpush1.msra.mxu0 %v2082
        %2241 = vmatprep.subr.mxu0 %v2079
        %2242 = vmatpush1.msra.mxu0 %v2078
        %2243 = vmatprep.subr.mxu0 0.0
        %2244 = vmatpush2.msra.mxu0 0.0
        %2245 = vmatprep.subr.mxu0 0.0
        %2246 = vmatpush2.msra.mxu0 0.0
        %2247 = vmatprep.subr.mxu0 0.0
        %2248 = vmatpush2.msra.mxu0 0.0
        %2249 = vmatprep.subr.mxu0 0.0
        %2250 = vmatpush2.msra.mxu0 0.0
        %2251 = vmatprep.subr.mxu0 0.0
        %2252 = vmatpush2.msra.mxu0 0.0
        %2253 = vmatprep.subr.mxu0 0.0
        %2254 = vmatpush2.msra.mxu0 0.0
        %2255 = vmatprep.subr.mxu0 0.0
        %2256 = vmatpush2.msra.mxu0 0.0
        %2257 = vmatprep.subr.mxu0 0.0
        %2258 = vmatpush2.msra.mxu0 0.0
        %2259 = vmatprep.subr.mxu0 0.0
        %2260 = vmatpush2.msra.mxu0 0.0
        %2261 = vmatprep.subr.mxu0 0.0
        %2262 = vmatpush2.msra.mxu0 0.0
        %2263 = vmatprep.subr.mxu0 0.0
        %2264 = vmatpush2.msra.mxu0 0.0
        %2265 = vmatprep.subr.mxu0 0.0
        %2266 = vmatpush2.msra.mxu0 0.0
        %2267 = vmatprep.subr.mxu0 0.0
        %2268 = vmatpush2.msra.mxu0 0.0
        %2269 = vmatprep.subr.mxu0 0.0
        %2270 = vmatpush2.msra.mxu0 0.0
        %2271 = vmatprep.subr.mxu0 0.0
        %2272 = vmatpush2.msra.mxu0 0.0
        %2273 = vmatprep.subr.mxu0 0.0
        %2274 = vmatpush2.msra.mxu0 0.0
        %2275 = vmatprep.mubr.f32.mxu0 0.0
        %2276 = vmatmul.mubr.f32.gmra.mxu0 %v2064
        %v2277 = vpop.f32.mrf.mxu0
        %v2278 = vadd.f32 0.0, %v2277
        %v2279 = vpop.f32.mrf.mxu0
        %v2280 = vadd.f32 0.0, %v2279
        %2281 = vdwg.mxu0
        %v2282 = vadd.f32 %v2072, %v2207
        %v2283 = vadd.f32 %v2073, %v2209
        %v2284 = vadd.f32 %v2074, %v2278
        %v2285 = vadd.f32 %v2075, %v2280
        %v2286 = vxor.u32 %v2282, 2147483648
        %v2287 = vmul.f32 %v2286, 1.442695
        %v2288 = vpow.pop %v2287
        %v2289 = vadd.f32 %v2288, 1.0
        %v2290 = vrcp.pop %v2289
        %v2291 = vmul.f32 1.0, %v2290
        %v2292 = vxor.u32 %v2283, 2147483648
        %v2293 = vmul.f32 %v2292, 1.442695
        %v2294 = vpow.pop %v2293
        %v2295 = vadd.f32 %v2294, 1.0
        %v2296 = vrcp.pop %v2295
        %v2297 = vmul.f32 1.0, %v2296
        %v2298 = vtanh.pop %v2284
        %v2299 = vxor.u32 %v2285, 2147483648
        %v2300 = vmul.f32 %v2299, 1.442695
        %v2301 = vpow.pop %v2300
        %v2302 = vadd.f32 %v2301, 1.0
        %v2303 = vrcp.pop %v2302
        %v2304 = vmul.f32 1.0, %v2303
        %v2305 = vmul.f32 %v2297, %v2062
        %v2306 = vmul.f32 %v2291, %v2298
        %v2307 = vadd.f32 %v2305, %v2306
        %v2308 = vtanh.pop %v2307
        %v2309 = vmul.f32 %v2304, %v2308
        %s2310 = smul.u32 %s2068, 8
        %s2311 = scalar_lea.vmem %s254, %s2310
        %2312 = vst [vmem:[%s2311] sm:$0xff] %v2309
        %s2313 = scalar_select %p597, 7, 0
        %s2314 = smul.u32 %s2313, 4
        %s2315 = smul.addr %s2314, 8
        %s2316 = scalar_lea.vmem [#allocation2], %s2315
        %v2317 = vld [vmem:[%s2316] sm:$0xff]
        %v2318 = vld [vmem:[%s2316 + $0x8] sm:$0xff]
        %v2319 = vld [vmem:[%s2316 + $0x10] sm:$0xff]
        %v2320 = vld [vmem:[%s2316 + $0x18] sm:$0xff]
        %v2321 = vld [vmem:[%s207] sm:$0xff]
        %v2322 = vld [vmem:[%s207 + $0x8] sm:$0xff]
        %v2323 = vld [vmem:[%s207 + $0x10] sm:$0xff]
        %v2324 = vld [vmem:[%s207 + $0x18] sm:$0xff]
        %v2325 = vld [vmem:[%s207 + $0x20] sm:$0xff]
        %v2326 = vld [vmem:[%s207 + $0x28] sm:$0xff]
        %v2327 = vld [vmem:[%s207 + $0x30] sm:$0xff]
        %v2328 = vld [vmem:[%s207 + $0x38] sm:$0xff]
        %v2329 = vld [vmem:[%s207 + $0x40] sm:$0xff]
        %v2330 = vld [vmem:[%s207 + $0x48] sm:$0xff]
        %v2331 = vld [vmem:[%s207 + $0x50] sm:$0xff]
        %v2332 = vld [vmem:[%s207 + $0x58] sm:$0xff]
        %v2333 = vld [vmem:[%s207 + $0x60] sm:$0xff]
        %v2334 = vld [vmem:[%s207 + $0x68] sm:$0xff]
        %v2335 = vld [vmem:[%s207 + $0x70] sm:$0xff]
        %v2336 = vld [vmem:[%s207 + $0x78] sm:$0xff]
        %v2337 = vld [vmem:[%s207 + $0x80] sm:$0xff]
        %v2338 = vld [vmem:[%s207 + $0x88] sm:$0xff]
        %v2339 = vld [vmem:[%s207 + $0x90] sm:$0xff]
        %v2340 = vld [vmem:[%s207 + $0x98] sm:$0xff]
        %v2341 = vld [vmem:[%s207 + $0xa0] sm:$0xff]
        %v2342 = vld [vmem:[%s207 + $0xa8] sm:$0xff]
        %v2343 = vld [vmem:[%s207 + $0xb0] sm:$0xff]
        %v2344 = vld [vmem:[%s207 + $0xb8] sm:$0xff]
        %v2345 = vld [vmem:[%s207 + $0xc0] sm:$0xff]
        %v2346 = vld [vmem:[%s207 + $0xc8] sm:$0xff]
        %v2347 = vld [vmem:[%s207 + $0xd0] sm:$0xff]
        %v2348 = vld [vmem:[%s207 + $0xd8] sm:$0xff]
        %v2349 = vld [vmem:[%s207 + $0xe0] sm:$0xff]
        %v2350 = vld [vmem:[%s207 + $0xe8] sm:$0xff]
        %v2351 = vld [vmem:[%s207 + $0xf0] sm:$0xff]
        %v2352 = vld [vmem:[%s207 + $0xf8] sm:$0xff]
        %v2353 = vld [vmem:[%s207 + $0x100] sm:$0xff]
        %v2354 = vld [vmem:[%s207 + $0x108] sm:$0xff]
        %v2355 = vld [vmem:[%s207 + $0x110] sm:$0xff]
        %v2356 = vld [vmem:[%s207 + $0x118] sm:$0xff]
        %v2357 = vld [vmem:[%s207 + $0x120] sm:$0xff]
        %v2358 = vld [vmem:[%s207 + $0x128] sm:$0xff]
        %v2359 = vld [vmem:[%s207 + $0x130] sm:$0xff]
        %v2360 = vld [vmem:[%s207 + $0x138] sm:$0xff]
        %v2361 = vld [vmem:[%s207 + $0x140] sm:$0xff]
        %v2362 = vld [vmem:[%s207 + $0x148] sm:$0xff]
        %v2363 = vld [vmem:[%s207 + $0x150] sm:$0xff]
        %v2364 = vld [vmem:[%s207 + $0x158] sm:$0xff]
        %v2365 = vld [vmem:[%s207 + $0x160] sm:$0xff]
        %v2366 = vld [vmem:[%s207 + $0x168] sm:$0xff]
        %v2367 = vld [vmem:[%s207 + $0x170] sm:$0xff]
        %v2368 = vld [vmem:[%s207 + $0x178] sm:$0xff]
        %v2369 = vld [vmem:[%s207 + $0x180] sm:$0xff]
        %v2370 = vld [vmem:[%s207 + $0x188] sm:$0xff]
        %v2371 = vld [vmem:[%s207 + $0x190] sm:$0xff]
        %v2372 = vld [vmem:[%s207 + $0x198] sm:$0xff]
        %v2373 = vld [vmem:[%s207 + $0x1a0] sm:$0xff]
        %v2374 = vld [vmem:[%s207 + $0x1a8] sm:$0xff]
        %v2375 = vld [vmem:[%s207 + $0x1b0] sm:$0xff]
        %v2376 = vld [vmem:[%s207 + $0x1b8] sm:$0xff]
        %v2377 = vld [vmem:[%s207 + $0x1c0] sm:$0xff]
        %v2378 = vld [vmem:[%s207 + $0x1c8] sm:$0xff]
        %v2379 = vld [vmem:[%s207 + $0x1d0] sm:$0xff]
        %v2380 = vld [vmem:[%s207 + $0x1d8] sm:$0xff]
        %v2381 = vld [vmem:[%s207 + $0x1e0] sm:$0xff]
        %v2382 = vld [vmem:[%s207 + $0x1e8] sm:$0xff]
        %v2383 = vld [vmem:[%s207 + $0x1f0] sm:$0xff]
        %v2384 = vld [vmem:[%s207 + $0x1f8] sm:$0xff]
        %2385 = vmatprep.subr.mxu0 %v2382
        %2386 = vmatpush1.msra.mxu0 %v2381
        %2387 = vmatprep.subr.mxu0 %v2378
        %2388 = vmatpush1.msra.mxu0 %v2377
        %2389 = vmatprep.subr.mxu0 %v2374
        %2390 = vmatpush1.msra.mxu0 %v2373
        %2391 = vmatprep.subr.mxu0 %v2370
        %2392 = vmatpush1.msra.mxu0 %v2369
        %2393 = vmatprep.subr.mxu0 %v2366
        %2394 = vmatpush1.msra.mxu0 %v2365
        %2395 = vmatprep.subr.mxu0 %v2362
        %2396 = vmatpush1.msra.mxu0 %v2361
        %2397 = vmatprep.subr.mxu0 %v2358
        %2398 = vmatpush1.msra.mxu0 %v2357
        %2399 = vmatprep.subr.mxu0 %v2354
        %2400 = vmatpush1.msra.mxu0 %v2353
        %2401 = vmatprep.subr.mxu0 %v2350
        %2402 = vmatpush1.msra.mxu0 %v2349
        %2403 = vmatprep.subr.mxu0 %v2346
        %2404 = vmatpush1.msra.mxu0 %v2345
        %2405 = vmatprep.subr.mxu0 %v2342
        %2406 = vmatpush1.msra.mxu0 %v2341
        %2407 = vmatprep.subr.mxu0 %v2338
        %2408 = vmatpush1.msra.mxu0 %v2337
        %2409 = vmatprep.subr.mxu0 %v2334
        %2410 = vmatpush1.msra.mxu0 %v2333
        %2411 = vmatprep.subr.mxu0 %v2330
        %2412 = vmatpush1.msra.mxu0 %v2329
        %2413 = vmatprep.subr.mxu0 %v2326
        %2414 = vmatpush1.msra.mxu0 %v2325
        %2415 = vmatprep.subr.mxu0 %v2322
        %2416 = vmatpush1.msra.mxu0 %v2321
        %2417 = vmatprep.subr.mxu0 0.0
        %2418 = vmatpush2.msra.mxu0 0.0
        %2419 = vmatprep.subr.mxu0 0.0
        %2420 = vmatpush2.msra.mxu0 0.0
        %2421 = vmatprep.subr.mxu0 0.0
        %2422 = vmatpush2.msra.mxu0 0.0
        %2423 = vmatprep.subr.mxu0 0.0
        %2424 = vmatpush2.msra.mxu0 0.0
        %2425 = vmatprep.subr.mxu0 0.0
        %2426 = vmatpush2.msra.mxu0 0.0
        %2427 = vmatprep.subr.mxu0 0.0
        %2428 = vmatpush2.msra.mxu0 0.0
        %2429 = vmatprep.subr.mxu0 0.0
        %2430 = vmatpush2.msra.mxu0 0.0
        %2431 = vmatprep.subr.mxu0 0.0
        %2432 = vmatpush2.msra.mxu0 0.0
        %2433 = vmatprep.subr.mxu0 0.0
        %2434 = vmatpush2.msra.mxu0 0.0
        %2435 = vmatprep.subr.mxu0 0.0
        %2436 = vmatpush2.msra.mxu0 0.0
        %2437 = vmatprep.subr.mxu0 0.0
        %2438 = vmatpush2.msra.mxu0 0.0
        %2439 = vmatprep.subr.mxu0 0.0
        %2440 = vmatpush2.msra.mxu0 0.0
        %2441 = vmatprep.subr.mxu0 0.0
        %2442 = vmatpush2.msra.mxu0 0.0
        %2443 = vmatprep.subr.mxu0 0.0
        %2444 = vmatpush2.msra.mxu0 0.0
        %2445 = vmatprep.subr.mxu0 0.0
        %2446 = vmatpush2.msra.mxu0 0.0
        %2447 = vmatprep.subr.mxu0 0.0
        %2448 = vmatpush2.msra.mxu0 0.0
        %2449 = vmatprep.mubr.f32.mxu0 0.0
        %2450 = vmatmul.mubr.f32.gmra.mxu0 %v2309
        %v2451 = vpop.f32.mrf.mxu0
        %v2452 = vadd.f32 0.0, %v2451
        %v2453 = vpop.f32.mrf.mxu0
        %v2454 = vadd.f32 0.0, %v2453
        %2455 = vdwg.mxu0
        %2456 = vmatprep.subr.mxu0 %v2384
        %2457 = vmatpush1.msra.mxu0 %v2383
        %2458 = vmatprep.subr.mxu0 %v2380
        %2459 = vmatpush1.msra.mxu0 %v2379
        %2460 = vmatprep.subr.mxu0 %v2376
        %2461 = vmatpush1.msra.mxu0 %v2375
        %2462 = vmatprep.subr.mxu0 %v2372
        %2463 = vmatpush1.msra.mxu0 %v2371
        %2464 = vmatprep.subr.mxu0 %v2368
        %2465 = vmatpush1.msra.mxu0 %v2367
        %2466 = vmatprep.subr.mxu0 %v2364
        %2467 = vmatpush1.msra.mxu0 %v2363
        %2468 = vmatprep.subr.mxu0 %v2360
        %2469 = vmatpush1.msra.mxu0 %v2359
        %2470 = vmatprep.subr.mxu0 %v2356
        %2471 = vmatpush1.msra.mxu0 %v2355
        %2472 = vmatprep.subr.mxu0 %v2352
        %2473 = vmatpush1.msra.mxu0 %v2351
        %2474 = vmatprep.subr.mxu0 %v2348
        %2475 = vmatpush1.msra.mxu0 %v2347
        %2476 = vmatprep.subr.mxu0 %v2344
        %2477 = vmatpush1.msra.mxu0 %v2343
        %2478 = vmatprep.subr.mxu0 %v2340
        %2479 = vmatpush1.msra.mxu0 %v2339
        %2480 = vmatprep.subr.mxu0 %v2336
        %2481 = vmatpush1.msra.mxu0 %v2335
        %2482 = vmatprep.subr.mxu0 %v2332
        %2483 = vmatpush1.msra.mxu0 %v2331
        %2484 = vmatprep.subr.mxu0 %v2328
        %2485 = vmatpush1.msra.mxu0 %v2327
        %2486 = vmatprep.subr.mxu0 %v2324
        %2487 = vmatpush1.msra.mxu0 %v2323
        %2488 = vmatprep.subr.mxu0 0.0
        %2489 = vmatpush2.msra.mxu0 0.0
        %2490 = vmatprep.subr.mxu0 0.0
        %2491 = vmatpush2.msra.mxu0 0.0
        %2492 = vmatprep.subr.mxu0 0.0
        %2493 = vmatpush2.msra.mxu0 0.0
        %2494 = vmatprep.subr.mxu0 0.0
        %2495 = vmatpush2.msra.mxu0 0.0
        %2496 = vmatprep.subr.mxu0 0.0
        %2497 = vmatpush2.msra.mxu0 0.0
        %2498 = vmatprep.subr.mxu0 0.0
        %2499 = vmatpush2.msra.mxu0 0.0
        %2500 = vmatprep.subr.mxu0 0.0
        %2501 = vmatpush2.msra.mxu0 0.0
        %2502 = vmatprep.subr.mxu0 0.0
        %2503 = vmatpush2.msra.mxu0 0.0
        %2504 = vmatprep.subr.mxu0 0.0
        %2505 = vmatpush2.msra.mxu0 0.0
        %2506 = vmatprep.subr.mxu0 0.0
        %2507 = vmatpush2.msra.mxu0 0.0
        %2508 = vmatprep.subr.mxu0 0.0
        %2509 = vmatpush2.msra.mxu0 0.0
        %2510 = vmatprep.subr.mxu0 0.0
        %2511 = vmatpush2.msra.mxu0 0.0
        %2512 = vmatprep.subr.mxu0 0.0
        %2513 = vmatpush2.msra.mxu0 0.0
        %2514 = vmatprep.subr.mxu0 0.0
        %2515 = vmatpush2.msra.mxu0 0.0
        %2516 = vmatprep.subr.mxu0 0.0
        %2517 = vmatpush2.msra.mxu0 0.0
        %2518 = vmatprep.subr.mxu0 0.0
        %2519 = vmatpush2.msra.mxu0 0.0
        %2520 = vmatprep.mubr.f32.mxu0 0.0
        %2521 = vmatmul.mubr.f32.gmra.mxu0 %v2309
        %v2522 = vpop.f32.mrf.mxu0
        %v2523 = vadd.f32 0.0, %v2522
        %v2524 = vpop.f32.mrf.mxu0
        %v2525 = vadd.f32 0.0, %v2524
        %2526 = vdwg.mxu0
        %v2527 = vadd.f32 %v2317, %v2452
        %v2528 = vadd.f32 %v2318, %v2454
        %v2529 = vadd.f32 %v2319, %v2523
        %v2530 = vadd.f32 %v2320, %v2525
        %v2531 = vxor.u32 %v2527, 2147483648
        %v2532 = vmul.f32 %v2531, 1.442695
        %v2533 = vpow.pop %v2532
        %v2534 = vadd.f32 %v2533, 1.0
        %v2535 = vrcp.pop %v2534
        %v2536 = vmul.f32 1.0, %v2535
        %v2537 = vxor.u32 %v2528, 2147483648
        %v2538 = vmul.f32 %v2537, 1.442695
        %v2539 = vpow.pop %v2538
        %v2540 = vadd.f32 %v2539, 1.0
        %v2541 = vrcp.pop %v2540
        %v2542 = vmul.f32 1.0, %v2541
        %v2543 = vtanh.pop %v2529
        %v2544 = vxor.u32 %v2530, 2147483648
        %v2545 = vmul.f32 %v2544, 1.442695
        %v2546 = vpow.pop %v2545
        %v2547 = vadd.f32 %v2546, 1.0
        %v2548 = vrcp.pop %v2547
        %v2549 = vmul.f32 1.0, %v2548
        %v2550 = vmul.f32 %v2542, %v2307
        %v2551 = vmul.f32 %v2536, %v2543
        %v2552 = vadd.f32 %v2550, %v2551
        %v2553 = vtanh.pop %v2552
        %v2554 = vmul.f32 %v2549, %v2553
        %s2555 = smul.u32 %s2313, 8
        %s2556 = scalar_lea.vmem %s254, %s2555
        %2557 = vst [vmem:[%s2556] sm:$0xff] %v2554
        %p2558 = scmp.lt.s32.totalorder %s18, 1
        %s2559 = scalar_select %p2558, %s18, 1
        %s2560 = smul.addr %s2559, 8
        %s2561 = smul.addr %s2560, 8
        %s2562 = scalar_lea.vmem %s4, %s2561
        // Predicated region
        $region41: #{blstm_forward.3} parent=35 // pred_check
          %p2563 = pneg %p135
        $region42: #{blstm_forward.3} parent=35 // pred_check_branch
          %2565 = sbr.rel (%p2563) target = $region44
        $region43: #{blstm_forward.3} parent=35 // pred_region
          _
        $region44: #{blstm_forward.3} parent=35 // pred_fallthru
          _
      $region36: #{blstm_forward.3} parent=5 // pred_fallthru
        _
      %p2566 = scmp.le.s32.totalorder 2, %s13
      // Predicated region
      $region45: #{blstm_forward.3} parent=5 // pred_check
        %p2567 = pneg %p2566
      $region46: #{blstm_forward.3} parent=5 // pred_check_branch
        %2569 = sbr.rel (%p2567) target = $region48
      $region47: #{blstm_forward.3} parent=5 // pred_region
        %s2570 = ssub.s32 %s13, 2
        // Predicated region
        $region49: #{blstm_forward.3} parent=47 // pred_check
          %p2571 = pneg %p141
        $region50: #{blstm_forward.3} parent=47 // pred_check_branch
          %2573 = sbr.rel (%p2571) target = $region52
        $region51: #{blstm_forward.3} parent=47 // pred_region
          %p2574 = scmp.lt.s32.totalorder %s19, 1
          %s2575 = scalar_select %p2574, %s19, 1
          %s2576 = smul.addr %s2575, 8
          %s2577 = smul.addr %s2576, 8
          %s2578 = scalar_lea.vmem %s4, %s2577
        $region52: #{blstm_forward.3} parent=47 // pred_fallthru
          _
      $region48: #{blstm_forward.3} parent=5 // pred_fallthru
        _
    $region6: #{blstm_forward.3} parent=1 // loop_footer
      %s17 = sadd.s32 1, %s13
    $region7: #{blstm_forward.3} parent=1 // loop_footer_branch
      %12 = sbr.rel target = $region3
    $region8: #{blstm_forward.3} parent=1 // loop_exit
      _
    %2579 = vsyncpa [#allocation4], 1
    %s2580 = scalar_lea.sflag [#allocation4], 1
    %2581 = vsyncpa %s2580, 1

// kernel: blstm_forward.4
$region0: #{blstm_forward.4}
  #allocation0 [shape = 'u32[]', space=smem, size = 0x4, offset = 0x4, fixed_abs, tag = 'smem constant byte address 0x4 - core index']
  #allocation1 [shape = 'u32[144,128]{1,0:T(1,128)}', space=vmem, size = 0x12000, scoped, tag = 'internal scratch']
  #allocation2 [shape = 'f32[8,8,512]{2,1,0:T(8,128)}', space=vmem, size = 0x20000, scoped, tag = 'scratch operand']
  %s0 = inlined_call_operand.vmem [shape: f32[8,8,256], index: 0, kind: input, shape index: {}]
  %s1 = inlined_call_operand.vmem [shape: f32[2,256,512], index: 1, kind: input, shape index: {}]
  %s2 = inlined_call_operand.hbm [shape: f32[2,128,512], index: 2, kind: input, shape index: {}]
  %s3 = inlined_call_operand.vmem [shape: f32[2,1,512], index: 3, kind: input, shape index: {}]
  %s4 = inlined_call_operand.vmem [shape: f32[2,8,8,128], index: 4, kind: output, shape index: {}]
  %s5 = sld [smem:[#allocation0]]
  $region53: #{blstm_forward.4} parent=0
    _
  %s7 = ssub.s32 1, %s5
  %s8 = scalar_select 0, %s7, %s5
  $region1: #{blstm_forward.4} parent=0
    #allocation3 [shape = 'u8[524288]{0}', space=vmem, size = 0x80000, scoped, tag = 'input window, operand 2']
    #allocation4 [shape = 's32[2]{0}', space=sflag, size = 0x8, scoped, tag = 'scoped memory for blstm_forward.4']
    %9 = vsyncpa [#allocation4], 0
    %s10 = scalar_lea.sflag [#allocation4], 1
    %11 = vsyncpa %s10, 0
    loop: start=0, step=1, limit=4
    $region2: #{blstm_forward.4} parent=1 // loop_pre_header
      _
    $region3: #{blstm_forward.4} parent=1 // loop_header
      %s13 = sphi 0, %s17
      %p14 = scmp.ge.s32.totalorder %s13, 4
      %s21 = sphi 0, %s21
      %s23 = sphi 0, %s21
      %s24 = sphi 0, %s23
      %s38 = sphi 0, %s24
      %s44 = sphi 0, %s46
      %s47 = sphi 0, %s44
      %s48 = sphi 0, %s47
      %s64 = sphi 0, %s48
      %s70 = sphi 0, %s72
      %s73 = sphi 0, %s70
      %s74 = sphi 0, %s73
      %s90 = sphi 0, %s74
      %s96 = sphi 0, %s98
      %s99 = sphi 0, %s96
      %s100 = sphi 0, %s99
      %s116 = sphi 0, %s100
      %s122 = sphi 0, %s124
      %s125 = sphi 0, %s122
      %s126 = sphi 0, %s125
      %s142 = sphi 0, %s126
    $region4: #{blstm_forward.4} parent=1 // loop_header_branch
      %16 = sbr.rel (%p14) target = $region8
    $region5: #{blstm_forward.4} parent=1 // loop_body
      %s18 = ssub.s32 %s13, 1
      %s19 = ssub.s32 %s13, 2
      %s20 = sadd.s32 %s13, 1
      %s22 = sadd.s32 %s21, 1
      %p25 = scmp.eq.s32.totalorder %s13, 1
      %p26 = scmp.ne.s32.totalorder %s21, %s23
      %p27 = scmp.eq.s32.totalorder %s13, 0
      %p28 = por %p26, %p27
      %p29 = scmp.ne.s32.totalorder %s21, %s23
      %p30 = scmp.eq.s32.totalorder %s18, 1
      %p31 = por %p29, %p30
      %p32 = scmp.ne.s32.totalorder %s23, %s24
      %p33 = scmp.eq.s32.totalorder %s18, 0
      %p34 = por %p32, %p33
      %p35 = scmp.ne.s32.totalorder %s23, %s24
      %p36 = scmp.eq.s32.totalorder %s19, 1
      %p37 = por %p35, %p36
      %p39 = scmp.ne.s32.totalorder %s24, %s38
      %p40 = scmp.eq.s32.totalorder %s19, 0
      %p41 = por %p39, %p40
      %s42 = ssub.s32 %s13, %s20
      %p43 = scmp.eq.s32.totalorder %s42, 0
      %s45 = sadd.s32 %s44, 1
      %s46 = scalar_select %p43, %s44, %s45
      %p49 = pneg %p43
      %p50 = scmp.eq.s32.totalorder %s13, 1
      %p51 = por %p49, %p50
      %p52 = scmp.ne.s32.totalorder %s44, %s47
      %p53 = scmp.eq.s32.totalorder %s13, 0
      %p54 = por %p52, %p53
      %p55 = scmp.ne.s32.totalorder %s44, %s47
      %p56 = scmp.eq.s32.totalorder %s18, 1
      %p57 = por %p55, %p56
      %p58 = scmp.ne.s32.totalorder %s47, %s48
      %p59 = scmp.eq.s32.totalorder %s18, 0
      %p60 = por %p58, %p59
      %p61 = scmp.ne.s32.totalorder %s47, %s48
      %p62 = scmp.eq.s32.totalorder %s19, 1
      %p63 = por %p61, %p62
      %p65 = scmp.ne.s32.totalorder %s48, %s64
      %p66 = scmp.eq.s32.totalorder %s19, 0
      %p67 = por %p65, %p66
      %s68 = ssub.s32 %s13, %s20
      %p69 = scmp.eq.s32.totalorder %s68, 0
      %s71 = sadd.s32 %s70, 1
      %s72 = scalar_select %p69, %s70, %s71
      %p75 = pneg %p69
      %p76 = scmp.eq.s32.totalorder %s13, 1
      %p77 = por %p75, %p76
      %p78 = scmp.ne.s32.totalorder %s70, %s73
      %p79 = scmp.eq.s32.totalorder %s13, 0
      %p80 = por %p78, %p79
      %p81 = scmp.ne.s32.totalorder %s70, %s73
      %p82 = scmp.eq.s32.totalorder %s18, 1
      %p83 = por %p81, %p82
      %p84 = scmp.ne.s32.totalorder %s73, %s74
      %p85 = scmp.eq.s32.totalorder %s18, 0
      %p86 = por %p84, %p85
      %p87 = scmp.ne.s32.totalorder %s73, %s74
      %p88 = scmp.eq.s32.totalorder %s19, 1
      %p89 = por %p87, %p88
      %p91 = scmp.ne.s32.totalorder %s74, %s90
      %p92 = scmp.eq.s32.totalorder %s19, 0
      %p93 = por %p91, %p92
      %s94 = ssub.s32 %s13, %s20
      %p95 = scmp.eq.s32.totalorder %s94, 0
      %s97 = sadd.s32 %s96, 1
      %s98 = scalar_select %p95, %s96, %s97
      %p101 = pneg %p95
      %p102 = scmp.eq.s32.totalorder %s13, 1
      %p103 = por %p101, %p102
      %p104 = scmp.ne.s32.totalorder %s96, %s99
      %p105 = scmp.eq.s32.totalorder %s13, 0
      %p106 = por %p104, %p105
      %p107 = scmp.ne.s32.totalorder %s96, %s99
      %p108 = scmp.eq.s32.totalorder %s18, 1
      %p109 = por %p107, %p108
      %p110 = scmp.ne.s32.totalorder %s99, %s100
      %p111 = scmp.eq.s32.totalorder %s18, 0
      %p112 = por %p110, %p111
      %p113 = scmp.ne.s32.totalorder %s99, %s100
      %p114 = scmp.eq.s32.totalorder %s19, 1
      %p115 = por %p113, %p114
      %p117 = scmp.ne.s32.totalorder %s100, %s116
      %p118 = scmp.eq.s32.totalorder %s19, 0
      %p119 = por %p117, %p118
      %s120 = ssub.s32 %s13, %s20
      %p121 = scmp.eq.s32.totalorder %s120, 0
      %s123 = sadd.s32 %s122, 1
      %s124 = scalar_select %p121, %s122, %s123
      %p127 = pneg %p121
      %p128 = scmp.eq.s32.totalorder %s13, 1
      %p129 = por %p127, %p128
      %p130 = scmp.ne.s32.totalorder %s122, %s125
      %p131 = scmp.eq.s32.totalorder %s13, 0
      %p132 = por %p130, %p131
      %p133 = scmp.ne.s32.totalorder %s122, %s125
      %p134 = scmp.eq.s32.totalorder %s18, 1
      %p135 = por %p133, %p134
      %p136 = scmp.ne.s32.totalorder %s125, %s126
      %p137 = scmp.eq.s32.totalorder %s18, 0
      %p138 = por %p136, %p137
      %p139 = scmp.ne.s32.totalorder %s125, %s126
      %p140 = scmp.eq.s32.totalorder %s19, 1
      %p141 = por %p139, %p140
      %p143 = scmp.ne.s32.totalorder %s126, %s142
      %p144 = scmp.eq.s32.totalorder %s19, 0
      %p145 = por %p143, %p144
      %p146 = scmp.le.s32.totalorder 1, %s13
      %p147 = scmp.lt.s32.totalorder %s13, 3
      %p148 = pnand %p146, %p147
      %p149 = pneg %p148
      // Predicated region
      $region9: #{blstm_forward.4} parent=5 // pred_check
        _
      $region10: #{blstm_forward.4} parent=5 // pred_check_branch
        %151 = sbr.rel (%p148) target = $region12
      $region11: #{blstm_forward.4} parent=5 // pred_region
        %s152 = ssub.s32 %s13, 1
        // Predicated region
        $region13: #{blstm_forward.4} parent=11 // pred_check
          %p153 = pneg %p34
        $region14: #{blstm_forward.4} parent=11 // pred_check_branch
          %155 = sbr.rel (%p153) target = $region16
        $region15: #{blstm_forward.4} parent=11 // pred_region
          _
        $region16: #{blstm_forward.4} parent=11 // pred_fallthru
          _
      $region12: #{blstm_forward.4} parent=5 // pred_fallthru
        _
      %p156 = scmp.lt.s32.totalorder %s13, 2
      // Predicated region
      $region17: #{blstm_forward.4} parent=5 // pred_check
        %p157 = pneg %p156
      $region18: #{blstm_forward.4} parent=5 // pred_check_branch
        %159 = sbr.rel (%p157) target = $region20
      $region19: #{blstm_forward.4} parent=5 // pred_region
        // Predicated region
        $region21: #{blstm_forward.4} parent=19 // pred_check
          %p160 = pneg %p54
        $region22: #{blstm_forward.4} parent=19 // pred_check_branch
          %162 = sbr.rel (%p160) target = $region24
        $region23: #{blstm_forward.4} parent=19 // pred_region
          %p163 = scmp.lt.s32.totalorder %s13, 1
          %s164 = scalar_select %p163, %s13, 1
          %s165 = smul.addr %s164, 128
          %s166 = smul.addr %s165, 8
          %s167 = scalar_lea.vmem %s1, %s166
        $region24: #{blstm_forward.4} parent=19 // pred_fallthru
          _
        // Predicated region
        $region25: #{blstm_forward.4} parent=19 // pred_check
          %p168 = pneg %p80
        $region26: #{blstm_forward.4} parent=19 // pred_check_branch
          %170 = sbr.rel (%p168) target = $region28
        $region27: #{blstm_forward.4} parent=19 // pred_region
          %s171 = sand.u32 %s70, 1
          %s172 = scalar_lea.sflag [#allocation4], %s171
          %s173 = sand.u32 %s70, 1
          %s174 = smul.addr %s173, 512
          %s175 = scalar_lea.vmem [#allocation3], %s174
          %s177 = ssub.s32 8192, 8192
          %178 = vsyncadd %s172, %s177
          %s179 = smul.addr %s13, 64
          %s180 = smul.addr %s179, 128
          %s181 = scalar_lea.hbm %s2, %s180
          %s182 = sshll.u32 %s175, 4
          %s183 = int_to_ptr.vmem [resolvable:$true] %s182
          %188 = dma.hbm_to_vmem [thread:$0]  %s181, 8192, %s183, %s172, 512, 512, 32
        $region28: #{blstm_forward.4} parent=19 // pred_fallthru
          _
        // Predicated region
        $region29: #{blstm_forward.4} parent=19 // pred_check
          %p189 = pneg %p106
        $region30: #{blstm_forward.4} parent=19 // pred_check_branch
          %191 = sbr.rel (%p189) target = $region32
        $region31: #{blstm_forward.4} parent=19 // pred_region
          %p192 = scmp.lt.s32.totalorder %s13, 1
          %s193 = scalar_select %p192, %s13, 1
          %s194 = smul.addr %s193, 4
          %s195 = scalar_lea.vmem %s3, %s194
        $region32: #{blstm_forward.4} parent=19 // pred_fallthru
          _
      $region20: #{blstm_forward.4} parent=5 // pred_fallthru
        _
      %p196 = scmp.le.s32.totalorder 1, %s13
      %p197 = scmp.lt.s32.totalorder %s13, 3
      %p198 = pnand %p196, %p197
      %p199 = pneg %p198
      // Predicated region
      $region33: #{blstm_forward.4} parent=5 // pred_check
        _
      $region34: #{blstm_forward.4} parent=5 // pred_check_branch
        %201 = sbr.rel (%p198) target = $region36
      $region35: #{blstm_forward.4} parent=5 // pred_region
        %s202 = ssub.s32 %s13, 1
        %s203 = sand.u32 %s73, 1
        %s204 = scalar_lea.sflag [#allocation4], %s203
        %s205 = sand.u32 %s73, 1
        %s206 = smul.addr %s205, 512
        %s207 = scalar_lea.vmem [#allocation3], %s206
        // Predicated region
        $region37: #{blstm_forward.4} parent=35 // pred_check
          %p208 = pneg %p86
        $region38: #{blstm_forward.4} parent=35 // pred_check_branch
          %210 = sbr.rel (%p208) target = $region40
        $region39: #{blstm_forward.4} parent=35 // pred_region
          %211 = dma.done %s204, 8192
        $region40: #{blstm_forward.4} parent=35 // pred_fallthru
          _
        %p212 = pneg %p34
        %p213 = pneg %p31
        %p214 = scmp.lt.s32.totalorder %s18, 1
        %s215 = scalar_select %p214, %s18, 1
        %s216 = smul.addr %s215, 128
        %s217 = smul.addr %s216, 8
        %s218 = scalar_lea.vmem %s1, %s217
        %p219 = pneg %p60
        %p220 = pneg %p57
        %s221 = sand.u32 %s73, 1
        %s222 = scalar_lea.sflag [#allocation4], %s221
        %s223 = sand.u32 %s73, 1
        %s224 = smul.addr %s223, 512
        %s225 = scalar_lea.vmem [#allocation3], %s224
        %p226 = pneg %p86
        %p227 = pneg %p83
        %p228 = scmp.lt.s32.totalorder %s18, 1
        %s229 = scalar_select %p228, %s18, 1
        %s230 = smul.addr %s229, 4
        %s231 = scalar_lea.vmem %s3, %s230
        %p232 = pneg %p112
        %p233 = pneg %p109
        %p234 = pneg %p138
        %p235 = pneg %p135
        %p236 = scmp.lt.s32.totalorder %s18, 1
        %s237 = scalar_select %p236, %s18, 1
        %s238 = smul.addr %s237, 8
        %s239 = smul.addr %s238, 8
        %s240 = scalar_lea.vmem %s4, %s239
        %p241 = scmp.lt.s32.totalorder %s18, 1
        %s242 = scalar_select %p241, %s18, 1
        %s243 = smul.addr %s242, 128
        %s244 = smul.addr %s243, 8
        %s245 = scalar_lea.vmem %s1, %s244
        %p246 = scmp.lt.s32.totalorder %s18, 1
        %s247 = scalar_select %p246, %s18, 1
        %s248 = smul.addr %s247, 4
        %s249 = scalar_lea.vmem %s3, %s248
        %p250 = scmp.lt.s32.totalorder %s18, 1
        %s251 = scalar_select %p250, %s18, 1
        %s252 = smul.addr %s251, 8
        %s253 = smul.addr %s252, 8
        %s254 = scalar_lea.vmem %s4, %s253
        %v255 = vld [vmem:[%s0] sm:$0xff]
        %v256 = vld [vmem:[%s0 + $0x8] sm:$0xff]
        %v257 = vld [vmem:[%s0 + $0x10] sm:$0xff]
        %v258 = vld [vmem:[%s0 + $0x18] sm:$0xff]
        %v259 = vld [vmem:[%s0 + $0x20] sm:$0xff]
        %v260 = vld [vmem:[%s0 + $0x28] sm:$0xff]
        %v261 = vld [vmem:[%s0 + $0x30] sm:$0xff]
        %v262 = vld [vmem:[%s0 + $0x38] sm:$0xff]
        %v263 = vld [vmem:[%s0 + $0x40] sm:$0xff]
        %v264 = vld [vmem:[%s0 + $0x48] sm:$0xff]
        %v265 = vld [vmem:[%s0 + $0x50] sm:$0xff]
        %v266 = vld [vmem:[%s0 + $0x58] sm:$0xff]
        %v267 = vld [vmem:[%s0 + $0x60] sm:$0xff]
        %v268 = vld [vmem:[%s0 + $0x68] sm:$0xff]
        %v269 = vld [vmem:[%s0 + $0x70] sm:$0xff]
        %v270 = vld [vmem:[%s0 + $0x78] sm:$0xff]
        %v271 = vld [vmem:[%s245] sm:$0xff]
        %v272 = vld [vmem:[%s245 + $0x8] sm:$0xff]
        %v273 = vld [vmem:[%s245 + $0x10] sm:$0xff]
        %v274 = vld [vmem:[%s245 + $0x18] sm:$0xff]
        %v275 = vld [vmem:[%s245 + $0x20] sm:$0xff]
        %v276 = vld [vmem:[%s245 + $0x28] sm:$0xff]
        %v277 = vld [vmem:[%s245 + $0x30] sm:$0xff]
        %v278 = vld [vmem:[%s245 + $0x38] sm:$0xff]
        %v279 = vld [vmem:[%s245 + $0x40] sm:$0xff]
        %v280 = vld [vmem:[%s245 + $0x48] sm:$0xff]
        %v281 = vld [vmem:[%s245 + $0x50] sm:$0xff]
        %v282 = vld [vmem:[%s245 + $0x58] sm:$0xff]
        %v283 = vld [vmem:[%s245 + $0x60] sm:$0xff]
        %v284 = vld [vmem:[%s245 + $0x68] sm:$0xff]
        %v285 = vld [vmem:[%s245 + $0x70] sm:$0xff]
        %v286 = vld [vmem:[%s245 + $0x78] sm:$0xff]
        %v287 = vld [vmem:[%s245 + $0x80] sm:$0xff]
        %v288 = vld [vmem:[%s245 + $0x88] sm:$0xff]
        %v289 = vld [vmem:[%s245 + $0x90] sm:$0xff]
        %v290 = vld [vmem:[%s245 + $0x98] sm:$0xff]
        %v291 = vld [vmem:[%s245 + $0xa0] sm:$0xff]
        %v292 = vld [vmem:[%s245 + $0xa8] sm:$0xff]
        %v293 = vld [vmem:[%s245 + $0xb0] sm:$0xff]
        %v294 = vld [vmem:[%s245 + $0xb8] sm:$0xff]
        %v295 = vld [vmem:[%s245 + $0xc0] sm:$0xff]
        %v296 = vld [vmem:[%s245 + $0xc8] sm:$0xff]
        %v297 = vld [vmem:[%s245 + $0xd0] sm:$0xff]
        %v298 = vld [vmem:[%s245 + $0xd8] sm:$0xff]
        %v299 = vld [vmem:[%s245 + $0xe0] sm:$0xff]
        %v300 = vld [vmem:[%s245 + $0xe8] sm:$0xff]
        %v301 = vld [vmem:[%s245 + $0xf0] sm:$0xff]
        %v302 = vld [vmem:[%s245 + $0xf8] sm:$0xff]
        %v303 = vld [vmem:[%s245 + $0x100] sm:$0xff]
        %v304 = vld [vmem:[%s245 + $0x108] sm:$0xff]
        %v305 = vld [vmem:[%s245 + $0x110] sm:$0xff]
        %v306 = vld [vmem:[%s245 + $0x118] sm:$0xff]
        %v307 = vld [vmem:[%s245 + $0x120] sm:$0xff]
        %v308 = vld [vmem:[%s245 + $0x128] sm:$0xff]
        %v309 = vld [vmem:[%s245 + $0x130] sm:$0xff]
        %v310 = vld [vmem:[%s245 + $0x138] sm:$0xff]
        %v311 = vld [vmem:[%s245 + $0x140] sm:$0xff]
        %v312 = vld [vmem:[%s245 + $0x148] sm:$0xff]
        %v313 = vld [vmem:[%s245 + $0x150] sm:$0xff]
        %v314 = vld [vmem:[%s245 + $0x158] sm:$0xff]
        %v315 = vld [vmem:[%s245 + $0x160] sm:$0xff]
        %v316 = vld [vmem:[%s245 + $0x168] sm:$0xff]
        %v317 = vld [vmem:[%s245 + $0x170] sm:$0xff]
        %v318 = vld [vmem:[%s245 + $0x178] sm:$0xff]
        %v319 = vld [vmem:[%s245 + $0x180] sm:$0xff]
        %v320 = vld [vmem:[%s245 + $0x188] sm:$0xff]
        %v321 = vld [vmem:[%s245 + $0x190] sm:$0xff]
        %v322 = vld [vmem:[%s245 + $0x198] sm:$0xff]
        %v323 = vld [vmem:[%s245 + $0x1a0] sm:$0xff]
        %v324 = vld [vmem:[%s245 + $0x1a8] sm:$0xff]
        %v325 = vld [vmem:[%s245 + $0x1b0] sm:$0xff]
        %v326 = vld [vmem:[%s245 + $0x1b8] sm:$0xff]
        %v327 = vld [vmem:[%s245 + $0x1c0] sm:$0xff]
        %v328 = vld [vmem:[%s245 + $0x1c8] sm:$0xff]
        %v329 = vld [vmem:[%s245 + $0x1d0] sm:$0xff]
        %v330 = vld [vmem:[%s245 + $0x1d8] sm:$0xff]
        %v331 = vld [vmem:[%s245 + $0x1e0] sm:$0xff]
        %v332 = vld [vmem:[%s245 + $0x1e8] sm:$0xff]
        %v333 = vld [vmem:[%s245 + $0x1f0] sm:$0xff]
        %v334 = vld [vmem:[%s245 + $0x1f8] sm:$0xff]
        %v335 = vld [vmem:[%s245 + $0x200] sm:$0xff]
        %v336 = vld [vmem:[%s245 + $0x208] sm:$0xff]
        %v337 = vld [vmem:[%s245 + $0x210] sm:$0xff]
        %v338 = vld [vmem:[%s245 + $0x218] sm:$0xff]
        %v339 = vld [vmem:[%s245 + $0x220] sm:$0xff]
        %v340 = vld [vmem:[%s245 + $0x228] sm:$0xff]
        %v341 = vld [vmem:[%s245 + $0x230] sm:$0xff]
        %v342 = vld [vmem:[%s245 + $0x238] sm:$0xff]
        %v343 = vld [vmem:[%s245 + $0x240] sm:$0xff]
        %v344 = vld [vmem:[%s245 + $0x248] sm:$0xff]
        %v345 = vld [vmem:[%s245 + $0x250] sm:$0xff]
        %v346 = vld [vmem:[%s245 + $0x258] sm:$0xff]
        %v347 = vld [vmem:[%s245 + $0x260] sm:$0xff]
        %v348 = vld [vmem:[%s245 + $0x268] sm:$0xff]
        %v349 = vld [vmem:[%s245 + $0x270] sm:$0xff]
        %v350 = vld [vmem:[%s245 + $0x278] sm:$0xff]
        %v351 = vld [vmem:[%s245 + $0x280] sm:$0xff]
        %v352 = vld [vmem:[%s245 + $0x288] sm:$0xff]
        %v353 = vld [vmem:[%s245 + $0x290] sm:$0xff]
        %v354 = vld [vmem:[%s245 + $0x298] sm:$0xff]
        %v355 = vld [vmem:[%s245 + $0x2a0] sm:$0xff]
        %v356 = vld [vmem:[%s245 + $0x2a8] sm:$0xff]
        %v357 = vld [vmem:[%s245 + $0x2b0] sm:$0xff]
        %v358 = vld [vmem:[%s245 + $0x2b8] sm:$0xff]
        %v359 = vld [vmem:[%s245 + $0x2c0] sm:$0xff]
        %v360 = vld [vmem:[%s245 + $0x2c8] sm:$0xff]
        %v361 = vld [vmem:[%s245 + $0x2d0] sm:$0xff]
        %v362 = vld [vmem:[%s245 + $0x2d8] sm:$0xff]
        %v363 = vld [vmem:[%s245 + $0x2e0] sm:$0xff]
        %v364 = vld [vmem:[%s245 + $0x2e8] sm:$0xff]
        %v365 = vld [vmem:[%s245 + $0x2f0] sm:$0xff]
        %v366 = vld [vmem:[%s245 + $0x2f8] sm:$0xff]
        %v367 = vld [vmem:[%s245 + $0x300] sm:$0xff]
        %v368 = vld [vmem:[%s245 + $0x308] sm:$0xff]
        %v369 = vld [vmem:[%s245 + $0x310] sm:$0xff]
        %v370 = vld [vmem:[%s245 + $0x318] sm:$0xff]
        %v371 = vld [vmem:[%s245 + $0x320] sm:$0xff]
        %v372 = vld [vmem:[%s245 + $0x328] sm:$0xff]
        %v373 = vld [vmem:[%s245 + $0x330] sm:$0xff]
        %v374 = vld [vmem:[%s245 + $0x338] sm:$0xff]
        %v375 = vld [vmem:[%s245 + $0x340] sm:$0xff]
        %v376 = vld [vmem:[%s245 + $0x348] sm:$0xff]
        %v377 = vld [vmem:[%s245 + $0x350] sm:$0xff]
        %v378 = vld [vmem:[%s245 + $0x358] sm:$0xff]
        %v379 = vld [vmem:[%s245 + $0x360] sm:$0xff]
        %v380 = vld [vmem:[%s245 + $0x368] sm:$0xff]
        %v381 = vld [vmem:[%s245 + $0x370] sm:$0xff]
        %v382 = vld [vmem:[%s245 + $0x378] sm:$0xff]
        %v383 = vld [vmem:[%s245 + $0x380] sm:$0xff]
        %v384 = vld [vmem:[%s245 + $0x388] sm:$0xff]
        %v385 = vld [vmem:[%s245 + $0x390] sm:$0xff]
        %v386 = vld [vmem:[%s245 + $0x398] sm:$0xff]
        %v387 = vld [vmem:[%s245 + $0x3a0] sm:$0xff]
        %v388 = vld [vmem:[%s245 + $0x3a8] sm:$0xff]
        %v389 = vld [vmem:[%s245 + $0x3b0] sm:$0xff]
        %v390 = vld [vmem:[%s245 + $0x3b8] sm:$0xff]
        %v391 = vld [vmem:[%s245 + $0x3c0] sm:$0xff]
        %v392 = vld [vmem:[%s245 + $0x3c8] sm:$0xff]
        %v393 = vld [vmem:[%s245 + $0x3d0] sm:$0xff]
        %v394 = vld [vmem:[%s245 + $0x3d8] sm:$0xff]
        %v395 = vld [vmem:[%s245 + $0x3e0] sm:$0xff]
        %v396 = vld [vmem:[%s245 + $0x3e8] sm:$0xff]
        %v397 = vld [vmem:[%s245 + $0x3f0] sm:$0xff]
        %v398 = vld [vmem:[%s245 + $0x3f8] sm:$0xff]
        %v399 = vld [vmem:[%s249] sm:$0xf]
        %v401 = vlaneseq
        %v402 = vshrl.u32 %v401, 7
        %v403 = vsub.s32 0, %v402
        %v404 = vrot.slane %v399, %v403
        %v405 = vlaneseq
        %v406 = vshrl.u32 %v405, 7
        %v407 = vsub.s32 1, %v406
        %v408 = vrot.slane %v399, %v407
        %v409 = vlaneseq
        %v410 = vshrl.u32 %v409, 7
        %v411 = vsub.s32 2, %v410
        %v412 = vrot.slane %v399, %v411
        %v413 = vlaneseq
        %v414 = vshrl.u32 %v413, 7
        %v415 = vsub.s32 3, %v414
        %v416 = vrot.slane %v399, %v415
        %421 = vmatprep.subr.mxu0 %v332
        %422 = vmatpush1.msra.mxu0 %v331
        %423 = vmatprep.subr.mxu0 %v328
        %424 = vmatpush1.msra.mxu0 %v327
        %425 = vmatprep.subr.mxu0 %v324
        %426 = vmatpush1.msra.mxu0 %v323
        %427 = vmatprep.subr.mxu0 %v320
        %428 = vmatpush1.msra.mxu0 %v319
        %429 = vmatprep.subr.mxu0 %v316
        %430 = vmatpush1.msra.mxu0 %v315
        %431 = vmatprep.subr.mxu0 %v312
        %432 = vmatpush1.msra.mxu0 %v311
        %433 = vmatprep.subr.mxu0 %v308
        %434 = vmatpush1.msra.mxu0 %v307
        %435 = vmatprep.subr.mxu0 %v304
        %436 = vmatpush1.msra.mxu0 %v303
        %437 = vmatprep.subr.mxu0 %v300
        %438 = vmatpush1.msra.mxu0 %v299
        %439 = vmatprep.subr.mxu0 %v296
        %440 = vmatpush1.msra.mxu0 %v295
        %441 = vmatprep.subr.mxu0 %v292
        %442 = vmatpush1.msra.mxu0 %v291
        %443 = vmatprep.subr.mxu0 %v288
        %444 = vmatpush1.msra.mxu0 %v287
        %445 = vmatprep.subr.mxu0 %v284
        %446 = vmatpush1.msra.mxu0 %v283
        %447 = vmatprep.subr.mxu0 %v280
        %448 = vmatpush1.msra.mxu0 %v279
        %449 = vmatprep.subr.mxu0 %v276
        %450 = vmatpush1.msra.mxu0 %v275
        %451 = vmatprep.subr.mxu0 %v272
        %452 = vmatpush1.msra.mxu0 %v271
        %453 = vmatprep.subr.mxu0 %v396
        %454 = vmatpush2.msra.mxu0 %v395
        %455 = vmatprep.subr.mxu0 %v392
        %456 = vmatpush2.msra.mxu0 %v391
        %457 = vmatprep.subr.mxu0 %v388
        %458 = vmatpush2.msra.mxu0 %v387
        %459 = vmatprep.subr.mxu0 %v384
        %460 = vmatpush2.msra.mxu0 %v383
        %461 = vmatprep.subr.mxu0 %v380
        %462 = vmatpush2.msra.mxu0 %v379
        %463 = vmatprep.subr.mxu0 %v376
        %464 = vmatpush2.msra.mxu0 %v375
        %465 = vmatprep.subr.mxu0 %v372
        %466 = vmatpush2.msra.mxu0 %v371
        %467 = vmatprep.subr.mxu0 %v368
        %468 = vmatpush2.msra.mxu0 %v367
        %469 = vmatprep.subr.mxu0 %v364
        %470 = vmatpush2.msra.mxu0 %v363
        %471 = vmatprep.subr.mxu0 %v360
        %472 = vmatpush2.msra.mxu0 %v359
        %473 = vmatprep.subr.mxu0 %v356
        %474 = vmatpush2.msra.mxu0 %v355
        %475 = vmatprep.subr.mxu0 %v352
        %476 = vmatpush2.msra.mxu0 %v351
        %477 = vmatprep.subr.mxu0 %v348
        %478 = vmatpush2.msra.mxu0 %v347
        %479 = vmatprep.subr.mxu0 %v344
        %480 = vmatpush2.msra.mxu0 %v343
        %481 = vmatprep.subr.mxu0 %v340
        %482 = vmatpush2.msra.mxu0 %v339
        %483 = vmatprep.subr.mxu0 %v336
        %484 = vmatpush2.msra.mxu0 %v335
        %485 = vmatprep.mubr.f32.mxu0 %v256
        %486 = vmatmul.mubr.f32.gmra.mxu0 %v255
        %v487 = vpop.f32.mrf.mxu0
        %v488 = vadd.f32 %v404, %v487
        %v489 = vpop.f32.mrf.mxu0
        %v490 = vadd.f32 %v408, %v489
        %491 = vmatprep.mubr.f32.mxu0 %v258
        %492 = vmatmul.mubr.f32.gmra.mxu0 %v257
        %v493 = vpop.f32.mrf.mxu0
        %v494 = vadd.f32 %v404, %v493
        %v495 = vpop.f32.mrf.mxu0
        %v496 = vadd.f32 %v408, %v495
        %497 = vmatprep.mubr.f32.mxu0 %v260
        %498 = vmatmul.mubr.f32.gmra.mxu0 %v259
        %v499 = vpop.f32.mrf.mxu0
        %v500 = vadd.f32 %v404, %v499
        %v501 = vpop.f32.mrf.mxu0
        %v502 = vadd.f32 %v408, %v501
        %503 = vmatprep.mubr.f32.mxu0 %v262
        %504 = vmatmul.mubr.f32.gmra.mxu0 %v261
        %v505 = vpop.f32.mrf.mxu0
        %v506 = vadd.f32 %v404, %v505
        %v507 = vpop.f32.mrf.mxu0
        %v508 = vadd.f32 %v408, %v507
        %509 = vmatprep.mubr.f32.mxu0 %v264
        %510 = vmatmul.mubr.f32.gmra.mxu0 %v263
        %v511 = vpop.f32.mrf.mxu0
        %v512 = vadd.f32 %v404, %v511
        %v513 = vpop.f32.mrf.mxu0
        %v514 = vadd.f32 %v408, %v513
        %515 = vmatprep.mubr.f32.mxu0 %v266
        %516 = vmatmul.mubr.f32.gmra.mxu0 %v265
        %v517 = vpop.f32.mrf.mxu0
        %v518 = vadd.f32 %v404, %v517
        %v519 = vpop.f32.mrf.mxu0
        %v520 = vadd.f32 %v408, %v519
        %521 = vmatprep.mubr.f32.mxu0 %v268
        %522 = vmatmul.mubr.f32.gmra.mxu0 %v267
        %v523 = vpop.f32.mrf.mxu0
        %v524 = vadd.f32 %v404, %v523
        %v525 = vpop.f32.mrf.mxu0
        %v526 = vadd.f32 %v408, %v525
        %527 = vmatprep.mubr.f32.mxu0 %v270
        %528 = vmatmul.mubr.f32.gmra.mxu0 %v269
        %v529 = vpop.f32.mrf.mxu0
        %v530 = vadd.f32 %v404, %v529
        %v531 = vpop.f32.mrf.mxu0
        %v532 = vadd.f32 %v408, %v531
        %533 = vdwg.mxu0
        %534 = vmatprep.subr.mxu0 %v334
        %535 = vmatpush1.msra.mxu0 %v333
        %536 = vmatprep.subr.mxu0 %v330
        %537 = vmatpush1.msra.mxu0 %v329
        %538 = vmatprep.subr.mxu0 %v326
        %539 = vmatpush1.msra.mxu0 %v325
        %540 = vmatprep.subr.mxu0 %v322
        %541 = vmatpush1.msra.mxu0 %v321
        %542 = vmatprep.subr.mxu0 %v318
        %543 = vmatpush1.msra.mxu0 %v317
        %544 = vmatprep.subr.mxu0 %v314
        %545 = vmatpush1.msra.mxu0 %v313
        %546 = vmatprep.subr.mxu0 %v310
        %547 = vmatpush1.msra.mxu0 %v309
        %548 = vmatprep.subr.mxu0 %v306
        %549 = vmatpush1.msra.mxu0 %v305
        %550 = vmatprep.subr.mxu0 %v302
        %551 = vmatpush1.msra.mxu0 %v301
        %552 = vmatprep.subr.mxu0 %v298
        %553 = vmatpush1.msra.mxu0 %v297
        %554 = vmatprep.subr.mxu0 %v294
        %555 = vmatpush1.msra.mxu0 %v293
        %556 = vmatprep.subr.mxu0 %v290
        %557 = vmatpush1.msra.mxu0 %v289
        %558 = vmatprep.subr.mxu0 %v286
        %559 = vmatpush1.msra.mxu0 %v285
        %560 = vmatprep.subr.mxu0 %v282
        %561 = vmatpush1.msra.mxu0 %v281
        %562 = vmatprep.subr.mxu0 %v278
        %563 = vmatpush1.msra.mxu0 %v277
        %564 = vmatprep.subr.mxu0 %v274
        %565 = vmatpush1.msra.mxu0 %v273
        %566 = vmatprep.subr.mxu0 %v398
        %567 = vmatpush2.msra.mxu0 %v397
        %568 = vmatprep.subr.mxu0 %v394
        %569 = vmatpush2.msra.mxu0 %v393
        %570 = vmatprep.subr.mxu0 %v390
        %571 = vmatpush2.msra.mxu0 %v389
        %572 = vmatprep.subr.mxu0 %v386
        %573 = vmatpush2.msra.mxu0 %v385
        %574 = vmatprep.subr.mxu0 %v382
        %575 = vmatpush2.msra.mxu0 %v381
        %576 = vmatprep.subr.mxu0 %v378
        %577 = vmatpush2.msra.mxu0 %v377
        %578 = vmatprep.subr.mxu0 %v374
        %579 = vmatpush2.msra.mxu0 %v373
        %580 = vmatprep.subr.mxu0 %v370
        %581 = vmatpush2.msra.mxu0 %v369
        %582 = vmatprep.subr.mxu0 %v366
        %583 = vmatpush2.msra.mxu0 %v365
        %584 = vmatprep.subr.mxu0 %v362
        %585 = vmatpush2.msra.mxu0 %v361
        %586 = vmatprep.subr.mxu0 %v358
        %587 = vmatpush2.msra.mxu0 %v357
        %588 = vmatprep.subr.mxu0 %v354
        %589 = vmatpush2.msra.mxu0 %v353
        %590 = vmatprep.subr.mxu0 %v350
        %591 = vmatpush2.msra.mxu0 %v349
        %592 = vmatprep.subr.mxu0 %v346
        %593 = vmatpush2.msra.mxu0 %v345
        %594 = vmatprep.subr.mxu0 %v342
        %595 = vmatpush2.msra.mxu0 %v341
        %596 = vmatprep.subr.mxu0 %v338
        %597 = vmatpush2.msra.mxu0 %v337
        %598 = vmatprep.mubr.f32.mxu0 %v256
        %599 = vmatmul.mubr.f32.gmra.mxu0 %v255
        %v600 = vpop.f32.mrf.mxu0
        %v601 = vadd.f32 %v412, %v600
        %v602 = vpop.f32.mrf.mxu0
        %v603 = vadd.f32 %v416, %v602
        %604 = vmatprep.mubr.f32.mxu0 %v258
        %605 = vmatmul.mubr.f32.gmra.mxu0 %v257
        %v606 = vpop.f32.mrf.mxu0
        %v607 = vadd.f32 %v412, %v606
        %v608 = vpop.f32.mrf.mxu0
        %v609 = vadd.f32 %v416, %v608
        %610 = vmatprep.mubr.f32.mxu0 %v260
        %611 = vmatmul.mubr.f32.gmra.mxu0 %v259
        %v612 = vpop.f32.mrf.mxu0
        %v613 = vadd.f32 %v412, %v612
        %v614 = vpop.f32.mrf.mxu0
        %v615 = vadd.f32 %v416, %v614
        %616 = vmatprep.mubr.f32.mxu0 %v262
        %617 = vmatmul.mubr.f32.gmra.mxu0 %v261
        %v618 = vpop.f32.mrf.mxu0
        %v619 = vadd.f32 %v412, %v618
        %v620 = vpop.f32.mrf.mxu0
        %v621 = vadd.f32 %v416, %v620
        %622 = vmatprep.mubr.f32.mxu0 %v264
        %623 = vmatmul.mubr.f32.gmra.mxu0 %v263
        %v624 = vpop.f32.mrf.mxu0
        %v625 = vadd.f32 %v412, %v624
        %v626 = vpop.f32.mrf.mxu0
        %v627 = vadd.f32 %v416, %v626
        %628 = vmatprep.mubr.f32.mxu0 %v266
        %629 = vmatmul.mubr.f32.gmra.mxu0 %v265
        %v630 = vpop.f32.mrf.mxu0
        %v631 = vadd.f32 %v412, %v630
        %v632 = vpop.f32.mrf.mxu0
        %v633 = vadd.f32 %v416, %v632
        %634 = vmatprep.mubr.f32.mxu0 %v268
        %635 = vmatmul.mubr.f32.gmra.mxu0 %v267
        %v636 = vpop.f32.mrf.mxu0
        %v637 = vadd.f32 %v412, %v636
        %v638 = vpop.f32.mrf.mxu0
        %v639 = vadd.f32 %v416, %v638
        %640 = vmatprep.mubr.f32.mxu0 %v270
        %641 = vmatmul.mubr.f32.gmra.mxu0 %v269
        %v642 = vpop.f32.mrf.mxu0
        %v643 = vadd.f32 %v412, %v642
        %v644 = vpop.f32.mrf.mxu0
        %v645 = vadd.f32 %v416, %v644
        %646 = vdwg.mxu0
        %647 = vst [vmem:[#allocation2] sm:$0xff] %v488
        %648 = vst [vmem:[#allocation2 + $0x8] sm:$0xff] %v490
        %649 = vst [vmem:[#allocation2 + $0x10] sm:$0xff] %v601
        %650 = vst [vmem:[#allocation2 + $0x18] sm:$0xff] %v603
        %651 = vst [vmem:[#allocation2 + $0x20] sm:$0xff] %v494
        %652 = vst [vmem:[#allocation2 + $0x28] sm:$0xff] %v496
        %653 = vst [vmem:[#allocation2 + $0x30] sm:$0xff] %v607
        %654 = vst [vmem:[#allocation2 + $0x38] sm:$0xff] %v609
        %655 = vst [vmem:[#allocation2 + $0x40] sm:$0xff] %v500
        %656 = vst [vmem:[#allocation2 + $0x48] sm:$0xff] %v502
        %657 = vst [vmem:[#allocation2 + $0x50] sm:$0xff] %v613
        %658 = vst [vmem:[#allocation2 + $0x58] sm:$0xff] %v615
        %659 = vst [vmem:[#allocation2 + $0x60] sm:$0xff] %v506
        %660 = vst [vmem:[#allocation2 + $0x68] sm:$0xff] %v508
        %661 = vst [vmem:[#allocation2 + $0x70] sm:$0xff] %v619
        %662 = vst [vmem:[#allocation2 + $0x78] sm:$0xff] %v621
        %663 = vst [vmem:[#allocation2 + $0x80] sm:$0xff] %v512
        %664 = vst [vmem:[#allocation2 + $0x88] sm:$0xff] %v514
        %665 = vst [vmem:[#allocation2 + $0x90] sm:$0xff] %v625
        %666 = vst [vmem:[#allocation2 + $0x98] sm:$0xff] %v627
        %667 = vst [vmem:[#allocation2 + $0xa0] sm:$0xff] %v518
        %668 = vst [vmem:[#allocation2 + $0xa8] sm:$0xff] %v520
        %669 = vst [vmem:[#allocation2 + $0xb0] sm:$0xff] %v631
        %670 = vst [vmem:[#allocation2 + $0xb8] sm:$0xff] %v633
        %671 = vst [vmem:[#allocation2 + $0xc0] sm:$0xff] %v524
        %672 = vst [vmem:[#allocation2 + $0xc8] sm:$0xff] %v526
        %673 = vst [vmem:[#allocation2 + $0xd0] sm:$0xff] %v637
        %674 = vst [vmem:[#allocation2 + $0xd8] sm:$0xff] %v639
        %675 = vst [vmem:[#allocation2 + $0xe0] sm:$0xff] %v530
        %676 = vst [vmem:[#allocation2 + $0xe8] sm:$0xff] %v532
        %677 = vst [vmem:[#allocation2 + $0xf0] sm:$0xff] %v643
        %678 = vst [vmem:[#allocation2 + $0xf8] sm:$0xff] %v645
        %p679 = scmp.eq.s32.totalorder %s18, 0
        %s680 = scalar_select %p679, 0, 7
        %s681 = smul.u32 %s680, 4
        %s682 = smul.addr %s681, 8
        %s683 = scalar_lea.vmem [#allocation2], %s682
        %v684 = vld [vmem:[%s683] sm:$0xff]
        %v685 = vld [vmem:[%s683 + $0x8] sm:$0xff]
        %v686 = vld [vmem:[%s683 + $0x10] sm:$0xff]
        %v687 = vld [vmem:[%s683 + $0x18] sm:$0xff]
        %v688 = vld [vmem:[%s207] sm:$0xff]
        %v689 = vld [vmem:[%s207 + $0x8] sm:$0xff]
        %v690 = vld [vmem:[%s207 + $0x10] sm:$0xff]
        %v691 = vld [vmem:[%s207 + $0x18] sm:$0xff]
        %v692 = vld [vmem:[%s207 + $0x20] sm:$0xff]
        %v693 = vld [vmem:[%s207 + $0x28] sm:$0xff]
        %v694 = vld [vmem:[%s207 + $0x30] sm:$0xff]
        %v695 = vld [vmem:[%s207 + $0x38] sm:$0xff]
        %v696 = vld [vmem:[%s207 + $0x40] sm:$0xff]
        %v697 = vld [vmem:[%s207 + $0x48] sm:$0xff]
        %v698 = vld [vmem:[%s207 + $0x50] sm:$0xff]
        %v699 = vld [vmem:[%s207 + $0x58] sm:$0xff]
        %v700 = vld [vmem:[%s207 + $0x60] sm:$0xff]
        %v701 = vld [vmem:[%s207 + $0x68] sm:$0xff]
        %v702 = vld [vmem:[%s207 + $0x70] sm:$0xff]
        %v703 = vld [vmem:[%s207 + $0x78] sm:$0xff]
        %v704 = vld [vmem:[%s207 + $0x80] sm:$0xff]
        %v705 = vld [vmem:[%s207 + $0x88] sm:$0xff]
        %v706 = vld [vmem:[%s207 + $0x90] sm:$0xff]
        %v707 = vld [vmem:[%s207 + $0x98] sm:$0xff]
        %v708 = vld [vmem:[%s207 + $0xa0] sm:$0xff]
        %v709 = vld [vmem:[%s207 + $0xa8] sm:$0xff]
        %v710 = vld [vmem:[%s207 + $0xb0] sm:$0xff]
        %v711 = vld [vmem:[%s207 + $0xb8] sm:$0xff]
        %v712 = vld [vmem:[%s207 + $0xc0] sm:$0xff]
        %v713 = vld [vmem:[%s207 + $0xc8] sm:$0xff]
        %v714 = vld [vmem:[%s207 + $0xd0] sm:$0xff]
        %v715 = vld [vmem:[%s207 + $0xd8] sm:$0xff]
        %v716 = vld [vmem:[%s207 + $0xe0] sm:$0xff]
        %v717 = vld [vmem:[%s207 + $0xe8] sm:$0xff]
        %v718 = vld [vmem:[%s207 + $0xf0] sm:$0xff]
        %v719 = vld [vmem:[%s207 + $0xf8] sm:$0xff]
        %v720 = vld [vmem:[%s207 + $0x100] sm:$0xff]
        %v721 = vld [vmem:[%s207 + $0x108] sm:$0xff]
        %v722 = vld [vmem:[%s207 + $0x110] sm:$0xff]
        %v723 = vld [vmem:[%s207 + $0x118] sm:$0xff]
        %v724 = vld [vmem:[%s207 + $0x120] sm:$0xff]
        %v725 = vld [vmem:[%s207 + $0x128] sm:$0xff]
        %v726 = vld [vmem:[%s207 + $0x130] sm:$0xff]
        %v727 = vld [vmem:[%s207 + $0x138] sm:$0xff]
        %v728 = vld [vmem:[%s207 + $0x140] sm:$0xff]
        %v729 = vld [vmem:[%s207 + $0x148] sm:$0xff]
        %v730 = vld [vmem:[%s207 + $0x150] sm:$0xff]
        %v731 = vld [vmem:[%s207 + $0x158] sm:$0xff]
        %v732 = vld [vmem:[%s207 + $0x160] sm:$0xff]
        %v733 = vld [vmem:[%s207 + $0x168] sm:$0xff]
        %v734 = vld [vmem:[%s207 + $0x170] sm:$0xff]
        %v735 = vld [vmem:[%s207 + $0x178] sm:$0xff]
        %v736 = vld [vmem:[%s207 + $0x180] sm:$0xff]
        %v737 = vld [vmem:[%s207 + $0x188] sm:$0xff]
        %v738 = vld [vmem:[%s207 + $0x190] sm:$0xff]
        %v739 = vld [vmem:[%s207 + $0x198] sm:$0xff]
        %v740 = vld [vmem:[%s207 + $0x1a0] sm:$0xff]
        %v741 = vld [vmem:[%s207 + $0x1a8] sm:$0xff]
        %v742 = vld [vmem:[%s207 + $0x1b0] sm:$0xff]
        %v743 = vld [vmem:[%s207 + $0x1b8] sm:$0xff]
        %v744 = vld [vmem:[%s207 + $0x1c0] sm:$0xff]
        %v745 = vld [vmem:[%s207 + $0x1c8] sm:$0xff]
        %v746 = vld [vmem:[%s207 + $0x1d0] sm:$0xff]
        %v747 = vld [vmem:[%s207 + $0x1d8] sm:$0xff]
        %v748 = vld [vmem:[%s207 + $0x1e0] sm:$0xff]
        %v749 = vld [vmem:[%s207 + $0x1e8] sm:$0xff]
        %v750 = vld [vmem:[%s207 + $0x1f0] sm:$0xff]
        %v751 = vld [vmem:[%s207 + $0x1f8] sm:$0xff]
        %752 = vmatprep.subr.mxu0 %v749
        %753 = vmatpush1.msra.mxu0 %v748
        %754 = vmatprep.subr.mxu0 %v745
        %755 = vmatpush1.msra.mxu0 %v744
        %756 = vmatprep.subr.mxu0 %v741
        %757 = vmatpush1.msra.mxu0 %v740
        %758 = vmatprep.subr.mxu0 %v737
        %759 = vmatpush1.msra.mxu0 %v736
        %760 = vmatprep.subr.mxu0 %v733
        %761 = vmatpush1.msra.mxu0 %v732
        %762 = vmatprep.subr.mxu0 %v729
        %763 = vmatpush1.msra.mxu0 %v728
        %764 = vmatprep.subr.mxu0 %v725
        %765 = vmatpush1.msra.mxu0 %v724
        %766 = vmatprep.subr.mxu0 %v721
        %767 = vmatpush1.msra.mxu0 %v720
        %768 = vmatprep.subr.mxu0 %v717
        %769 = vmatpush1.msra.mxu0 %v716
        %770 = vmatprep.subr.mxu0 %v713
        %771 = vmatpush1.msra.mxu0 %v712
        %772 = vmatprep.subr.mxu0 %v709
        %773 = vmatpush1.msra.mxu0 %v708
        %774 = vmatprep.subr.mxu0 %v705
        %775 = vmatpush1.msra.mxu0 %v704
        %776 = vmatprep.subr.mxu0 %v701
        %777 = vmatpush1.msra.mxu0 %v700
        %778 = vmatprep.subr.mxu0 %v697
        %779 = vmatpush1.msra.mxu0 %v696
        %780 = vmatprep.subr.mxu0 %v693
        %781 = vmatpush1.msra.mxu0 %v692
        %782 = vmatprep.subr.mxu0 %v689
        %783 = vmatpush1.msra.mxu0 %v688
        %784 = vmatprep.subr.mxu0 0.0
        %785 = vmatpush2.msra.mxu0 0.0
        %786 = vmatprep.subr.mxu0 0.0
        %787 = vmatpush2.msra.mxu0 0.0
        %788 = vmatprep.subr.mxu0 0.0
        %789 = vmatpush2.msra.mxu0 0.0
        %790 = vmatprep.subr.mxu0 0.0
        %791 = vmatpush2.msra.mxu0 0.0
        %792 = vmatprep.subr.mxu0 0.0
        %793 = vmatpush2.msra.mxu0 0.0
        %794 = vmatprep.subr.mxu0 0.0
        %795 = vmatpush2.msra.mxu0 0.0
        %796 = vmatprep.subr.mxu0 0.0
        %797 = vmatpush2.msra.mxu0 0.0
        %798 = vmatprep.subr.mxu0 0.0
        %799 = vmatpush2.msra.mxu0 0.0
        %800 = vmatprep.subr.mxu0 0.0
        %801 = vmatpush2.msra.mxu0 0.0
        %802 = vmatprep.subr.mxu0 0.0
        %803 = vmatpush2.msra.mxu0 0.0
        %804 = vmatprep.subr.mxu0 0.0
        %805 = vmatpush2.msra.mxu0 0.0
        %806 = vmatprep.subr.mxu0 0.0
        %807 = vmatpush2.msra.mxu0 0.0
        %808 = vmatprep.subr.mxu0 0.0
        %809 = vmatpush2.msra.mxu0 0.0
        %810 = vmatprep.subr.mxu0 0.0
        %811 = vmatpush2.msra.mxu0 0.0
        %812 = vmatprep.subr.mxu0 0.0
        %813 = vmatpush2.msra.mxu0 0.0
        %814 = vmatprep.subr.mxu0 0.0
        %815 = vmatpush2.msra.mxu0 0.0
        %816 = vmatprep.mubr.f32.mxu0 0.0
        %817 = vmatmul.mubr.f32.gmra.mxu0 0.0
        %v818 = vpop.f32.mrf.mxu0
        %v819 = vadd.f32 0.0, %v818
        %v820 = vpop.f32.mrf.mxu0
        %v821 = vadd.f32 0.0, %v820
        %822 = vdwg.mxu0
        %823 = vmatprep.subr.mxu0 %v751
        %824 = vmatpush1.msra.mxu0 %v750
        %825 = vmatprep.subr.mxu0 %v747
        %826 = vmatpush1.msra.mxu0 %v746
        %827 = vmatprep.subr.mxu0 %v743
        %828 = vmatpush1.msra.mxu0 %v742
        %829 = vmatprep.subr.mxu0 %v739
        %830 = vmatpush1.msra.mxu0 %v738
        %831 = vmatprep.subr.mxu0 %v735
        %832 = vmatpush1.msra.mxu0 %v734
        %833 = vmatprep.subr.mxu0 %v731
        %834 = vmatpush1.msra.mxu0 %v730
        %835 = vmatprep.subr.mxu0 %v727
        %836 = vmatpush1.msra.mxu0 %v726
        %837 = vmatprep.subr.mxu0 %v723
        %838 = vmatpush1.msra.mxu0 %v722
        %839 = vmatprep.subr.mxu0 %v719
        %840 = vmatpush1.msra.mxu0 %v718
        %841 = vmatprep.subr.mxu0 %v715
        %842 = vmatpush1.msra.mxu0 %v714
        %843 = vmatprep.subr.mxu0 %v711
        %844 = vmatpush1.msra.mxu0 %v710
        %845 = vmatprep.subr.mxu0 %v707
        %846 = vmatpush1.msra.mxu0 %v706
        %847 = vmatprep.subr.mxu0 %v703
        %848 = vmatpush1.msra.mxu0 %v702
        %849 = vmatprep.subr.mxu0 %v699
        %850 = vmatpush1.msra.mxu0 %v698
        %851 = vmatprep.subr.mxu0 %v695
        %852 = vmatpush1.msra.mxu0 %v694
        %853 = vmatprep.subr.mxu0 %v691
        %854 = vmatpush1.msra.mxu0 %v690
        %855 = vmatprep.subr.mxu0 0.0
        %856 = vmatpush2.msra.mxu0 0.0
        %857 = vmatprep.subr.mxu0 0.0
        %858 = vmatpush2.msra.mxu0 0.0
        %859 = vmatprep.subr.mxu0 0.0
        %860 = vmatpush2.msra.mxu0 0.0
        %861 = vmatprep.subr.mxu0 0.0
        %862 = vmatpush2.msra.mxu0 0.0
        %863 = vmatprep.subr.mxu0 0.0
        %864 = vmatpush2.msra.mxu0 0.0
        %865 = vmatprep.subr.mxu0 0.0
        %866 = vmatpush2.msra.mxu0 0.0
        %867 = vmatprep.subr.mxu0 0.0
        %868 = vmatpush2.msra.mxu0 0.0
        %869 = vmatprep.subr.mxu0 0.0
        %870 = vmatpush2.msra.mxu0 0.0
        %871 = vmatprep.subr.mxu0 0.0
        %872 = vmatpush2.msra.mxu0 0.0
        %873 = vmatprep.subr.mxu0 0.0
        %874 = vmatpush2.msra.mxu0 0.0
        %875 = vmatprep.subr.mxu0 0.0
        %876 = vmatpush2.msra.mxu0 0.0
        %877 = vmatprep.subr.mxu0 0.0
        %878 = vmatpush2.msra.mxu0 0.0
        %879 = vmatprep.subr.mxu0 0.0
        %880 = vmatpush2.msra.mxu0 0.0
        %881 = vmatprep.subr.mxu0 0.0
        %882 = vmatpush2.msra.mxu0 0.0
        %883 = vmatprep.subr.mxu0 0.0
        %884 = vmatpush2.msra.mxu0 0.0
        %885 = vmatprep.subr.mxu0 0.0
        %886 = vmatpush2.msra.mxu0 0.0
        %887 = vmatprep.mubr.f32.mxu0 0.0
        %888 = vmatmul.mubr.f32.gmra.mxu0 0.0
        %v889 = vpop.f32.mrf.mxu0
        %v890 = vadd.f32 0.0, %v889
        %v891 = vpop.f32.mrf.mxu0
        %v892 = vadd.f32 0.0, %v891
        %893 = vdwg.mxu0
        %v894 = vadd.f32 %v684, %v819
        %v895 = vadd.f32 %v685, %v821
        %v896 = vadd.f32 %v686, %v890
        %v897 = vadd.f32 %v687, %v892
        %v898 = vxor.u32 %v894, 2147483648
        %v899 = vmul.f32 %v898, 1.442695
        %v900 = vpow.pop %v899
        %v901 = vadd.f32 %v900, 1.0
        %v902 = vrcp.pop %v901
        %v903 = vmul.f32 1.0, %v902
        %v904 = vxor.u32 %v895, 2147483648
        %v905 = vmul.f32 %v904, 1.442695
        %v906 = vpow.pop %v905
        %v907 = vadd.f32 %v906, 1.0
        %v908 = vrcp.pop %v907
        %v909 = vmul.f32 1.0, %v908
        %v910 = vtanh.pop %v896
        %v911 = vxor.u32 %v897, 2147483648
        %v912 = vmul.f32 %v911, 1.442695
        %v913 = vpow.pop %v912
        %v914 = vadd.f32 %v913, 1.0
        %v915 = vrcp.pop %v914
        %v916 = vmul.f32 1.0, %v915
        %v917 = vmul.f32 %v909, 0.0
        %v918 = vmul.f32 %v903, %v910
        %v919 = vadd.f32 %v917, %v918
        %v920 = vtanh.pop %v919
        %v921 = vmul.f32 %v916, %v920
        %s922 = smul.u32 %s680, 8
        %s923 = scalar_lea.vmem %s254, %s922
        %924 = vst [vmem:[%s923] sm:$0xff] %v921
        %s925 = scalar_select %p679, 1, 6
        %s926 = smul.u32 %s925, 4
        %s927 = smul.addr %s926, 8
        %s928 = scalar_lea.vmem [#allocation2], %s927
        %v929 = vld [vmem:[%s928] sm:$0xff]
        %v930 = vld [vmem:[%s928 + $0x8] sm:$0xff]
        %v931 = vld [vmem:[%s928 + $0x10] sm:$0xff]
        %v932 = vld [vmem:[%s928 + $0x18] sm:$0xff]
        %v933 = vld [vmem:[%s207] sm:$0xff]
        %v934 = vld [vmem:[%s207 + $0x8] sm:$0xff]
        %v935 = vld [vmem:[%s207 + $0x10] sm:$0xff]
        %v936 = vld [vmem:[%s207 + $0x18] sm:$0xff]
        %v937 = vld [vmem:[%s207 + $0x20] sm:$0xff]
        %v938 = vld [vmem:[%s207 + $0x28] sm:$0xff]
        %v939 = vld [vmem:[%s207 + $0x30] sm:$0xff]
        %v940 = vld [vmem:[%s207 + $0x38] sm:$0xff]
        %v941 = vld [vmem:[%s207 + $0x40] sm:$0xff]
        %v942 = vld [vmem:[%s207 + $0x48] sm:$0xff]
        %v943 = vld [vmem:[%s207 + $0x50] sm:$0xff]
        %v944 = vld [vmem:[%s207 + $0x58] sm:$0xff]
        %v945 = vld [vmem:[%s207 + $0x60] sm:$0xff]
        %v946 = vld [vmem:[%s207 + $0x68] sm:$0xff]
        %v947 = vld [vmem:[%s207 + $0x70] sm:$0xff]
        %v948 = vld [vmem:[%s207 + $0x78] sm:$0xff]
        %v949 = vld [vmem:[%s207 + $0x80] sm:$0xff]
        %v950 = vld [vmem:[%s207 + $0x88] sm:$0xff]
        %v951 = vld [vmem:[%s207 + $0x90] sm:$0xff]
        %v952 = vld [vmem:[%s207 + $0x98] sm:$0xff]
        %v953 = vld [vmem:[%s207 + $0xa0] sm:$0xff]
        %v954 = vld [vmem:[%s207 + $0xa8] sm:$0xff]
        %v955 = vld [vmem:[%s207 + $0xb0] sm:$0xff]
        %v956 = vld [vmem:[%s207 + $0xb8] sm:$0xff]
        %v957 = vld [vmem:[%s207 + $0xc0] sm:$0xff]
        %v958 = vld [vmem:[%s207 + $0xc8] sm:$0xff]
        %v959 = vld [vmem:[%s207 + $0xd0] sm:$0xff]
        %v960 = vld [vmem:[%s207 + $0xd8] sm:$0xff]
        %v961 = vld [vmem:[%s207 + $0xe0] sm:$0xff]
        %v962 = vld [vmem:[%s207 + $0xe8] sm:$0xff]
        %v963 = vld [vmem:[%s207 + $0xf0] sm:$0xff]
        %v964 = vld [vmem:[%s207 + $0xf8] sm:$0xff]
        %v965 = vld [vmem:[%s207 + $0x100] sm:$0xff]
        %v966 = vld [vmem:[%s207 + $0x108] sm:$0xff]
        %v967 = vld [vmem:[%s207 + $0x110] sm:$0xff]
        %v968 = vld [vmem:[%s207 + $0x118] sm:$0xff]
        %v969 = vld [vmem:[%s207 + $0x120] sm:$0xff]
        %v970 = vld [vmem:[%s207 + $0x128] sm:$0xff]
        %v971 = vld [vmem:[%s207 + $0x130] sm:$0xff]
        %v972 = vld [vmem:[%s207 + $0x138] sm:$0xff]
        %v973 = vld [vmem:[%s207 + $0x140] sm:$0xff]
        %v974 = vld [vmem:[%s207 + $0x148] sm:$0xff]
        %v975 = vld [vmem:[%s207 + $0x150] sm:$0xff]
        %v976 = vld [vmem:[%s207 + $0x158] sm:$0xff]
        %v977 = vld [vmem:[%s207 + $0x160] sm:$0xff]
        %v978 = vld [vmem:[%s207 + $0x168] sm:$0xff]
        %v979 = vld [vmem:[%s207 + $0x170] sm:$0xff]
        %v980 = vld [vmem:[%s207 + $0x178] sm:$0xff]
        %v981 = vld [vmem:[%s207 + $0x180] sm:$0xff]
        %v982 = vld [vmem:[%s207 + $0x188] sm:$0xff]
        %v983 = vld [vmem:[%s207 + $0x190] sm:$0xff]
        %v984 = vld [vmem:[%s207 + $0x198] sm:$0xff]
        %v985 = vld [vmem:[%s207 + $0x1a0] sm:$0xff]
        %v986 = vld [vmem:[%s207 + $0x1a8] sm:$0xff]
        %v987 = vld [vmem:[%s207 + $0x1b0] sm:$0xff]
        %v988 = vld [vmem:[%s207 + $0x1b8] sm:$0xff]
        %v989 = vld [vmem:[%s207 + $0x1c0] sm:$0xff]
        %v990 = vld [vmem:[%s207 + $0x1c8] sm:$0xff]
        %v991 = vld [vmem:[%s207 + $0x1d0] sm:$0xff]
        %v992 = vld [vmem:[%s207 + $0x1d8] sm:$0xff]
        %v993 = vld [vmem:[%s207 + $0x1e0] sm:$0xff]
        %v994 = vld [vmem:[%s207 + $0x1e8] sm:$0xff]
        %v995 = vld [vmem:[%s207 + $0x1f0] sm:$0xff]
        %v996 = vld [vmem:[%s207 + $0x1f8] sm:$0xff]
        %997 = vmatprep.subr.mxu0 %v994
        %998 = vmatpush1.msra.mxu0 %v993
        %999 = vmatprep.subr.mxu0 %v990
        %1000 = vmatpush1.msra.mxu0 %v989
        %1001 = vmatprep.subr.mxu0 %v986
        %1002 = vmatpush1.msra.mxu0 %v985
        %1003 = vmatprep.subr.mxu0 %v982
        %1004 = vmatpush1.msra.mxu0 %v981
        %1005 = vmatprep.subr.mxu0 %v978
        %1006 = vmatpush1.msra.mxu0 %v977
        %1007 = vmatprep.subr.mxu0 %v974
        %1008 = vmatpush1.msra.mxu0 %v973
        %1009 = vmatprep.subr.mxu0 %v970
        %1010 = vmatpush1.msra.mxu0 %v969
        %1011 = vmatprep.subr.mxu0 %v966
        %1012 = vmatpush1.msra.mxu0 %v965
        %1013 = vmatprep.subr.mxu0 %v962
        %1014 = vmatpush1.msra.mxu0 %v961
        %1015 = vmatprep.subr.mxu0 %v958
        %1016 = vmatpush1.msra.mxu0 %v957
        %1017 = vmatprep.subr.mxu0 %v954
        %1018 = vmatpush1.msra.mxu0 %v953
        %1019 = vmatprep.subr.mxu0 %v950
        %1020 = vmatpush1.msra.mxu0 %v949
        %1021 = vmatprep.subr.mxu0 %v946
        %1022 = vmatpush1.msra.mxu0 %v945
        %1023 = vmatprep.subr.mxu0 %v942
        %1024 = vmatpush1.msra.mxu0 %v941
        %1025 = vmatprep.subr.mxu0 %v938
        %1026 = vmatpush1.msra.mxu0 %v937
        %1027 = vmatprep.subr.mxu0 %v934
        %1028 = vmatpush1.msra.mxu0 %v933
        %1029 = vmatprep.subr.mxu0 0.0
        %1030 = vmatpush2.msra.mxu0 0.0
        %1031 = vmatprep.subr.mxu0 0.0
        %1032 = vmatpush2.msra.mxu0 0.0
        %1033 = vmatprep.subr.mxu0 0.0
        %1034 = vmatpush2.msra.mxu0 0.0
        %1035 = vmatprep.subr.mxu0 0.0
        %1036 = vmatpush2.msra.mxu0 0.0
        %1037 = vmatprep.subr.mxu0 0.0
        %1038 = vmatpush2.msra.mxu0 0.0
        %1039 = vmatprep.subr.mxu0 0.0
        %1040 = vmatpush2.msra.mxu0 0.0
        %1041 = vmatprep.subr.mxu0 0.0
        %1042 = vmatpush2.msra.mxu0 0.0
        %1043 = vmatprep.subr.mxu0 0.0
        %1044 = vmatpush2.msra.mxu0 0.0
        %1045 = vmatprep.subr.mxu0 0.0
        %1046 = vmatpush2.msra.mxu0 0.0
        %1047 = vmatprep.subr.mxu0 0.0
        %1048 = vmatpush2.msra.mxu0 0.0
        %1049 = vmatprep.subr.mxu0 0.0
        %1050 = vmatpush2.msra.mxu0 0.0
        %1051 = vmatprep.subr.mxu0 0.0
        %1052 = vmatpush2.msra.mxu0 0.0
        %1053 = vmatprep.subr.mxu0 0.0
        %1054 = vmatpush2.msra.mxu0 0.0
        %1055 = vmatprep.subr.mxu0 0.0
        %1056 = vmatpush2.msra.mxu0 0.0
        %1057 = vmatprep.subr.mxu0 0.0
        %1058 = vmatpush2.msra.mxu0 0.0
        %1059 = vmatprep.subr.mxu0 0.0
        %1060 = vmatpush2.msra.mxu0 0.0
        %1061 = vmatprep.mubr.f32.mxu0 0.0
        %1062 = vmatmul.mubr.f32.gmra.mxu0 %v921
        %v1063 = vpop.f32.mrf.mxu0
        %v1064 = vadd.f32 0.0, %v1063
        %v1065 = vpop.f32.mrf.mxu0
        %v1066 = vadd.f32 0.0, %v1065
        %1067 = vdwg.mxu0
        %1068 = vmatprep.subr.mxu0 %v996
        %1069 = vmatpush1.msra.mxu0 %v995
        %1070 = vmatprep.subr.mxu0 %v992
        %1071 = vmatpush1.msra.mxu0 %v991
        %1072 = vmatprep.subr.mxu0 %v988
        %1073 = vmatpush1.msra.mxu0 %v987
        %1074 = vmatprep.subr.mxu0 %v984
        %1075 = vmatpush1.msra.mxu0 %v983
        %1076 = vmatprep.subr.mxu0 %v980
        %1077 = vmatpush1.msra.mxu0 %v979
        %1078 = vmatprep.subr.mxu0 %v976
        %1079 = vmatpush1.msra.mxu0 %v975
        %1080 = vmatprep.subr.mxu0 %v972
        %1081 = vmatpush1.msra.mxu0 %v971
        %1082 = vmatprep.subr.mxu0 %v968
        %1083 = vmatpush1.msra.mxu0 %v967
        %1084 = vmatprep.subr.mxu0 %v964
        %1085 = vmatpush1.msra.mxu0 %v963
        %1086 = vmatprep.subr.mxu0 %v960
        %1087 = vmatpush1.msra.mxu0 %v959
        %1088 = vmatprep.subr.mxu0 %v956
        %1089 = vmatpush1.msra.mxu0 %v955
        %1090 = vmatprep.subr.mxu0 %v952
        %1091 = vmatpush1.msra.mxu0 %v951
        %1092 = vmatprep.subr.mxu0 %v948
        %1093 = vmatpush1.msra.mxu0 %v947
        %1094 = vmatprep.subr.mxu0 %v944
        %1095 = vmatpush1.msra.mxu0 %v943
        %1096 = vmatprep.subr.mxu0 %v940
        %1097 = vmatpush1.msra.mxu0 %v939
        %1098 = vmatprep.subr.mxu0 %v936
        %1099 = vmatpush1.msra.mxu0 %v935
        %1100 = vmatprep.subr.mxu0 0.0
        %1101 = vmatpush2.msra.mxu0 0.0
        %1102 = vmatprep.subr.mxu0 0.0
        %1103 = vmatpush2.msra.mxu0 0.0
        %1104 = vmatprep.subr.mxu0 0.0
        %1105 = vmatpush2.msra.mxu0 0.0
        %1106 = vmatprep.subr.mxu0 0.0
        %1107 = vmatpush2.msra.mxu0 0.0
        %1108 = vmatprep.subr.mxu0 0.0
        %1109 = vmatpush2.msra.mxu0 0.0
        %1110 = vmatprep.subr.mxu0 0.0
        %1111 = vmatpush2.msra.mxu0 0.0
        %1112 = vmatprep.subr.mxu0 0.0
        %1113 = vmatpush2.msra.mxu0 0.0
        %1114 = vmatprep.subr.mxu0 0.0
        %1115 = vmatpush2.msra.mxu0 0.0
        %1116 = vmatprep.subr.mxu0 0.0
        %1117 = vmatpush2.msra.mxu0 0.0
        %1118 = vmatprep.subr.mxu0 0.0
        %1119 = vmatpush2.msra.mxu0 0.0
        %1120 = vmatprep.subr.mxu0 0.0
        %1121 = vmatpush2.msra.mxu0 0.0
        %1122 = vmatprep.subr.mxu0 0.0
        %1123 = vmatpush2.msra.mxu0 0.0
        %1124 = vmatprep.subr.mxu0 0.0
        %1125 = vmatpush2.msra.mxu0 0.0
        %1126 = vmatprep.subr.mxu0 0.0
        %1127 = vmatpush2.msra.mxu0 0.0
        %1128 = vmatprep.subr.mxu0 0.0
        %1129 = vmatpush2.msra.mxu0 0.0
        %1130 = vmatprep.subr.mxu0 0.0
        %1131 = vmatpush2.msra.mxu0 0.0
        %1132 = vmatprep.mubr.f32.mxu0 0.0
        %1133 = vmatmul.mubr.f32.gmra.mxu0 %v921
        %v1134 = vpop.f32.mrf.mxu0
        %v1135 = vadd.f32 0.0, %v1134
        %v1136 = vpop.f32.mrf.mxu0
        %v1137 = vadd.f32 0.0, %v1136
        %1138 = vdwg.mxu0
        %v1139 = vadd.f32 %v929, %v1064
        %v1140 = vadd.f32 %v930, %v1066
        %v1141 = vadd.f32 %v931, %v1135
        %v1142 = vadd.f32 %v932, %v1137
        %v1143 = vxor.u32 %v1139, 2147483648
        %v1144 = vmul.f32 %v1143, 1.442695
        %v1145 = vpow.pop %v1144
        %v1146 = vadd.f32 %v1145, 1.0
        %v1147 = vrcp.pop %v1146
        %v1148 = vmul.f32 1.0, %v1147
        %v1149 = vxor.u32 %v1140, 2147483648
        %v1150 = vmul.f32 %v1149, 1.442695
        %v1151 = vpow.pop %v1150
        %v1152 = vadd.f32 %v1151, 1.0
        %v1153 = vrcp.pop %v1152
        %v1154 = vmul.f32 1.0, %v1153
        %v1155 = vtanh.pop %v1141
        %v1156 = vxor.u32 %v1142, 2147483648
        %v1157 = vmul.f32 %v1156, 1.442695
        %v1158 = vpow.pop %v1157
        %v1159 = vadd.f32 %v1158, 1.0
        %v1160 = vrcp.pop %v1159
        %v1161 = vmul.f32 1.0, %v1160
        %v1162 = vmul.f32 %v1154, %v919
        %v1163 = vmul.f32 %v1148, %v1155
        %v1164 = vadd.f32 %v1162, %v1163
        %v1165 = vtanh.pop %v1164
        %v1166 = vmul.f32 %v1161, %v1165
        %s1167 = smul.u32 %s925, 8
        %s1168 = scalar_lea.vmem %s254, %s1167
        %1169 = vst [vmem:[%s1168] sm:$0xff] %v1166
        %s1170 = scalar_select %p679, 2, 5
        %s1171 = smul.u32 %s1170, 4
        %s1172 = smul.addr %s1171, 8
        %s1173 = scalar_lea.vmem [#allocation2], %s1172
        %v1174 = vld [vmem:[%s1173] sm:$0xff]
        %v1175 = vld [vmem:[%s1173 + $0x8] sm:$0xff]
        %v1176 = vld [vmem:[%s1173 + $0x10] sm:$0xff]
        %v1177 = vld [vmem:[%s1173 + $0x18] sm:$0xff]
        %v1178 = vld [vmem:[%s207] sm:$0xff]
        %v1179 = vld [vmem:[%s207 + $0x8] sm:$0xff]
        %v1180 = vld [vmem:[%s207 + $0x10] sm:$0xff]
        %v1181 = vld [vmem:[%s207 + $0x18] sm:$0xff]
        %v1182 = vld [vmem:[%s207 + $0x20] sm:$0xff]
        %v1183 = vld [vmem:[%s207 + $0x28] sm:$0xff]
        %v1184 = vld [vmem:[%s207 + $0x30] sm:$0xff]
        %v1185 = vld [vmem:[%s207 + $0x38] sm:$0xff]
        %v1186 = vld [vmem:[%s207 + $0x40] sm:$0xff]
        %v1187 = vld [vmem:[%s207 + $0x48] sm:$0xff]
        %v1188 = vld [vmem:[%s207 + $0x50] sm:$0xff]
        %v1189 = vld [vmem:[%s207 + $0x58] sm:$0xff]
        %v1190 = vld [vmem:[%s207 + $0x60] sm:$0xff]
        %v1191 = vld [vmem:[%s207 + $0x68] sm:$0xff]
        %v1192 = vld [vmem:[%s207 + $0x70] sm:$0xff]
        %v1193 = vld [vmem:[%s207 + $0x78] sm:$0xff]
        %v1194 = vld [vmem:[%s207 + $0x80] sm:$0xff]
        %v1195 = vld [vmem:[%s207 + $0x88] sm:$0xff]
        %v1196 = vld [vmem:[%s207 + $0x90] sm:$0xff]
        %v1197 = vld [vmem:[%s207 + $0x98] sm:$0xff]
        %v1198 = vld [vmem:[%s207 + $0xa0] sm:$0xff]
        %v1199 = vld [vmem:[%s207 + $0xa8] sm:$0xff]
        %v1200 = vld [vmem:[%s207 + $0xb0] sm:$0xff]
        %v1201 = vld [vmem:[%s207 + $0xb8] sm:$0xff]
        %v1202 = vld [vmem:[%s207 + $0xc0] sm:$0xff]
        %v1203 = vld [vmem:[%s207 + $0xc8] sm:$0xff]
        %v1204 = vld [vmem:[%s207 + $0xd0] sm:$0xff]
        %v1205 = vld [vmem:[%s207 + $0xd8] sm:$0xff]
        %v1206 = vld [vmem:[%s207 + $0xe0] sm:$0xff]
        %v1207 = vld [vmem:[%s207 + $0xe8] sm:$0xff]
        %v1208 = vld [vmem:[%s207 + $0xf0] sm:$0xff]
        %v1209 = vld [vmem:[%s207 + $0xf8] sm:$0xff]
        %v1210 = vld [vmem:[%s207 + $0x100] sm:$0xff]
        %v1211 = vld [vmem:[%s207 + $0x108] sm:$0xff]
        %v1212 = vld [vmem:[%s207 + $0x110] sm:$0xff]
        %v1213 = vld [vmem:[%s207 + $0x118] sm:$0xff]
        %v1214 = vld [vmem:[%s207 + $0x120] sm:$0xff]
        %v1215 = vld [vmem:[%s207 + $0x128] sm:$0xff]
        %v1216 = vld [vmem:[%s207 + $0x130] sm:$0xff]
        %v1217 = vld [vmem:[%s207 + $0x138] sm:$0xff]
        %v1218 = vld [vmem:[%s207 + $0x140] sm:$0xff]
        %v1219 = vld [vmem:[%s207 + $0x148] sm:$0xff]
        %v1220 = vld [vmem:[%s207 + $0x150] sm:$0xff]
        %v1221 = vld [vmem:[%s207 + $0x158] sm:$0xff]
        %v1222 = vld [vmem:[%s207 + $0x160] sm:$0xff]
        %v1223 = vld [vmem:[%s207 + $0x168] sm:$0xff]
        %v1224 = vld [vmem:[%s207 + $0x170] sm:$0xff]
        %v1225 = vld [vmem:[%s207 + $0x178] sm:$0xff]
        %v1226 = vld [vmem:[%s207 + $0x180] sm:$0xff]
        %v1227 = vld [vmem:[%s207 + $0x188] sm:$0xff]
        %v1228 = vld [vmem:[%s207 + $0x190] sm:$0xff]
        %v1229 = vld [vmem:[%s207 + $0x198] sm:$0xff]
        %v1230 = vld [vmem:[%s207 + $0x1a0] sm:$0xff]
        %v1231 = vld [vmem:[%s207 + $0x1a8] sm:$0xff]
        %v1232 = vld [vmem:[%s207 + $0x1b0] sm:$0xff]
        %v1233 = vld [vmem:[%s207 + $0x1b8] sm:$0xff]
        %v1234 = vld [vmem:[%s207 + $0x1c0] sm:$0xff]
        %v1235 = vld [vmem:[%s207 + $0x1c8] sm:$0xff]
        %v1236 = vld [vmem:[%s207 + $0x1d0] sm:$0xff]
        %v1237 = vld [vmem:[%s207 + $0x1d8] sm:$0xff]
        %v1238 = vld [vmem:[%s207 + $0x1e0] sm:$0xff]
        %v1239 = vld [vmem:[%s207 + $0x1e8] sm:$0xff]
        %v1240 = vld [vmem:[%s207 + $0x1f0] sm:$0xff]
        %v1241 = vld [vmem:[%s207 + $0x1f8] sm:$0xff]
        %1242 = vmatprep.subr.mxu0 %v1239
        %1243 = vmatpush1.msra.mxu0 %v1238
        %1244 = vmatprep.subr.mxu0 %v1235
        %1245 = vmatpush1.msra.mxu0 %v1234
        %1246 = vmatprep.subr.mxu0 %v1231
        %1247 = vmatpush1.msra.mxu0 %v1230
        %1248 = vmatprep.subr.mxu0 %v1227
        %1249 = vmatpush1.msra.mxu0 %v1226
        %1250 = vmatprep.subr.mxu0 %v1223
        %1251 = vmatpush1.msra.mxu0 %v1222
        %1252 = vmatprep.subr.mxu0 %v1219
        %1253 = vmatpush1.msra.mxu0 %v1218
        %1254 = vmatprep.subr.mxu0 %v1215
        %1255 = vmatpush1.msra.mxu0 %v1214
        %1256 = vmatprep.subr.mxu0 %v1211
        %1257 = vmatpush1.msra.mxu0 %v1210
        %1258 = vmatprep.subr.mxu0 %v1207
        %1259 = vmatpush1.msra.mxu0 %v1206
        %1260 = vmatprep.subr.mxu0 %v1203
        %1261 = vmatpush1.msra.mxu0 %v1202
        %1262 = vmatprep.subr.mxu0 %v1199
        %1263 = vmatpush1.msra.mxu0 %v1198
        %1264 = vmatprep.subr.mxu0 %v1195
        %1265 = vmatpush1.msra.mxu0 %v1194
        %1266 = vmatprep.subr.mxu0 %v1191
        %1267 = vmatpush1.msra.mxu0 %v1190
        %1268 = vmatprep.subr.mxu0 %v1187
        %1269 = vmatpush1.msra.mxu0 %v1186
        %1270 = vmatprep.subr.mxu0 %v1183
        %1271 = vmatpush1.msra.mxu0 %v1182
        %1272 = vmatprep.subr.mxu0 %v1179
        %1273 = vmatpush1.msra.mxu0 %v1178
        %1274 = vmatprep.subr.mxu0 0.0
        %1275 = vmatpush2.msra.mxu0 0.0
        %1276 = vmatprep.subr.mxu0 0.0
        %1277 = vmatpush2.msra.mxu0 0.0
        %1278 = vmatprep.subr.mxu0 0.0
        %1279 = vmatpush2.msra.mxu0 0.0
        %1280 = vmatprep.subr.mxu0 0.0
        %1281 = vmatpush2.msra.mxu0 0.0
        %1282 = vmatprep.subr.mxu0 0.0
        %1283 = vmatpush2.msra.mxu0 0.0
        %1284 = vmatprep.subr.mxu0 0.0
        %1285 = vmatpush2.msra.mxu0 0.0
        %1286 = vmatprep.subr.mxu0 0.0
        %1287 = vmatpush2.msra.mxu0 0.0
        %1288 = vmatprep.subr.mxu0 0.0
        %1289 = vmatpush2.msra.mxu0 0.0
        %1290 = vmatprep.subr.mxu0 0.0
        %1291 = vmatpush2.msra.mxu0 0.0
        %1292 = vmatprep.subr.mxu0 0.0
        %1293 = vmatpush2.msra.mxu0 0.0
        %1294 = vmatprep.subr.mxu0 0.0
        %1295 = vmatpush2.msra.mxu0 0.0
        %1296 = vmatprep.subr.mxu0 0.0
        %1297 = vmatpush2.msra.mxu0 0.0
        %1298 = vmatprep.subr.mxu0 0.0
        %1299 = vmatpush2.msra.mxu0 0.0
        %1300 = vmatprep.subr.mxu0 0.0
        %1301 = vmatpush2.msra.mxu0 0.0
        %1302 = vmatprep.subr.mxu0 0.0
        %1303 = vmatpush2.msra.mxu0 0.0
        %1304 = vmatprep.subr.mxu0 0.0
        %1305 = vmatpush2.msra.mxu0 0.0
        %1306 = vmatprep.mubr.f32.mxu0 0.0
        %1307 = vmatmul.mubr.f32.gmra.mxu0 %v1166
        %v1308 = vpop.f32.mrf.mxu0
        %v1309 = vadd.f32 0.0, %v1308
        %v1310 = vpop.f32.mrf.mxu0
        %v1311 = vadd.f32 0.0, %v1310
        %1312 = vdwg.mxu0
        %1313 = vmatprep.subr.mxu0 %v1241
        %1314 = vmatpush1.msra.mxu0 %v1240
        %1315 = vmatprep.subr.mxu0 %v1237
        %1316 = vmatpush1.msra.mxu0 %v1236
        %1317 = vmatprep.subr.mxu0 %v1233
        %1318 = vmatpush1.msra.mxu0 %v1232
        %1319 = vmatprep.subr.mxu0 %v1229
        %1320 = vmatpush1.msra.mxu0 %v1228
        %1321 = vmatprep.subr.mxu0 %v1225
        %1322 = vmatpush1.msra.mxu0 %v1224
        %1323 = vmatprep.subr.mxu0 %v1221
        %1324 = vmatpush1.msra.mxu0 %v1220
        %1325 = vmatprep.subr.mxu0 %v1217
        %1326 = vmatpush1.msra.mxu0 %v1216
        %1327 = vmatprep.subr.mxu0 %v1213
        %1328 = vmatpush1.msra.mxu0 %v1212
        %1329 = vmatprep.subr.mxu0 %v1209
        %1330 = vmatpush1.msra.mxu0 %v1208
        %1331 = vmatprep.subr.mxu0 %v1205
        %1332 = vmatpush1.msra.mxu0 %v1204
        %1333 = vmatprep.subr.mxu0 %v1201
        %1334 = vmatpush1.msra.mxu0 %v1200
        %1335 = vmatprep.subr.mxu0 %v1197
        %1336 = vmatpush1.msra.mxu0 %v1196
        %1337 = vmatprep.subr.mxu0 %v1193
        %1338 = vmatpush1.msra.mxu0 %v1192
        %1339 = vmatprep.subr.mxu0 %v1189
        %1340 = vmatpush1.msra.mxu0 %v1188
        %1341 = vmatprep.subr.mxu0 %v1185
        %1342 = vmatpush1.msra.mxu0 %v1184
        %1343 = vmatprep.subr.mxu0 %v1181
        %1344 = vmatpush1.msra.mxu0 %v1180
        %1345 = vmatprep.subr.mxu0 0.0
        %1346 = vmatpush2.msra.mxu0 0.0
        %1347 = vmatprep.subr.mxu0 0.0
        %1348 = vmatpush2.msra.mxu0 0.0
        %1349 = vmatprep.subr.mxu0 0.0
        %1350 = vmatpush2.msra.mxu0 0.0
        %1351 = vmatprep.subr.mxu0 0.0
        %1352 = vmatpush2.msra.mxu0 0.0
        %1353 = vmatprep.subr.mxu0 0.0
        %1354 = vmatpush2.msra.mxu0 0.0
        %1355 = vmatprep.subr.mxu0 0.0
        %1356 = vmatpush2.msra.mxu0 0.0
        %1357 = vmatprep.subr.mxu0 0.0
        %1358 = vmatpush2.msra.mxu0 0.0
        %1359 = vmatprep.subr.mxu0 0.0
        %1360 = vmatpush2.msra.mxu0 0.0
        %1361 = vmatprep.subr.mxu0 0.0
        %1362 = vmatpush2.msra.mxu0 0.0
        %1363 = vmatprep.subr.mxu0 0.0
        %1364 = vmatpush2.msra.mxu0 0.0
        %1365 = vmatprep.subr.mxu0 0.0
        %1366 = vmatpush2.msra.mxu0 0.0
        %1367 = vmatprep.subr.mxu0 0.0
        %1368 = vmatpush2.msra.mxu0 0.0
        %1369 = vmatprep.subr.mxu0 0.0
        %1370 = vmatpush2.msra.mxu0 0.0
        %1371 = vmatprep.subr.mxu0 0.0
        %1372 = vmatpush2.msra.mxu0 0.0
        %1373 = vmatprep.subr.mxu0 0.0
        %1374 = vmatpush2.msra.mxu0 0.0
        %1375 = vmatprep.subr.mxu0 0.0
        %1376 = vmatpush2.msra.mxu0 0.0
        %1377 = vmatprep.mubr.f32.mxu0 0.0
        %1378 = vmatmul.mubr.f32.gmra.mxu0 %v1166
        %v1379 = vpop.f32.mrf.mxu0
        %v1380 = vadd.f32 0.0, %v1379
        %v1381 = vpop.f32.mrf.mxu0
        %v1382 = vadd.f32 0.0, %v1381
        %1383 = vdwg.mxu0
        %v1384 = vadd.f32 %v1174, %v1309
        %v1385 = vadd.f32 %v1175, %v1311
        %v1386 = vadd.f32 %v1176, %v1380
        %v1387 = vadd.f32 %v1177, %v1382
        %v1388 = vxor.u32 %v1384, 2147483648
        %v1389 = vmul.f32 %v1388, 1.442695
        %v1390 = vpow.pop %v1389
        %v1391 = vadd.f32 %v1390, 1.0
        %v1392 = vrcp.pop %v1391
        %v1393 = vmul.f32 1.0, %v1392
        %v1394 = vxor.u32 %v1385, 2147483648
        %v1395 = vmul.f32 %v1394, 1.442695
        %v1396 = vpow.pop %v1395
        %v1397 = vadd.f32 %v1396, 1.0
        %v1398 = vrcp.pop %v1397
        %v1399 = vmul.f32 1.0, %v1398
        %v1400 = vtanh.pop %v1386
        %v1401 = vxor.u32 %v1387, 2147483648
        %v1402 = vmul.f32 %v1401, 1.442695
        %v1403 = vpow.pop %v1402
        %v1404 = vadd.f32 %v1403, 1.0
        %v1405 = vrcp.pop %v1404
        %v1406 = vmul.f32 1.0, %v1405
        %v1407 = vmul.f32 %v1399, %v1164
        %v1408 = vmul.f32 %v1393, %v1400
        %v1409 = vadd.f32 %v1407, %v1408
        %v1410 = vtanh.pop %v1409
        %v1411 = vmul.f32 %v1406, %v1410
        %s1412 = smul.u32 %s1170, 8
        %s1413 = scalar_lea.vmem %s254, %s1412
        %1414 = vst [vmem:[%s1413] sm:$0xff] %v1411
        %s1415 = scalar_select %p679, 3, 4
        %s1416 = smul.u32 %s1415, 4
        %s1417 = smul.addr %s1416, 8
        %s1418 = scalar_lea.vmem [#allocation2], %s1417
        %v1419 = vld [vmem:[%s1418] sm:$0xff]
        %v1420 = vld [vmem:[%s1418 + $0x8] sm:$0xff]
        %v1421 = vld [vmem:[%s1418 + $0x10] sm:$0xff]
        %v1422 = vld [vmem:[%s1418 + $0x18] sm:$0xff]
        %v1423 = vld [vmem:[%s207] sm:$0xff]
        %v1424 = vld [vmem:[%s207 + $0x8] sm:$0xff]
        %v1425 = vld [vmem:[%s207 + $0x10] sm:$0xff]
        %v1426 = vld [vmem:[%s207 + $0x18] sm:$0xff]
        %v1427 = vld [vmem:[%s207 + $0x20] sm:$0xff]
        %v1428 = vld [vmem:[%s207 + $0x28] sm:$0xff]
        %v1429 = vld [vmem:[%s207 + $0x30] sm:$0xff]
        %v1430 = vld [vmem:[%s207 + $0x38] sm:$0xff]
        %v1431 = vld [vmem:[%s207 + $0x40] sm:$0xff]
        %v1432 = vld [vmem:[%s207 + $0x48] sm:$0xff]
        %v1433 = vld [vmem:[%s207 + $0x50] sm:$0xff]
        %v1434 = vld [vmem:[%s207 + $0x58] sm:$0xff]
        %v1435 = vld [vmem:[%s207 + $0x60] sm:$0xff]
        %v1436 = vld [vmem:[%s207 + $0x68] sm:$0xff]
        %v1437 = vld [vmem:[%s207 + $0x70] sm:$0xff]
        %v1438 = vld [vmem:[%s207 + $0x78] sm:$0xff]
        %v1439 = vld [vmem:[%s207 + $0x80] sm:$0xff]
        %v1440 = vld [vmem:[%s207 + $0x88] sm:$0xff]
        %v1441 = vld [vmem:[%s207 + $0x90] sm:$0xff]
        %v1442 = vld [vmem:[%s207 + $0x98] sm:$0xff]
        %v1443 = vld [vmem:[%s207 + $0xa0] sm:$0xff]
        %v1444 = vld [vmem:[%s207 + $0xa8] sm:$0xff]
        %v1445 = vld [vmem:[%s207 + $0xb0] sm:$0xff]
        %v1446 = vld [vmem:[%s207 + $0xb8] sm:$0xff]
        %v1447 = vld [vmem:[%s207 + $0xc0] sm:$0xff]
        %v1448 = vld [vmem:[%s207 + $0xc8] sm:$0xff]
        %v1449 = vld [vmem:[%s207 + $0xd0] sm:$0xff]
        %v1450 = vld [vmem:[%s207 + $0xd8] sm:$0xff]
        %v1451 = vld [vmem:[%s207 + $0xe0] sm:$0xff]
        %v1452 = vld [vmem:[%s207 + $0xe8] sm:$0xff]
        %v1453 = vld [vmem:[%s207 + $0xf0] sm:$0xff]
        %v1454 = vld [vmem:[%s207 + $0xf8] sm:$0xff]
        %v1455 = vld [vmem:[%s207 + $0x100] sm:$0xff]
        %v1456 = vld [vmem:[%s207 + $0x108] sm:$0xff]
        %v1457 = vld [vmem:[%s207 + $0x110] sm:$0xff]
        %v1458 = vld [vmem:[%s207 + $0x118] sm:$0xff]
        %v1459 = vld [vmem:[%s207 + $0x120] sm:$0xff]
        %v1460 = vld [vmem:[%s207 + $0x128] sm:$0xff]
        %v1461 = vld [vmem:[%s207 + $0x130] sm:$0xff]
        %v1462 = vld [vmem:[%s207 + $0x138] sm:$0xff]
        %v1463 = vld [vmem:[%s207 + $0x140] sm:$0xff]
        %v1464 = vld [vmem:[%s207 + $0x148] sm:$0xff]
        %v1465 = vld [vmem:[%s207 + $0x150] sm:$0xff]
        %v1466 = vld [vmem:[%s207 + $0x158] sm:$0xff]
        %v1467 = vld [vmem:[%s207 + $0x160] sm:$0xff]
        %v1468 = vld [vmem:[%s207 + $0x168] sm:$0xff]
        %v1469 = vld [vmem:[%s207 + $0x170] sm:$0xff]
        %v1470 = vld [vmem:[%s207 + $0x178] sm:$0xff]
        %v1471 = vld [vmem:[%s207 + $0x180] sm:$0xff]
        %v1472 = vld [vmem:[%s207 + $0x188] sm:$0xff]
        %v1473 = vld [vmem:[%s207 + $0x190] sm:$0xff]
        %v1474 = vld [vmem:[%s207 + $0x198] sm:$0xff]
        %v1475 = vld [vmem:[%s207 + $0x1a0] sm:$0xff]
        %v1476 = vld [vmem:[%s207 + $0x1a8] sm:$0xff]
        %v1477 = vld [vmem:[%s207 + $0x1b0] sm:$0xff]
        %v1478 = vld [vmem:[%s207 + $0x1b8] sm:$0xff]
        %v1479 = vld [vmem:[%s207 + $0x1c0] sm:$0xff]
        %v1480 = vld [vmem:[%s207 + $0x1c8] sm:$0xff]
        %v1481 = vld [vmem:[%s207 + $0x1d0] sm:$0xff]
        %v1482 = vld [vmem:[%s207 + $0x1d8] sm:$0xff]
        %v1483 = vld [vmem:[%s207 + $0x1e0] sm:$0xff]
        %v1484 = vld [vmem:[%s207 + $0x1e8] sm:$0xff]
        %v1485 = vld [vmem:[%s207 + $0x1f0] sm:$0xff]
        %v1486 = vld [vmem:[%s207 + $0x1f8] sm:$0xff]
        %1487 = vmatprep.subr.mxu0 %v1484
        %1488 = vmatpush1.msra.mxu0 %v1483
        %1489 = vmatprep.subr.mxu0 %v1480
        %1490 = vmatpush1.msra.mxu0 %v1479
        %1491 = vmatprep.subr.mxu0 %v1476
        %1492 = vmatpush1.msra.mxu0 %v1475
        %1493 = vmatprep.subr.mxu0 %v1472
        %1494 = vmatpush1.msra.mxu0 %v1471
        %1495 = vmatprep.subr.mxu0 %v1468
        %1496 = vmatpush1.msra.mxu0 %v1467
        %1497 = vmatprep.subr.mxu0 %v1464
        %1498 = vmatpush1.msra.mxu0 %v1463
        %1499 = vmatprep.subr.mxu0 %v1460
        %1500 = vmatpush1.msra.mxu0 %v1459
        %1501 = vmatprep.subr.mxu0 %v1456
        %1502 = vmatpush1.msra.mxu0 %v1455
        %1503 = vmatprep.subr.mxu0 %v1452
        %1504 = vmatpush1.msra.mxu0 %v1451
        %1505 = vmatprep.subr.mxu0 %v1448
        %1506 = vmatpush1.msra.mxu0 %v1447
        %1507 = vmatprep.subr.mxu0 %v1444
        %1508 = vmatpush1.msra.mxu0 %v1443
        %1509 = vmatprep.subr.mxu0 %v1440
        %1510 = vmatpush1.msra.mxu0 %v1439
        %1511 = vmatprep.subr.mxu0 %v1436
        %1512 = vmatpush1.msra.mxu0 %v1435
        %1513 = vmatprep.subr.mxu0 %v1432
        %1514 = vmatpush1.msra.mxu0 %v1431
        %1515 = vmatprep.subr.mxu0 %v1428
        %1516 = vmatpush1.msra.mxu0 %v1427
        %1517 = vmatprep.subr.mxu0 %v1424
        %1518 = vmatpush1.msra.mxu0 %v1423
        %1519 = vmatprep.subr.mxu0 0.0
        %1520 = vmatpush2.msra.mxu0 0.0
        %1521 = vmatprep.subr.mxu0 0.0
        %1522 = vmatpush2.msra.mxu0 0.0
        %1523 = vmatprep.subr.mxu0 0.0
        %1524 = vmatpush2.msra.mxu0 0.0
        %1525 = vmatprep.subr.mxu0 0.0
        %1526 = vmatpush2.msra.mxu0 0.0
        %1527 = vmatprep.subr.mxu0 0.0
        %1528 = vmatpush2.msra.mxu0 0.0
        %1529 = vmatprep.subr.mxu0 0.0
        %1530 = vmatpush2.msra.mxu0 0.0
        %1531 = vmatprep.subr.mxu0 0.0
        %1532 = vmatpush2.msra.mxu0 0.0
        %1533 = vmatprep.subr.mxu0 0.0
        %1534 = vmatpush2.msra.mxu0 0.0
        %1535 = vmatprep.subr.mxu0 0.0
        %1536 = vmatpush2.msra.mxu0 0.0
        %1537 = vmatprep.subr.mxu0 0.0
        %1538 = vmatpush2.msra.mxu0 0.0
        %1539 = vmatprep.subr.mxu0 0.0
        %1540 = vmatpush2.msra.mxu0 0.0
        %1541 = vmatprep.subr.mxu0 0.0
        %1542 = vmatpush2.msra.mxu0 0.0
        %1543 = vmatprep.subr.mxu0 0.0
        %1544 = vmatpush2.msra.mxu0 0.0
        %1545 = vmatprep.subr.mxu0 0.0
        %1546 = vmatpush2.msra.mxu0 0.0
        %1547 = vmatprep.subr.mxu0 0.0
        %1548 = vmatpush2.msra.mxu0 0.0
        %1549 = vmatprep.subr.mxu0 0.0
        %1550 = vmatpush2.msra.mxu0 0.0
        %1551 = vmatprep.mubr.f32.mxu0 0.0
        %1552 = vmatmul.mubr.f32.gmra.mxu0 %v1411
        %v1553 = vpop.f32.mrf.mxu0
        %v1554 = vadd.f32 0.0, %v1553
        %v1555 = vpop.f32.mrf.mxu0
        %v1556 = vadd.f32 0.0, %v1555
        %1557 = vdwg.mxu0
        %1558 = vmatprep.subr.mxu0 %v1486
        %1559 = vmatpush1.msra.mxu0 %v1485
        %1560 = vmatprep.subr.mxu0 %v1482
        %1561 = vmatpush1.msra.mxu0 %v1481
        %1562 = vmatprep.subr.mxu0 %v1478
        %1563 = vmatpush1.msra.mxu0 %v1477
        %1564 = vmatprep.subr.mxu0 %v1474
        %1565 = vmatpush1.msra.mxu0 %v1473
        %1566 = vmatprep.subr.mxu0 %v1470
        %1567 = vmatpush1.msra.mxu0 %v1469
        %1568 = vmatprep.subr.mxu0 %v1466
        %1569 = vmatpush1.msra.mxu0 %v1465
        %1570 = vmatprep.subr.mxu0 %v1462
        %1571 = vmatpush1.msra.mxu0 %v1461
        %1572 = vmatprep.subr.mxu0 %v1458
        %1573 = vmatpush1.msra.mxu0 %v1457
        %1574 = vmatprep.subr.mxu0 %v1454
        %1575 = vmatpush1.msra.mxu0 %v1453
        %1576 = vmatprep.subr.mxu0 %v1450
        %1577 = vmatpush1.msra.mxu0 %v1449
        %1578 = vmatprep.subr.mxu0 %v1446
        %1579 = vmatpush1.msra.mxu0 %v1445
        %1580 = vmatprep.subr.mxu0 %v1442
        %1581 = vmatpush1.msra.mxu0 %v1441
        %1582 = vmatprep.subr.mxu0 %v1438
        %1583 = vmatpush1.msra.mxu0 %v1437
        %1584 = vmatprep.subr.mxu0 %v1434
        %1585 = vmatpush1.msra.mxu0 %v1433
        %1586 = vmatprep.subr.mxu0 %v1430
        %1587 = vmatpush1.msra.mxu0 %v1429
        %1588 = vmatprep.subr.mxu0 %v1426
        %1589 = vmatpush1.msra.mxu0 %v1425
        %1590 = vmatprep.subr.mxu0 0.0
        %1591 = vmatpush2.msra.mxu0 0.0
        %1592 = vmatprep.subr.mxu0 0.0
        %1593 = vmatpush2.msra.mxu0 0.0
        %1594 = vmatprep.subr.mxu0 0.0
        %1595 = vmatpush2.msra.mxu0 0.0
        %1596 = vmatprep.subr.mxu0 0.0
        %1597 = vmatpush2.msra.mxu0 0.0
        %1598 = vmatprep.subr.mxu0 0.0
        %1599 = vmatpush2.msra.mxu0 0.0
        %1600 = vmatprep.subr.mxu0 0.0
        %1601 = vmatpush2.msra.mxu0 0.0
        %1602 = vmatprep.subr.mxu0 0.0
        %1603 = vmatpush2.msra.mxu0 0.0
        %1604 = vmatprep.subr.mxu0 0.0
        %1605 = vmatpush2.msra.mxu0 0.0
        %1606 = vmatprep.subr.mxu0 0.0
        %1607 = vmatpush2.msra.mxu0 0.0
        %1608 = vmatprep.subr.mxu0 0.0
        %1609 = vmatpush2.msra.mxu0 0.0
        %1610 = vmatprep.subr.mxu0 0.0
        %1611 = vmatpush2.msra.mxu0 0.0
        %1612 = vmatprep.subr.mxu0 0.0
        %1613 = vmatpush2.msra.mxu0 0.0
        %1614 = vmatprep.subr.mxu0 0.0
        %1615 = vmatpush2.msra.mxu0 0.0
        %1616 = vmatprep.subr.mxu0 0.0
        %1617 = vmatpush2.msra.mxu0 0.0
        %1618 = vmatprep.subr.mxu0 0.0
        %1619 = vmatpush2.msra.mxu0 0.0
        %1620 = vmatprep.subr.mxu0 0.0
        %1621 = vmatpush2.msra.mxu0 0.0
        %1622 = vmatprep.mubr.f32.mxu0 0.0
        %1623 = vmatmul.mubr.f32.gmra.mxu0 %v1411
        %v1624 = vpop.f32.mrf.mxu0
        %v1625 = vadd.f32 0.0, %v1624
        %v1626 = vpop.f32.mrf.mxu0
        %v1627 = vadd.f32 0.0, %v1626
        %1628 = vdwg.mxu0
        %v1629 = vadd.f32 %v1419, %v1554
        %v1630 = vadd.f32 %v1420, %v1556
        %v1631 = vadd.f32 %v1421, %v1625
        %v1632 = vadd.f32 %v1422, %v1627
        %v1633 = vxor.u32 %v1629, 2147483648
        %v1634 = vmul.f32 %v1633, 1.442695
        %v1635 = vpow.pop %v1634
        %v1636 = vadd.f32 %v1635, 1.0
        %v1637 = vrcp.pop %v1636
        %v1638 = vmul.f32 1.0, %v1637
        %v1639 = vxor.u32 %v1630, 2147483648
        %v1640 = vmul.f32 %v1639, 1.442695
        %v1641 = vpow.pop %v1640
        %v1642 = vadd.f32 %v1641, 1.0
        %v1643 = vrcp.pop %v1642
        %v1644 = vmul.f32 1.0, %v1643
        %v1645 = vtanh.pop %v1631
        %v1646 = vxor.u32 %v1632, 2147483648
        %v1647 = vmul.f32 %v1646, 1.442695
        %v1648 = vpow.pop %v1647
        %v1649 = vadd.f32 %v1648, 1.0
        %v1650 = vrcp.pop %v1649
        %v1651 = vmul.f32 1.0, %v1650
        %v1652 = vmul.f32 %v1644, %v1409
        %v1653 = vmul.f32 %v1638, %v1645
        %v1654 = vadd.f32 %v1652, %v1653
        %v1655 = vtanh.pop %v1654
        %v1656 = vmul.f32 %v1651, %v1655
        %s1657 = smul.u32 %s1415, 8
        %s1658 = scalar_lea.vmem %s254, %s1657
        %1659 = vst [vmem:[%s1658] sm:$0xff] %v1656
        %s1660 = scalar_select %p679, 4, 3
        %s1661 = smul.u32 %s1660, 4
        %s1662 = smul.addr %s1661, 8
        %s1663 = scalar_lea.vmem [#allocation2], %s1662
        %v1664 = vld [vmem:[%s1663] sm:$0xff]
        %v1665 = vld [vmem:[%s1663 + $0x8] sm:$0xff]
        %v1666 = vld [vmem:[%s1663 + $0x10] sm:$0xff]
        %v1667 = vld [vmem:[%s1663 + $0x18] sm:$0xff]
        %v1668 = vld [vmem:[%s207] sm:$0xff]
        %v1669 = vld [vmem:[%s207 + $0x8] sm:$0xff]
        %v1670 = vld [vmem:[%s207 + $0x10] sm:$0xff]
        %v1671 = vld [vmem:[%s207 + $0x18] sm:$0xff]
        %v1672 = vld [vmem:[%s207 + $0x20] sm:$0xff]
        %v1673 = vld [vmem:[%s207 + $0x28] sm:$0xff]
        %v1674 = vld [vmem:[%s207 + $0x30] sm:$0xff]
        %v1675 = vld [vmem:[%s207 + $0x38] sm:$0xff]
        %v1676 = vld [vmem:[%s207 + $0x40] sm:$0xff]
        %v1677 = vld [vmem:[%s207 + $0x48] sm:$0xff]
        %v1678 = vld [vmem:[%s207 + $0x50] sm:$0xff]
        %v1679 = vld [vmem:[%s207 + $0x58] sm:$0xff]
        %v1680 = vld [vmem:[%s207 + $0x60] sm:$0xff]
        %v1681 = vld [vmem:[%s207 + $0x68] sm:$0xff]
        %v1682 = vld [vmem:[%s207 + $0x70] sm:$0xff]
        %v1683 = vld [vmem:[%s207 + $0x78] sm:$0xff]
        %v1684 = vld [vmem:[%s207 + $0x80] sm:$0xff]
        %v1685 = vld [vmem:[%s207 + $0x88] sm:$0xff]
        %v1686 = vld [vmem:[%s207 + $0x90] sm:$0xff]
        %v1687 = vld [vmem:[%s207 + $0x98] sm:$0xff]
        %v1688 = vld [vmem:[%s207 + $0xa0] sm:$0xff]
        %v1689 = vld [vmem:[%s207 + $0xa8] sm:$0xff]
        %v1690 = vld [vmem:[%s207 + $0xb0] sm:$0xff]
        %v1691 = vld [vmem:[%s207 + $0xb8] sm:$0xff]
        %v1692 = vld [vmem:[%s207 + $0xc0] sm:$0xff]
        %v1693 = vld [vmem:[%s207 + $0xc8] sm:$0xff]
        %v1694 = vld [vmem:[%s207 + $0xd0] sm:$0xff]
        %v1695 = vld [vmem:[%s207 + $0xd8] sm:$0xff]
        %v1696 = vld [vmem:[%s207 + $0xe0] sm:$0xff]
        %v1697 = vld [vmem:[%s207 + $0xe8] sm:$0xff]
        %v1698 = vld [vmem:[%s207 + $0xf0] sm:$0xff]
        %v1699 = vld [vmem:[%s207 + $0xf8] sm:$0xff]
        %v1700 = vld [vmem:[%s207 + $0x100] sm:$0xff]
        %v1701 = vld [vmem:[%s207 + $0x108] sm:$0xff]
        %v1702 = vld [vmem:[%s207 + $0x110] sm:$0xff]
        %v1703 = vld [vmem:[%s207 + $0x118] sm:$0xff]
        %v1704 = vld [vmem:[%s207 + $0x120] sm:$0xff]
        %v1705 = vld [vmem:[%s207 + $0x128] sm:$0xff]
        %v1706 = vld [vmem:[%s207 + $0x130] sm:$0xff]
        %v1707 = vld [vmem:[%s207 + $0x138] sm:$0xff]
        %v1708 = vld [vmem:[%s207 + $0x140] sm:$0xff]
        %v1709 = vld [vmem:[%s207 + $0x148] sm:$0xff]
        %v1710 = vld [vmem:[%s207 + $0x150] sm:$0xff]
        %v1711 = vld [vmem:[%s207 + $0x158] sm:$0xff]
        %v1712 = vld [vmem:[%s207 + $0x160] sm:$0xff]
        %v1713 = vld [vmem:[%s207 + $0x168] sm:$0xff]
        %v1714 = vld [vmem:[%s207 + $0x170] sm:$0xff]
        %v1715 = vld [vmem:[%s207 + $0x178] sm:$0xff]
        %v1716 = vld [vmem:[%s207 + $0x180] sm:$0xff]
        %v1717 = vld [vmem:[%s207 + $0x188] sm:$0xff]
        %v1718 = vld [vmem:[%s207 + $0x190] sm:$0xff]
        %v1719 = vld [vmem:[%s207 + $0x198] sm:$0xff]
        %v1720 = vld [vmem:[%s207 + $0x1a0] sm:$0xff]
        %v1721 = vld [vmem:[%s207 + $0x1a8] sm:$0xff]
        %v1722 = vld [vmem:[%s207 + $0x1b0] sm:$0xff]
        %v1723 = vld [vmem:[%s207 + $0x1b8] sm:$0xff]
        %v1724 = vld [vmem:[%s207 + $0x1c0] sm:$0xff]
        %v1725 = vld [vmem:[%s207 + $0x1c8] sm:$0xff]
        %v1726 = vld [vmem:[%s207 + $0x1d0] sm:$0xff]
        %v1727 = vld [vmem:[%s207 + $0x1d8] sm:$0xff]
        %v1728 = vld [vmem:[%s207 + $0x1e0] sm:$0xff]
        %v1729 = vld [vmem:[%s207 + $0x1e8] sm:$0xff]
        %v1730 = vld [vmem:[%s207 + $0x1f0] sm:$0xff]
        %v1731 = vld [vmem:[%s207 + $0x1f8] sm:$0xff]
        %1732 = vmatprep.subr.mxu0 %v1729
        %1733 = vmatpush1.msra.mxu0 %v1728
        %1734 = vmatprep.subr.mxu0 %v1725
        %1735 = vmatpush1.msra.mxu0 %v1724
        %1736 = vmatprep.subr.mxu0 %v1721
        %1737 = vmatpush1.msra.mxu0 %v1720
        %1738 = vmatprep.subr.mxu0 %v1717
        %1739 = vmatpush1.msra.mxu0 %v1716
        %1740 = vmatprep.subr.mxu0 %v1713
        %1741 = vmatpush1.msra.mxu0 %v1712
        %1742 = vmatprep.subr.mxu0 %v1709
        %1743 = vmatpush1.msra.mxu0 %v1708
        %1744 = vmatprep.subr.mxu0 %v1705
        %1745 = vmatpush1.msra.mxu0 %v1704
        %1746 = vmatprep.subr.mxu0 %v1701
        %1747 = vmatpush1.msra.mxu0 %v1700
        %1748 = vmatprep.subr.mxu0 %v1697
        %1749 = vmatpush1.msra.mxu0 %v1696
        %1750 = vmatprep.subr.mxu0 %v1693
        %1751 = vmatpush1.msra.mxu0 %v1692
        %1752 = vmatprep.subr.mxu0 %v1689
        %1753 = vmatpush1.msra.mxu0 %v1688
        %1754 = vmatprep.subr.mxu0 %v1685
        %1755 = vmatpush1.msra.mxu0 %v1684
        %1756 = vmatprep.subr.mxu0 %v1681
        %1757 = vmatpush1.msra.mxu0 %v1680
        %1758 = vmatprep.subr.mxu0 %v1677
        %1759 = vmatpush1.msra.mxu0 %v1676
        %1760 = vmatprep.subr.mxu0 %v1673
        %1761 = vmatpush1.msra.mxu0 %v1672
        %1762 = vmatprep.subr.mxu0 %v1669
        %1763 = vmatpush1.msra.mxu0 %v1668
        %1764 = vmatprep.subr.mxu0 0.0
        %1765 = vmatpush2.msra.mxu0 0.0
        %1766 = vmatprep.subr.mxu0 0.0
        %1767 = vmatpush2.msra.mxu0 0.0
        %1768 = vmatprep.subr.mxu0 0.0
        %1769 = vmatpush2.msra.mxu0 0.0
        %1770 = vmatprep.subr.mxu0 0.0
        %1771 = vmatpush2.msra.mxu0 0.0
        %1772 = vmatprep.subr.mxu0 0.0
        %1773 = vmatpush2.msra.mxu0 0.0
        %1774 = vmatprep.subr.mxu0 0.0
        %1775 = vmatpush2.msra.mxu0 0.0
        %1776 = vmatprep.subr.mxu0 0.0
        %1777 = vmatpush2.msra.mxu0 0.0
        %1778 = vmatprep.subr.mxu0 0.0
        %1779 = vmatpush2.msra.mxu0 0.0
        %1780 = vmatprep.subr.mxu0 0.0
        %1781 = vmatpush2.msra.mxu0 0.0
        %1782 = vmatprep.subr.mxu0 0.0
        %1783 = vmatpush2.msra.mxu0 0.0
        %1784 = vmatprep.subr.mxu0 0.0
        %1785 = vmatpush2.msra.mxu0 0.0
        %1786 = vmatprep.subr.mxu0 0.0
        %1787 = vmatpush2.msra.mxu0 0.0
        %1788 = vmatprep.subr.mxu0 0.0
        %1789 = vmatpush2.msra.mxu0 0.0
        %1790 = vmatprep.subr.mxu0 0.0
        %1791 = vmatpush2.msra.mxu0 0.0
        %1792 = vmatprep.subr.mxu0 0.0
        %1793 = vmatpush2.msra.mxu0 0.0
        %1794 = vmatprep.subr.mxu0 0.0
        %1795 = vmatpush2.msra.mxu0 0.0
        %1796 = vmatprep.mubr.f32.mxu0 0.0
        %1797 = vmatmul.mubr.f32.gmra.mxu0 %v1656
        %v1798 = vpop.f32.mrf.mxu0
        %v1799 = vadd.f32 0.0, %v1798
        %v1800 = vpop.f32.mrf.mxu0
        %v1801 = vadd.f32 0.0, %v1800
        %1802 = vdwg.mxu0
        %1803 = vmatprep.subr.mxu0 %v1731
        %1804 = vmatpush1.msra.mxu0 %v1730
        %1805 = vmatprep.subr.mxu0 %v1727
        %1806 = vmatpush1.msra.mxu0 %v1726
        %1807 = vmatprep.subr.mxu0 %v1723
        %1808 = vmatpush1.msra.mxu0 %v1722
        %1809 = vmatprep.subr.mxu0 %v1719
        %1810 = vmatpush1.msra.mxu0 %v1718
        %1811 = vmatprep.subr.mxu0 %v1715
        %1812 = vmatpush1.msra.mxu0 %v1714
        %1813 = vmatprep.subr.mxu0 %v1711
        %1814 = vmatpush1.msra.mxu0 %v1710
        %1815 = vmatprep.subr.mxu0 %v1707
        %1816 = vmatpush1.msra.mxu0 %v1706
        %1817 = vmatprep.subr.mxu0 %v1703
        %1818 = vmatpush1.msra.mxu0 %v1702
        %1819 = vmatprep.subr.mxu0 %v1699
        %1820 = vmatpush1.msra.mxu0 %v1698
        %1821 = vmatprep.subr.mxu0 %v1695
        %1822 = vmatpush1.msra.mxu0 %v1694
        %1823 = vmatprep.subr.mxu0 %v1691
        %1824 = vmatpush1.msra.mxu0 %v1690
        %1825 = vmatprep.subr.mxu0 %v1687
        %1826 = vmatpush1.msra.mxu0 %v1686
        %1827 = vmatprep.subr.mxu0 %v1683
        %1828 = vmatpush1.msra.mxu0 %v1682
        %1829 = vmatprep.subr.mxu0 %v1679
        %1830 = vmatpush1.msra.mxu0 %v1678
        %1831 = vmatprep.subr.mxu0 %v1675
        %1832 = vmatpush1.msra.mxu0 %v1674
        %1833 = vmatprep.subr.mxu0 %v1671
        %1834 = vmatpush1.msra.mxu0 %v1670
        %1835 = vmatprep.subr.mxu0 0.0
        %1836 = vmatpush2.msra.mxu0 0.0
        %1837 = vmatprep.subr.mxu0 0.0
        %1838 = vmatpush2.msra.mxu0 0.0
        %1839 = vmatprep.subr.mxu0 0.0
        %1840 = vmatpush2.msra.mxu0 0.0
        %1841 = vmatprep.subr.mxu0 0.0
        %1842 = vmatpush2.msra.mxu0 0.0
        %1843 = vmatprep.subr.mxu0 0.0
        %1844 = vmatpush2.msra.mxu0 0.0
        %1845 = vmatprep.subr.mxu0 0.0
        %1846 = vmatpush2.msra.mxu0 0.0
        %1847 = vmatprep.subr.mxu0 0.0
        %1848 = vmatpush2.msra.mxu0 0.0
        %1849 = vmatprep.subr.mxu0 0.0
        %1850 = vmatpush2.msra.mxu0 0.0
        %1851 = vmatprep.subr.mxu0 0.0
        %1852 = vmatpush2.msra.mxu0 0.0
        %1853 = vmatprep.subr.mxu0 0.0
        %1854 = vmatpush2.msra.mxu0 0.0
        %1855 = vmatprep.subr.mxu0 0.0
        %1856 = vmatpush2.msra.mxu0 0.0
        %1857 = vmatprep.subr.mxu0 0.0
        %1858 = vmatpush2.msra.mxu0 0.0
        %1859 = vmatprep.subr.mxu0 0.0
        %1860 = vmatpush2.msra.mxu0 0.0
        %1861 = vmatprep.subr.mxu0 0.0
        %1862 = vmatpush2.msra.mxu0 0.0
        %1863 = vmatprep.subr.mxu0 0.0
        %1864 = vmatpush2.msra.mxu0 0.0
        %1865 = vmatprep.subr.mxu0 0.0
        %1866 = vmatpush2.msra.mxu0 0.0
        %1867 = vmatprep.mubr.f32.mxu0 0.0
        %1868 = vmatmul.mubr.f32.gmra.mxu0 %v1656
        %v1869 = vpop.f32.mrf.mxu0
        %v1870 = vadd.f32 0.0, %v1869
        %v1871 = vpop.f32.mrf.mxu0
        %v1872 = vadd.f32 0.0, %v1871
        %1873 = vdwg.mxu0
        %v1874 = vadd.f32 %v1664, %v1799
        %v1875 = vadd.f32 %v1665, %v1801
        %v1876 = vadd.f32 %v1666, %v1870
        %v1877 = vadd.f32 %v1667, %v1872
        %v1878 = vxor.u32 %v1874, 2147483648
        %v1879 = vmul.f32 %v1878, 1.442695
        %v1880 = vpow.pop %v1879
        %v1881 = vadd.f32 %v1880, 1.0
        %v1882 = vrcp.pop %v1881
        %v1883 = vmul.f32 1.0, %v1882
        %v1884 = vxor.u32 %v1875, 2147483648
        %v1885 = vmul.f32 %v1884, 1.442695
        %v1886 = vpow.pop %v1885
        %v1887 = vadd.f32 %v1886, 1.0
        %v1888 = vrcp.pop %v1887
        %v1889 = vmul.f32 1.0, %v1888
        %v1890 = vtanh.pop %v1876
        %v1891 = vxor.u32 %v1877, 2147483648
        %v1892 = vmul.f32 %v1891, 1.442695
        %v1893 = vpow.pop %v1892
        %v1894 = vadd.f32 %v1893, 1.0
        %v1895 = vrcp.pop %v1894
        %v1896 = vmul.f32 1.0, %v1895
        %v1897 = vmul.f32 %v1889, %v1654
        %v1898 = vmul.f32 %v1883, %v1890
        %v1899 = vadd.f32 %v1897, %v1898
        %v1900 = vtanh.pop %v1899
        %v1901 = vmul.f32 %v1896, %v1900
        %s1902 = smul.u32 %s1660, 8
        %s1903 = scalar_lea.vmem %s254, %s1902
        %1904 = vst [vmem:[%s1903] sm:$0xff] %v1901
        %s1905 = scalar_select %p679, 5, 2
        %s1906 = smul.u32 %s1905, 4
        %s1907 = smul.addr %s1906, 8
        %s1908 = scalar_lea.vmem [#allocation2], %s1907
        %v1909 = vld [vmem:[%s1908] sm:$0xff]
        %v1910 = vld [vmem:[%s1908 + $0x8] sm:$0xff]
        %v1911 = vld [vmem:[%s1908 + $0x10] sm:$0xff]
        %v1912 = vld [vmem:[%s1908 + $0x18] sm:$0xff]
        %v1913 = vld [vmem:[%s207] sm:$0xff]
        %v1914 = vld [vmem:[%s207 + $0x8] sm:$0xff]
        %v1915 = vld [vmem:[%s207 + $0x10] sm:$0xff]
        %v1916 = vld [vmem:[%s207 + $0x18] sm:$0xff]
        %v1917 = vld [vmem:[%s207 + $0x20] sm:$0xff]
        %v1918 = vld [vmem:[%s207 + $0x28] sm:$0xff]
        %v1919 = vld [vmem:[%s207 + $0x30] sm:$0xff]
        %v1920 = vld [vmem:[%s207 + $0x38] sm:$0xff]
        %v1921 = vld [vmem:[%s207 + $0x40] sm:$0xff]
        %v1922 = vld [vmem:[%s207 + $0x48] sm:$0xff]
        %v1923 = vld [vmem:[%s207 + $0x50] sm:$0xff]
        %v1924 = vld [vmem:[%s207 + $0x58] sm:$0xff]
        %v1925 = vld [vmem:[%s207 + $0x60] sm:$0xff]
        %v1926 = vld [vmem:[%s207 + $0x68] sm:$0xff]
        %v1927 = vld [vmem:[%s207 + $0x70] sm:$0xff]
        %v1928 = vld [vmem:[%s207 + $0x78] sm:$0xff]
        %v1929 = vld [vmem:[%s207 + $0x80] sm:$0xff]
        %v1930 = vld [vmem:[%s207 + $0x88] sm:$0xff]
        %v1931 = vld [vmem:[%s207 + $0x90] sm:$0xff]
        %v1932 = vld [vmem:[%s207 + $0x98] sm:$0xff]
        %v1933 = vld [vmem:[%s207 + $0xa0] sm:$0xff]
        %v1934 = vld [vmem:[%s207 + $0xa8] sm:$0xff]
        %v1935 = vld [vmem:[%s207 + $0xb0] sm:$0xff]
        %v1936 = vld [vmem:[%s207 + $0xb8] sm:$0xff]
        %v1937 = vld [vmem:[%s207 + $0xc0] sm:$0xff]
        %v1938 = vld [vmem:[%s207 + $0xc8] sm:$0xff]
        %v1939 = vld [vmem:[%s207 + $0xd0] sm:$0xff]
        %v1940 = vld [vmem:[%s207 + $0xd8] sm:$0xff]
        %v1941 = vld [vmem:[%s207 + $0xe0] sm:$0xff]
        %v1942 = vld [vmem:[%s207 + $0xe8] sm:$0xff]
        %v1943 = vld [vmem:[%s207 + $0xf0] sm:$0xff]
        %v1944 = vld [vmem:[%s207 + $0xf8] sm:$0xff]
        %v1945 = vld [vmem:[%s207 + $0x100] sm:$0xff]
        %v1946 = vld [vmem:[%s207 + $0x108] sm:$0xff]
        %v1947 = vld [vmem:[%s207 + $0x110] sm:$0xff]
        %v1948 = vld [vmem:[%s207 + $0x118] sm:$0xff]
        %v1949 = vld [vmem:[%s207 + $0x120] sm:$0xff]
        %v1950 = vld [vmem:[%s207 + $0x128] sm:$0xff]
        %v1951 = vld [vmem:[%s207 + $0x130] sm:$0xff]
        %v1952 = vld [vmem:[%s207 + $0x138] sm:$0xff]
        %v1953 = vld [vmem:[%s207 + $0x140] sm:$0xff]
        %v1954 = vld [vmem:[%s207 + $0x148] sm:$0xff]
        %v1955 = vld [vmem:[%s207 + $0x150] sm:$0xff]
        %v1956 = vld [vmem:[%s207 + $0x158] sm:$0xff]
        %v1957 = vld [vmem:[%s207 + $0x160] sm:$0xff]
        %v1958 = vld [vmem:[%s207 + $0x168] sm:$0xff]
        %v1959 = vld [vmem:[%s207 + $0x170] sm:$0xff]
        %v1960 = vld [vmem:[%s207 + $0x178] sm:$0xff]
        %v1961 = vld [vmem:[%s207 + $0x180] sm:$0xff]
        %v1962 = vld [vmem:[%s207 + $0x188] sm:$0xff]
        %v1963 = vld [vmem:[%s207 + $0x190] sm:$0xff]
        %v1964 = vld [vmem:[%s207 + $0x198] sm:$0xff]
        %v1965 = vld [vmem:[%s207 + $0x1a0] sm:$0xff]
        %v1966 = vld [vmem:[%s207 + $0x1a8] sm:$0xff]
        %v1967 = vld [vmem:[%s207 + $0x1b0] sm:$0xff]
        %v1968 = vld [vmem:[%s207 + $0x1b8] sm:$0xff]
        %v1969 = vld [vmem:[%s207 + $0x1c0] sm:$0xff]
        %v1970 = vld [vmem:[%s207 + $0x1c8] sm:$0xff]
        %v1971 = vld [vmem:[%s207 + $0x1d0] sm:$0xff]
        %v1972 = vld [vmem:[%s207 + $0x1d8] sm:$0xff]
        %v1973 = vld [vmem:[%s207 + $0x1e0] sm:$0xff]
        %v1974 = vld [vmem:[%s207 + $0x1e8] sm:$0xff]
        %v1975 = vld [vmem:[%s207 + $0x1f0] sm:$0xff]
        %v1976 = vld [vmem:[%s207 + $0x1f8] sm:$0xff]
        %1977 = vmatprep.subr.mxu0 %v1974
        %1978 = vmatpush1.msra.mxu0 %v1973
        %1979 = vmatprep.subr.mxu0 %v1970
        %1980 = vmatpush1.msra.mxu0 %v1969
        %1981 = vmatprep.subr.mxu0 %v1966
        %1982 = vmatpush1.msra.mxu0 %v1965
        %1983 = vmatprep.subr.mxu0 %v1962
        %1984 = vmatpush1.msra.mxu0 %v1961
        %1985 = vmatprep.subr.mxu0 %v1958
        %1986 = vmatpush1.msra.mxu0 %v1957
        %1987 = vmatprep.subr.mxu0 %v1954
        %1988 = vmatpush1.msra.mxu0 %v1953
        %1989 = vmatprep.subr.mxu0 %v1950
        %1990 = vmatpush1.msra.mxu0 %v1949
        %1991 = vmatprep.subr.mxu0 %v1946
        %1992 = vmatpush1.msra.mxu0 %v1945
        %1993 = vmatprep.subr.mxu0 %v1942
        %1994 = vmatpush1.msra.mxu0 %v1941
        %1995 = vmatprep.subr.mxu0 %v1938
        %1996 = vmatpush1.msra.mxu0 %v1937
        %1997 = vmatprep.subr.mxu0 %v1934
        %1998 = vmatpush1.msra.mxu0 %v1933
        %1999 = vmatprep.subr.mxu0 %v1930
        %2000 = vmatpush1.msra.mxu0 %v1929
        %2001 = vmatprep.subr.mxu0 %v1926
        %2002 = vmatpush1.msra.mxu0 %v1925
        %2003 = vmatprep.subr.mxu0 %v1922
        %2004 = vmatpush1.msra.mxu0 %v1921
        %2005 = vmatprep.subr.mxu0 %v1918
        %2006 = vmatpush1.msra.mxu0 %v1917
        %2007 = vmatprep.subr.mxu0 %v1914
        %2008 = vmatpush1.msra.mxu0 %v1913
        %2009 = vmatprep.subr.mxu0 0.0
        %2010 = vmatpush2.msra.mxu0 0.0
        %2011 = vmatprep.subr.mxu0 0.0
        %2012 = vmatpush2.msra.mxu0 0.0
        %2013 = vmatprep.subr.mxu0 0.0
        %2014 = vmatpush2.msra.mxu0 0.0
        %2015 = vmatprep.subr.mxu0 0.0
        %2016 = vmatpush2.msra.mxu0 0.0
        %2017 = vmatprep.subr.mxu0 0.0
        %2018 = vmatpush2.msra.mxu0 0.0
        %2019 = vmatprep.subr.mxu0 0.0
        %2020 = vmatpush2.msra.mxu0 0.0
        %2021 = vmatprep.subr.mxu0 0.0
        %2022 = vmatpush2.msra.mxu0 0.0
        %2023 = vmatprep.subr.mxu0 0.0
        %2024 = vmatpush2.msra.mxu0 0.0
        %2025 = vmatprep.subr.mxu0 0.0
        %2026 = vmatpush2.msra.mxu0 0.0
        %2027 = vmatprep.subr.mxu0 0.0
        %2028 = vmatpush2.msra.mxu0 0.0
        %2029 = vmatprep.subr.mxu0 0.0
        %2030 = vmatpush2.msra.mxu0 0.0
        %2031 = vmatprep.subr.mxu0 0.0
        %2032 = vmatpush2.msra.mxu0 0.0
        %2033 = vmatprep.subr.mxu0 0.0
        %2034 = vmatpush2.msra.mxu0 0.0
        %2035 = vmatprep.subr.mxu0 0.0
        %2036 = vmatpush2.msra.mxu0 0.0
        %2037 = vmatprep.subr.mxu0 0.0
        %2038 = vmatpush2.msra.mxu0 0.0
        %2039 = vmatprep.subr.mxu0 0.0
        %2040 = vmatpush2.msra.mxu0 0.0
        %2041 = vmatprep.mubr.f32.mxu0 0.0
        %2042 = vmatmul.mubr.f32.gmra.mxu0 %v1901
        %v2043 = vpop.f32.mrf.mxu0
        %v2044 = vadd.f32 0.0, %v2043
        %v2045 = vpop.f32.mrf.mxu0
        %v2046 = vadd.f32 0.0, %v2045
        %2047 = vdwg.mxu0
        %2048 = vmatprep.subr.mxu0 %v1976
        %2049 = vmatpush1.msra.mxu0 %v1975
        %2050 = vmatprep.subr.mxu0 %v1972
        %2051 = vmatpush1.msra.mxu0 %v1971
        %2052 = vmatprep.subr.mxu0 %v1968
        %2053 = vmatpush1.msra.mxu0 %v1967
        %2054 = vmatprep.subr.mxu0 %v1964
        %2055 = vmatpush1.msra.mxu0 %v1963
        %2056 = vmatprep.subr.mxu0 %v1960
        %2057 = vmatpush1.msra.mxu0 %v1959
        %2058 = vmatprep.subr.mxu0 %v1956
        %2059 = vmatpush1.msra.mxu0 %v1955
        %2060 = vmatprep.subr.mxu0 %v1952
        %2061 = vmatpush1.msra.mxu0 %v1951
        %2062 = vmatprep.subr.mxu0 %v1948
        %2063 = vmatpush1.msra.mxu0 %v1947
        %2064 = vmatprep.subr.mxu0 %v1944
        %2065 = vmatpush1.msra.mxu0 %v1943
        %2066 = vmatprep.subr.mxu0 %v1940
        %2067 = vmatpush1.msra.mxu0 %v1939
        %2068 = vmatprep.subr.mxu0 %v1936
        %2069 = vmatpush1.msra.mxu0 %v1935
        %2070 = vmatprep.subr.mxu0 %v1932
        %2071 = vmatpush1.msra.mxu0 %v1931
        %2072 = vmatprep.subr.mxu0 %v1928
        %2073 = vmatpush1.msra.mxu0 %v1927
        %2074 = vmatprep.subr.mxu0 %v1924
        %2075 = vmatpush1.msra.mxu0 %v1923
        %2076 = vmatprep.subr.mxu0 %v1920
        %2077 = vmatpush1.msra.mxu0 %v1919
        %2078 = vmatprep.subr.mxu0 %v1916
        %2079 = vmatpush1.msra.mxu0 %v1915
        %2080 = vmatprep.subr.mxu0 0.0
        %2081 = vmatpush2.msra.mxu0 0.0
        %2082 = vmatprep.subr.mxu0 0.0
        %2083 = vmatpush2.msra.mxu0 0.0
        %2084 = vmatprep.subr.mxu0 0.0
        %2085 = vmatpush2.msra.mxu0 0.0
        %2086 = vmatprep.subr.mxu0 0.0
        %2087 = vmatpush2.msra.mxu0 0.0
        %2088 = vmatprep.subr.mxu0 0.0
        %2089 = vmatpush2.msra.mxu0 0.0
        %2090 = vmatprep.subr.mxu0 0.0
        %2091 = vmatpush2.msra.mxu0 0.0
        %2092 = vmatprep.subr.mxu0 0.0
        %2093 = vmatpush2.msra.mxu0 0.0
        %2094 = vmatprep.subr.mxu0 0.0
        %2095 = vmatpush2.msra.mxu0 0.0
        %2096 = vmatprep.subr.mxu0 0.0
        %2097 = vmatpush2.msra.mxu0 0.0
        %2098 = vmatprep.subr.mxu0 0.0
        %2099 = vmatpush2.msra.mxu0 0.0
        %2100 = vmatprep.subr.mxu0 0.0
        %2101 = vmatpush2.msra.mxu0 0.0
        %2102 = vmatprep.subr.mxu0 0.0
        %2103 = vmatpush2.msra.mxu0 0.0
        %2104 = vmatprep.subr.mxu0 0.0
        %2105 = vmatpush2.msra.mxu0 0.0
        %2106 = vmatprep.subr.mxu0 0.0
        %2107 = vmatpush2.msra.mxu0 0.0
        %2108 = vmatprep.subr.mxu0 0.0
        %2109 = vmatpush2.msra.mxu0 0.0
        %2110 = vmatprep.subr.mxu0 0.0
        %2111 = vmatpush2.msra.mxu0 0.0
        %2112 = vmatprep.mubr.f32.mxu0 0.0
        %2113 = vmatmul.mubr.f32.gmra.mxu0 %v1901
        %v2114 = vpop.f32.mrf.mxu0
        %v2115 = vadd.f32 0.0, %v2114
        %v2116 = vpop.f32.mrf.mxu0
        %v2117 = vadd.f32 0.0, %v2116
        %2118 = vdwg.mxu0
        %v2119 = vadd.f32 %v1909, %v2044
        %v2120 = vadd.f32 %v1910, %v2046
        %v2121 = vadd.f32 %v1911, %v2115
        %v2122 = vadd.f32 %v1912, %v2117
        %v2123 = vxor.u32 %v2119, 2147483648
        %v2124 = vmul.f32 %v2123, 1.442695
        %v2125 = vpow.pop %v2124
        %v2126 = vadd.f32 %v2125, 1.0
        %v2127 = vrcp.pop %v2126
        %v2128 = vmul.f32 1.0, %v2127
        %v2129 = vxor.u32 %v2120, 2147483648
        %v2130 = vmul.f32 %v2129, 1.442695
        %v2131 = vpow.pop %v2130
        %v2132 = vadd.f32 %v2131, 1.0
        %v2133 = vrcp.pop %v2132
        %v2134 = vmul.f32 1.0, %v2133
        %v2135 = vtanh.pop %v2121
        %v2136 = vxor.u32 %v2122, 2147483648
        %v2137 = vmul.f32 %v2136, 1.442695
        %v2138 = vpow.pop %v2137
        %v2139 = vadd.f32 %v2138, 1.0
        %v2140 = vrcp.pop %v2139
        %v2141 = vmul.f32 1.0, %v2140
        %v2142 = vmul.f32 %v2134, %v1899
        %v2143 = vmul.f32 %v2128, %v2135
        %v2144 = vadd.f32 %v2142, %v2143
        %v2145 = vtanh.pop %v2144
        %v2146 = vmul.f32 %v2141, %v2145
        %s2147 = smul.u32 %s1905, 8
        %s2148 = scalar_lea.vmem %s254, %s2147
        %2149 = vst [vmem:[%s2148] sm:$0xff] %v2146
        %s2150 = scalar_select %p679, 6, 1
        %s2151 = smul.u32 %s2150, 4
        %s2152 = smul.addr %s2151, 8
        %s2153 = scalar_lea.vmem [#allocation2], %s2152
        %v2154 = vld [vmem:[%s2153] sm:$0xff]
        %v2155 = vld [vmem:[%s2153 + $0x8] sm:$0xff]
        %v2156 = vld [vmem:[%s2153 + $0x10] sm:$0xff]
        %v2157 = vld [vmem:[%s2153 + $0x18] sm:$0xff]
        %v2158 = vld [vmem:[%s207] sm:$0xff]
        %v2159 = vld [vmem:[%s207 + $0x8] sm:$0xff]
        %v2160 = vld [vmem:[%s207 + $0x10] sm:$0xff]
        %v2161 = vld [vmem:[%s207 + $0x18] sm:$0xff]
        %v2162 = vld [vmem:[%s207 + $0x20] sm:$0xff]
        %v2163 = vld [vmem:[%s207 + $0x28] sm:$0xff]
        %v2164 = vld [vmem:[%s207 + $0x30] sm:$0xff]
        %v2165 = vld [vmem:[%s207 + $0x38] sm:$0xff]
        %v2166 = vld [vmem:[%s207 + $0x40] sm:$0xff]
        %v2167 = vld [vmem:[%s207 + $0x48] sm:$0xff]
        %v2168 = vld [vmem:[%s207 + $0x50] sm:$0xff]
        %v2169 = vld [vmem:[%s207 + $0x58] sm:$0xff]
        %v2170 = vld [vmem:[%s207 + $0x60] sm:$0xff]
        %v2171 = vld [vmem:[%s207 + $0x68] sm:$0xff]
        %v2172 = vld [vmem:[%s207 + $0x70] sm:$0xff]
        %v2173 = vld [vmem:[%s207 + $0x78] sm:$0xff]
        %v2174 = vld [vmem:[%s207 + $0x80] sm:$0xff]
        %v2175 = vld [vmem:[%s207 + $0x88] sm:$0xff]
        %v2176 = vld [vmem:[%s207 + $0x90] sm:$0xff]
        %v2177 = vld [vmem:[%s207 + $0x98] sm:$0xff]
        %v2178 = vld [vmem:[%s207 + $0xa0] sm:$0xff]
        %v2179 = vld [vmem:[%s207 + $0xa8] sm:$0xff]
        %v2180 = vld [vmem:[%s207 + $0xb0] sm:$0xff]
        %v2181 = vld [vmem:[%s207 + $0xb8] sm:$0xff]
        %v2182 = vld [vmem:[%s207 + $0xc0] sm:$0xff]
        %v2183 = vld [vmem:[%s207 + $0xc8] sm:$0xff]
        %v2184 = vld [vmem:[%s207 + $0xd0] sm:$0xff]
        %v2185 = vld [vmem:[%s207 + $0xd8] sm:$0xff]
        %v2186 = vld [vmem:[%s207 + $0xe0] sm:$0xff]
        %v2187 = vld [vmem:[%s207 + $0xe8] sm:$0xff]
        %v2188 = vld [vmem:[%s207 + $0xf0] sm:$0xff]
        %v2189 = vld [vmem:[%s207 + $0xf8] sm:$0xff]
        %v2190 = vld [vmem:[%s207 + $0x100] sm:$0xff]
        %v2191 = vld [vmem:[%s207 + $0x108] sm:$0xff]
        %v2192 = vld [vmem:[%s207 + $0x110] sm:$0xff]
        %v2193 = vld [vmem:[%s207 + $0x118] sm:$0xff]
        %v2194 = vld [vmem:[%s207 + $0x120] sm:$0xff]
        %v2195 = vld [vmem:[%s207 + $0x128] sm:$0xff]
        %v2196 = vld [vmem:[%s207 + $0x130] sm:$0xff]
        %v2197 = vld [vmem:[%s207 + $0x138] sm:$0xff]
        %v2198 = vld [vmem:[%s207 + $0x140] sm:$0xff]
        %v2199 = vld [vmem:[%s207 + $0x148] sm:$0xff]
        %v2200 = vld [vmem:[%s207 + $0x150] sm:$0xff]
        %v2201 = vld [vmem:[%s207 + $0x158] sm:$0xff]
        %v2202 = vld [vmem:[%s207 + $0x160] sm:$0xff]
        %v2203 = vld [vmem:[%s207 + $0x168] sm:$0xff]
        %v2204 = vld [vmem:[%s207 + $0x170] sm:$0xff]
        %v2205 = vld [vmem:[%s207 + $0x178] sm:$0xff]
        %v2206 = vld [vmem:[%s207 + $0x180] sm:$0xff]
        %v2207 = vld [vmem:[%s207 + $0x188] sm:$0xff]
        %v2208 = vld [vmem:[%s207 + $0x190] sm:$0xff]
        %v2209 = vld [vmem:[%s207 + $0x198] sm:$0xff]
        %v2210 = vld [vmem:[%s207 + $0x1a0] sm:$0xff]
        %v2211 = vld [vmem:[%s207 + $0x1a8] sm:$0xff]
        %v2212 = vld [vmem:[%s207 + $0x1b0] sm:$0xff]
        %v2213 = vld [vmem:[%s207 + $0x1b8] sm:$0xff]
        %v2214 = vld [vmem:[%s207 + $0x1c0] sm:$0xff]
        %v2215 = vld [vmem:[%s207 + $0x1c8] sm:$0xff]
        %v2216 = vld [vmem:[%s207 + $0x1d0] sm:$0xff]
        %v2217 = vld [vmem:[%s207 + $0x1d8] sm:$0xff]
        %v2218 = vld [vmem:[%s207 + $0x1e0] sm:$0xff]
        %v2219 = vld [vmem:[%s207 + $0x1e8] sm:$0xff]
        %v2220 = vld [vmem:[%s207 + $0x1f0] sm:$0xff]
        %v2221 = vld [vmem:[%s207 + $0x1f8] sm:$0xff]
        %2222 = vmatprep.subr.mxu0 %v2219
        %2223 = vmatpush1.msra.mxu0 %v2218
        %2224 = vmatprep.subr.mxu0 %v2215
        %2225 = vmatpush1.msra.mxu0 %v2214
        %2226 = vmatprep.subr.mxu0 %v2211
        %2227 = vmatpush1.msra.mxu0 %v2210
        %2228 = vmatprep.subr.mxu0 %v2207
        %2229 = vmatpush1.msra.mxu0 %v2206
        %2230 = vmatprep.subr.mxu0 %v2203
        %2231 = vmatpush1.msra.mxu0 %v2202
        %2232 = vmatprep.subr.mxu0 %v2199
        %2233 = vmatpush1.msra.mxu0 %v2198
        %2234 = vmatprep.subr.mxu0 %v2195
        %2235 = vmatpush1.msra.mxu0 %v2194
        %2236 = vmatprep.subr.mxu0 %v2191
        %2237 = vmatpush1.msra.mxu0 %v2190
        %2238 = vmatprep.subr.mxu0 %v2187
        %2239 = vmatpush1.msra.mxu0 %v2186
        %2240 = vmatprep.subr.mxu0 %v2183
        %2241 = vmatpush1.msra.mxu0 %v2182
        %2242 = vmatprep.subr.mxu0 %v2179
        %2243 = vmatpush1.msra.mxu0 %v2178
        %2244 = vmatprep.subr.mxu0 %v2175
        %2245 = vmatpush1.msra.mxu0 %v2174
        %2246 = vmatprep.subr.mxu0 %v2171
        %2247 = vmatpush1.msra.mxu0 %v2170
        %2248 = vmatprep.subr.mxu0 %v2167
        %2249 = vmatpush1.msra.mxu0 %v2166
        %2250 = vmatprep.subr.mxu0 %v2163
        %2251 = vmatpush1.msra.mxu0 %v2162
        %2252 = vmatprep.subr.mxu0 %v2159
        %2253 = vmatpush1.msra.mxu0 %v2158
        %2254 = vmatprep.subr.mxu0 0.0
        %2255 = vmatpush2.msra.mxu0 0.0
        %2256 = vmatprep.subr.mxu0 0.0
        %2257 = vmatpush2.msra.mxu0 0.0
        %2258 = vmatprep.subr.mxu0 0.0
        %2259 = vmatpush2.msra.mxu0 0.0
        %2260 = vmatprep.subr.mxu0 0.0
        %2261 = vmatpush2.msra.mxu0 0.0
        %2262 = vmatprep.subr.mxu0 0.0
        %2263 = vmatpush2.msra.mxu0 0.0
        %2264 = vmatprep.subr.mxu0 0.0
        %2265 = vmatpush2.msra.mxu0 0.0
        %2266 = vmatprep.subr.mxu0 0.0
        %2267 = vmatpush2.msra.mxu0 0.0
        %2268 = vmatprep.subr.mxu0 0.0
        %2269 = vmatpush2.msra.mxu0 0.0
        %2270 = vmatprep.subr.mxu0 0.0
        %2271 = vmatpush2.msra.mxu0 0.0
        %2272 = vmatprep.subr.mxu0 0.0
        %2273 = vmatpush2.msra.mxu0 0.0
        %2274 = vmatprep.subr.mxu0 0.0
        %2275 = vmatpush2.msra.mxu0 0.0
        %2276 = vmatprep.subr.mxu0 0.0
        %2277 = vmatpush2.msra.mxu0 0.0
        %2278 = vmatprep.subr.mxu0 0.0
        %2279 = vmatpush2.msra.mxu0 0.0
        %2280 = vmatprep.subr.mxu0 0.0
        %2281 = vmatpush2.msra.mxu0 0.0
        %2282 = vmatprep.subr.mxu0 0.0
        %2283 = vmatpush2.msra.mxu0 0.0
        %2284 = vmatprep.subr.mxu0 0.0
        %2285 = vmatpush2.msra.mxu0 0.0
        %2286 = vmatprep.mubr.f32.mxu0 0.0
        %2287 = vmatmul.mubr.f32.gmra.mxu0 %v2146
        %v2288 = vpop.f32.mrf.mxu0
        %v2289 = vadd.f32 0.0, %v2288
        %v2290 = vpop.f32.mrf.mxu0
        %v2291 = vadd.f32 0.0, %v2290
        %2292 = vdwg.mxu0
        %2293 = vmatprep.subr.mxu0 %v2221
        %2294 = vmatpush1.msra.mxu0 %v2220
        %2295 = vmatprep.subr.mxu0 %v2217
        %2296 = vmatpush1.msra.mxu0 %v2216
        %2297 = vmatprep.subr.mxu0 %v2213
        %2298 = vmatpush1.msra.mxu0 %v2212
        %2299 = vmatprep.subr.mxu0 %v2209
        %2300 = vmatpush1.msra.mxu0 %v2208
        %2301 = vmatprep.subr.mxu0 %v2205
        %2302 = vmatpush1.msra.mxu0 %v2204
        %2303 = vmatprep.subr.mxu0 %v2201
        %2304 = vmatpush1.msra.mxu0 %v2200
        %2305 = vmatprep.subr.mxu0 %v2197
        %2306 = vmatpush1.msra.mxu0 %v2196
        %2307 = vmatprep.subr.mxu0 %v2193
        %2308 = vmatpush1.msra.mxu0 %v2192
        %2309 = vmatprep.subr.mxu0 %v2189
        %2310 = vmatpush1.msra.mxu0 %v2188
        %2311 = vmatprep.subr.mxu0 %v2185
        %2312 = vmatpush1.msra.mxu0 %v2184
        %2313 = vmatprep.subr.mxu0 %v2181
        %2314 = vmatpush1.msra.mxu0 %v2180
        %2315 = vmatprep.subr.mxu0 %v2177
        %2316 = vmatpush1.msra.mxu0 %v2176
        %2317 = vmatprep.subr.mxu0 %v2173
        %2318 = vmatpush1.msra.mxu0 %v2172
        %2319 = vmatprep.subr.mxu0 %v2169
        %2320 = vmatpush1.msra.mxu0 %v2168
        %2321 = vmatprep.subr.mxu0 %v2165
        %2322 = vmatpush1.msra.mxu0 %v2164
        %2323 = vmatprep.subr.mxu0 %v2161
        %2324 = vmatpush1.msra.mxu0 %v2160
        %2325 = vmatprep.subr.mxu0 0.0
        %2326 = vmatpush2.msra.mxu0 0.0
        %2327 = vmatprep.subr.mxu0 0.0
        %2328 = vmatpush2.msra.mxu0 0.0
        %2329 = vmatprep.subr.mxu0 0.0
        %2330 = vmatpush2.msra.mxu0 0.0
        %2331 = vmatprep.subr.mxu0 0.0
        %2332 = vmatpush2.msra.mxu0 0.0
        %2333 = vmatprep.subr.mxu0 0.0
        %2334 = vmatpush2.msra.mxu0 0.0
        %2335 = vmatprep.subr.mxu0 0.0
        %2336 = vmatpush2.msra.mxu0 0.0
        %2337 = vmatprep.subr.mxu0 0.0
        %2338 = vmatpush2.msra.mxu0 0.0
        %2339 = vmatprep.subr.mxu0 0.0
        %2340 = vmatpush2.msra.mxu0 0.0
        %2341 = vmatprep.subr.mxu0 0.0
        %2342 = vmatpush2.msra.mxu0 0.0
        %2343 = vmatprep.subr.mxu0 0.0
        %2344 = vmatpush2.msra.mxu0 0.0
        %2345 = vmatprep.subr.mxu0 0.0
        %2346 = vmatpush2.msra.mxu0 0.0
        %2347 = vmatprep.subr.mxu0 0.0
        %2348 = vmatpush2.msra.mxu0 0.0
        %2349 = vmatprep.subr.mxu0 0.0
        %2350 = vmatpush2.msra.mxu0 0.0
        %2351 = vmatprep.subr.mxu0 0.0
        %2352 = vmatpush2.msra.mxu0 0.0
        %2353 = vmatprep.subr.mxu0 0.0
        %2354 = vmatpush2.msra.mxu0 0.0
        %2355 = vmatprep.subr.mxu0 0.0
        %2356 = vmatpush2.msra.mxu0 0.0
        %2357 = vmatprep.mubr.f32.mxu0 0.0
        %2358 = vmatmul.mubr.f32.gmra.mxu0 %v2146
        %v2359 = vpop.f32.mrf.mxu0
        %v2360 = vadd.f32 0.0, %v2359
        %v2361 = vpop.f32.mrf.mxu0
        %v2362 = vadd.f32 0.0, %v2361
        %2363 = vdwg.mxu0
        %v2364 = vadd.f32 %v2154, %v2289
        %v2365 = vadd.f32 %v2155, %v2291
        %v2366 = vadd.f32 %v2156, %v2360
        %v2367 = vadd.f32 %v2157, %v2362
        %v2368 = vxor.u32 %v2364, 2147483648
        %v2369 = vmul.f32 %v2368, 1.442695
        %v2370 = vpow.pop %v2369
        %v2371 = vadd.f32 %v2370, 1.0
        %v2372 = vrcp.pop %v2371
        %v2373 = vmul.f32 1.0, %v2372
        %v2374 = vxor.u32 %v2365, 2147483648
        %v2375 = vmul.f32 %v2374, 1.442695
        %v2376 = vpow.pop %v2375
        %v2377 = vadd.f32 %v2376, 1.0
        %v2378 = vrcp.pop %v2377
        %v2379 = vmul.f32 1.0, %v2378
        %v2380 = vtanh.pop %v2366
        %v2381 = vxor.u32 %v2367, 2147483648
        %v2382 = vmul.f32 %v2381, 1.442695
        %v2383 = vpow.pop %v2382
        %v2384 = vadd.f32 %v2383, 1.0
        %v2385 = vrcp.pop %v2384
        %v2386 = vmul.f32 1.0, %v2385
        %v2387 = vmul.f32 %v2379, %v2144
        %v2388 = vmul.f32 %v2373, %v2380
        %v2389 = vadd.f32 %v2387, %v2388
        %v2390 = vtanh.pop %v2389
        %v2391 = vmul.f32 %v2386, %v2390
        %s2392 = smul.u32 %s2150, 8
        %s2393 = scalar_lea.vmem %s254, %s2392
        %2394 = vst [vmem:[%s2393] sm:$0xff] %v2391
        %s2395 = scalar_select %p679, 7, 0
        %s2396 = smul.u32 %s2395, 4
        %s2397 = smul.addr %s2396, 8
        %s2398 = scalar_lea.vmem [#allocation2], %s2397
        %v2399 = vld [vmem:[%s2398] sm:$0xff]
        %v2400 = vld [vmem:[%s2398 + $0x8] sm:$0xff]
        %v2401 = vld [vmem:[%s2398 + $0x10] sm:$0xff]
        %v2402 = vld [vmem:[%s2398 + $0x18] sm:$0xff]
        %v2403 = vld [vmem:[%s207] sm:$0xff]
        %v2404 = vld [vmem:[%s207 + $0x8] sm:$0xff]
        %v2405 = vld [vmem:[%s207 + $0x10] sm:$0xff]
        %v2406 = vld [vmem:[%s207 + $0x18] sm:$0xff]
        %v2407 = vld [vmem:[%s207 + $0x20] sm:$0xff]
        %v2408 = vld [vmem:[%s207 + $0x28] sm:$0xff]
        %v2409 = vld [vmem:[%s207 + $0x30] sm:$0xff]
        %v2410 = vld [vmem:[%s207 + $0x38] sm:$0xff]
        %v2411 = vld [vmem:[%s207 + $0x40] sm:$0xff]
        %v2412 = vld [vmem:[%s207 + $0x48] sm:$0xff]
        %v2413 = vld [vmem:[%s207 + $0x50] sm:$0xff]
        %v2414 = vld [vmem:[%s207 + $0x58] sm:$0xff]
        %v2415 = vld [vmem:[%s207 + $0x60] sm:$0xff]
        %v2416 = vld [vmem:[%s207 + $0x68] sm:$0xff]
        %v2417 = vld [vmem:[%s207 + $0x70] sm:$0xff]
        %v2418 = vld [vmem:[%s207 + $0x78] sm:$0xff]
        %v2419 = vld [vmem:[%s207 + $0x80] sm:$0xff]
        %v2420 = vld [vmem:[%s207 + $0x88] sm:$0xff]
        %v2421 = vld [vmem:[%s207 + $0x90] sm:$0xff]
        %v2422 = vld [vmem:[%s207 + $0x98] sm:$0xff]
        %v2423 = vld [vmem:[%s207 + $0xa0] sm:$0xff]
        %v2424 = vld [vmem:[%s207 + $0xa8] sm:$0xff]
        %v2425 = vld [vmem:[%s207 + $0xb0] sm:$0xff]
        %v2426 = vld [vmem:[%s207 + $0xb8] sm:$0xff]
        %v2427 = vld [vmem:[%s207 + $0xc0] sm:$0xff]
        %v2428 = vld [vmem:[%s207 + $0xc8] sm:$0xff]
        %v2429 = vld [vmem:[%s207 + $0xd0] sm:$0xff]
        %v2430 = vld [vmem:[%s207 + $0xd8] sm:$0xff]
        %v2431 = vld [vmem:[%s207 + $0xe0] sm:$0xff]
        %v2432 = vld [vmem:[%s207 + $0xe8] sm:$0xff]
        %v2433 = vld [vmem:[%s207 + $0xf0] sm:$0xff]
        %v2434 = vld [vmem:[%s207 + $0xf8] sm:$0xff]
        %v2435 = vld [vmem:[%s207 + $0x100] sm:$0xff]
        %v2436 = vld [vmem:[%s207 + $0x108] sm:$0xff]
        %v2437 = vld [vmem:[%s207 + $0x110] sm:$0xff]
        %v2438 = vld [vmem:[%s207 + $0x118] sm:$0xff]
        %v2439 = vld [vmem:[%s207 + $0x120] sm:$0xff]
        %v2440 = vld [vmem:[%s207 + $0x128] sm:$0xff]
        %v2441 = vld [vmem:[%s207 + $0x130] sm:$0xff]
        %v2442 = vld [vmem:[%s207 + $0x138] sm:$0xff]
        %v2443 = vld [vmem:[%s207 + $0x140] sm:$0xff]
        %v2444 = vld [vmem:[%s207 + $0x148] sm:$0xff]
        %v2445 = vld [vmem:[%s207 + $0x150] sm:$0xff]
        %v2446 = vld [vmem:[%s207 + $0x158] sm:$0xff]
        %v2447 = vld [vmem:[%s207 + $0x160] sm:$0xff]
        %v2448 = vld [vmem:[%s207 + $0x168] sm:$0xff]
        %v2449 = vld [vmem:[%s207 + $0x170] sm:$0xff]
        %v2450 = vld [vmem:[%s207 + $0x178] sm:$0xff]
        %v2451 = vld [vmem:[%s207 + $0x180] sm:$0xff]
        %v2452 = vld [vmem:[%s207 + $0x188] sm:$0xff]
        %v2453 = vld [vmem:[%s207 + $0x190] sm:$0xff]
        %v2454 = vld [vmem:[%s207 + $0x198] sm:$0xff]
        %v2455 = vld [vmem:[%s207 + $0x1a0] sm:$0xff]
        %v2456 = vld [vmem:[%s207 + $0x1a8] sm:$0xff]
        %v2457 = vld [vmem:[%s207 + $0x1b0] sm:$0xff]
        %v2458 = vld [vmem:[%s207 + $0x1b8] sm:$0xff]
        %v2459 = vld [vmem:[%s207 + $0x1c0] sm:$0xff]
        %v2460 = vld [vmem:[%s207 + $0x1c8] sm:$0xff]
        %v2461 = vld [vmem:[%s207 + $0x1d0] sm:$0xff]
        %v2462 = vld [vmem:[%s207 + $0x1d8] sm:$0xff]
        %v2463 = vld [vmem:[%s207 + $0x1e0] sm:$0xff]
        %v2464 = vld [vmem:[%s207 + $0x1e8] sm:$0xff]
        %v2465 = vld [vmem:[%s207 + $0x1f0] sm:$0xff]
        %v2466 = vld [vmem:[%s207 + $0x1f8] sm:$0xff]
        %2467 = vmatprep.subr.mxu0 %v2464
        %2468 = vmatpush1.msra.mxu0 %v2463
        %2469 = vmatprep.subr.mxu0 %v2460
        %2470 = vmatpush1.msra.mxu0 %v2459
        %2471 = vmatprep.subr.mxu0 %v2456
        %2472 = vmatpush1.msra.mxu0 %v2455
        %2473 = vmatprep.subr.mxu0 %v2452
        %2474 = vmatpush1.msra.mxu0 %v2451
        %2475 = vmatprep.subr.mxu0 %v2448
        %2476 = vmatpush1.msra.mxu0 %v2447
        %2477 = vmatprep.subr.mxu0 %v2444
        %2478 = vmatpush1.msra.mxu0 %v2443
        %2479 = vmatprep.subr.mxu0 %v2440
        %2480 = vmatpush1.msra.mxu0 %v2439
        %2481 = vmatprep.subr.mxu0 %v2436
        %2482 = vmatpush1.msra.mxu0 %v2435
        %2483 = vmatprep.subr.mxu0 %v2432
        %2484 = vmatpush1.msra.mxu0 %v2431
        %2485 = vmatprep.subr.mxu0 %v2428
        %2486 = vmatpush1.msra.mxu0 %v2427
        %2487 = vmatprep.subr.mxu0 %v2424
        %2488 = vmatpush1.msra.mxu0 %v2423
        %2489 = vmatprep.subr.mxu0 %v2420
        %2490 = vmatpush1.msra.mxu0 %v2419
        %2491 = vmatprep.subr.mxu0 %v2416
        %2492 = vmatpush1.msra.mxu0 %v2415
        %2493 = vmatprep.subr.mxu0 %v2412
        %2494 = vmatpush1.msra.mxu0 %v2411
        %2495 = vmatprep.subr.mxu0 %v2408
        %2496 = vmatpush1.msra.mxu0 %v2407
        %2497 = vmatprep.subr.mxu0 %v2404
        %2498 = vmatpush1.msra.mxu0 %v2403
        %2499 = vmatprep.subr.mxu0 0.0
        %2500 = vmatpush2.msra.mxu0 0.0
        %2501 = vmatprep.subr.mxu0 0.0
        %2502 = vmatpush2.msra.mxu0 0.0
        %2503 = vmatprep.subr.mxu0 0.0
        %2504 = vmatpush2.msra.mxu0 0.0
        %2505 = vmatprep.subr.mxu0 0.0
        %2506 = vmatpush2.msra.mxu0 0.0
        %2507 = vmatprep.subr.mxu0 0.0
        %2508 = vmatpush2.msra.mxu0 0.0
        %2509 = vmatprep.subr.mxu0 0.0
        %2510 = vmatpush2.msra.mxu0 0.0
        %2511 = vmatprep.subr.mxu0 0.0
        %2512 = vmatpush2.msra.mxu0 0.0
        %2513 = vmatprep.subr.mxu0 0.0
        %2514 = vmatpush2.msra.mxu0 0.0
        %2515 = vmatprep.subr.mxu0 0.0
        %2516 = vmatpush2.msra.mxu0 0.0
        %2517 = vmatprep.subr.mxu0 0.0
        %2518 = vmatpush2.msra.mxu0 0.0
        %2519 = vmatprep.subr.mxu0 0.0
        %2520 = vmatpush2.msra.mxu0 0.0
        %2521 = vmatprep.subr.mxu0 0.0
        %2522 = vmatpush2.msra.mxu0 0.0
        %2523 = vmatprep.subr.mxu0 0.0
        %2524 = vmatpush2.msra.mxu0 0.0
        %2525 = vmatprep.subr.mxu0 0.0
        %2526 = vmatpush2.msra.mxu0 0.0
        %2527 = vmatprep.subr.mxu0 0.0
        %2528 = vmatpush2.msra.mxu0 0.0
        %2529 = vmatprep.subr.mxu0 0.0
        %2530 = vmatpush2.msra.mxu0 0.0
        %2531 = vmatprep.mubr.f32.mxu0 0.0
        %2532 = vmatmul.mubr.f32.gmra.mxu0 %v2391
        %v2533 = vpop.f32.mrf.mxu0
        %v2534 = vadd.f32 0.0, %v2533
        %v2535 = vpop.f32.mrf.mxu0
        %v2536 = vadd.f32 0.0, %v2535
        %2537 = vdwg.mxu0
        %2538 = vmatprep.subr.mxu0 %v2466
        %2539 = vmatpush1.msra.mxu0 %v2465
        %2540 = vmatprep.subr.mxu0 %v2462
        %2541 = vmatpush1.msra.mxu0 %v2461
        %2542 = vmatprep.subr.mxu0 %v2458
        %2543 = vmatpush1.msra.mxu0 %v2457
        %2544 = vmatprep.subr.mxu0 %v2454
        %2545 = vmatpush1.msra.mxu0 %v2453
        %2546 = vmatprep.subr.mxu0 %v2450
        %2547 = vmatpush1.msra.mxu0 %v2449
        %2548 = vmatprep.subr.mxu0 %v2446
        %2549 = vmatpush1.msra.mxu0 %v2445
        %2550 = vmatprep.subr.mxu0 %v2442
        %2551 = vmatpush1.msra.mxu0 %v2441
        %2552 = vmatprep.subr.mxu0 %v2438
        %2553 = vmatpush1.msra.mxu0 %v2437
        %2554 = vmatprep.subr.mxu0 %v2434
        %2555 = vmatpush1.msra.mxu0 %v2433
        %2556 = vmatprep.subr.mxu0 %v2430
        %2557 = vmatpush1.msra.mxu0 %v2429
        %2558 = vmatprep.subr.mxu0 %v2426
        %2559 = vmatpush1.msra.mxu0 %v2425
        %2560 = vmatprep.subr.mxu0 %v2422
        %2561 = vmatpush1.msra.mxu0 %v2421
        %2562 = vmatprep.subr.mxu0 %v2418
        %2563 = vmatpush1.msra.mxu0 %v2417
        %2564 = vmatprep.subr.mxu0 %v2414
        %2565 = vmatpush1.msra.mxu0 %v2413
        %2566 = vmatprep.subr.mxu0 %v2410
        %2567 = vmatpush1.msra.mxu0 %v2409
        %2568 = vmatprep.subr.mxu0 %v2406
        %2569 = vmatpush1.msra.mxu0 %v2405
        %2570 = vmatprep.subr.mxu0 0.0
        %2571 = vmatpush2.msra.mxu0 0.0
        %2572 = vmatprep.subr.mxu0 0.0
        %2573 = vmatpush2.msra.mxu0 0.0
        %2574 = vmatprep.subr.mxu0 0.0
        %2575 = vmatpush2.msra.mxu0 0.0
        %2576 = vmatprep.subr.mxu0 0.0
        %2577 = vmatpush2.msra.mxu0 0.0
        %2578 = vmatprep.subr.mxu0 0.0
        %2579 = vmatpush2.msra.mxu0 0.0
        %2580 = vmatprep.subr.mxu0 0.0
        %2581 = vmatpush2.msra.mxu0 0.0
        %2582 = vmatprep.subr.mxu0 0.0
        %2583 = vmatpush2.msra.mxu0 0.0
        %2584 = vmatprep.subr.mxu0 0.0
        %2585 = vmatpush2.msra.mxu0 0.0
        %2586 = vmatprep.subr.mxu0 0.0
        %2587 = vmatpush2.msra.mxu0 0.0
        %2588 = vmatprep.subr.mxu0 0.0
        %2589 = vmatpush2.msra.mxu0 0.0
        %2590 = vmatprep.subr.mxu0 0.0
        %2591 = vmatpush2.msra.mxu0 0.0
        %2592 = vmatprep.subr.mxu0 0.0
        %2593 = vmatpush2.msra.mxu0 0.0
        %2594 = vmatprep.subr.mxu0 0.0
        %2595 = vmatpush2.msra.mxu0 0.0
        %2596 = vmatprep.subr.mxu0 0.0
        %2597 = vmatpush2.msra.mxu0 0.0
        %2598 = vmatprep.subr.mxu0 0.0
        %2599 = vmatpush2.msra.mxu0 0.0
        %2600 = vmatprep.subr.mxu0 0.0
        %2601 = vmatpush2.msra.mxu0 0.0
        %2602 = vmatprep.mubr.f32.mxu0 0.0
        %2603 = vmatmul.mubr.f32.gmra.mxu0 %v2391
        %v2604 = vpop.f32.mrf.mxu0
        %v2605 = vadd.f32 0.0, %v2604
        %v2606 = vpop.f32.mrf.mxu0
        %v2607 = vadd.f32 0.0, %v2606
        %2608 = vdwg.mxu0
        %v2609 = vadd.f32 %v2399, %v2534
        %v2610 = vadd.f32 %v2400, %v2536
        %v2611 = vadd.f32 %v2401, %v2605
        %v2612 = vadd.f32 %v2402, %v2607
        %v2613 = vxor.u32 %v2609, 2147483648
        %v2614 = vmul.f32 %v2613, 1.442695
        %v2615 = vpow.pop %v2614
        %v2616 = vadd.f32 %v2615, 1.0
        %v2617 = vrcp.pop %v2616
        %v2618 = vmul.f32 1.0, %v2617
        %v2619 = vxor.u32 %v2610, 2147483648
        %v2620 = vmul.f32 %v2619, 1.442695
        %v2621 = vpow.pop %v2620
        %v2622 = vadd.f32 %v2621, 1.0
        %v2623 = vrcp.pop %v2622
        %v2624 = vmul.f32 1.0, %v2623
        %v2625 = vtanh.pop %v2611
        %v2626 = vxor.u32 %v2612, 2147483648
        %v2627 = vmul.f32 %v2626, 1.442695
        %v2628 = vpow.pop %v2627
        %v2629 = vadd.f32 %v2628, 1.0
        %v2630 = vrcp.pop %v2629
        %v2631 = vmul.f32 1.0, %v2630
        %v2632 = vmul.f32 %v2624, %v2389
        %v2633 = vmul.f32 %v2618, %v2625
        %v2634 = vadd.f32 %v2632, %v2633
        %v2635 = vtanh.pop %v2634
        %v2636 = vmul.f32 %v2631, %v2635
        %s2637 = smul.u32 %s2395, 8
        %s2638 = scalar_lea.vmem %s254, %s2637
        %2639 = vst [vmem:[%s2638] sm:$0xff] %v2636
        %p2640 = scmp.lt.s32.totalorder %s18, 1
        %s2641 = scalar_select %p2640, %s18, 1
        %s2642 = smul.addr %s2641, 8
        %s2643 = smul.addr %s2642, 8
        %s2644 = scalar_lea.vmem %s4, %s2643
        // Predicated region
        $region41: #{blstm_forward.4} parent=35 // pred_check
          %p2645 = pneg %p135
        $region42: #{blstm_forward.4} parent=35 // pred_check_branch
          %2647 = sbr.rel (%p2645) target = $region44
        $region43: #{blstm_forward.4} parent=35 // pred_region
          _
        $region44: #{blstm_forward.4} parent=35 // pred_fallthru
          _
      $region36: #{blstm_forward.4} parent=5 // pred_fallthru
        _
      %p2648 = scmp.le.s32.totalorder 2, %s13
      // Predicated region
      $region45: #{blstm_forward.4} parent=5 // pred_check
        %p2649 = pneg %p2648
      $region46: #{blstm_forward.4} parent=5 // pred_check_branch
        %2651 = sbr.rel (%p2649) target = $region48
      $region47: #{blstm_forward.4} parent=5 // pred_region
        %s2652 = ssub.s32 %s13, 2
        // Predicated region
        $region49: #{blstm_forward.4} parent=47 // pred_check
          %p2653 = pneg %p141
        $region50: #{blstm_forward.4} parent=47 // pred_check_branch
          %2655 = sbr.rel (%p2653) target = $region52
        $region51: #{blstm_forward.4} parent=47 // pred_region
          %p2656 = scmp.lt.s32.totalorder %s19, 1
          %s2657 = scalar_select %p2656, %s19, 1
          %s2658 = smul.addr %s2657, 8
          %s2659 = smul.addr %s2658, 8
          %s2660 = scalar_lea.vmem %s4, %s2659
        $region52: #{blstm_forward.4} parent=47 // pred_fallthru
          _
      $region48: #{blstm_forward.4} parent=5 // pred_fallthru
        _
    $region6: #{blstm_forward.4} parent=1 // loop_footer
      %s17 = sadd.s32 1, %s13
    $region7: #{blstm_forward.4} parent=1 // loop_footer_branch
      %12 = sbr.rel target = $region3
    $region8: #{blstm_forward.4} parent=1 // loop_exit
      _
    %2661 = vsyncpa [#allocation4], 1
    %s2662 = scalar_lea.sflag [#allocation4], 1
    %2663 = vsyncpa %s2662, 1

</llo_original>
